<compile_context>
chip_gen: v6e
topology: v6e:2x2x1
jax: 0.10.0
libtpu: 0.0.40
codegen_flags: <defaults>
</compile_context>

<pallas_src>
import jax
import jax.numpy as jnp
from jax.experimental import pallas as pl
from jax.experimental.pallas import tpu as pltpu

LATENT = 32
DIMS = [784, 512, 256, 128, LATENT, 128, 256, 512, 784]  # 8 linear layers
IN_DIM = 784


def _bayesian_ae_kernel(x_ref, *refs):
    # refs = (w1..w8, b1..b8, x_rec_ref, z_ref)
    ws = refs[0:8]
    bs = refs[8:16]
    x_rec_ref, z_ref = refs[16], refs[17]

    tb = x_ref.shape[0]
    half = tb // 2

    def linear(h, w_ref, b_ref):
        # bf16 x bf16 on the MXU with f32 accumulation; bias-add in f32.
        return jnp.dot(h, w_ref[...], preferred_element_type=jnp.float32) + b_ref[...]

    # Two independent row sub-blocks: the scheduler can co-issue one sub-block's
    # MXU matmul with the other's tanh/bias/cast epilogue (EUP/VPU slots).
    hs = [
        x_ref[pl.ds(0, half), :].astype(jnp.bfloat16),
        x_ref[pl.ds(half, half), :].astype(jnp.bfloat16),
    ]

    # Encoder e1..e3: tanh in f32, cast back to bf16 for the next MXU matmul.
    for i in range(3):
        hs = [jnp.tanh(linear(h, ws[i], bs[i])).astype(jnp.bfloat16) for h in hs]

    # e4 -> z (stored without activation), f32.
    zs = [linear(h, ws[3], bs[3]) for h in hs]
    z_ref[pl.ds(0, half), :] = zs[0]
    z_ref[pl.ds(half, half), :] = zs[1]

    # Decoder: tanh(z), then tanh after d1..d3; d4 is linear.
    hs = [jnp.tanh(z).astype(jnp.bfloat16) for z in zs]
    for i in range(4, 7):
        hs = [jnp.tanh(linear(h, ws[i], bs[i])).astype(jnp.bfloat16) for h in hs]

    # Final layer, stored in bf16 (halves the dominant HBM writeback).
    x_rec_ref[pl.ds(0, half), :] = linear(hs[0], ws[7], bs[7]).astype(jnp.bfloat16)
    x_rec_ref[pl.ds(half, half), :] = linear(hs[1], ws[7], bs[7]).astype(jnp.bfloat16)


@jax.jit
def bayesian_ae_forward(x, weights_bf16, biases_f32):
    """x: (B, 784) f32; weights_bf16[i]: (in_i, out_i) bf16; biases_f32[i]: (1, out_i) f32."""
    B = x.shape[0]
    # TB=256 fills the v6e/v7x MXU M dimension; fall back to 128 so there are
    # always >= 2 grid steps for two-TensorCore (v7x) batch parallelism.
    TB = 256 if B >= 2 * 256 else 128
    b_pad = ((B + TB - 1) // TB) * TB
    xp = x if b_pad == B else jnp.pad(x, ((0, b_pad - B), (0, 0)))

    grid = (b_pad // TB,)
    const_map = lambda i: (0, 0)
    batch_map = lambda i: (i, 0)

    in_specs = [pl.BlockSpec((TB, IN_DIM), batch_map)]
    # Constant index_map -> weights/biases DMA'd once, VMEM-resident for all tiles.
    in_specs += [pl.BlockSpec(w.shape, const_map) for w in weights_bf16]
    in_specs += [pl.BlockSpec(b.shape, const_map) for b in biases_f32]
    out_specs = (
        pl.BlockSpec((TB, IN_DIM), batch_map),   # x_rec (bf16)
        pl.BlockSpec((TB, LATENT), batch_map),   # z (f32)
    )

    flops = 2 * b_pad * sum(DIMS[i] * DIMS[i + 1] for i in range(8))
    transcendentals = b_pad * (512 + 256 + 128 + LATENT + 128 + 256 + 512)
    bytes_accessed = (
        xp.size * 4
        + sum(w.size * 2 for w in weights_bf16)
        + sum(b.size * 4 for b in biases_f32)
        + b_pad * IN_DIM * 2     # x_rec (bf16)
        + b_pad * LATENT * 4     # z (f32)
    )

    x_rec_pad, z_pad = pl.pallas_call(
        _bayesian_ae_kernel,
        grid=grid,
        out_shape=(
            jax.ShapeDtypeStruct((b_pad, IN_DIM), jnp.bfloat16),  # x_rec
            jax.ShapeDtypeStruct((b_pad, LATENT), jnp.float32),   # z
        ),
        in_specs=in_specs,
        out_specs=out_specs,
        compiler_params=pltpu.CompilerParams(
            dimension_semantics=("parallel",),
            vmem_limit_bytes=32 * 1024 * 1024,  # headroom for TB=256 on v5e; < v7x physical
        ),
        cost_estimate=pl.CostEstimate(
            flops=flops,
            transcendentals=transcendentals,
            bytes_accessed=bytes_accessed,
        ),
    )(xp, *weights_bf16, *biases_f32)

    if b_pad != B:
        return x_rec_pad[:B], z_pad[:B]
    return x_rec_pad, z_pad


def init_params(key):
    """Deterministic init matching torch .uniform_(-0.2, 0.2) for the mu params.

    Weights returned as (in, out) = weight_mu.T (f32); biases as (1, out) f32.
    """
    weights, biases = [], []
    for i in range(8):
        d_in, d_out = DIMS[i], DIMS[i + 1]
        key, kw, kb = jax.random.split(key, 3)
        w_mu = jax.random.uniform(kw, (d_out, d_in), jnp.float32, -0.2, 0.2)
        b_mu = jax.random.uniform(kb, (d_out,), jnp.float32, -0.2, 0.2)
        weights.append(jnp.asarray(w_mu.T))       # (in, out)
        biases.append(b_mu.reshape(1, d_out))     # (1, out) for lane broadcast
    return weights, biases


def pack_params(weights_f32, biases_f32):
    """One-time prep: cast weights to bf16 (halves HBM weight traffic); biases stay f32."""
    return ([w.astype(jnp.bfloat16) for w in weights_f32],
            [b.astype(jnp.float32) for b in biases_f32])


def reference_forward_bf16(x, weights_f32, biases_f32):
    """Pure-JAX reference with the same bf16-weight / bf16-activation, f32-accumulate math."""
    def lin(h, w, b):
        return jnp.dot(
            h.astype(jnp.bfloat16), w.astype(jnp.bfloat16),
            preferred_element_type=jnp.float32,
        ) + b

    h = x
    for i in range(3):
        h = jnp.tanh(lin(h, weights_f32[i], biases_f32[i]))
    z = lin(h, weights_f32[3], biases_f32[3])
    h = jnp.tanh(z)
    for i in range(4, 7):
        h = jnp.tanh(lin(h, weights_f32[i], biases_f32[i]))
    x_rec = lin(h, weights_f32[7], biases_f32[7])
    return x_rec, z


if __name__ == "__main__":
    key = jax.random.PRNGKey(0)
    key, kx = jax.random.split(key)
    B = 512  # two batch tiles of TB=256 -> exercises the parallel batch grid
    x = jax.random.uniform(kx, (B, IN_DIM), jnp.float32)  # FashionMNIST-like flat input

    weights_f32, biases_f32 = init_params(key)
    packed_w, packed_b = pack_params(weights_f32, biases_f32)

    x_rec, z = bayesian_ae_forward(x, packed_w, packed_b)
    jax.block_until_ready((x_rec, z))

    # Compare against a pure-JAX reference using the same bf16 math
    # (bf16-weight quantization vs. the full-f32 torch module is expected and intended).
    x_rec_ref, z_ref = reference_forward_bf16(x, weights_f32, biases_f32)

    assert x_rec.shape == (B, IN_DIM) and x_rec.dtype == jnp.bfloat16
    assert z.shape == (B, LATENT) and z.dtype == jnp.float32
    # x_rec is emitted in bf16 -> tolerance covers bf16 output rounding.
    assert jnp.allclose(x_rec.astype(jnp.float32), x_rec_ref, atol=2e-2, rtol=2e-2)
    assert jnp.allclose(z, z_ref, atol=5e-3, rtol=5e-3)

    print("KERNEL_OK")
</pallas_src>

<mosaic_0001>
module attributes {stable_mosaic.version = 11 : i64} {
  func.func @_bayesian_ae_kernel(%arg0: i32, %arg1: memref<256x784xf32, #tpu.memory_space<vmem>>, %arg2: memref<784x512xbf16, #tpu.memory_space<vmem>>, %arg3: memref<512x256xbf16, #tpu.memory_space<vmem>>, %arg4: memref<256x128xbf16, #tpu.memory_space<vmem>>, %arg5: memref<128x32xbf16, #tpu.memory_space<vmem>>, %arg6: memref<32x128xbf16, #tpu.memory_space<vmem>>, %arg7: memref<128x256xbf16, #tpu.memory_space<vmem>>, %arg8: memref<256x512xbf16, #tpu.memory_space<vmem>>, %arg9: memref<512x784xbf16, #tpu.memory_space<vmem>>, %arg10: memref<1x512xf32, #tpu.memory_space<vmem>>, %arg11: memref<1x256xf32, #tpu.memory_space<vmem>>, %arg12: memref<1x128xf32, #tpu.memory_space<vmem>>, %arg13: memref<1x32xf32, #tpu.memory_space<vmem>>, %arg14: memref<1x128xf32, #tpu.memory_space<vmem>>, %arg15: memref<1x256xf32, #tpu.memory_space<vmem>>, %arg16: memref<1x512xf32, #tpu.memory_space<vmem>>, %arg17: memref<1x784xf32, #tpu.memory_space<vmem>>, %arg18: memref<256x784xbf16, #tpu.memory_space<vmem>>, %arg19: memref<256x32xf32, #tpu.memory_space<vmem>>) attributes {dimension_semantics = [#tpu.dimension_semantics<parallel>], iteration_bounds = array<i64: 2>, scalar_prefetch = 0 : i64, scratch_operands = 0 : i64, tpu.core_type = #tpu.core_type<tc>, window_params = [{transform_indices = @transform_0, window_bounds = array<i64: 256, 784>}, {pipeline_mode = #tpu.pipeline_mode<synchronous>, transform_indices = @transform_1, window_bounds = array<i64: 784, 512>}, {pipeline_mode = #tpu.pipeline_mode<synchronous>, transform_indices = @transform_2, window_bounds = array<i64: 512, 256>}, {pipeline_mode = #tpu.pipeline_mode<synchronous>, transform_indices = @transform_3, window_bounds = array<i64: 256, 128>}, {pipeline_mode = #tpu.pipeline_mode<synchronous>, transform_indices = @transform_4, window_bounds = array<i64: 128, 32>}, {pipeline_mode = #tpu.pipeline_mode<synchronous>, transform_indices = @transform_5, window_bounds = array<i64: 32, 128>}, {pipeline_mode = #tpu.pipeline_mode<synchronous>, transform_indices = @transform_6, window_bounds = array<i64: 128, 256>}, {pipeline_mode = #tpu.pipeline_mode<synchronous>, transform_indices = @transform_7, window_bounds = array<i64: 256, 512>}, {pipeline_mode = #tpu.pipeline_mode<synchronous>, transform_indices = @transform_8, window_bounds = array<i64: 512, 784>}, {pipeline_mode = #tpu.pipeline_mode<synchronous>, transform_indices = @transform_9, window_bounds = array<i64: 1, 512>}, {pipeline_mode = #tpu.pipeline_mode<synchronous>, transform_indices = @transform_10, window_bounds = array<i64: 1, 256>}, {pipeline_mode = #tpu.pipeline_mode<synchronous>, transform_indices = @transform_11, window_bounds = array<i64: 1, 128>}, {pipeline_mode = #tpu.pipeline_mode<synchronous>, transform_indices = @transform_12, window_bounds = array<i64: 1, 32>}, {pipeline_mode = #tpu.pipeline_mode<synchronous>, transform_indices = @transform_13, window_bounds = array<i64: 1, 128>}, {pipeline_mode = #tpu.pipeline_mode<synchronous>, transform_indices = @transform_14, window_bounds = array<i64: 1, 256>}, {pipeline_mode = #tpu.pipeline_mode<synchronous>, transform_indices = @transform_15, window_bounds = array<i64: 1, 512>}, {pipeline_mode = #tpu.pipeline_mode<synchronous>, transform_indices = @transform_16, window_bounds = array<i64: 1, 784>}, {transform_indices = @transform_17, window_bounds = array<i64: 256, 784>}, {transform_indices = @transform_18, window_bounds = array<i64: 256, 32>}]} {
    %c0 = arith.constant 0 : index
    %c0_0 = arith.constant 0 : index
    %0 = vector.load %arg1[%c0, %c0_0] : memref<256x784xf32, #tpu.memory_space<vmem>>, vector<128x784xf32>
    %1 = arith.truncf %0 : vector<128x784xf32> to vector<128x784xbf16>
    %c128 = arith.constant 128 : index
    %c0_1 = arith.constant 0 : index
    %2 = vector.load %arg1[%c128, %c0_1] : memref<256x784xf32, #tpu.memory_space<vmem>>, vector<128x784xf32>
    %3 = arith.truncf %2 : vector<128x784xf32> to vector<128x784xbf16>
    %c0_2 = arith.constant 0 : index
    %c0_3 = arith.constant 0 : index
    %4 = vector.load %arg2[%c0_2, %c0_3] : memref<784x512xbf16, #tpu.memory_space<vmem>>, vector<784x512xbf16>
    %cst = arith.constant dense<0.000000e+00> : vector<128x512xf32>
    %5 = tpu.matmul %1, %4, %cst {dimension_numbers = #tpu.dot_dimension_numbers<[1], [0], [0], [1], [0, 0, 1, 1], [], []>} : vector<128x784xbf16>, vector<784x512xbf16>, vector<128x512xf32> -> vector<128x512xf32>
    %c0_4 = arith.constant 0 : index
    %c0_5 = arith.constant 0 : index
    %6 = vector.load %arg10[%c0_4, %c0_5] : memref<1x512xf32, #tpu.memory_space<vmem>>, vector<1x512xf32>
    %7 = vector.broadcast %6 : vector<1x512xf32> to vector<128x512xf32>
    %8 = arith.addf %5, %7 : vector<128x512xf32>
    %9 = math.tanh %8 : vector<128x512xf32>
    %10 = arith.truncf %9 : vector<128x512xf32> to vector<128x512xbf16>
    %c0_6 = arith.constant 0 : index
    %c0_7 = arith.constant 0 : index
    %11 = vector.load %arg2[%c0_6, %c0_7] : memref<784x512xbf16, #tpu.memory_space<vmem>>, vector<784x512xbf16>
    %cst_8 = arith.constant dense<0.000000e+00> : vector<128x512xf32>
    %12 = tpu.matmul %3, %11, %cst_8 {dimension_numbers = #tpu.dot_dimension_numbers<[1], [0], [0], [1], [0, 0, 1, 1], [], []>} : vector<128x784xbf16>, vector<784x512xbf16>, vector<128x512xf32> -> vector<128x512xf32>
    %c0_9 = arith.constant 0 : index
    %c0_10 = arith.constant 0 : index
    %13 = vector.load %arg10[%c0_9, %c0_10] : memref<1x512xf32, #tpu.memory_space<vmem>>, vector<1x512xf32>
    %14 = vector.broadcast %13 : vector<1x512xf32> to vector<128x512xf32>
    %15 = arith.addf %12, %14 : vector<128x512xf32>
    %16 = math.tanh %15 : vector<128x512xf32>
    %17 = arith.truncf %16 : vector<128x512xf32> to vector<128x512xbf16>
    %c0_11 = arith.constant 0 : index
    %c0_12 = arith.constant 0 : index
    %18 = vector.load %arg3[%c0_11, %c0_12] : memref<512x256xbf16, #tpu.memory_space<vmem>>, vector<512x256xbf16>
    %cst_13 = arith.constant dense<0.000000e+00> : vector<128x256xf32>
    %19 = tpu.matmul %10, %18, %cst_13 {dimension_numbers = #tpu.dot_dimension_numbers<[1], [0], [0], [1], [0, 0, 1, 1], [], []>} : vector<128x512xbf16>, vector<512x256xbf16>, vector<128x256xf32> -> vector<128x256xf32>
    %c0_14 = arith.constant 0 : index
    %c0_15 = arith.constant 0 : index
    %20 = vector.load %arg11[%c0_14, %c0_15] : memref<1x256xf32, #tpu.memory_space<vmem>>, vector<1x256xf32>
    %21 = vector.broadcast %20 : vector<1x256xf32> to vector<128x256xf32>
    %22 = arith.addf %19, %21 : vector<128x256xf32>
    %23 = math.tanh %22 : vector<128x256xf32>
    %24 = arith.truncf %23 : vector<128x256xf32> to vector<128x256xbf16>
    %c0_16 = arith.constant 0 : index
    %c0_17 = arith.constant 0 : index
    %25 = vector.load %arg3[%c0_16, %c0_17] : memref<512x256xbf16, #tpu.memory_space<vmem>>, vector<512x256xbf16>
    %cst_18 = arith.constant dense<0.000000e+00> : vector<128x256xf32>
    %26 = tpu.matmul %17, %25, %cst_18 {dimension_numbers = #tpu.dot_dimension_numbers<[1], [0], [0], [1], [0, 0, 1, 1], [], []>} : vector<128x512xbf16>, vector<512x256xbf16>, vector<128x256xf32> -> vector<128x256xf32>
    %c0_19 = arith.constant 0 : index
    %c0_20 = arith.constant 0 : index
    %27 = vector.load %arg11[%c0_19, %c0_20] : memref<1x256xf32, #tpu.memory_space<vmem>>, vector<1x256xf32>
    %28 = vector.broadcast %27 : vector<1x256xf32> to vector<128x256xf32>
    %29 = arith.addf %26, %28 : vector<128x256xf32>
    %30 = math.tanh %29 : vector<128x256xf32>
    %31 = arith.truncf %30 : vector<128x256xf32> to vector<128x256xbf16>
    %c0_21 = arith.constant 0 : index
    %c0_22 = arith.constant 0 : index
    %32 = vector.load %arg4[%c0_21, %c0_22] : memref<256x128xbf16, #tpu.memory_space<vmem>>, vector<256x128xbf16>
    %cst_23 = arith.constant dense<0.000000e+00> : vector<128x128xf32>
    %33 = tpu.matmul %24, %32, %cst_23 {dimension_numbers = #tpu.dot_dimension_numbers<[1], [0], [0], [1], [0, 0, 1, 1], [], []>} : vector<128x256xbf16>, vector<256x128xbf16>, vector<128x128xf32> -> vector<128x128xf32>
    %c0_24 = arith.constant 0 : index
    %c0_25 = arith.constant 0 : index
    %34 = vector.load %arg12[%c0_24, %c0_25] : memref<1x128xf32, #tpu.memory_space<vmem>>, vector<1x128xf32>
    %35 = vector.broadcast %34 : vector<1x128xf32> to vector<128x128xf32>
    %36 = arith.addf %33, %35 : vector<128x128xf32>
    %37 = math.tanh %36 : vector<128x128xf32>
    %38 = arith.truncf %37 : vector<128x128xf32> to vector<128x128xbf16>
    %c0_26 = arith.constant 0 : index
    %c0_27 = arith.constant 0 : index
    %39 = vector.load %arg4[%c0_26, %c0_27] : memref<256x128xbf16, #tpu.memory_space<vmem>>, vector<256x128xbf16>
    %cst_28 = arith.constant dense<0.000000e+00> : vector<128x128xf32>
    %40 = tpu.matmul %31, %39, %cst_28 {dimension_numbers = #tpu.dot_dimension_numbers<[1], [0], [0], [1], [0, 0, 1, 1], [], []>} : vector<128x256xbf16>, vector<256x128xbf16>, vector<128x128xf32> -> vector<128x128xf32>
    %c0_29 = arith.constant 0 : index
    %c0_30 = arith.constant 0 : index
    %41 = vector.load %arg12[%c0_29, %c0_30] : memref<1x128xf32, #tpu.memory_space<vmem>>, vector<1x128xf32>
    %42 = vector.broadcast %41 : vector<1x128xf32> to vector<128x128xf32>
    %43 = arith.addf %40, %42 : vector<128x128xf32>
    %44 = math.tanh %43 : vector<128x128xf32>
    %45 = arith.truncf %44 : vector<128x128xf32> to vector<128x128xbf16>
    %c0_31 = arith.constant 0 : index
    %c0_32 = arith.constant 0 : index
    %46 = vector.load %arg5[%c0_31, %c0_32] : memref<128x32xbf16, #tpu.memory_space<vmem>>, vector<128x32xbf16>
    %cst_33 = arith.constant dense<0.000000e+00> : vector<128x32xf32>
    %47 = tpu.matmul %38, %46, %cst_33 {dimension_numbers = #tpu.dot_dimension_numbers<[1], [0], [0], [1], [0, 0, 1, 1], [], []>} : vector<128x128xbf16>, vector<128x32xbf16>, vector<128x32xf32> -> vector<128x32xf32>
    %c0_34 = arith.constant 0 : index
    %c0_35 = arith.constant 0 : index
    %48 = vector.load %arg13[%c0_34, %c0_35] : memref<1x32xf32, #tpu.memory_space<vmem>>, vector<1x32xf32>
    %49 = vector.broadcast %48 : vector<1x32xf32> to vector<128x32xf32>
    %50 = arith.addf %47, %49 : vector<128x32xf32>
    %c0_36 = arith.constant 0 : index
    %c0_37 = arith.constant 0 : index
    %51 = vector.load %arg5[%c0_36, %c0_37] : memref<128x32xbf16, #tpu.memory_space<vmem>>, vector<128x32xbf16>
    %cst_38 = arith.constant dense<0.000000e+00> : vector<128x32xf32>
    %52 = tpu.matmul %45, %51, %cst_38 {dimension_numbers = #tpu.dot_dimension_numbers<[1], [0], [0], [1], [0, 0, 1, 1], [], []>} : vector<128x128xbf16>, vector<128x32xbf16>, vector<128x32xf32> -> vector<128x32xf32>
    %c0_39 = arith.constant 0 : index
    %c0_40 = arith.constant 0 : index
    %53 = vector.load %arg13[%c0_39, %c0_40] : memref<1x32xf32, #tpu.memory_space<vmem>>, vector<1x32xf32>
    %54 = vector.broadcast %53 : vector<1x32xf32> to vector<128x32xf32>
    %55 = arith.addf %52, %54 : vector<128x32xf32>
    %c0_41 = arith.constant 0 : index
    %c0_42 = arith.constant 0 : index
    %56 = vector.load %arg19[%c0_41, %c0_42] : memref<256x32xf32, #tpu.memory_space<vmem>>, vector<128x32xf32>
    tpu.vector_store %arg19[%c0_41, %c0_42], %50 {strides = array<i32>} : memref<256x32xf32, #tpu.memory_space<vmem>>, vector<128x32xf32>,
    %c128_43 = arith.constant 128 : index
    %c0_44 = arith.constant 0 : index
    %57 = vector.load %arg19[%c128_43, %c0_44] : memref<256x32xf32, #tpu.memory_space<vmem>>, vector<128x32xf32>
    tpu.vector_store %arg19[%c128_43, %c0_44], %55 {strides = array<i32>} : memref<256x32xf32, #tpu.memory_space<vmem>>, vector<128x32xf32>,
    %58 = math.tanh %50 : vector<128x32xf32>
    %59 = arith.truncf %58 : vector<128x32xf32> to vector<128x32xbf16>
    %60 = math.tanh %55 : vector<128x32xf32>
    %61 = arith.truncf %60 : vector<128x32xf32> to vector<128x32xbf16>
    %c0_45 = arith.constant 0 : index
    %c0_46 = arith.constant 0 : index
    %62 = vector.load %arg6[%c0_45, %c0_46] : memref<32x128xbf16, #tpu.memory_space<vmem>>, vector<32x128xbf16>
    %cst_47 = arith.constant dense<0.000000e+00> : vector<128x128xf32>
    %63 = tpu.matmul %59, %62, %cst_47 {dimension_numbers = #tpu.dot_dimension_numbers<[1], [0], [0], [1], [0, 0, 1, 1], [], []>} : vector<128x32xbf16>, vector<32x128xbf16>, vector<128x128xf32> -> vector<128x128xf32>
    %c0_48 = arith.constant 0 : index
    %c0_49 = arith.constant 0 : index
    %64 = vector.load %arg14[%c0_48, %c0_49] : memref<1x128xf32, #tpu.memory_space<vmem>>, vector<1x128xf32>
    %65 = vector.broadcast %64 : vector<1x128xf32> to vector<128x128xf32>
    %66 = arith.addf %63, %65 : vector<128x128xf32>
    %67 = math.tanh %66 : vector<128x128xf32>
    %68 = arith.truncf %67 : vector<128x128xf32> to vector<128x128xbf16>
    %c0_50 = arith.constant 0 : index
    %c0_51 = arith.constant 0 : index
    %69 = vector.load %arg6[%c0_50, %c0_51] : memref<32x128xbf16, #tpu.memory_space<vmem>>, vector<32x128xbf16>
    %cst_52 = arith.constant dense<0.000000e+00> : vector<128x128xf32>
    %70 = tpu.matmul %61, %69, %cst_52 {dimension_numbers = #tpu.dot_dimension_numbers<[1], [0], [0], [1], [0, 0, 1, 1], [], []>} : vector<128x32xbf16>, vector<32x128xbf16>, vector<128x128xf32> -> vector<128x128xf32>
    %c0_53 = arith.constant 0 : index
    %c0_54 = arith.constant 0 : index
    %71 = vector.load %arg14[%c0_53, %c0_54] : memref<1x128xf32, #tpu.memory_space<vmem>>, vector<1x128xf32>
    %72 = vector.broadcast %71 : vector<1x128xf32> to vector<128x128xf32>
    %73 = arith.addf %70, %72 : vector<128x128xf32>
    %74 = math.tanh %73 : vector<128x128xf32>
    %75 = arith.truncf %74 : vector<128x128xf32> to vector<128x128xbf16>
    %c0_55 = arith.constant 0 : index
    %c0_56 = arith.constant 0 : index
    %76 = vector.load %arg7[%c0_55, %c0_56] : memref<128x256xbf16, #tpu.memory_space<vmem>>, vector<128x256xbf16>
    %cst_57 = arith.constant dense<0.000000e+00> : vector<128x256xf32>
    %77 = tpu.matmul %68, %76, %cst_57 {dimension_numbers = #tpu.dot_dimension_numbers<[1], [0], [0], [1], [0, 0, 1, 1], [], []>} : vector<128x128xbf16>, vector<128x256xbf16>, vector<128x256xf32> -> vector<128x256xf32>
    %c0_58 = arith.constant 0 : index
    %c0_59 = arith.constant 0 : index
    %78 = vector.load %arg15[%c0_58, %c0_59] : memref<1x256xf32, #tpu.memory_space<vmem>>, vector<1x256xf32>
    %79 = vector.broadcast %78 : vector<1x256xf32> to vector<128x256xf32>
    %80 = arith.addf %77, %79 : vector<128x256xf32>
    %81 = math.tanh %80 : vector<128x256xf32>
    %82 = arith.truncf %81 : vector<128x256xf32> to vector<128x256xbf16>
    %c0_60 = arith.constant 0 : index
    %c0_61 = arith.constant 0 : index
    %83 = vector.load %arg7[%c0_60, %c0_61] : memref<128x256xbf16, #tpu.memory_space<vmem>>, vector<128x256xbf16>
    %cst_62 = arith.constant dense<0.000000e+00> : vector<128x256xf32>
    %84 = tpu.matmul %75, %83, %cst_62 {dimension_numbers = #tpu.dot_dimension_numbers<[1], [0], [0], [1], [0, 0, 1, 1], [], []>} : vector<128x128xbf16>, vector<128x256xbf16>, vector<128x256xf32> -> vector<128x256xf32>
    %c0_63 = arith.constant 0 : index
    %c0_64 = arith.constant 0 : index
    %85 = vector.load %arg15[%c0_63, %c0_64] : memref<1x256xf32, #tpu.memory_space<vmem>>, vector<1x256xf32>
    %86 = vector.broadcast %85 : vector<1x256xf32> to vector<128x256xf32>
    %87 = arith.addf %84, %86 : vector<128x256xf32>
    %88 = math.tanh %87 : vector<128x256xf32>
    %89 = arith.truncf %88 : vector<128x256xf32> to vector<128x256xbf16>
    %c0_65 = arith.constant 0 : index
    %c0_66 = arith.constant 0 : index
    %90 = vector.load %arg8[%c0_65, %c0_66] : memref<256x512xbf16, #tpu.memory_space<vmem>>, vector<256x512xbf16>
    %cst_67 = arith.constant dense<0.000000e+00> : vector<128x512xf32>
    %91 = tpu.matmul %82, %90, %cst_67 {dimension_numbers = #tpu.dot_dimension_numbers<[1], [0], [0], [1], [0, 0, 1, 1], [], []>} : vector<128x256xbf16>, vector<256x512xbf16>, vector<128x512xf32> -> vector<128x512xf32>
    %c0_68 = arith.constant 0 : index
    %c0_69 = arith.constant 0 : index
    %92 = vector.load %arg16[%c0_68, %c0_69] : memref<1x512xf32, #tpu.memory_space<vmem>>, vector<1x512xf32>
    %93 = vector.broadcast %92 : vector<1x512xf32> to vector<128x512xf32>
    %94 = arith.addf %91, %93 : vector<128x512xf32>
    %95 = math.tanh %94 : vector<128x512xf32>
    %96 = arith.truncf %95 : vector<128x512xf32> to vector<128x512xbf16>
    %c0_70 = arith.constant 0 : index
    %c0_71 = arith.constant 0 : index
    %97 = vector.load %arg8[%c0_70, %c0_71] : memref<256x512xbf16, #tpu.memory_space<vmem>>, vector<256x512xbf16>
    %cst_72 = arith.constant dense<0.000000e+00> : vector<128x512xf32>
    %98 = tpu.matmul %89, %97, %cst_72 {dimension_numbers = #tpu.dot_dimension_numbers<[1], [0], [0], [1], [0, 0, 1, 1], [], []>} : vector<128x256xbf16>, vector<256x512xbf16>, vector<128x512xf32> -> vector<128x512xf32>
    %c0_73 = arith.constant 0 : index
    %c0_74 = arith.constant 0 : index
    %99 = vector.load %arg16[%c0_73, %c0_74] : memref<1x512xf32, #tpu.memory_space<vmem>>, vector<1x512xf32>
    %100 = vector.broadcast %99 : vector<1x512xf32> to vector<128x512xf32>
    %101 = arith.addf %98, %100 : vector<128x512xf32>
    %102 = math.tanh %101 : vector<128x512xf32>
    %103 = arith.truncf %102 : vector<128x512xf32> to vector<128x512xbf16>
    %c0_75 = arith.constant 0 : index
    %c0_76 = arith.constant 0 : index
    %104 = vector.load %arg9[%c0_75, %c0_76] : memref<512x784xbf16, #tpu.memory_space<vmem>>, vector<512x784xbf16>
    %cst_77 = arith.constant dense<0.000000e+00> : vector<128x784xf32>
    %105 = tpu.matmul %96, %104, %cst_77 {dimension_numbers = #tpu.dot_dimension_numbers<[1], [0], [0], [1], [0, 0, 1, 1], [], []>} : vector<128x512xbf16>, vector<512x784xbf16>, vector<128x784xf32> -> vector<128x784xf32>
    %c0_78 = arith.constant 0 : index
    %c0_79 = arith.constant 0 : index
    %106 = vector.load %arg17[%c0_78, %c0_79] : memref<1x784xf32, #tpu.memory_space<vmem>>, vector<1x784xf32>
    %107 = vector.broadcast %106 : vector<1x784xf32> to vector<128x784xf32>
    %108 = arith.addf %105, %107 : vector<128x784xf32>
    %109 = arith.truncf %108 : vector<128x784xf32> to vector<128x784xbf16>
    %c0_80 = arith.constant 0 : index
    %c0_81 = arith.constant 0 : index
    %110 = vector.load %arg18[%c0_80, %c0_81] : memref<256x784xbf16, #tpu.memory_space<vmem>>, vector<128x784xbf16>
    tpu.vector_store %arg18[%c0_80, %c0_81], %109 {strides = array<i32>} : memref<256x784xbf16, #tpu.memory_space<vmem>>, vector<128x784xbf16>,
    %c0_82 = arith.constant 0 : index
    %c0_83 = arith.constant 0 : index
    %111 = vector.load %arg9[%c0_82, %c0_83] : memref<512x784xbf16, #tpu.memory_space<vmem>>, vector<512x784xbf16>
    %cst_84 = arith.constant dense<0.000000e+00> : vector<128x784xf32>
    %112 = tpu.matmul %103, %111, %cst_84 {dimension_numbers = #tpu.dot_dimension_numbers<[1], [0], [0], [1], [0, 0, 1, 1], [], []>} : vector<128x512xbf16>, vector<512x784xbf16>, vector<128x784xf32> -> vector<128x784xf32>
    %c0_85 = arith.constant 0 : index
    %c0_86 = arith.constant 0 : index
    %113 = vector.load %arg17[%c0_85, %c0_86] : memref<1x784xf32, #tpu.memory_space<vmem>>, vector<1x784xf32>
    %114 = vector.broadcast %113 : vector<1x784xf32> to vector<128x784xf32>
    %115 = arith.addf %112, %114 : vector<128x784xf32>
    %116 = arith.truncf %115 : vector<128x784xf32> to vector<128x784xbf16>
    %c128_87 = arith.constant 128 : index
    %c0_88 = arith.constant 0 : index
    %117 = vector.load %arg18[%c128_87, %c0_88] : memref<256x784xbf16, #tpu.memory_space<vmem>>, vector<128x784xbf16>
    tpu.vector_store %arg18[%c128_87, %c0_88], %116 {strides = array<i32>} : memref<256x784xbf16, #tpu.memory_space<vmem>>, vector<128x784xbf16>,
    return
  }
  func.func @transform_0(%arg0: i32) -> (i32, i32) {
    %c0_i32 = arith.constant 0 : i32
    %c0_i32_0 = arith.constant 0 : i32
    return %arg0, %c0_i32 : i32, i32
  }
  func.func @transform_1(%arg0: i32) -> (i32, i32) {
    %c0_i32 = arith.constant 0 : i32
    %c0_i32_0 = arith.constant 0 : i32
    %c0_i32_1 = arith.constant 0 : i32
    return %c0_i32, %c0_i32_0 : i32, i32
  }
  func.func @transform_2(%arg0: i32) -> (i32, i32) {
    %c0_i32 = arith.constant 0 : i32
    %c0_i32_0 = arith.constant 0 : i32
    %c0_i32_1 = arith.constant 0 : i32
    return %c0_i32, %c0_i32_0 : i32, i32
  }
  func.func @transform_3(%arg0: i32) -> (i32, i32) {
    %c0_i32 = arith.constant 0 : i32
    %c0_i32_0 = arith.constant 0 : i32
    %c0_i32_1 = arith.constant 0 : i32
    return %c0_i32, %c0_i32_0 : i32, i32
  }
  func.func @transform_4(%arg0: i32) -> (i32, i32) {
    %c0_i32 = arith.constant 0 : i32
    %c0_i32_0 = arith.constant 0 : i32
    %c0_i32_1 = arith.constant 0 : i32
    return %c0_i32, %c0_i32_0 : i32, i32
  }
  func.func @transform_5(%arg0: i32) -> (i32, i32) {
    %c0_i32 = arith.constant 0 : i32
    %c0_i32_0 = arith.constant 0 : i32
    %c0_i32_1 = arith.constant 0 : i32
    return %c0_i32, %c0_i32_0 : i32, i32
  }
  func.func @transform_6(%arg0: i32) -> (i32, i32) {
    %c0_i32 = arith.constant 0 : i32
    %c0_i32_0 = arith.constant 0 : i32
    %c0_i32_1 = arith.constant 0 : i32
    return %c0_i32, %c0_i32_0 : i32, i32
  }
  func.func @transform_7(%arg0: i32) -> (i32, i32) {
    %c0_i32 = arith.constant 0 : i32
    %c0_i32_0 = arith.constant 0 : i32
    %c0_i32_1 = arith.constant 0 : i32
    return %c0_i32, %c0_i32_0 : i32, i32
  }
  func.func @transform_8(%arg0: i32) -> (i32, i32) {
    %c0_i32 = arith.constant 0 : i32
    %c0_i32_0 = arith.constant 0 : i32
    %c0_i32_1 = arith.constant 0 : i32
    return %c0_i32, %c0_i32_0 : i32, i32
  }
  func.func @transform_9(%arg0: i32) -> (i32, i32) {
    %c0_i32 = arith.constant 0 : i32
    %c0_i32_0 = arith.constant 0 : i32
    %c0_i32_1 = arith.constant 0 : i32
    return %c0_i32, %c0_i32_0 : i32, i32
  }
  func.func @transform_10(%arg0: i32) -> (i32, i32) {
    %c0_i32 = arith.constant 0 : i32
    %c0_i32_0 = arith.constant 0 : i32
    %c0_i32_1 = arith.constant 0 : i32
    return %c0_i32, %c0_i32_0 : i32, i32
  }
  func.func @transform_11(%arg0: i32) -> (i32, i32) {
    %c0_i32 = arith.constant 0 : i32
    %c0_i32_0 = arith.constant 0 : i32
    %c0_i32_1 = arith.constant 0 : i32
    return %c0_i32, %c0_i32_0 : i32, i32
  }
  func.func @transform_12(%arg0: i32) -> (i32, i32) {
    %c0_i32 = arith.constant 0 : i32
    %c0_i32_0 = arith.constant 0 : i32
    %c0_i32_1 = arith.constant 0 : i32
    return %c0_i32, %c0_i32_0 : i32, i32
  }
  func.func @transform_13(%arg0: i32) -> (i32, i32) {
    %c0_i32 = arith.constant 0 : i32
    %c0_i32_0 = arith.constant 0 : i32
    %c0_i32_1 = arith.constant 0 : i32
    return %c0_i32, %c0_i32_0 : i32, i32
  }
  func.func @transform_14(%arg0: i32) -> (i32, i32) {
    %c0_i32 = arith.constant 0 : i32
    %c0_i32_0 = arith.constant 0 : i32
    %c0_i32_1 = arith.constant 0 : i32
    return %c0_i32, %c0_i32_0 : i32, i32
  }
  func.func @transform_15(%arg0: i32) -> (i32, i32) {
    %c0_i32 = arith.constant 0 : i32
    %c0_i32_0 = arith.constant 0 : i32
    %c0_i32_1 = arith.constant 0 : i32
    return %c0_i32, %c0_i32_0 : i32, i32
  }
  func.func @transform_16(%arg0: i32) -> (i32, i32) {
    %c0_i32 = arith.constant 0 : i32
    %c0_i32_0 = arith.constant 0 : i32
    %c0_i32_1 = arith.constant 0 : i32
    return %c0_i32, %c0_i32_0 : i32, i32
  }
  func.func @transform_17(%arg0: i32) -> (i32, i32) {
    %c0_i32 = arith.constant 0 : i32
    %c0_i32_0 = arith.constant 0 : i32
    return %arg0, %c0_i32 : i32, i32
  }
  func.func @transform_18(%arg0: i32) -> (i32, i32) {
    %c0_i32 = arith.constant 0 : i32
    %c0_i32_0 = arith.constant 0 : i32
    return %arg0, %c0_i32 : i32, i32
  }
}

</mosaic_0001>

<llo_original>
// kernel: bayesian_ae_forward.1
$region0: #{bayesian_ae_forward.1}
  #allocation0 [shape = 'u32[]', space=smem, size = 0x4, offset = 0x4, fixed_abs, tag = 'smem constant byte address 0x4 - core index']
  #allocation1 [shape = 'u32[144,128]{1,0:T(1,128)}', space=vmem, size = 0x12000, scoped, tag = 'internal scratch']
  %s0 = inlined_call_operand.vmem [shape: f32[512,784], index: 0, kind: input, shape index: {}]
  %s1 = inlined_call_operand.vmem [shape: bf16[784,512], index: 1, kind: input, shape index: {}]
  %s2 = inlined_call_operand.vmem [shape: bf16[512,256], index: 2, kind: input, shape index: {}]
  %s3 = inlined_call_operand.vmem [shape: bf16[256,128], index: 3, kind: input, shape index: {}]
  %s4 = inlined_call_operand.vmem [shape: bf16[128,32], index: 4, kind: input, shape index: {}]
  %s5 = inlined_call_operand.vmem [shape: bf16[32,128], index: 5, kind: input, shape index: {}]
  %s6 = inlined_call_operand.vmem [shape: bf16[128,256], index: 6, kind: input, shape index: {}]
  %s7 = inlined_call_operand.vmem [shape: bf16[256,512], index: 7, kind: input, shape index: {}]
  %s8 = inlined_call_operand.vmem [shape: bf16[512,784], index: 8, kind: input, shape index: {}]
  %s9 = inlined_call_operand.vmem [shape: f32[1,512], index: 9, kind: input, shape index: {}]
  %s10 = inlined_call_operand.vmem [shape: f32[1,256], index: 10, kind: input, shape index: {}]
  %s11 = inlined_call_operand.vmem [shape: f32[1,128], index: 11, kind: input, shape index: {}]
  %s12 = inlined_call_operand.vmem [shape: f32[1,32], index: 12, kind: input, shape index: {}]
  %s13 = inlined_call_operand.vmem [shape: f32[1,128], index: 13, kind: input, shape index: {}]
  %s14 = inlined_call_operand.vmem [shape: f32[1,256], index: 14, kind: input, shape index: {}]
  %s15 = inlined_call_operand.vmem [shape: f32[1,512], index: 15, kind: input, shape index: {}]
  %s16 = inlined_call_operand.vmem [shape: f32[1,784], index: 16, kind: input, shape index: {}]
  %s17 = inlined_call_operand.vmem [shape: bf16[512,784], index: 17, kind: output, shape index: {0}]
  %s18 = inlined_call_operand.vmem [shape: f32[512,32], index: 18, kind: output, shape index: {1}]
  %19 = xla_tuple %s17, %s18
  %s20 = sld [smem:[#allocation0]]
  $region109: #{bayesian_ae_forward.1} parent=0
    _
  %s22 = ssub.s32 1, %s20
  %s23 = scalar_select 0, %s22, %s20
  loop: start=0, step=1, limit=4
  $region2: #{bayesian_ae_forward.1} parent=0 // loop_pre_header
    _
  $region3: #{bayesian_ae_forward.1} parent=0 // loop_header
    %s25 = sphi 0, %s29
    %p26 = scmp.ge.s32.totalorder %s25, 4
    %s35 = sphi 0, %s37
    %s38 = sphi 0, %s35
    %s39 = sphi 0, %s38
    %s55 = sphi 0, %s39
    %s59 = sphi 0, %s59
    %s61 = sphi 0, %s59
    %s62 = sphi 0, %s61
    %s76 = sphi 0, %s62
    %s80 = sphi 0, %s80
    %s82 = sphi 0, %s80
    %s83 = sphi 0, %s82
    %s97 = sphi 0, %s83
    %s101 = sphi 0, %s101
    %s103 = sphi 0, %s101
    %s104 = sphi 0, %s103
    %s118 = sphi 0, %s104
    %s122 = sphi 0, %s122
    %s124 = sphi 0, %s122
    %s125 = sphi 0, %s124
    %s139 = sphi 0, %s125
    %s143 = sphi 0, %s143
    %s145 = sphi 0, %s143
    %s146 = sphi 0, %s145
    %s160 = sphi 0, %s146
    %s164 = sphi 0, %s164
    %s166 = sphi 0, %s164
    %s167 = sphi 0, %s166
    %s181 = sphi 0, %s167
    %s185 = sphi 0, %s185
    %s187 = sphi 0, %s185
    %s188 = sphi 0, %s187
    %s202 = sphi 0, %s188
    %s206 = sphi 0, %s206
    %s208 = sphi 0, %s206
    %s209 = sphi 0, %s208
    %s223 = sphi 0, %s209
    %s227 = sphi 0, %s227
    %s229 = sphi 0, %s227
    %s230 = sphi 0, %s229
    %s244 = sphi 0, %s230
    %s248 = sphi 0, %s248
    %s250 = sphi 0, %s248
    %s251 = sphi 0, %s250
    %s265 = sphi 0, %s251
    %s269 = sphi 0, %s269
    %s271 = sphi 0, %s269
    %s272 = sphi 0, %s271
    %s286 = sphi 0, %s272
    %s290 = sphi 0, %s290
    %s292 = sphi 0, %s290
    %s293 = sphi 0, %s292
    %s307 = sphi 0, %s293
    %s311 = sphi 0, %s311
    %s313 = sphi 0, %s311
    %s314 = sphi 0, %s313
    %s328 = sphi 0, %s314
    %s332 = sphi 0, %s332
    %s334 = sphi 0, %s332
    %s335 = sphi 0, %s334
    %s349 = sphi 0, %s335
    %s353 = sphi 0, %s353
    %s355 = sphi 0, %s353
    %s356 = sphi 0, %s355
    %s370 = sphi 0, %s356
    %s374 = sphi 0, %s374
    %s376 = sphi 0, %s374
    %s377 = sphi 0, %s376
    %s391 = sphi 0, %s377
    %s397 = sphi 0, %s399
    %s400 = sphi 0, %s397
    %s401 = sphi 0, %s400
    %s417 = sphi 0, %s401
    %s423 = sphi 0, %s425
    %s426 = sphi 0, %s423
    %s427 = sphi 0, %s426
    %s443 = sphi 0, %s427
  $region4: #{bayesian_ae_forward.1} parent=0 // loop_header_branch
    %28 = sbr.rel (%p26) target = $region8
  $region5: #{bayesian_ae_forward.1} parent=0 // loop_body
    %s30 = ssub.s32 %s25, 1
    %s31 = ssub.s32 %s25, 2
    %s32 = sadd.s32 %s25, 1
    %s33 = ssub.s32 %s25, %s32
    %p34 = scmp.eq.s32.totalorder %s33, 0
    %s36 = sadd.s32 %s35, 1
    %s37 = scalar_select %p34, %s35, %s36
    %p40 = pneg %p34
    %p41 = scmp.eq.s32.totalorder %s25, 1
    %p42 = por %p40, %p41
    %p43 = scmp.ne.s32.totalorder %s35, %s38
    %p44 = scmp.eq.s32.totalorder %s25, 0
    %p45 = por %p43, %p44
    %p46 = scmp.ne.s32.totalorder %s35, %s38
    %p47 = scmp.eq.s32.totalorder %s30, 1
    %p48 = por %p46, %p47
    %p49 = scmp.ne.s32.totalorder %s38, %s39
    %p50 = scmp.eq.s32.totalorder %s30, 0
    %p51 = por %p49, %p50
    %p52 = scmp.ne.s32.totalorder %s38, %s39
    %p53 = scmp.eq.s32.totalorder %s31, 1
    %p54 = por %p52, %p53
    %p56 = scmp.ne.s32.totalorder %s39, %s55
    %p57 = scmp.eq.s32.totalorder %s31, 0
    %p58 = por %p56, %p57
    %s60 = sadd.s32 %s59, 1
    %p63 = scmp.eq.s32.totalorder %s25, 1
    %p64 = scmp.ne.s32.totalorder %s59, %s61
    %p65 = scmp.eq.s32.totalorder %s25, 0
    %p66 = por %p64, %p65
    %p67 = scmp.ne.s32.totalorder %s59, %s61
    %p68 = scmp.eq.s32.totalorder %s30, 1
    %p69 = por %p67, %p68
    %p70 = scmp.ne.s32.totalorder %s61, %s62
    %p71 = scmp.eq.s32.totalorder %s30, 0
    %p72 = por %p70, %p71
    %p73 = scmp.ne.s32.totalorder %s61, %s62
    %p74 = scmp.eq.s32.totalorder %s31, 1
    %p75 = por %p73, %p74
    %p77 = scmp.ne.s32.totalorder %s62, %s76
    %p78 = scmp.eq.s32.totalorder %s31, 0
    %p79 = por %p77, %p78
    %s81 = sadd.s32 %s80, 1
    %p84 = scmp.eq.s32.totalorder %s25, 1
    %p85 = scmp.ne.s32.totalorder %s80, %s82
    %p86 = scmp.eq.s32.totalorder %s25, 0
    %p87 = por %p85, %p86
    %p88 = scmp.ne.s32.totalorder %s80, %s82
    %p89 = scmp.eq.s32.totalorder %s30, 1
    %p90 = por %p88, %p89
    %p91 = scmp.ne.s32.totalorder %s82, %s83
    %p92 = scmp.eq.s32.totalorder %s30, 0
    %p93 = por %p91, %p92
    %p94 = scmp.ne.s32.totalorder %s82, %s83
    %p95 = scmp.eq.s32.totalorder %s31, 1
    %p96 = por %p94, %p95
    %p98 = scmp.ne.s32.totalorder %s83, %s97
    %p99 = scmp.eq.s32.totalorder %s31, 0
    %p100 = por %p98, %p99
    %s102 = sadd.s32 %s101, 1
    %p105 = scmp.eq.s32.totalorder %s25, 1
    %p106 = scmp.ne.s32.totalorder %s101, %s103
    %p107 = scmp.eq.s32.totalorder %s25, 0
    %p108 = por %p106, %p107
    %p109 = scmp.ne.s32.totalorder %s101, %s103
    %p110 = scmp.eq.s32.totalorder %s30, 1
    %p111 = por %p109, %p110
    %p112 = scmp.ne.s32.totalorder %s103, %s104
    %p113 = scmp.eq.s32.totalorder %s30, 0
    %p114 = por %p112, %p113
    %p115 = scmp.ne.s32.totalorder %s103, %s104
    %p116 = scmp.eq.s32.totalorder %s31, 1
    %p117 = por %p115, %p116
    %p119 = scmp.ne.s32.totalorder %s104, %s118
    %p120 = scmp.eq.s32.totalorder %s31, 0
    %p121 = por %p119, %p120
    %s123 = sadd.s32 %s122, 1
    %p126 = scmp.eq.s32.totalorder %s25, 1
    %p127 = scmp.ne.s32.totalorder %s122, %s124
    %p128 = scmp.eq.s32.totalorder %s25, 0
    %p129 = por %p127, %p128
    %p130 = scmp.ne.s32.totalorder %s122, %s124
    %p131 = scmp.eq.s32.totalorder %s30, 1
    %p132 = por %p130, %p131
    %p133 = scmp.ne.s32.totalorder %s124, %s125
    %p134 = scmp.eq.s32.totalorder %s30, 0
    %p135 = por %p133, %p134
    %p136 = scmp.ne.s32.totalorder %s124, %s125
    %p137 = scmp.eq.s32.totalorder %s31, 1
    %p138 = por %p136, %p137
    %p140 = scmp.ne.s32.totalorder %s125, %s139
    %p141 = scmp.eq.s32.totalorder %s31, 0
    %p142 = por %p140, %p141
    %s144 = sadd.s32 %s143, 1
    %p147 = scmp.eq.s32.totalorder %s25, 1
    %p148 = scmp.ne.s32.totalorder %s143, %s145
    %p149 = scmp.eq.s32.totalorder %s25, 0
    %p150 = por %p148, %p149
    %p151 = scmp.ne.s32.totalorder %s143, %s145
    %p152 = scmp.eq.s32.totalorder %s30, 1
    %p153 = por %p151, %p152
    %p154 = scmp.ne.s32.totalorder %s145, %s146
    %p155 = scmp.eq.s32.totalorder %s30, 0
    %p156 = por %p154, %p155
    %p157 = scmp.ne.s32.totalorder %s145, %s146
    %p158 = scmp.eq.s32.totalorder %s31, 1
    %p159 = por %p157, %p158
    %p161 = scmp.ne.s32.totalorder %s146, %s160
    %p162 = scmp.eq.s32.totalorder %s31, 0
    %p163 = por %p161, %p162
    %s165 = sadd.s32 %s164, 1
    %p168 = scmp.eq.s32.totalorder %s25, 1
    %p169 = scmp.ne.s32.totalorder %s164, %s166
    %p170 = scmp.eq.s32.totalorder %s25, 0
    %p171 = por %p169, %p170
    %p172 = scmp.ne.s32.totalorder %s164, %s166
    %p173 = scmp.eq.s32.totalorder %s30, 1
    %p174 = por %p172, %p173
    %p175 = scmp.ne.s32.totalorder %s166, %s167
    %p176 = scmp.eq.s32.totalorder %s30, 0
    %p177 = por %p175, %p176
    %p178 = scmp.ne.s32.totalorder %s166, %s167
    %p179 = scmp.eq.s32.totalorder %s31, 1
    %p180 = por %p178, %p179
    %p182 = scmp.ne.s32.totalorder %s167, %s181
    %p183 = scmp.eq.s32.totalorder %s31, 0
    %p184 = por %p182, %p183
    %s186 = sadd.s32 %s185, 1
    %p189 = scmp.eq.s32.totalorder %s25, 1
    %p190 = scmp.ne.s32.totalorder %s185, %s187
    %p191 = scmp.eq.s32.totalorder %s25, 0
    %p192 = por %p190, %p191
    %p193 = scmp.ne.s32.totalorder %s185, %s187
    %p194 = scmp.eq.s32.totalorder %s30, 1
    %p195 = por %p193, %p194
    %p196 = scmp.ne.s32.totalorder %s187, %s188
    %p197 = scmp.eq.s32.totalorder %s30, 0
    %p198 = por %p196, %p197
    %p199 = scmp.ne.s32.totalorder %s187, %s188
    %p200 = scmp.eq.s32.totalorder %s31, 1
    %p201 = por %p199, %p200
    %p203 = scmp.ne.s32.totalorder %s188, %s202
    %p204 = scmp.eq.s32.totalorder %s31, 0
    %p205 = por %p203, %p204
    %s207 = sadd.s32 %s206, 1
    %p210 = scmp.eq.s32.totalorder %s25, 1
    %p211 = scmp.ne.s32.totalorder %s206, %s208
    %p212 = scmp.eq.s32.totalorder %s25, 0
    %p213 = por %p211, %p212
    %p214 = scmp.ne.s32.totalorder %s206, %s208
    %p215 = scmp.eq.s32.totalorder %s30, 1
    %p216 = por %p214, %p215
    %p217 = scmp.ne.s32.totalorder %s208, %s209
    %p218 = scmp.eq.s32.totalorder %s30, 0
    %p219 = por %p217, %p218
    %p220 = scmp.ne.s32.totalorder %s208, %s209
    %p221 = scmp.eq.s32.totalorder %s31, 1
    %p222 = por %p220, %p221
    %p224 = scmp.ne.s32.totalorder %s209, %s223
    %p225 = scmp.eq.s32.totalorder %s31, 0
    %p226 = por %p224, %p225
    %s228 = sadd.s32 %s227, 1
    %p231 = scmp.eq.s32.totalorder %s25, 1
    %p232 = scmp.ne.s32.totalorder %s227, %s229
    %p233 = scmp.eq.s32.totalorder %s25, 0
    %p234 = por %p232, %p233
    %p235 = scmp.ne.s32.totalorder %s227, %s229
    %p236 = scmp.eq.s32.totalorder %s30, 1
    %p237 = por %p235, %p236
    %p238 = scmp.ne.s32.totalorder %s229, %s230
    %p239 = scmp.eq.s32.totalorder %s30, 0
    %p240 = por %p238, %p239
    %p241 = scmp.ne.s32.totalorder %s229, %s230
    %p242 = scmp.eq.s32.totalorder %s31, 1
    %p243 = por %p241, %p242
    %p245 = scmp.ne.s32.totalorder %s230, %s244
    %p246 = scmp.eq.s32.totalorder %s31, 0
    %p247 = por %p245, %p246
    %s249 = sadd.s32 %s248, 1
    %p252 = scmp.eq.s32.totalorder %s25, 1
    %p253 = scmp.ne.s32.totalorder %s248, %s250
    %p254 = scmp.eq.s32.totalorder %s25, 0
    %p255 = por %p253, %p254
    %p256 = scmp.ne.s32.totalorder %s248, %s250
    %p257 = scmp.eq.s32.totalorder %s30, 1
    %p258 = por %p256, %p257
    %p259 = scmp.ne.s32.totalorder %s250, %s251
    %p260 = scmp.eq.s32.totalorder %s30, 0
    %p261 = por %p259, %p260
    %p262 = scmp.ne.s32.totalorder %s250, %s251
    %p263 = scmp.eq.s32.totalorder %s31, 1
    %p264 = por %p262, %p263
    %p266 = scmp.ne.s32.totalorder %s251, %s265
    %p267 = scmp.eq.s32.totalorder %s31, 0
    %p268 = por %p266, %p267
    %s270 = sadd.s32 %s269, 1
    %p273 = scmp.eq.s32.totalorder %s25, 1
    %p274 = scmp.ne.s32.totalorder %s269, %s271
    %p275 = scmp.eq.s32.totalorder %s25, 0
    %p276 = por %p274, %p275
    %p277 = scmp.ne.s32.totalorder %s269, %s271
    %p278 = scmp.eq.s32.totalorder %s30, 1
    %p279 = por %p277, %p278
    %p280 = scmp.ne.s32.totalorder %s271, %s272
    %p281 = scmp.eq.s32.totalorder %s30, 0
    %p282 = por %p280, %p281
    %p283 = scmp.ne.s32.totalorder %s271, %s272
    %p284 = scmp.eq.s32.totalorder %s31, 1
    %p285 = por %p283, %p284
    %p287 = scmp.ne.s32.totalorder %s272, %s286
    %p288 = scmp.eq.s32.totalorder %s31, 0
    %p289 = por %p287, %p288
    %s291 = sadd.s32 %s290, 1
    %p294 = scmp.eq.s32.totalorder %s25, 1
    %p295 = scmp.ne.s32.totalorder %s290, %s292
    %p296 = scmp.eq.s32.totalorder %s25, 0
    %p297 = por %p295, %p296
    %p298 = scmp.ne.s32.totalorder %s290, %s292
    %p299 = scmp.eq.s32.totalorder %s30, 1
    %p300 = por %p298, %p299
    %p301 = scmp.ne.s32.totalorder %s292, %s293
    %p302 = scmp.eq.s32.totalorder %s30, 0
    %p303 = por %p301, %p302
    %p304 = scmp.ne.s32.totalorder %s292, %s293
    %p305 = scmp.eq.s32.totalorder %s31, 1
    %p306 = por %p304, %p305
    %p308 = scmp.ne.s32.totalorder %s293, %s307
    %p309 = scmp.eq.s32.totalorder %s31, 0
    %p310 = por %p308, %p309
    %s312 = sadd.s32 %s311, 1
    %p315 = scmp.eq.s32.totalorder %s25, 1
    %p316 = scmp.ne.s32.totalorder %s311, %s313
    %p317 = scmp.eq.s32.totalorder %s25, 0
    %p318 = por %p316, %p317
    %p319 = scmp.ne.s32.totalorder %s311, %s313
    %p320 = scmp.eq.s32.totalorder %s30, 1
    %p321 = por %p319, %p320
    %p322 = scmp.ne.s32.totalorder %s313, %s314
    %p323 = scmp.eq.s32.totalorder %s30, 0
    %p324 = por %p322, %p323
    %p325 = scmp.ne.s32.totalorder %s313, %s314
    %p326 = scmp.eq.s32.totalorder %s31, 1
    %p327 = por %p325, %p326
    %p329 = scmp.ne.s32.totalorder %s314, %s328
    %p330 = scmp.eq.s32.totalorder %s31, 0
    %p331 = por %p329, %p330
    %s333 = sadd.s32 %s332, 1
    %p336 = scmp.eq.s32.totalorder %s25, 1
    %p337 = scmp.ne.s32.totalorder %s332, %s334
    %p338 = scmp.eq.s32.totalorder %s25, 0
    %p339 = por %p337, %p338
    %p340 = scmp.ne.s32.totalorder %s332, %s334
    %p341 = scmp.eq.s32.totalorder %s30, 1
    %p342 = por %p340, %p341
    %p343 = scmp.ne.s32.totalorder %s334, %s335
    %p344 = scmp.eq.s32.totalorder %s30, 0
    %p345 = por %p343, %p344
    %p346 = scmp.ne.s32.totalorder %s334, %s335
    %p347 = scmp.eq.s32.totalorder %s31, 1
    %p348 = por %p346, %p347
    %p350 = scmp.ne.s32.totalorder %s335, %s349
    %p351 = scmp.eq.s32.totalorder %s31, 0
    %p352 = por %p350, %p351
    %s354 = sadd.s32 %s353, 1
    %p357 = scmp.eq.s32.totalorder %s25, 1
    %p358 = scmp.ne.s32.totalorder %s353, %s355
    %p359 = scmp.eq.s32.totalorder %s25, 0
    %p360 = por %p358, %p359
    %p361 = scmp.ne.s32.totalorder %s353, %s355
    %p362 = scmp.eq.s32.totalorder %s30, 1
    %p363 = por %p361, %p362
    %p364 = scmp.ne.s32.totalorder %s355, %s356
    %p365 = scmp.eq.s32.totalorder %s30, 0
    %p366 = por %p364, %p365
    %p367 = scmp.ne.s32.totalorder %s355, %s356
    %p368 = scmp.eq.s32.totalorder %s31, 1
    %p369 = por %p367, %p368
    %p371 = scmp.ne.s32.totalorder %s356, %s370
    %p372 = scmp.eq.s32.totalorder %s31, 0
    %p373 = por %p371, %p372
    %s375 = sadd.s32 %s374, 1
    %p378 = scmp.eq.s32.totalorder %s25, 1
    %p379 = scmp.ne.s32.totalorder %s374, %s376
    %p380 = scmp.eq.s32.totalorder %s25, 0
    %p381 = por %p379, %p380
    %p382 = scmp.ne.s32.totalorder %s374, %s376
    %p383 = scmp.eq.s32.totalorder %s30, 1
    %p384 = por %p382, %p383
    %p385 = scmp.ne.s32.totalorder %s376, %s377
    %p386 = scmp.eq.s32.totalorder %s30, 0
    %p387 = por %p385, %p386
    %p388 = scmp.ne.s32.totalorder %s376, %s377
    %p389 = scmp.eq.s32.totalorder %s31, 1
    %p390 = por %p388, %p389
    %p392 = scmp.ne.s32.totalorder %s377, %s391
    %p393 = scmp.eq.s32.totalorder %s31, 0
    %p394 = por %p392, %p393
    %s395 = ssub.s32 %s25, %s32
    %p396 = scmp.eq.s32.totalorder %s395, 0
    %s398 = sadd.s32 %s397, 1
    %s399 = scalar_select %p396, %s397, %s398
    %p402 = pneg %p396
    %p403 = scmp.eq.s32.totalorder %s25, 1
    %p404 = por %p402, %p403
    %p405 = scmp.ne.s32.totalorder %s397, %s400
    %p406 = scmp.eq.s32.totalorder %s25, 0
    %p407 = por %p405, %p406
    %p408 = scmp.ne.s32.totalorder %s397, %s400
    %p409 = scmp.eq.s32.totalorder %s30, 1
    %p410 = por %p408, %p409
    %p411 = scmp.ne.s32.totalorder %s400, %s401
    %p412 = scmp.eq.s32.totalorder %s30, 0
    %p413 = por %p411, %p412
    %p414 = scmp.ne.s32.totalorder %s400, %s401
    %p415 = scmp.eq.s32.totalorder %s31, 1
    %p416 = por %p414, %p415
    %p418 = scmp.ne.s32.totalorder %s401, %s417
    %p419 = scmp.eq.s32.totalorder %s31, 0
    %p420 = por %p418, %p419
    %s421 = ssub.s32 %s25, %s32
    %p422 = scmp.eq.s32.totalorder %s421, 0
    %s424 = sadd.s32 %s423, 1
    %s425 = scalar_select %p422, %s423, %s424
    %p428 = pneg %p422
    %p429 = scmp.eq.s32.totalorder %s25, 1
    %p430 = por %p428, %p429
    %p431 = scmp.ne.s32.totalorder %s423, %s426
    %p432 = scmp.eq.s32.totalorder %s25, 0
    %p433 = por %p431, %p432
    %p434 = scmp.ne.s32.totalorder %s423, %s426
    %p435 = scmp.eq.s32.totalorder %s30, 1
    %p436 = por %p434, %p435
    %p437 = scmp.ne.s32.totalorder %s426, %s427
    %p438 = scmp.eq.s32.totalorder %s30, 0
    %p439 = por %p437, %p438
    %p440 = scmp.ne.s32.totalorder %s426, %s427
    %p441 = scmp.eq.s32.totalorder %s31, 1
    %p442 = por %p440, %p441
    %p444 = scmp.ne.s32.totalorder %s427, %s443
    %p445 = scmp.eq.s32.totalorder %s31, 0
    %p446 = por %p444, %p445
    %p447 = scmp.le.s32.totalorder 1, %s25
    %p448 = scmp.lt.s32.totalorder %s25, 3
    %p449 = pnand %p447, %p448
    %p450 = pneg %p449
    // Predicated region
    $region9: #{bayesian_ae_forward.1} parent=5 // pred_check
      _
    $region10: #{bayesian_ae_forward.1} parent=5 // pred_check_branch
      %452 = sbr.rel (%p449) target = $region12
    $region11: #{bayesian_ae_forward.1} parent=5 // pred_region
      %s453 = ssub.s32 %s25, 1
      // Predicated region
      $region13: #{bayesian_ae_forward.1} parent=11 // pred_check
        %p454 = pneg %p72
      $region14: #{bayesian_ae_forward.1} parent=11 // pred_check_branch
        %456 = sbr.rel (%p454) target = $region16
      $region15: #{bayesian_ae_forward.1} parent=11 // pred_region
        _
      $region16: #{bayesian_ae_forward.1} parent=11 // pred_fallthru
        _
      // Predicated region
      $region17: #{bayesian_ae_forward.1} parent=11 // pred_check
        %p457 = pneg %p93
      $region18: #{bayesian_ae_forward.1} parent=11 // pred_check_branch
        %459 = sbr.rel (%p457) target = $region20
      $region19: #{bayesian_ae_forward.1} parent=11 // pred_region
        _
      $region20: #{bayesian_ae_forward.1} parent=11 // pred_fallthru
        _
      // Predicated region
      $region21: #{bayesian_ae_forward.1} parent=11 // pred_check
        %p460 = pneg %p114
      $region22: #{bayesian_ae_forward.1} parent=11 // pred_check_branch
        %462 = sbr.rel (%p460) target = $region24
      $region23: #{bayesian_ae_forward.1} parent=11 // pred_region
        _
      $region24: #{bayesian_ae_forward.1} parent=11 // pred_fallthru
        _
      // Predicated region
      $region25: #{bayesian_ae_forward.1} parent=11 // pred_check
        %p463 = pneg %p135
      $region26: #{bayesian_ae_forward.1} parent=11 // pred_check_branch
        %465 = sbr.rel (%p463) target = $region28
      $region27: #{bayesian_ae_forward.1} parent=11 // pred_region
        _
      $region28: #{bayesian_ae_forward.1} parent=11 // pred_fallthru
        _
      // Predicated region
      $region29: #{bayesian_ae_forward.1} parent=11 // pred_check
        %p466 = pneg %p156
      $region30: #{bayesian_ae_forward.1} parent=11 // pred_check_branch
        %468 = sbr.rel (%p466) target = $region32
      $region31: #{bayesian_ae_forward.1} parent=11 // pred_region
        _
      $region32: #{bayesian_ae_forward.1} parent=11 // pred_fallthru
        _
      // Predicated region
      $region33: #{bayesian_ae_forward.1} parent=11 // pred_check
        %p469 = pneg %p177
      $region34: #{bayesian_ae_forward.1} parent=11 // pred_check_branch
        %471 = sbr.rel (%p469) target = $region36
      $region35: #{bayesian_ae_forward.1} parent=11 // pred_region
        _
      $region36: #{bayesian_ae_forward.1} parent=11 // pred_fallthru
        _
      // Predicated region
      $region37: #{bayesian_ae_forward.1} parent=11 // pred_check
        %p472 = pneg %p198
      $region38: #{bayesian_ae_forward.1} parent=11 // pred_check_branch
        %474 = sbr.rel (%p472) target = $region40
      $region39: #{bayesian_ae_forward.1} parent=11 // pred_region
        _
      $region40: #{bayesian_ae_forward.1} parent=11 // pred_fallthru
        _
      // Predicated region
      $region41: #{bayesian_ae_forward.1} parent=11 // pred_check
        %p475 = pneg %p219
      $region42: #{bayesian_ae_forward.1} parent=11 // pred_check_branch
        %477 = sbr.rel (%p475) target = $region44
      $region43: #{bayesian_ae_forward.1} parent=11 // pred_region
        _
      $region44: #{bayesian_ae_forward.1} parent=11 // pred_fallthru
        _
      // Predicated region
      $region45: #{bayesian_ae_forward.1} parent=11 // pred_check
        %p478 = pneg %p240
      $region46: #{bayesian_ae_forward.1} parent=11 // pred_check_branch
        %480 = sbr.rel (%p478) target = $region48
      $region47: #{bayesian_ae_forward.1} parent=11 // pred_region
        _
      $region48: #{bayesian_ae_forward.1} parent=11 // pred_fallthru
        _
      // Predicated region
      $region49: #{bayesian_ae_forward.1} parent=11 // pred_check
        %p481 = pneg %p261
      $region50: #{bayesian_ae_forward.1} parent=11 // pred_check_branch
        %483 = sbr.rel (%p481) target = $region52
      $region51: #{bayesian_ae_forward.1} parent=11 // pred_region
        _
      $region52: #{bayesian_ae_forward.1} parent=11 // pred_fallthru
        _
      // Predicated region
      $region53: #{bayesian_ae_forward.1} parent=11 // pred_check
        %p484 = pneg %p282
      $region54: #{bayesian_ae_forward.1} parent=11 // pred_check_branch
        %486 = sbr.rel (%p484) target = $region56
      $region55: #{bayesian_ae_forward.1} parent=11 // pred_region
        _
      $region56: #{bayesian_ae_forward.1} parent=11 // pred_fallthru
        _
      // Predicated region
      $region57: #{bayesian_ae_forward.1} parent=11 // pred_check
        %p487 = pneg %p303
      $region58: #{bayesian_ae_forward.1} parent=11 // pred_check_branch
        %489 = sbr.rel (%p487) target = $region60
      $region59: #{bayesian_ae_forward.1} parent=11 // pred_region
        _
      $region60: #{bayesian_ae_forward.1} parent=11 // pred_fallthru
        _
      // Predicated region
      $region61: #{bayesian_ae_forward.1} parent=11 // pred_check
        %p490 = pneg %p324
      $region62: #{bayesian_ae_forward.1} parent=11 // pred_check_branch
        %492 = sbr.rel (%p490) target = $region64
      $region63: #{bayesian_ae_forward.1} parent=11 // pred_region
        _
      $region64: #{bayesian_ae_forward.1} parent=11 // pred_fallthru
        _
      // Predicated region
      $region65: #{bayesian_ae_forward.1} parent=11 // pred_check
        %p493 = pneg %p345
      $region66: #{bayesian_ae_forward.1} parent=11 // pred_check_branch
        %495 = sbr.rel (%p493) target = $region68
      $region67: #{bayesian_ae_forward.1} parent=11 // pred_region
        _
      $region68: #{bayesian_ae_forward.1} parent=11 // pred_fallthru
        _
      // Predicated region
      $region69: #{bayesian_ae_forward.1} parent=11 // pred_check
        %p496 = pneg %p366
      $region70: #{bayesian_ae_forward.1} parent=11 // pred_check_branch
        %498 = sbr.rel (%p496) target = $region72
      $region71: #{bayesian_ae_forward.1} parent=11 // pred_region
        _
      $region72: #{bayesian_ae_forward.1} parent=11 // pred_fallthru
        _
      // Predicated region
      $region73: #{bayesian_ae_forward.1} parent=11 // pred_check
        %p499 = pneg %p387
      $region74: #{bayesian_ae_forward.1} parent=11 // pred_check_branch
        %501 = sbr.rel (%p499) target = $region76
      $region75: #{bayesian_ae_forward.1} parent=11 // pred_region
        _
      $region76: #{bayesian_ae_forward.1} parent=11 // pred_fallthru
        _
    $region12: #{bayesian_ae_forward.1} parent=5 // pred_fallthru
      _
    %p502 = scmp.lt.s32.totalorder %s25, 2
    // Predicated region
    $region77: #{bayesian_ae_forward.1} parent=5 // pred_check
      %p503 = pneg %p502
    $region78: #{bayesian_ae_forward.1} parent=5 // pred_check_branch
      %505 = sbr.rel (%p503) target = $region80
    $region79: #{bayesian_ae_forward.1} parent=5 // pred_region
      // Predicated region
      $region81: #{bayesian_ae_forward.1} parent=79 // pred_check
        %p506 = pneg %p45
      $region82: #{bayesian_ae_forward.1} parent=79 // pred_check_branch
        %508 = sbr.rel (%p506) target = $region84
      $region83: #{bayesian_ae_forward.1} parent=79 // pred_region
        %s509 = smul.u32 32, %s25
        %p510 = scmp.lt.s32.totalorder %s509, 63
        %s511 = scalar_select %p510, %s509, 63
        %s512 = smul.addr %s511, 7
        %s513 = smul.addr %s512, 8
        %s514 = scalar_lea.vmem %s0, %s513
        %s515 = smul.u32 32, %s25
      $region84: #{bayesian_ae_forward.1} parent=79 // pred_fallthru
        _
    $region80: #{bayesian_ae_forward.1} parent=5 // pred_fallthru
      _
    %p516 = scmp.le.s32.totalorder 1, %s25
    %p517 = scmp.lt.s32.totalorder %s25, 3
    %p518 = pnand %p516, %p517
    %p519 = pneg %p518
    // Predicated region
    $region85: #{bayesian_ae_forward.1} parent=5 // pred_check
      _
    $region86: #{bayesian_ae_forward.1} parent=5 // pred_check_branch
      %521 = sbr.rel (%p518) target = $region88
    $region87: #{bayesian_ae_forward.1} parent=5 // pred_region
      %s522 = ssub.s32 %s25, 1
      %s523 = smul.u32 32, %s30
      %p524 = scmp.lt.s32.totalorder %s523, 63
      %s525 = scalar_select %p524, %s523, 63
      %s526 = smul.addr %s525, 7
      %s527 = smul.addr %s526, 8
      %s528 = scalar_lea.vmem %s0, %s527
      %p529 = pneg %p51
      %p530 = pneg %p48
      %p531 = pneg %p72
      %p532 = pneg %p69
      %p533 = pneg %p93
      %p534 = pneg %p90
      %p535 = pneg %p114
      %p536 = pneg %p111
      %p537 = pneg %p135
      %p538 = pneg %p132
      %p539 = pneg %p156
      %p540 = pneg %p153
      %p541 = pneg %p177
      %p542 = pneg %p174
      %p543 = pneg %p198
      %p544 = pneg %p195
      %p545 = pneg %p219
      %p546 = pneg %p216
      %p547 = pneg %p240
      %p548 = pneg %p237
      %p549 = pneg %p261
      %p550 = pneg %p258
      %p551 = pneg %p282
      %p552 = pneg %p279
      %p553 = pneg %p303
      %p554 = pneg %p300
      %p555 = pneg %p324
      %p556 = pneg %p321
      %p557 = pneg %p345
      %p558 = pneg %p342
      %p559 = pneg %p366
      %p560 = pneg %p363
      %p561 = pneg %p387
      %p562 = pneg %p384
      %p563 = pneg %p413
      %p564 = pneg %p410
      %s565 = smul.u32 32, %s30
      %p566 = scmp.lt.s32.totalorder %s565, 63
      %s567 = scalar_select %p566, %s565, 63
      %s568 = smul.addr %s567, 7
      %s569 = smul.addr %s568, 4
      %s570 = scalar_lea.vmem %s17, %s569
      %p571 = pneg %p439
      %p572 = pneg %p436
      %s573 = smul.u32 32, %s30
      %p574 = scmp.lt.s32.totalorder %s573, 63
      %s575 = scalar_select %p574, %s573, 63
      %s576 = smul.addr %s575, 8
      %s577 = scalar_lea.vmem %s18, %s576
      %s578 = smul.u32 32, %s30
      %p579 = scmp.lt.s32.totalorder %s578, 63
      %s580 = scalar_select %p579, %s578, 63
      %s581 = smul.addr %s580, 7
      %s582 = smul.addr %s581, 8
      %s583 = scalar_lea.vmem %s0, %s582
      %s584 = smul.u32 32, %s30
      %s585 = smul.u32 32, %s30
      %p586 = scmp.lt.s32.totalorder %s585, 63
      %s587 = scalar_select %p586, %s585, 63
      %s588 = smul.addr %s587, 7
      %s589 = smul.addr %s588, 4
      %s590 = scalar_lea.vmem %s17, %s589
      %s591 = smul.u32 32, %s30
      %s592 = smul.u32 32, %s30
      %p593 = scmp.lt.s32.totalorder %s592, 63
      %s594 = scalar_select %p593, %s592, 63
      %s595 = smul.addr %s594, 8
      %s596 = scalar_lea.vmem %s18, %s595
      %s597 = smul.u32 32, %s30
      %v599 = vld [vmem:[%s583] sm:$0xff]
      %v600 = vld [vmem:[%s583 + $0x8] sm:$0xff]
      %v601 = vld [vmem:[%s583 + $0x10] sm:$0xff]
      %v602 = vld [vmem:[%s583 + $0x18] sm:$0xff]
      %v603 = vld [vmem:[%s583 + $0x20] sm:$0xff]
      %v604 = vld [vmem:[%s583 + $0x28] sm:$0xff]
      %v605 = vld [vmem:[%s583 + $0x30] sm:$0xff]
      %v606 = vld [vmem:[%s583 + $0x38] sm:$0xff]
      %v607 = vld [vmem:[%s583 + $0x40] sm:$0xff]
      %v608 = vld [vmem:[%s583 + $0x48] sm:$0xff]
      %v609 = vld [vmem:[%s583 + $0x50] sm:$0xff]
      %v610 = vld [vmem:[%s583 + $0x58] sm:$0xff]
      %v611 = vld [vmem:[%s583 + $0x60] sm:$0xff]
      %v612 = vld [vmem:[%s583 + $0x68] sm:$0xff]
      %v613 = vld [vmem:[%s583 + $0x70] sm:$0xff]
      %v614 = vld [vmem:[%s583 + $0x78] sm:$0xff]
      %v615 = vld [vmem:[%s583 + $0x80] sm:$0xff]
      %v616 = vld [vmem:[%s583 + $0x88] sm:$0xff]
      %v617 = vld [vmem:[%s583 + $0x90] sm:$0xff]
      %v618 = vld [vmem:[%s583 + $0x98] sm:$0xff]
      %v619 = vld [vmem:[%s583 + $0xa0] sm:$0xff]
      %v620 = vld [vmem:[%s583 + $0xa8] sm:$0xff]
      %v621 = vld [vmem:[%s583 + $0xb0] sm:$0xff]
      %v622 = vld [vmem:[%s583 + $0xb8] sm:$0xff]
      %v623 = vld [vmem:[%s583 + $0xc0] sm:$0xff]
      %v624 = vld [vmem:[%s583 + $0xc8] sm:$0xff]
      %v625 = vld [vmem:[%s583 + $0xd0] sm:$0xff]
      %v626 = vld [vmem:[%s583 + $0xd8] sm:$0xff]
      %v627 = vld [vmem:[%s583 + $0xe0] sm:$0xff]
      %v628 = vld [vmem:[%s583 + $0xe8] sm:$0xff]
      %v629 = vld [vmem:[%s583 + $0xf0] sm:$0xff]
      %v630 = vld [vmem:[%s583 + $0xf8] sm:$0xff]
      %v631 = vld [vmem:[%s583 + $0x100] sm:$0xff]
      %v632 = vld [vmem:[%s583 + $0x108] sm:$0xff]
      %v633 = vld [vmem:[%s583 + $0x110] sm:$0xff]
      %v634 = vld [vmem:[%s583 + $0x118] sm:$0xff]
      %v635 = vld [vmem:[%s583 + $0x120] sm:$0xff]
      %v636 = vld [vmem:[%s583 + $0x128] sm:$0xff]
      %v637 = vld [vmem:[%s583 + $0x130] sm:$0xff]
      %v638 = vld [vmem:[%s583 + $0x138] sm:$0xff]
      %v639 = vld [vmem:[%s583 + $0x140] sm:$0xff]
      %v640 = vld [vmem:[%s583 + $0x148] sm:$0xff]
      %v641 = vld [vmem:[%s583 + $0x150] sm:$0xff]
      %v642 = vld [vmem:[%s583 + $0x158] sm:$0xff]
      %v643 = vld [vmem:[%s583 + $0x160] sm:$0xff]
      %v644 = vld [vmem:[%s583 + $0x168] sm:$0xff]
      %v645 = vld [vmem:[%s583 + $0x170] sm:$0xff]
      %v646 = vld [vmem:[%s583 + $0x178] sm:$0xff]
      %v647 = vld [vmem:[%s583 + $0x180] sm:$0xff]
      %v648 = vld [vmem:[%s583 + $0x188] sm:$0xff]
      %v649 = vld [vmem:[%s583 + $0x190] sm:$0xff]
      %v650 = vld [vmem:[%s583 + $0x198] sm:$0xff]
      %v651 = vld [vmem:[%s583 + $0x1a0] sm:$0xff]
      %v652 = vld [vmem:[%s583 + $0x1a8] sm:$0xff]
      %v653 = vld [vmem:[%s583 + $0x1b0] sm:$0xff]
      %v654 = vld [vmem:[%s583 + $0x1b8] sm:$0xff]
      %v655 = vld [vmem:[%s583 + $0x1c0] sm:$0xff]
      %v656 = vld [vmem:[%s583 + $0x1c8] sm:$0xff]
      %v657 = vld [vmem:[%s583 + $0x1d0] sm:$0xff]
      %v658 = vld [vmem:[%s583 + $0x1d8] sm:$0xff]
      %v659 = vld [vmem:[%s583 + $0x1e0] sm:$0xff]
      %v660 = vld [vmem:[%s583 + $0x1e8] sm:$0xff]
      %v661 = vld [vmem:[%s583 + $0x1f0] sm:$0xff]
      %v662 = vld [vmem:[%s583 + $0x1f8] sm:$0xff]
      %v663 = vld [vmem:[%s583 + $0x200] sm:$0xff]
      %v664 = vld [vmem:[%s583 + $0x208] sm:$0xff]
      %v665 = vld [vmem:[%s583 + $0x210] sm:$0xff]
      %v666 = vld [vmem:[%s583 + $0x218] sm:$0xff]
      %v667 = vld [vmem:[%s583 + $0x220] sm:$0xff]
      %v668 = vld [vmem:[%s583 + $0x228] sm:$0xff]
      %v669 = vld [vmem:[%s583 + $0x230] sm:$0xff]
      %v670 = vld [vmem:[%s583 + $0x238] sm:$0xff]
      %v671 = vld [vmem:[%s583 + $0x240] sm:$0xff]
      %v672 = vld [vmem:[%s583 + $0x248] sm:$0xff]
      %v673 = vld [vmem:[%s583 + $0x250] sm:$0xff]
      %v674 = vld [vmem:[%s583 + $0x258] sm:$0xff]
      %v675 = vld [vmem:[%s583 + $0x260] sm:$0xff]
      %v676 = vld [vmem:[%s583 + $0x268] sm:$0xff]
      %v677 = vld [vmem:[%s583 + $0x270] sm:$0xff]
      %v678 = vld [vmem:[%s583 + $0x278] sm:$0xff]
      %v679 = vld [vmem:[%s583 + $0x280] sm:$0xff]
      %v680 = vld [vmem:[%s583 + $0x288] sm:$0xff]
      %v681 = vld [vmem:[%s583 + $0x290] sm:$0xff]
      %v682 = vld [vmem:[%s583 + $0x298] sm:$0xff]
      %v683 = vld [vmem:[%s583 + $0x2a0] sm:$0xff]
      %v684 = vld [vmem:[%s583 + $0x2a8] sm:$0xff]
      %v685 = vld [vmem:[%s583 + $0x2b0] sm:$0xff]
      %v686 = vld [vmem:[%s583 + $0x2b8] sm:$0xff]
      %v687 = vld [vmem:[%s583 + $0x2c0] sm:$0xff]
      %v688 = vld [vmem:[%s583 + $0x2c8] sm:$0xff]
      %v689 = vld [vmem:[%s583 + $0x2d0] sm:$0xff]
      %v690 = vld [vmem:[%s583 + $0x2d8] sm:$0xff]
      %v691 = vld [vmem:[%s583 + $0x2e0] sm:$0xff]
      %v692 = vld [vmem:[%s583 + $0x2e8] sm:$0xff]
      %v693 = vld [vmem:[%s583 + $0x2f0] sm:$0xff]
      %v694 = vld [vmem:[%s583 + $0x2f8] sm:$0xff]
      %v695 = vld [vmem:[%s583 + $0x300] sm:$0xff]
      %v696 = vld [vmem:[%s583 + $0x308] sm:$0xff]
      %v697 = vld [vmem:[%s583 + $0x310] sm:$0xff]
      %v698 = vld [vmem:[%s583 + $0x318] sm:$0xff]
      %v699 = vld [vmem:[%s583 + $0x320] sm:$0xff]
      %v700 = vld [vmem:[%s583 + $0x328] sm:$0xff]
      %v701 = vld [vmem:[%s583 + $0x330] sm:$0xff]
      %v702 = vld [vmem:[%s583 + $0x338] sm:$0xff]
      %v703 = vld [vmem:[%s583 + $0x340] sm:$0xff]
      %v704 = vld [vmem:[%s583 + $0x348] sm:$0xff]
      %v705 = vld [vmem:[%s583 + $0x350] sm:$0xff]
      %v706 = vld [vmem:[%s583 + $0x358] sm:$0xff]
      %v707 = vld [vmem:[%s583 + $0x360] sm:$0xff]
      %v708 = vld [vmem:[%s583 + $0x368] sm:$0xff]
      %v709 = vld [vmem:[%s583 + $0x370] sm:$0xff]
      %v710 = vld [vmem:[%s583 + $0x378] sm:$0xff]
      %v711 = vpack.c.bf16 %v606, %v599
      %v712 = vpack.c.bf16 %v607, %v600
      %v713 = vpack.c.bf16 %v608, %v601
      %v714 = vpack.c.bf16 %v609, %v602
      %v715 = vpack.c.bf16 %v610, %v603
      %v716 = vpack.c.bf16 %v611, %v604
      %v717 = vpack.c.bf16 %v612, %v605
      %v718 = vpack.c.bf16 %v620, %v613
      %v719 = vpack.c.bf16 %v621, %v614
      %v720 = vpack.c.bf16 %v622, %v615
      %v721 = vpack.c.bf16 %v623, %v616
      %v722 = vpack.c.bf16 %v624, %v617
      %v723 = vpack.c.bf16 %v625, %v618
      %v724 = vpack.c.bf16 %v626, %v619
      %v725 = vpack.c.bf16 %v634, %v627
      %v726 = vpack.c.bf16 %v635, %v628
      %v727 = vpack.c.bf16 %v636, %v629
      %v728 = vpack.c.bf16 %v637, %v630
      %v729 = vpack.c.bf16 %v638, %v631
      %v730 = vpack.c.bf16 %v639, %v632
      %v731 = vpack.c.bf16 %v640, %v633
      %v732 = vpack.c.bf16 %v648, %v641
      %v733 = vpack.c.bf16 %v649, %v642
      %v734 = vpack.c.bf16 %v650, %v643
      %v735 = vpack.c.bf16 %v651, %v644
      %v736 = vpack.c.bf16 %v652, %v645
      %v737 = vpack.c.bf16 %v653, %v646
      %v738 = vpack.c.bf16 %v654, %v647
      %v739 = vpack.c.bf16 %v662, %v655
      %v740 = vpack.c.bf16 %v663, %v656
      %v741 = vpack.c.bf16 %v664, %v657
      %v742 = vpack.c.bf16 %v665, %v658
      %v743 = vpack.c.bf16 %v666, %v659
      %v744 = vpack.c.bf16 %v667, %v660
      %v745 = vpack.c.bf16 %v668, %v661
      %v746 = vpack.c.bf16 %v676, %v669
      %v747 = vpack.c.bf16 %v677, %v670
      %v748 = vpack.c.bf16 %v678, %v671
      %v749 = vpack.c.bf16 %v679, %v672
      %v750 = vpack.c.bf16 %v680, %v673
      %v751 = vpack.c.bf16 %v681, %v674
      %v752 = vpack.c.bf16 %v682, %v675
      %v753 = vpack.c.bf16 %v690, %v683
      %v754 = vpack.c.bf16 %v691, %v684
      %v755 = vpack.c.bf16 %v692, %v685
      %v756 = vpack.c.bf16 %v693, %v686
      %v757 = vpack.c.bf16 %v694, %v687
      %v758 = vpack.c.bf16 %v695, %v688
      %v759 = vpack.c.bf16 %v696, %v689
      %v760 = vpack.c.bf16 %v704, %v697
      %v761 = vpack.c.bf16 %v705, %v698
      %v762 = vpack.c.bf16 %v706, %v699
      %v763 = vpack.c.bf16 %v707, %v700
      %v764 = vpack.c.bf16 %v708, %v701
      %v765 = vpack.c.bf16 %v709, %v702
      %v766 = vpack.c.bf16 %v710, %v703
      %v767 = vld [vmem:[%s583 + $0x380] sm:$0xff]
      %v768 = vld [vmem:[%s583 + $0x388] sm:$0xff]
      %v769 = vld [vmem:[%s583 + $0x390] sm:$0xff]
      %v770 = vld [vmem:[%s583 + $0x398] sm:$0xff]
      %v771 = vld [vmem:[%s583 + $0x3a0] sm:$0xff]
      %v772 = vld [vmem:[%s583 + $0x3a8] sm:$0xff]
      %v773 = vld [vmem:[%s583 + $0x3b0] sm:$0xff]
      %v774 = vld [vmem:[%s583 + $0x3b8] sm:$0xff]
      %v775 = vld [vmem:[%s583 + $0x3c0] sm:$0xff]
      %v776 = vld [vmem:[%s583 + $0x3c8] sm:$0xff]
      %v777 = vld [vmem:[%s583 + $0x3d0] sm:$0xff]
      %v778 = vld [vmem:[%s583 + $0x3d8] sm:$0xff]
      %v779 = vld [vmem:[%s583 + $0x3e0] sm:$0xff]
      %v780 = vld [vmem:[%s583 + $0x3e8] sm:$0xff]
      %v781 = vld [vmem:[%s583 + $0x3f0] sm:$0xff]
      %v782 = vld [vmem:[%s583 + $0x3f8] sm:$0xff]
      %v783 = vld [vmem:[%s583 + $0x400] sm:$0xff]
      %v784 = vld [vmem:[%s583 + $0x408] sm:$0xff]
      %v785 = vld [vmem:[%s583 + $0x410] sm:$0xff]
      %v786 = vld [vmem:[%s583 + $0x418] sm:$0xff]
      %v787 = vld [vmem:[%s583 + $0x420] sm:$0xff]
      %v788 = vld [vmem:[%s583 + $0x428] sm:$0xff]
      %v789 = vld [vmem:[%s583 + $0x430] sm:$0xff]
      %v790 = vld [vmem:[%s583 + $0x438] sm:$0xff]
      %v791 = vld [vmem:[%s583 + $0x440] sm:$0xff]
      %v792 = vld [vmem:[%s583 + $0x448] sm:$0xff]
      %v793 = vld [vmem:[%s583 + $0x450] sm:$0xff]
      %v794 = vld [vmem:[%s583 + $0x458] sm:$0xff]
      %v795 = vld [vmem:[%s583 + $0x460] sm:$0xff]
      %v796 = vld [vmem:[%s583 + $0x468] sm:$0xff]
      %v797 = vld [vmem:[%s583 + $0x470] sm:$0xff]
      %v798 = vld [vmem:[%s583 + $0x478] sm:$0xff]
      %v799 = vld [vmem:[%s583 + $0x480] sm:$0xff]
      %v800 = vld [vmem:[%s583 + $0x488] sm:$0xff]
      %v801 = vld [vmem:[%s583 + $0x490] sm:$0xff]
      %v802 = vld [vmem:[%s583 + $0x498] sm:$0xff]
      %v803 = vld [vmem:[%s583 + $0x4a0] sm:$0xff]
      %v804 = vld [vmem:[%s583 + $0x4a8] sm:$0xff]
      %v805 = vld [vmem:[%s583 + $0x4b0] sm:$0xff]
      %v806 = vld [vmem:[%s583 + $0x4b8] sm:$0xff]
      %v807 = vld [vmem:[%s583 + $0x4c0] sm:$0xff]
      %v808 = vld [vmem:[%s583 + $0x4c8] sm:$0xff]
      %v809 = vld [vmem:[%s583 + $0x4d0] sm:$0xff]
      %v810 = vld [vmem:[%s583 + $0x4d8] sm:$0xff]
      %v811 = vld [vmem:[%s583 + $0x4e0] sm:$0xff]
      %v812 = vld [vmem:[%s583 + $0x4e8] sm:$0xff]
      %v813 = vld [vmem:[%s583 + $0x4f0] sm:$0xff]
      %v814 = vld [vmem:[%s583 + $0x4f8] sm:$0xff]
      %v815 = vld [vmem:[%s583 + $0x500] sm:$0xff]
      %v816 = vld [vmem:[%s583 + $0x508] sm:$0xff]
      %v817 = vld [vmem:[%s583 + $0x510] sm:$0xff]
      %v818 = vld [vmem:[%s583 + $0x518] sm:$0xff]
      %v819 = vld [vmem:[%s583 + $0x520] sm:$0xff]
      %v820 = vld [vmem:[%s583 + $0x528] sm:$0xff]
      %v821 = vld [vmem:[%s583 + $0x530] sm:$0xff]
      %v822 = vld [vmem:[%s583 + $0x538] sm:$0xff]
      %v823 = vld [vmem:[%s583 + $0x540] sm:$0xff]
      %v824 = vld [vmem:[%s583 + $0x548] sm:$0xff]
      %v825 = vld [vmem:[%s583 + $0x550] sm:$0xff]
      %v826 = vld [vmem:[%s583 + $0x558] sm:$0xff]
      %v827 = vld [vmem:[%s583 + $0x560] sm:$0xff]
      %v828 = vld [vmem:[%s583 + $0x568] sm:$0xff]
      %v829 = vld [vmem:[%s583 + $0x570] sm:$0xff]
      %v830 = vld [vmem:[%s583 + $0x578] sm:$0xff]
      %v831 = vld [vmem:[%s583 + $0x580] sm:$0xff]
      %v832 = vld [vmem:[%s583 + $0x588] sm:$0xff]
      %v833 = vld [vmem:[%s583 + $0x590] sm:$0xff]
      %v834 = vld [vmem:[%s583 + $0x598] sm:$0xff]
      %v835 = vld [vmem:[%s583 + $0x5a0] sm:$0xff]
      %v836 = vld [vmem:[%s583 + $0x5a8] sm:$0xff]
      %v837 = vld [vmem:[%s583 + $0x5b0] sm:$0xff]
      %v838 = vld [vmem:[%s583 + $0x5b8] sm:$0xff]
      %v839 = vld [vmem:[%s583 + $0x5c0] sm:$0xff]
      %v840 = vld [vmem:[%s583 + $0x5c8] sm:$0xff]
      %v841 = vld [vmem:[%s583 + $0x5d0] sm:$0xff]
      %v842 = vld [vmem:[%s583 + $0x5d8] sm:$0xff]
      %v843 = vld [vmem:[%s583 + $0x5e0] sm:$0xff]
      %v844 = vld [vmem:[%s583 + $0x5e8] sm:$0xff]
      %v845 = vld [vmem:[%s583 + $0x5f0] sm:$0xff]
      %v846 = vld [vmem:[%s583 + $0x5f8] sm:$0xff]
      %v847 = vld [vmem:[%s583 + $0x600] sm:$0xff]
      %v848 = vld [vmem:[%s583 + $0x608] sm:$0xff]
      %v849 = vld [vmem:[%s583 + $0x610] sm:$0xff]
      %v850 = vld [vmem:[%s583 + $0x618] sm:$0xff]
      %v851 = vld [vmem:[%s583 + $0x620] sm:$0xff]
      %v852 = vld [vmem:[%s583 + $0x628] sm:$0xff]
      %v853 = vld [vmem:[%s583 + $0x630] sm:$0xff]
      %v854 = vld [vmem:[%s583 + $0x638] sm:$0xff]
      %v855 = vld [vmem:[%s583 + $0x640] sm:$0xff]
      %v856 = vld [vmem:[%s583 + $0x648] sm:$0xff]
      %v857 = vld [vmem:[%s583 + $0x650] sm:$0xff]
      %v858 = vld [vmem:[%s583 + $0x658] sm:$0xff]
      %v859 = vld [vmem:[%s583 + $0x660] sm:$0xff]
      %v860 = vld [vmem:[%s583 + $0x668] sm:$0xff]
      %v861 = vld [vmem:[%s583 + $0x670] sm:$0xff]
      %v862 = vld [vmem:[%s583 + $0x678] sm:$0xff]
      %v863 = vld [vmem:[%s583 + $0x680] sm:$0xff]
      %v864 = vld [vmem:[%s583 + $0x688] sm:$0xff]
      %v865 = vld [vmem:[%s583 + $0x690] sm:$0xff]
      %v866 = vld [vmem:[%s583 + $0x698] sm:$0xff]
      %v867 = vld [vmem:[%s583 + $0x6a0] sm:$0xff]
      %v868 = vld [vmem:[%s583 + $0x6a8] sm:$0xff]
      %v869 = vld [vmem:[%s583 + $0x6b0] sm:$0xff]
      %v870 = vld [vmem:[%s583 + $0x6b8] sm:$0xff]
      %v871 = vld [vmem:[%s583 + $0x6c0] sm:$0xff]
      %v872 = vld [vmem:[%s583 + $0x6c8] sm:$0xff]
      %v873 = vld [vmem:[%s583 + $0x6d0] sm:$0xff]
      %v874 = vld [vmem:[%s583 + $0x6d8] sm:$0xff]
      %v875 = vld [vmem:[%s583 + $0x6e0] sm:$0xff]
      %v876 = vld [vmem:[%s583 + $0x6e8] sm:$0xff]
      %v877 = vld [vmem:[%s583 + $0x6f0] sm:$0xff]
      %v878 = vld [vmem:[%s583 + $0x6f8] sm:$0xff]
      %v879 = vpack.c.bf16 %v774, %v767
      %v880 = vpack.c.bf16 %v775, %v768
      %v881 = vpack.c.bf16 %v776, %v769
      %v882 = vpack.c.bf16 %v777, %v770
      %v883 = vpack.c.bf16 %v778, %v771
      %v884 = vpack.c.bf16 %v779, %v772
      %v885 = vpack.c.bf16 %v780, %v773
      %v886 = vpack.c.bf16 %v788, %v781
      %v887 = vpack.c.bf16 %v789, %v782
      %v888 = vpack.c.bf16 %v790, %v783
      %v889 = vpack.c.bf16 %v791, %v784
      %v890 = vpack.c.bf16 %v792, %v785
      %v891 = vpack.c.bf16 %v793, %v786
      %v892 = vpack.c.bf16 %v794, %v787
      %v893 = vpack.c.bf16 %v802, %v795
      %v894 = vpack.c.bf16 %v803, %v796
      %v895 = vpack.c.bf16 %v804, %v797
      %v896 = vpack.c.bf16 %v805, %v798
      %v897 = vpack.c.bf16 %v806, %v799
      %v898 = vpack.c.bf16 %v807, %v800
      %v899 = vpack.c.bf16 %v808, %v801
      %v900 = vpack.c.bf16 %v816, %v809
      %v901 = vpack.c.bf16 %v817, %v810
      %v902 = vpack.c.bf16 %v818, %v811
      %v903 = vpack.c.bf16 %v819, %v812
      %v904 = vpack.c.bf16 %v820, %v813
      %v905 = vpack.c.bf16 %v821, %v814
      %v906 = vpack.c.bf16 %v822, %v815
      %v907 = vpack.c.bf16 %v830, %v823
      %v908 = vpack.c.bf16 %v831, %v824
      %v909 = vpack.c.bf16 %v832, %v825
      %v910 = vpack.c.bf16 %v833, %v826
      %v911 = vpack.c.bf16 %v834, %v827
      %v912 = vpack.c.bf16 %v835, %v828
      %v913 = vpack.c.bf16 %v836, %v829
      %v914 = vpack.c.bf16 %v844, %v837
      %v915 = vpack.c.bf16 %v845, %v838
      %v916 = vpack.c.bf16 %v846, %v839
      %v917 = vpack.c.bf16 %v847, %v840
      %v918 = vpack.c.bf16 %v848, %v841
      %v919 = vpack.c.bf16 %v849, %v842
      %v920 = vpack.c.bf16 %v850, %v843
      %v921 = vpack.c.bf16 %v858, %v851
      %v922 = vpack.c.bf16 %v859, %v852
      %v923 = vpack.c.bf16 %v860, %v853
      %v924 = vpack.c.bf16 %v861, %v854
      %v925 = vpack.c.bf16 %v862, %v855
      %v926 = vpack.c.bf16 %v863, %v856
      %v927 = vpack.c.bf16 %v864, %v857
      %v928 = vpack.c.bf16 %v872, %v865
      %v929 = vpack.c.bf16 %v873, %v866
      %v930 = vpack.c.bf16 %v874, %v867
      %v931 = vpack.c.bf16 %v875, %v868
      %v932 = vpack.c.bf16 %v876, %v869
      %v933 = vpack.c.bf16 %v877, %v870
      %v934 = vpack.c.bf16 %v878, %v871
      %v935 = vld [vmem:[%s1] sm:$0xff]
      %v936 = vld [vmem:[%s1 + $0x8] sm:$0xff]
      %v937 = vld [vmem:[%s1 + $0x10] sm:$0xff]
      %v938 = vld [vmem:[%s1 + $0x18] sm:$0xff]
      %v939 = vld [vmem:[%s1 + $0x20] sm:$0xff]
      %v940 = vld [vmem:[%s1 + $0x28] sm:$0xff]
      %v941 = vld [vmem:[%s1 + $0x30] sm:$0xff]
      %v942 = vld [vmem:[%s1 + $0x38] sm:$0xff]
      %v943 = vld [vmem:[%s1 + $0x40] sm:$0xff]
      %v944 = vld [vmem:[%s1 + $0x48] sm:$0xff]
      %v945 = vld [vmem:[%s1 + $0x50] sm:$0xff]
      %v946 = vld [vmem:[%s1 + $0x58] sm:$0xff]
      %v947 = vld [vmem:[%s1 + $0x60] sm:$0xff]
      %v948 = vld [vmem:[%s1 + $0x68] sm:$0xff]
      %v949 = vld [vmem:[%s1 + $0x70] sm:$0xff]
      %v950 = vld [vmem:[%s1 + $0x78] sm:$0xff]
      %v951 = vld [vmem:[%s1 + $0x80] sm:$0xff]
      %v952 = vld [vmem:[%s1 + $0x88] sm:$0xff]
      %v953 = vld [vmem:[%s1 + $0x90] sm:$0xff]
      %v954 = vld [vmem:[%s1 + $0x98] sm:$0xff]
      %v955 = vld [vmem:[%s1 + $0xa0] sm:$0xff]
      %v956 = vld [vmem:[%s1 + $0xa8] sm:$0xff]
      %v957 = vld [vmem:[%s1 + $0xb0] sm:$0xff]
      %v958 = vld [vmem:[%s1 + $0xb8] sm:$0xff]
      %v959 = vld [vmem:[%s1 + $0xc0] sm:$0xff]
      %v960 = vld [vmem:[%s1 + $0xc8] sm:$0xff]
      %v961 = vld [vmem:[%s1 + $0xd0] sm:$0xff]
      %v962 = vld [vmem:[%s1 + $0xd8] sm:$0xff]
      %v963 = vld [vmem:[%s1 + $0xe0] sm:$0xff]
      %v964 = vld [vmem:[%s1 + $0xe8] sm:$0xff]
      %v965 = vld [vmem:[%s1 + $0xf0] sm:$0xff]
      %v966 = vld [vmem:[%s1 + $0xf8] sm:$0xff]
      %v967 = vld [vmem:[%s1 + $0x100] sm:$0xff]
      %v968 = vld [vmem:[%s1 + $0x108] sm:$0xff]
      %v969 = vld [vmem:[%s1 + $0x110] sm:$0xff]
      %v970 = vld [vmem:[%s1 + $0x118] sm:$0xff]
      %v971 = vld [vmem:[%s1 + $0x120] sm:$0xff]
      %v972 = vld [vmem:[%s1 + $0x128] sm:$0xff]
      %v973 = vld [vmem:[%s1 + $0x130] sm:$0xff]
      %v974 = vld [vmem:[%s1 + $0x138] sm:$0xff]
      %v975 = vld [vmem:[%s1 + $0x140] sm:$0xff]
      %v976 = vld [vmem:[%s1 + $0x148] sm:$0xff]
      %v977 = vld [vmem:[%s1 + $0x150] sm:$0xff]
      %v978 = vld [vmem:[%s1 + $0x158] sm:$0xff]
      %v979 = vld [vmem:[%s1 + $0x160] sm:$0xff]
      %v980 = vld [vmem:[%s1 + $0x168] sm:$0xff]
      %v981 = vld [vmem:[%s1 + $0x170] sm:$0xff]
      %v982 = vld [vmem:[%s1 + $0x178] sm:$0xff]
      %v983 = vld [vmem:[%s1 + $0x180] sm:$0xff]
      %v984 = vld [vmem:[%s1 + $0x188] sm:$0xff]
      %v985 = vld [vmem:[%s1 + $0x190] sm:$0xff]
      %v986 = vld [vmem:[%s1 + $0x198] sm:$0xff]
      %v987 = vld [vmem:[%s1 + $0x1a0] sm:$0xff]
      %v988 = vld [vmem:[%s1 + $0x1a8] sm:$0xff]
      %v989 = vld [vmem:[%s1 + $0x1b0] sm:$0xff]
      %v990 = vld [vmem:[%s1 + $0x1b8] sm:$0xff]
      %v991 = vld [vmem:[%s1 + $0x1c0] sm:$0xff]
      %v992 = vld [vmem:[%s1 + $0x1c8] sm:$0xff]
      %v993 = vld [vmem:[%s1 + $0x1d0] sm:$0xff]
      %v994 = vld [vmem:[%s1 + $0x1d8] sm:$0xff]
      %v995 = vld [vmem:[%s1 + $0x1e0] sm:$0xff]
      %v996 = vld [vmem:[%s1 + $0x1e8] sm:$0xff]
      %v997 = vld [vmem:[%s1 + $0x1f0] sm:$0xff]
      %v998 = vld [vmem:[%s1 + $0x1f8] sm:$0xff]
      %v999 = vld [vmem:[%s1 + $0x200] sm:$0xff]
      %v1000 = vld [vmem:[%s1 + $0x208] sm:$0xff]
      %v1001 = vld [vmem:[%s1 + $0x210] sm:$0xff]
      %v1002 = vld [vmem:[%s1 + $0x218] sm:$0xff]
      %v1003 = vld [vmem:[%s1 + $0x220] sm:$0xff]
      %v1004 = vld [vmem:[%s1 + $0x228] sm:$0xff]
      %v1005 = vld [vmem:[%s1 + $0x230] sm:$0xff]
      %v1006 = vld [vmem:[%s1 + $0x238] sm:$0xff]
      %v1007 = vld [vmem:[%s1 + $0x240] sm:$0xff]
      %v1008 = vld [vmem:[%s1 + $0x248] sm:$0xff]
      %v1009 = vld [vmem:[%s1 + $0x250] sm:$0xff]
      %v1010 = vld [vmem:[%s1 + $0x258] sm:$0xff]
      %v1011 = vld [vmem:[%s1 + $0x260] sm:$0xff]
      %v1012 = vld [vmem:[%s1 + $0x268] sm:$0xff]
      %v1013 = vld [vmem:[%s1 + $0x270] sm:$0xff]
      %v1014 = vld [vmem:[%s1 + $0x278] sm:$0xff]
      %v1015 = vld [vmem:[%s1 + $0x280] sm:$0xff]
      %v1016 = vld [vmem:[%s1 + $0x288] sm:$0xff]
      %v1017 = vld [vmem:[%s1 + $0x290] sm:$0xff]
      %v1018 = vld [vmem:[%s1 + $0x298] sm:$0xff]
      %v1019 = vld [vmem:[%s1 + $0x2a0] sm:$0xff]
      %v1020 = vld [vmem:[%s1 + $0x2a8] sm:$0xff]
      %v1021 = vld [vmem:[%s1 + $0x2b0] sm:$0xff]
      %v1022 = vld [vmem:[%s1 + $0x2b8] sm:$0xff]
      %v1023 = vld [vmem:[%s1 + $0x2c0] sm:$0xff]
      %v1024 = vld [vmem:[%s1 + $0x2c8] sm:$0xff]
      %v1025 = vld [vmem:[%s1 + $0x2d0] sm:$0xff]
      %v1026 = vld [vmem:[%s1 + $0x2d8] sm:$0xff]
      %v1027 = vld [vmem:[%s1 + $0x2e0] sm:$0xff]
      %v1028 = vld [vmem:[%s1 + $0x2e8] sm:$0xff]
      %v1029 = vld [vmem:[%s1 + $0x2f0] sm:$0xff]
      %v1030 = vld [vmem:[%s1 + $0x2f8] sm:$0xff]
      %v1031 = vld [vmem:[%s1 + $0x300] sm:$0xff]
      %v1032 = vld [vmem:[%s1 + $0x308] sm:$0xff]
      %v1033 = vld [vmem:[%s1 + $0x310] sm:$0xff]
      %v1034 = vld [vmem:[%s1 + $0x318] sm:$0xff]
      %v1035 = vld [vmem:[%s1 + $0x320] sm:$0xff]
      %v1036 = vld [vmem:[%s1 + $0x328] sm:$0xff]
      %v1037 = vld [vmem:[%s1 + $0x330] sm:$0xff]
      %v1038 = vld [vmem:[%s1 + $0x338] sm:$0xff]
      %v1039 = vld [vmem:[%s1 + $0x340] sm:$0xff]
      %v1040 = vld [vmem:[%s1 + $0x348] sm:$0xff]
      %v1041 = vld [vmem:[%s1 + $0x350] sm:$0xff]
      %v1042 = vld [vmem:[%s1 + $0x358] sm:$0xff]
      %v1043 = vld [vmem:[%s1 + $0x360] sm:$0xff]
      %v1044 = vld [vmem:[%s1 + $0x368] sm:$0xff]
      %v1045 = vld [vmem:[%s1 + $0x370] sm:$0xff]
      %v1046 = vld [vmem:[%s1 + $0x378] sm:$0xff]
      %v1047 = vld [vmem:[%s1 + $0x380] sm:$0xff]
      %v1048 = vld [vmem:[%s1 + $0x388] sm:$0xff]
      %v1049 = vld [vmem:[%s1 + $0x390] sm:$0xff]
      %v1050 = vld [vmem:[%s1 + $0x398] sm:$0xff]
      %v1051 = vld [vmem:[%s1 + $0x3a0] sm:$0xff]
      %v1052 = vld [vmem:[%s1 + $0x3a8] sm:$0xff]
      %v1053 = vld [vmem:[%s1 + $0x3b0] sm:$0xff]
      %v1054 = vld [vmem:[%s1 + $0x3b8] sm:$0xff]
      %v1055 = vld [vmem:[%s1 + $0x3c0] sm:$0xff]
      %v1056 = vld [vmem:[%s1 + $0x3c8] sm:$0xff]
      %v1057 = vld [vmem:[%s1 + $0x3d0] sm:$0xff]
      %v1058 = vld [vmem:[%s1 + $0x3d8] sm:$0xff]
      %v1059 = vld [vmem:[%s1 + $0x3e0] sm:$0xff]
      %v1060 = vld [vmem:[%s1 + $0x3e8] sm:$0xff]
      %v1061 = vld [vmem:[%s1 + $0x3f0] sm:$0xff]
      %v1062 = vld [vmem:[%s1 + $0x3f8] sm:$0xff]
      %v1063 = vld [vmem:[%s1 + $0x400] sm:$0xff]
      %v1064 = vld [vmem:[%s1 + $0x408] sm:$0xff]
      %v1065 = vld [vmem:[%s1 + $0x410] sm:$0xff]
      %v1066 = vld [vmem:[%s1 + $0x418] sm:$0xff]
      %v1067 = vld [vmem:[%s1 + $0x420] sm:$0xff]
      %v1068 = vld [vmem:[%s1 + $0x428] sm:$0xff]
      %v1069 = vld [vmem:[%s1 + $0x430] sm:$0xff]
      %v1070 = vld [vmem:[%s1 + $0x438] sm:$0xff]
      %v1071 = vld [vmem:[%s1 + $0x440] sm:$0xff]
      %v1072 = vld [vmem:[%s1 + $0x448] sm:$0xff]
      %v1073 = vld [vmem:[%s1 + $0x450] sm:$0xff]
      %v1074 = vld [vmem:[%s1 + $0x458] sm:$0xff]
      %v1075 = vld [vmem:[%s1 + $0x460] sm:$0xff]
      %v1076 = vld [vmem:[%s1 + $0x468] sm:$0xff]
      %v1077 = vld [vmem:[%s1 + $0x470] sm:$0xff]
      %v1078 = vld [vmem:[%s1 + $0x478] sm:$0xff]
      %v1079 = vld [vmem:[%s1 + $0x480] sm:$0xff]
      %v1080 = vld [vmem:[%s1 + $0x488] sm:$0xff]
      %v1081 = vld [vmem:[%s1 + $0x490] sm:$0xff]
      %v1082 = vld [vmem:[%s1 + $0x498] sm:$0xff]
      %v1083 = vld [vmem:[%s1 + $0x4a0] sm:$0xff]
      %v1084 = vld [vmem:[%s1 + $0x4a8] sm:$0xff]
      %v1085 = vld [vmem:[%s1 + $0x4b0] sm:$0xff]
      %v1086 = vld [vmem:[%s1 + $0x4b8] sm:$0xff]
      %v1087 = vld [vmem:[%s1 + $0x4c0] sm:$0xff]
      %v1088 = vld [vmem:[%s1 + $0x4c8] sm:$0xff]
      %v1089 = vld [vmem:[%s1 + $0x4d0] sm:$0xff]
      %v1090 = vld [vmem:[%s1 + $0x4d8] sm:$0xff]
      %v1091 = vld [vmem:[%s1 + $0x4e0] sm:$0xff]
      %v1092 = vld [vmem:[%s1 + $0x4e8] sm:$0xff]
      %v1093 = vld [vmem:[%s1 + $0x4f0] sm:$0xff]
      %v1094 = vld [vmem:[%s1 + $0x4f8] sm:$0xff]
      %v1095 = vld [vmem:[%s1 + $0x500] sm:$0xff]
      %v1096 = vld [vmem:[%s1 + $0x508] sm:$0xff]
      %v1097 = vld [vmem:[%s1 + $0x510] sm:$0xff]
      %v1098 = vld [vmem:[%s1 + $0x518] sm:$0xff]
      %v1099 = vld [vmem:[%s1 + $0x520] sm:$0xff]
      %v1100 = vld [vmem:[%s1 + $0x528] sm:$0xff]
      %v1101 = vld [vmem:[%s1 + $0x530] sm:$0xff]
      %v1102 = vld [vmem:[%s1 + $0x538] sm:$0xff]
      %v1103 = vld [vmem:[%s1 + $0x540] sm:$0xff]
      %v1104 = vld [vmem:[%s1 + $0x548] sm:$0xff]
      %v1105 = vld [vmem:[%s1 + $0x550] sm:$0xff]
      %v1106 = vld [vmem:[%s1 + $0x558] sm:$0xff]
      %v1107 = vld [vmem:[%s1 + $0x560] sm:$0xff]
      %v1108 = vld [vmem:[%s1 + $0x568] sm:$0xff]
      %v1109 = vld [vmem:[%s1 + $0x570] sm:$0xff]
      %v1110 = vld [vmem:[%s1 + $0x578] sm:$0xff]
      %v1111 = vld [vmem:[%s1 + $0x580] sm:$0xff]
      %v1112 = vld [vmem:[%s1 + $0x588] sm:$0xff]
      %v1113 = vld [vmem:[%s1 + $0x590] sm:$0xff]
      %v1114 = vld [vmem:[%s1 + $0x598] sm:$0xff]
      %v1115 = vld [vmem:[%s1 + $0x5a0] sm:$0xff]
      %v1116 = vld [vmem:[%s1 + $0x5a8] sm:$0xff]
      %v1117 = vld [vmem:[%s1 + $0x5b0] sm:$0xff]
      %v1118 = vld [vmem:[%s1 + $0x5b8] sm:$0xff]
      %v1119 = vld [vmem:[%s1 + $0x5c0] sm:$0xff]
      %v1120 = vld [vmem:[%s1 + $0x5c8] sm:$0xff]
      %v1121 = vld [vmem:[%s1 + $0x5d0] sm:$0xff]
      %v1122 = vld [vmem:[%s1 + $0x5d8] sm:$0xff]
      %v1123 = vld [vmem:[%s1 + $0x5e0] sm:$0xff]
      %v1124 = vld [vmem:[%s1 + $0x5e8] sm:$0xff]
      %v1125 = vld [vmem:[%s1 + $0x5f0] sm:$0xff]
      %v1126 = vld [vmem:[%s1 + $0x5f8] sm:$0xff]
      %v1127 = vld [vmem:[%s1 + $0x600] sm:$0xff]
      %v1128 = vld [vmem:[%s1 + $0x608] sm:$0xff]
      %v1129 = vld [vmem:[%s1 + $0x610] sm:$0xff]
      %v1130 = vld [vmem:[%s1 + $0x618] sm:$0xff]
      %v1131 = vld [vmem:[%s9] sm:$0xf]
      %v1133 = vlaneseq
      %v1134 = vshrl.u32 %v1133, 7
      %v1135 = vsub.s32 0, %v1134
      %v1136 = vrot.slane %v1131, %v1135
      %v1137 = vlaneseq
      %v1138 = vshrl.u32 %v1137, 7
      %v1139 = vsub.s32 1, %v1138
      %v1140 = vrot.slane %v1131, %v1139
      %v1141 = vlaneseq
      %v1142 = vshrl.u32 %v1141, 7
      %v1143 = vsub.s32 2, %v1142
      %v1144 = vrot.slane %v1131, %v1143
      %v1145 = vlaneseq
      %v1146 = vshrl.u32 %v1145, 7
      %v1147 = vsub.s32 3, %v1146
      %v1148 = vrot.slane %v1131, %v1147
      %v1349 = vunpack.c.l.b16 %v935
      %v1350 = vunpack.c.h.b16 %v935
      %v1351 = vunpack.c.l.b16 %v936
      %v1352 = vunpack.c.h.b16 %v936
      %v1353 = vunpack.c.l.b16 %v937
      %v1354 = vunpack.c.h.b16 %v937
      %v1355 = vunpack.c.l.b16 %v938
      %v1356 = vunpack.c.h.b16 %v938
      %v1357 = vunpack.c.l.b16 %v939
      %v1358 = vunpack.c.h.b16 %v939
      %v1359 = vunpack.c.l.b16 %v940
      %v1360 = vunpack.c.h.b16 %v940
      %v1361 = vunpack.c.l.b16 %v941
      %v1362 = vunpack.c.h.b16 %v941
      %v1363 = vunpack.c.l.b16 %v942
      %v1364 = vunpack.c.h.b16 %v942
      %v1365 = vunpack.c.l.b16 %v943
      %v1366 = vunpack.c.h.b16 %v943
      %v1367 = vunpack.c.l.b16 %v944
      %v1368 = vunpack.c.h.b16 %v944
      %v1369 = vunpack.c.l.b16 %v945
      %v1370 = vunpack.c.h.b16 %v945
      %v1371 = vunpack.c.l.b16 %v946
      %v1372 = vunpack.c.h.b16 %v946
      %v1373 = vunpack.c.l.b16 %v947
      %v1374 = vunpack.c.h.b16 %v947
      %v1375 = vunpack.c.l.b16 %v948
      %v1376 = vunpack.c.h.b16 %v948
      %v1377 = vunpack.c.l.b16 %v949
      %v1378 = vunpack.c.h.b16 %v949
      %v1379 = vunpack.c.l.b16 %v950
      %v1380 = vunpack.c.h.b16 %v950
      %v1381 = vunpack.c.l.b16 %v951
      %v1382 = vunpack.c.h.b16 %v951
      %v1383 = vunpack.c.l.b16 %v952
      %v1384 = vunpack.c.h.b16 %v952
      %v1385 = vunpack.c.l.b16 %v953
      %v1386 = vunpack.c.h.b16 %v953
      %v1387 = vunpack.c.l.b16 %v954
      %v1388 = vunpack.c.h.b16 %v954
      %v1389 = vunpack.c.l.b16 %v955
      %v1390 = vunpack.c.h.b16 %v955
      %v1391 = vunpack.c.l.b16 %v956
      %v1392 = vunpack.c.h.b16 %v956
      %v1393 = vunpack.c.l.b16 %v957
      %v1394 = vunpack.c.h.b16 %v957
      %v1395 = vunpack.c.l.b16 %v958
      %v1396 = vunpack.c.h.b16 %v958
      %v1397 = vunpack.c.l.b16 %v959
      %v1398 = vunpack.c.h.b16 %v959
      %v1399 = vunpack.c.l.b16 %v960
      %v1400 = vunpack.c.h.b16 %v960
      %v1401 = vunpack.c.l.b16 %v961
      %v1402 = vunpack.c.h.b16 %v961
      %v1403 = vunpack.c.l.b16 %v962
      %v1404 = vunpack.c.h.b16 %v962
      %v1405 = vunpack.c.l.b16 %v963
      %v1406 = vunpack.c.h.b16 %v963
      %v1407 = vunpack.c.l.b16 %v964
      %v1408 = vunpack.c.h.b16 %v964
      %v1409 = vunpack.c.l.b16 %v965
      %v1410 = vunpack.c.h.b16 %v965
      %v1411 = vunpack.c.l.b16 %v966
      %v1412 = vunpack.c.h.b16 %v966
      %v1413 = vunpack.c.l.b16 %v967
      %v1414 = vunpack.c.h.b16 %v967
      %v1415 = vunpack.c.l.b16 %v968
      %v1416 = vunpack.c.h.b16 %v968
      %v1417 = vunpack.c.l.b16 %v969
      %v1418 = vunpack.c.h.b16 %v969
      %v1419 = vunpack.c.l.b16 %v970
      %v1420 = vunpack.c.h.b16 %v970
      %v1421 = vunpack.c.l.b16 %v971
      %v1422 = vunpack.c.h.b16 %v971
      %v1423 = vunpack.c.l.b16 %v972
      %v1424 = vunpack.c.h.b16 %v972
      %v1425 = vunpack.c.l.b16 %v973
      %v1426 = vunpack.c.h.b16 %v973
      %v1427 = vunpack.c.l.b16 %v974
      %v1428 = vunpack.c.h.b16 %v974
      %v1429 = vunpack.c.l.b16 %v975
      %v1430 = vunpack.c.h.b16 %v975
      %v1431 = vunpack.c.l.b16 %v976
      %v1432 = vunpack.c.h.b16 %v976
      %v1433 = vunpack.c.l.b16 %v977
      %v1434 = vunpack.c.h.b16 %v977
      %v1435 = vunpack.c.l.b16 %v978
      %v1436 = vunpack.c.h.b16 %v978
      %v1437 = vunpack.c.l.b16 %v979
      %v1438 = vunpack.c.h.b16 %v979
      %v1439 = vunpack.c.l.b16 %v980
      %v1440 = vunpack.c.h.b16 %v980
      %v1441 = vunpack.c.l.b16 %v981
      %v1442 = vunpack.c.h.b16 %v981
      %v1443 = vunpack.c.l.b16 %v982
      %v1444 = vunpack.c.h.b16 %v982
      %v1445 = vunpack.c.l.b16 %v983
      %v1446 = vunpack.c.h.b16 %v983
      %v1447 = vunpack.c.l.b16 %v984
      %v1448 = vunpack.c.h.b16 %v984
      %v1449 = vunpack.c.l.b16 %v985
      %v1450 = vunpack.c.h.b16 %v985
      %v1451 = vunpack.c.l.b16 %v986
      %v1452 = vunpack.c.h.b16 %v986
      %v1453 = vunpack.c.l.b16 %v987
      %v1454 = vunpack.c.h.b16 %v987
      %v1455 = vunpack.c.l.b16 %v988
      %v1456 = vunpack.c.h.b16 %v988
      %v1457 = vunpack.c.l.b16 %v989
      %v1458 = vunpack.c.h.b16 %v989
      %v1459 = vunpack.c.l.b16 %v990
      %v1460 = vunpack.c.h.b16 %v990
      %v1461 = vunpack.c.l.b16 %v991
      %v1462 = vunpack.c.h.b16 %v991
      %v1463 = vunpack.c.l.b16 %v992
      %v1464 = vunpack.c.h.b16 %v992
      %v1465 = vunpack.c.l.b16 %v993
      %v1466 = vunpack.c.h.b16 %v993
      %v1467 = vunpack.c.l.b16 %v994
      %v1468 = vunpack.c.h.b16 %v994
      %v1469 = vunpack.c.l.b16 %v995
      %v1470 = vunpack.c.h.b16 %v995
      %v1471 = vunpack.c.l.b16 %v996
      %v1472 = vunpack.c.h.b16 %v996
      %v1473 = vunpack.c.l.b16 %v997
      %v1474 = vunpack.c.h.b16 %v997
      %v1475 = vunpack.c.l.b16 %v998
      %v1476 = vunpack.c.h.b16 %v998
      %v1477 = vunpack.c.l.b16 %v999
      %v1478 = vunpack.c.h.b16 %v999
      %v1479 = vunpack.c.l.b16 %v1000
      %v1480 = vunpack.c.h.b16 %v1000
      %v1481 = vunpack.c.l.b16 %v1001
      %v1482 = vunpack.c.h.b16 %v1001
      %v1483 = vunpack.c.l.b16 %v1002
      %v1484 = vunpack.c.h.b16 %v1002
      %v1485 = vunpack.c.l.b16 %v1003
      %v1486 = vunpack.c.h.b16 %v1003
      %v1487 = vunpack.c.l.b16 %v1004
      %v1488 = vunpack.c.h.b16 %v1004
      %v1489 = vunpack.c.l.b16 %v1005
      %v1490 = vunpack.c.h.b16 %v1005
      %v1491 = vunpack.c.l.b16 %v1006
      %v1492 = vunpack.c.h.b16 %v1006
      %v1493 = vunpack.c.l.b16 %v1007
      %v1494 = vunpack.c.h.b16 %v1007
      %v1495 = vunpack.c.l.b16 %v1008
      %v1496 = vunpack.c.h.b16 %v1008
      %v1497 = vunpack.c.l.b16 %v1009
      %v1498 = vunpack.c.h.b16 %v1009
      %v1499 = vunpack.c.l.b16 %v1010
      %v1500 = vunpack.c.h.b16 %v1010
      %v1501 = vunpack.c.l.b16 %v1011
      %v1502 = vunpack.c.h.b16 %v1011
      %v1503 = vunpack.c.l.b16 %v1012
      %v1504 = vunpack.c.h.b16 %v1012
      %v1505 = vunpack.c.l.b16 %v1013
      %v1506 = vunpack.c.h.b16 %v1013
      %v1507 = vunpack.c.l.b16 %v1014
      %v1508 = vunpack.c.h.b16 %v1014
      %v1509 = vunpack.c.l.b16 %v1015
      %v1510 = vunpack.c.h.b16 %v1015
      %v1511 = vunpack.c.l.b16 %v1016
      %v1512 = vunpack.c.h.b16 %v1016
      %v1513 = vunpack.c.l.b16 %v1017
      %v1514 = vunpack.c.h.b16 %v1017
      %v1515 = vunpack.c.l.b16 %v1018
      %v1516 = vunpack.c.h.b16 %v1018
      %v1517 = vunpack.c.l.b16 %v1019
      %v1518 = vunpack.c.h.b16 %v1019
      %v1519 = vunpack.c.l.b16 %v1020
      %v1520 = vunpack.c.h.b16 %v1020
      %v1521 = vunpack.c.l.b16 %v1021
      %v1522 = vunpack.c.h.b16 %v1021
      %v1523 = vunpack.c.l.b16 %v1022
      %v1524 = vunpack.c.h.b16 %v1022
      %v1525 = vunpack.c.l.b16 %v1023
      %v1526 = vunpack.c.h.b16 %v1023
      %v1527 = vunpack.c.l.b16 %v1024
      %v1528 = vunpack.c.h.b16 %v1024
      %v1529 = vunpack.c.l.b16 %v1025
      %v1530 = vunpack.c.h.b16 %v1025
      %v1531 = vunpack.c.l.b16 %v1026
      %v1532 = vunpack.c.h.b16 %v1026
      %v1533 = vunpack.c.l.b16 %v1027
      %v1534 = vunpack.c.h.b16 %v1027
      %v1535 = vunpack.c.l.b16 %v1028
      %v1536 = vunpack.c.h.b16 %v1028
      %v1537 = vunpack.c.l.b16 %v1029
      %v1538 = vunpack.c.h.b16 %v1029
      %v1539 = vunpack.c.l.b16 %v1030
      %v1540 = vunpack.c.h.b16 %v1030
      %v1541 = vunpack.c.l.b16 %v1031
      %v1542 = vunpack.c.h.b16 %v1031
      %v1543 = vunpack.c.l.b16 %v1032
      %v1544 = vunpack.c.h.b16 %v1032
      %v1545 = vunpack.c.l.b16 %v1033
      %v1546 = vunpack.c.h.b16 %v1033
      %v1547 = vunpack.c.l.b16 %v1034
      %v1548 = vunpack.c.h.b16 %v1034
      %v1549 = vunpack.c.l.b16 %v1035
      %v1550 = vunpack.c.h.b16 %v1035
      %v1551 = vunpack.c.l.b16 %v1036
      %v1552 = vunpack.c.h.b16 %v1036
      %v1553 = vunpack.c.l.b16 %v1037
      %v1554 = vunpack.c.h.b16 %v1037
      %v1555 = vunpack.c.l.b16 %v1038
      %v1556 = vunpack.c.h.b16 %v1038
      %v1557 = vunpack.c.l.b16 %v1039
      %v1558 = vunpack.c.h.b16 %v1039
      %v1559 = vunpack.c.l.b16 %v1040
      %v1560 = vunpack.c.h.b16 %v1040
      %v1561 = vunpack.c.l.b16 %v1041
      %v1562 = vunpack.c.h.b16 %v1041
      %v1563 = vunpack.c.l.b16 %v1042
      %v1564 = vunpack.c.h.b16 %v1042
      %v1565 = vunpack.c.l.b16 %v1043
      %v1566 = vunpack.c.h.b16 %v1043
      %v1567 = vunpack.c.l.b16 %v1044
      %v1568 = vunpack.c.h.b16 %v1044
      %v1569 = vunpack.c.l.b16 %v1045
      %v1570 = vunpack.c.h.b16 %v1045
      %v1571 = vunpack.c.l.b16 %v1046
      %v1572 = vunpack.c.h.b16 %v1046
      %v1573 = vunpack.c.l.b16 %v1047
      %v1574 = vunpack.c.h.b16 %v1047
      %v1575 = vunpack.c.l.b16 %v1048
      %v1576 = vunpack.c.h.b16 %v1048
      %v1577 = vunpack.c.l.b16 %v1049
      %v1578 = vunpack.c.h.b16 %v1049
      %v1579 = vunpack.c.l.b16 %v1050
      %v1580 = vunpack.c.h.b16 %v1050
      %v1581 = vunpack.c.l.b16 %v1051
      %v1582 = vunpack.c.h.b16 %v1051
      %v1583 = vunpack.c.l.b16 %v1052
      %v1584 = vunpack.c.h.b16 %v1052
      %v1585 = vunpack.c.l.b16 %v1053
      %v1586 = vunpack.c.h.b16 %v1053
      %v1587 = vunpack.c.l.b16 %v1054
      %v1588 = vunpack.c.h.b16 %v1054
      %v1589 = vunpack.c.l.b16 %v1055
      %v1590 = vunpack.c.h.b16 %v1055
      %v1591 = vunpack.c.l.b16 %v1056
      %v1592 = vunpack.c.h.b16 %v1056
      %v1593 = vunpack.c.l.b16 %v1057
      %v1594 = vunpack.c.h.b16 %v1057
      %v1595 = vunpack.c.l.b16 %v1058
      %v1596 = vunpack.c.h.b16 %v1058
      %v1597 = vunpack.c.l.b16 %v1059
      %v1598 = vunpack.c.h.b16 %v1059
      %v1599 = vunpack.c.l.b16 %v1060
      %v1600 = vunpack.c.h.b16 %v1060
      %v1601 = vunpack.c.l.b16 %v1061
      %v1602 = vunpack.c.h.b16 %v1061
      %v1603 = vunpack.c.l.b16 %v1062
      %v1604 = vunpack.c.h.b16 %v1062
      %v1605 = vunpack.c.l.b16 %v1063
      %v1606 = vunpack.c.h.b16 %v1063
      %v1607 = vunpack.c.l.b16 %v1064
      %v1608 = vunpack.c.h.b16 %v1064
      %v1609 = vunpack.c.l.b16 %v1065
      %v1610 = vunpack.c.h.b16 %v1065
      %v1611 = vunpack.c.l.b16 %v1066
      %v1612 = vunpack.c.h.b16 %v1066
      %v1613 = vunpack.c.l.b16 %v1067
      %v1614 = vunpack.c.h.b16 %v1067
      %v1615 = vunpack.c.l.b16 %v1068
      %v1616 = vunpack.c.h.b16 %v1068
      %v1617 = vunpack.c.l.b16 %v1069
      %v1618 = vunpack.c.h.b16 %v1069
      %v1619 = vunpack.c.l.b16 %v1070
      %v1620 = vunpack.c.h.b16 %v1070
      %v1621 = vunpack.c.l.b16 %v1071
      %v1622 = vunpack.c.h.b16 %v1071
      %v1623 = vunpack.c.l.b16 %v1072
      %v1624 = vunpack.c.h.b16 %v1072
      %v1625 = vunpack.c.l.b16 %v1073
      %v1626 = vunpack.c.h.b16 %v1073
      %v1627 = vunpack.c.l.b16 %v1074
      %v1628 = vunpack.c.h.b16 %v1074
      %v1629 = vunpack.c.l.b16 %v1075
      %v1630 = vunpack.c.h.b16 %v1075
      %v1631 = vunpack.c.l.b16 %v1076
      %v1632 = vunpack.c.h.b16 %v1076
      %v1633 = vunpack.c.l.b16 %v1077
      %v1634 = vunpack.c.h.b16 %v1077
      %v1635 = vunpack.c.l.b16 %v1078
      %v1636 = vunpack.c.h.b16 %v1078
      %v1637 = vunpack.c.l.b16 %v1079
      %v1638 = vunpack.c.h.b16 %v1079
      %v1639 = vunpack.c.l.b16 %v1080
      %v1640 = vunpack.c.h.b16 %v1080
      %v1641 = vunpack.c.l.b16 %v1081
      %v1642 = vunpack.c.h.b16 %v1081
      %v1643 = vunpack.c.l.b16 %v1082
      %v1644 = vunpack.c.h.b16 %v1082
      %v1645 = vunpack.c.l.b16 %v1083
      %v1646 = vunpack.c.h.b16 %v1083
      %v1647 = vunpack.c.l.b16 %v1084
      %v1648 = vunpack.c.h.b16 %v1084
      %v1649 = vunpack.c.l.b16 %v1085
      %v1650 = vunpack.c.h.b16 %v1085
      %v1651 = vunpack.c.l.b16 %v1086
      %v1652 = vunpack.c.h.b16 %v1086
      %v1653 = vunpack.c.l.b16 %v1087
      %v1654 = vunpack.c.h.b16 %v1087
      %v1655 = vunpack.c.l.b16 %v1088
      %v1656 = vunpack.c.h.b16 %v1088
      %v1657 = vunpack.c.l.b16 %v1089
      %v1658 = vunpack.c.h.b16 %v1089
      %v1659 = vunpack.c.l.b16 %v1090
      %v1660 = vunpack.c.h.b16 %v1090
      %v1661 = vunpack.c.l.b16 %v1091
      %v1662 = vunpack.c.h.b16 %v1091
      %v1663 = vunpack.c.l.b16 %v1092
      %v1664 = vunpack.c.h.b16 %v1092
      %v1665 = vunpack.c.l.b16 %v1093
      %v1666 = vunpack.c.h.b16 %v1093
      %v1667 = vunpack.c.l.b16 %v1094
      %v1668 = vunpack.c.h.b16 %v1094
      %v1669 = vunpack.c.l.b16 %v1095
      %v1670 = vunpack.c.h.b16 %v1095
      %v1671 = vunpack.c.l.b16 %v1096
      %v1672 = vunpack.c.h.b16 %v1096
      %v1673 = vunpack.c.l.b16 %v1097
      %v1674 = vunpack.c.h.b16 %v1097
      %v1675 = vunpack.c.l.b16 %v1098
      %v1676 = vunpack.c.h.b16 %v1098
      %v1677 = vunpack.c.l.b16 %v1099
      %v1678 = vunpack.c.h.b16 %v1099
      %v1679 = vunpack.c.l.b16 %v1100
      %v1680 = vunpack.c.h.b16 %v1100
      %v1681 = vunpack.c.l.b16 %v1101
      %v1682 = vunpack.c.h.b16 %v1101
      %v1683 = vunpack.c.l.b16 %v1102
      %v1684 = vunpack.c.h.b16 %v1102
      %v1685 = vunpack.c.l.b16 %v1103
      %v1686 = vunpack.c.h.b16 %v1103
      %v1687 = vunpack.c.l.b16 %v1104
      %v1688 = vunpack.c.h.b16 %v1104
      %v1689 = vunpack.c.l.b16 %v1105
      %v1690 = vunpack.c.h.b16 %v1105
      %v1691 = vunpack.c.l.b16 %v1106
      %v1692 = vunpack.c.h.b16 %v1106
      %v1693 = vunpack.c.l.b16 %v1107
      %v1694 = vunpack.c.h.b16 %v1107
      %v1695 = vunpack.c.l.b16 %v1108
      %v1696 = vunpack.c.h.b16 %v1108
      %v1697 = vunpack.c.l.b16 %v1109
      %v1698 = vunpack.c.h.b16 %v1109
      %v1699 = vunpack.c.l.b16 %v1110
      %v1700 = vunpack.c.h.b16 %v1110
      %v1701 = vunpack.c.l.b16 %v1111
      %v1702 = vunpack.c.h.b16 %v1111
      %v1703 = vunpack.c.l.b16 %v1112
      %v1704 = vunpack.c.h.b16 %v1112
      %v1705 = vunpack.c.l.b16 %v1113
      %v1706 = vunpack.c.h.b16 %v1113
      %v1707 = vunpack.c.l.b16 %v1114
      %v1708 = vunpack.c.h.b16 %v1114
      %v1709 = vunpack.c.l.b16 %v1115
      %v1710 = vunpack.c.h.b16 %v1115
      %v1711 = vunpack.c.l.b16 %v1116
      %v1712 = vunpack.c.h.b16 %v1116
      %v1713 = vunpack.c.l.b16 %v1117
      %v1714 = vunpack.c.h.b16 %v1117
      %v1715 = vunpack.c.l.b16 %v1118
      %v1716 = vunpack.c.h.b16 %v1118
      %v1717 = vunpack.c.l.b16 %v1119
      %v1718 = vunpack.c.h.b16 %v1119
      %v1719 = vunpack.c.l.b16 %v1120
      %v1720 = vunpack.c.h.b16 %v1120
      %v1721 = vunpack.c.l.b16 %v1121
      %v1722 = vunpack.c.h.b16 %v1121
      %v1723 = vunpack.c.l.b16 %v1122
      %v1724 = vunpack.c.h.b16 %v1122
      %v1725 = vunpack.c.l.b16 %v1123
      %v1726 = vunpack.c.h.b16 %v1123
      %v1727 = vunpack.c.l.b16 %v1124
      %v1728 = vunpack.c.h.b16 %v1124
      %v1729 = vunpack.c.l.b16 %v1125
      %v1730 = vunpack.c.h.b16 %v1125
      %v1731 = vunpack.c.l.b16 %v1126
      %v1732 = vunpack.c.h.b16 %v1126
      %v1733 = vunpack.c.l.b16 %v1127
      %v1734 = vunpack.c.h.b16 %v1127
      %v1735 = vunpack.c.l.b16 %v1128
      %v1736 = vunpack.c.h.b16 %v1128
      %v1737 = vunpack.c.l.b16 %v1129
      %v1738 = vunpack.c.h.b16 %v1129
      %v1739 = vunpack.c.l.b16 %v1130
      %v1740 = vunpack.c.h.b16 %v1130
      %v1741 = vpack.c.b16 %v1353, %v1349
      %v1742 = vpack.c.b16 %v1354, %v1350
      %v1743 = vpack.c.b16 %v1355, %v1351
      %v1744 = vpack.c.b16 %v1356, %v1352
      %v1745 = vpack.c.b16 %v1361, %v1357
      %v1746 = vpack.c.b16 %v1362, %v1358
      %v1747 = vpack.c.b16 %v1363, %v1359
      %v1748 = vpack.c.b16 %v1364, %v1360
      %v1749 = vpack.c.b16 %v1369, %v1365
      %v1750 = vpack.c.b16 %v1370, %v1366
      %v1751 = vpack.c.b16 %v1371, %v1367
      %v1752 = vpack.c.b16 %v1372, %v1368
      %v1753 = vpack.c.b16 %v1377, %v1373
      %v1754 = vpack.c.b16 %v1378, %v1374
      %v1755 = vpack.c.b16 %v1379, %v1375
      %v1756 = vpack.c.b16 %v1380, %v1376
      %v1757 = vpack.c.b16 %v1385, %v1381
      %v1758 = vpack.c.b16 %v1386, %v1382
      %v1759 = vpack.c.b16 %v1387, %v1383
      %v1760 = vpack.c.b16 %v1388, %v1384
      %v1761 = vpack.c.b16 %v1393, %v1389
      %v1762 = vpack.c.b16 %v1394, %v1390
      %v1763 = vpack.c.b16 %v1395, %v1391
      %v1764 = vpack.c.b16 %v1396, %v1392
      %v1765 = vpack.c.b16 %v1401, %v1397
      %v1766 = vpack.c.b16 %v1402, %v1398
      %v1767 = vpack.c.b16 %v1403, %v1399
      %v1768 = vpack.c.b16 %v1404, %v1400
      %v1769 = vpack.c.b16 %v1409, %v1405
      %v1770 = vpack.c.b16 %v1410, %v1406
      %v1771 = vpack.c.b16 %v1411, %v1407
      %v1772 = vpack.c.b16 %v1412, %v1408
      %v1773 = vpack.c.b16 %v1417, %v1413
      %v1774 = vpack.c.b16 %v1418, %v1414
      %v1775 = vpack.c.b16 %v1419, %v1415
      %v1776 = vpack.c.b16 %v1420, %v1416
      %v1777 = vpack.c.b16 %v1425, %v1421
      %v1778 = vpack.c.b16 %v1426, %v1422
      %v1779 = vpack.c.b16 %v1427, %v1423
      %v1780 = vpack.c.b16 %v1428, %v1424
      %v1781 = vpack.c.b16 %v1433, %v1429
      %v1782 = vpack.c.b16 %v1434, %v1430
      %v1783 = vpack.c.b16 %v1435, %v1431
      %v1784 = vpack.c.b16 %v1436, %v1432
      %v1785 = vpack.c.b16 %v1441, %v1437
      %v1786 = vpack.c.b16 %v1442, %v1438
      %v1787 = vpack.c.b16 %v1443, %v1439
      %v1788 = vpack.c.b16 %v1444, %v1440
      %v1789 = vpack.c.b16 %v1449, %v1445
      %v1790 = vpack.c.b16 %v1450, %v1446
      %v1791 = vpack.c.b16 %v1451, %v1447
      %v1792 = vpack.c.b16 %v1452, %v1448
      %v1793 = vpack.c.b16 %v1457, %v1453
      %v1794 = vpack.c.b16 %v1458, %v1454
      %v1795 = vpack.c.b16 %v1459, %v1455
      %v1796 = vpack.c.b16 %v1460, %v1456
      %v1797 = vpack.c.b16 %v1465, %v1461
      %v1798 = vpack.c.b16 %v1466, %v1462
      %v1799 = vpack.c.b16 %v1467, %v1463
      %v1800 = vpack.c.b16 %v1468, %v1464
      %v1801 = vpack.c.b16 %v1473, %v1469
      %v1802 = vpack.c.b16 %v1474, %v1470
      %v1803 = vpack.c.b16 %v1475, %v1471
      %v1804 = vpack.c.b16 %v1476, %v1472
      %v1805 = vpack.c.b16 %v1481, %v1477
      %v1806 = vpack.c.b16 %v1482, %v1478
      %v1807 = vpack.c.b16 %v1483, %v1479
      %v1808 = vpack.c.b16 %v1484, %v1480
      %v1809 = vpack.c.b16 %v1489, %v1485
      %v1810 = vpack.c.b16 %v1490, %v1486
      %v1811 = vpack.c.b16 %v1491, %v1487
      %v1812 = vpack.c.b16 %v1492, %v1488
      %v1813 = vpack.c.b16 %v1497, %v1493
      %v1814 = vpack.c.b16 %v1498, %v1494
      %v1815 = vpack.c.b16 %v1499, %v1495
      %v1816 = vpack.c.b16 %v1500, %v1496
      %v1817 = vpack.c.b16 %v1505, %v1501
      %v1818 = vpack.c.b16 %v1506, %v1502
      %v1819 = vpack.c.b16 %v1507, %v1503
      %v1820 = vpack.c.b16 %v1508, %v1504
      %v1821 = vpack.c.b16 %v1513, %v1509
      %v1822 = vpack.c.b16 %v1514, %v1510
      %v1823 = vpack.c.b16 %v1515, %v1511
      %v1824 = vpack.c.b16 %v1516, %v1512
      %v1825 = vpack.c.b16 %v1521, %v1517
      %v1826 = vpack.c.b16 %v1522, %v1518
      %v1827 = vpack.c.b16 %v1523, %v1519
      %v1828 = vpack.c.b16 %v1524, %v1520
      %v1829 = vpack.c.b16 %v1529, %v1525
      %v1830 = vpack.c.b16 %v1530, %v1526
      %v1831 = vpack.c.b16 %v1531, %v1527
      %v1832 = vpack.c.b16 %v1532, %v1528
      %v1833 = vpack.c.b16 %v1537, %v1533
      %v1834 = vpack.c.b16 %v1538, %v1534
      %v1835 = vpack.c.b16 %v1539, %v1535
      %v1836 = vpack.c.b16 %v1540, %v1536
      %v1837 = vpack.c.b16 %v1545, %v1541
      %v1838 = vpack.c.b16 %v1546, %v1542
      %v1839 = vpack.c.b16 %v1547, %v1543
      %v1840 = vpack.c.b16 %v1548, %v1544
      %v1841 = vpack.c.b16 %v1553, %v1549
      %v1842 = vpack.c.b16 %v1554, %v1550
      %v1843 = vpack.c.b16 %v1555, %v1551
      %v1844 = vpack.c.b16 %v1556, %v1552
      %v1845 = vpack.c.b16 %v1561, %v1557
      %v1846 = vpack.c.b16 %v1562, %v1558
      %v1847 = vpack.c.b16 %v1563, %v1559
      %v1848 = vpack.c.b16 %v1564, %v1560
      %v1849 = vpack.c.b16 %v1569, %v1565
      %v1850 = vpack.c.b16 %v1570, %v1566
      %v1851 = vpack.c.b16 %v1571, %v1567
      %v1852 = vpack.c.b16 %v1572, %v1568
      %v1853 = vpack.c.b16 %v1577, %v1573
      %v1854 = vpack.c.b16 %v1578, %v1574
      %v1855 = vpack.c.b16 %v1579, %v1575
      %v1856 = vpack.c.b16 %v1580, %v1576
      %v1857 = vpack.c.b16 %v1585, %v1581
      %v1858 = vpack.c.b16 %v1586, %v1582
      %v1859 = vpack.c.b16 %v1587, %v1583
      %v1860 = vpack.c.b16 %v1588, %v1584
      %v1861 = vpack.c.b16 %v1593, %v1589
      %v1862 = vpack.c.b16 %v1594, %v1590
      %v1863 = vpack.c.b16 %v1595, %v1591
      %v1864 = vpack.c.b16 %v1596, %v1592
      %v1865 = vpack.c.b16 %v1601, %v1597
      %v1866 = vpack.c.b16 %v1602, %v1598
      %v1867 = vpack.c.b16 %v1603, %v1599
      %v1868 = vpack.c.b16 %v1604, %v1600
      %v1869 = vpack.c.b16 %v1609, %v1605
      %v1870 = vpack.c.b16 %v1610, %v1606
      %v1871 = vpack.c.b16 %v1611, %v1607
      %v1872 = vpack.c.b16 %v1612, %v1608
      %v1873 = vpack.c.b16 %v1617, %v1613
      %v1874 = vpack.c.b16 %v1618, %v1614
      %v1875 = vpack.c.b16 %v1619, %v1615
      %v1876 = vpack.c.b16 %v1620, %v1616
      %v1877 = vpack.c.b16 %v1625, %v1621
      %v1878 = vpack.c.b16 %v1626, %v1622
      %v1879 = vpack.c.b16 %v1627, %v1623
      %v1880 = vpack.c.b16 %v1628, %v1624
      %v1881 = vpack.c.b16 %v1633, %v1629
      %v1882 = vpack.c.b16 %v1634, %v1630
      %v1883 = vpack.c.b16 %v1635, %v1631
      %v1884 = vpack.c.b16 %v1636, %v1632
      %v1885 = vpack.c.b16 %v1641, %v1637
      %v1886 = vpack.c.b16 %v1642, %v1638
      %v1887 = vpack.c.b16 %v1643, %v1639
      %v1888 = vpack.c.b16 %v1644, %v1640
      %v1889 = vpack.c.b16 %v1649, %v1645
      %v1890 = vpack.c.b16 %v1650, %v1646
      %v1891 = vpack.c.b16 %v1651, %v1647
      %v1892 = vpack.c.b16 %v1652, %v1648
      %v1893 = vpack.c.b16 %v1657, %v1653
      %v1894 = vpack.c.b16 %v1658, %v1654
      %v1895 = vpack.c.b16 %v1659, %v1655
      %v1896 = vpack.c.b16 %v1660, %v1656
      %v1897 = vpack.c.b16 %v1665, %v1661
      %v1898 = vpack.c.b16 %v1666, %v1662
      %v1899 = vpack.c.b16 %v1667, %v1663
      %v1900 = vpack.c.b16 %v1668, %v1664
      %v1901 = vpack.c.b16 %v1673, %v1669
      %v1902 = vpack.c.b16 %v1674, %v1670
      %v1903 = vpack.c.b16 %v1675, %v1671
      %v1904 = vpack.c.b16 %v1676, %v1672
      %v1905 = vpack.c.b16 %v1681, %v1677
      %v1906 = vpack.c.b16 %v1682, %v1678
      %v1907 = vpack.c.b16 %v1683, %v1679
      %v1908 = vpack.c.b16 %v1684, %v1680
      %v1909 = vpack.c.b16 %v1689, %v1685
      %v1910 = vpack.c.b16 %v1690, %v1686
      %v1911 = vpack.c.b16 %v1691, %v1687
      %v1912 = vpack.c.b16 %v1692, %v1688
      %v1913 = vpack.c.b16 %v1697, %v1693
      %v1914 = vpack.c.b16 %v1698, %v1694
      %v1915 = vpack.c.b16 %v1699, %v1695
      %v1916 = vpack.c.b16 %v1700, %v1696
      %v1917 = vpack.c.b16 %v1705, %v1701
      %v1918 = vpack.c.b16 %v1706, %v1702
      %v1919 = vpack.c.b16 %v1707, %v1703
      %v1920 = vpack.c.b16 %v1708, %v1704
      %v1921 = vpack.c.b16 %v1713, %v1709
      %v1922 = vpack.c.b16 %v1714, %v1710
      %v1923 = vpack.c.b16 %v1715, %v1711
      %v1924 = vpack.c.b16 %v1716, %v1712
      %v1925 = vpack.c.b16 %v1721, %v1717
      %v1926 = vpack.c.b16 %v1722, %v1718
      %v1927 = vpack.c.b16 %v1723, %v1719
      %v1928 = vpack.c.b16 %v1724, %v1720
      %v1929 = vpack.c.b16 %v1729, %v1725
      %v1930 = vpack.c.b16 %v1730, %v1726
      %v1931 = vpack.c.b16 %v1731, %v1727
      %v1932 = vpack.c.b16 %v1732, %v1728
      %v1933 = vpack.c.b16 %v1737, %v1733
      %v1934 = vpack.c.b16 %v1738, %v1734
      %v1935 = vpack.c.b16 %v1739, %v1735
      %v1936 = vpack.c.b16 %v1740, %v1736
      %vm2133 = vcmask 130048
      %v2135 = vsel %vm2133, %v717, 0
      %v2138 = vsel %vm2133, %v724, 0
      %v2141 = vsel %vm2133, %v731, 0
      %v2144 = vsel %vm2133, %v738, 0
      %v2147 = vsel %vm2133, %v745, 0
      %v2150 = vsel %vm2133, %v752, 0
      %v2153 = vsel %vm2133, %v759, 0
      %v2156 = vsel %vm2133, %v766, 0
      %2158 = vmatprep.subr.bf16.mxu0 %v1770
      %2159 = vmatpush1.bf16.msra.mxu0 %v1769
      %2160 = vmatprep.subr.bf16.mxu0 %v1766
      %2161 = vmatpush1.bf16.msra.mxu0 %v1765
      %2162 = vmatprep.subr.bf16.mxu0 %v1762
      %2163 = vmatpush1.bf16.msra.mxu0 %v1761
      %2164 = vmatprep.subr.bf16.mxu0 %v1758
      %2165 = vmatpush1.bf16.msra.mxu0 %v1757
      %2166 = vmatprep.subr.bf16.mxu0 %v1754
      %2167 = vmatpush1.bf16.msra.mxu0 %v1753
      %2168 = vmatprep.subr.bf16.mxu0 %v1750
      %2169 = vmatpush1.bf16.msra.mxu0 %v1749
      %2170 = vmatprep.subr.bf16.mxu0 %v1746
      %2171 = vmatpush1.bf16.msra.mxu0 %v1745
      %2172 = vmatprep.subr.bf16.mxu0 %v1742
      %2173 = vmatpush1.bf16.msra.mxu0 %v1741
      %2174 = vmatprep.subr.bf16.mxu0 %v1802
      %2175 = vmatpush2.bf16.msra.mxu0 %v1801
      %2176 = vmatprep.subr.bf16.mxu0 %v1798
      %2177 = vmatpush2.bf16.msra.mxu0 %v1797
      %2178 = vmatprep.subr.bf16.mxu0 %v1794
      %2179 = vmatpush2.bf16.msra.mxu0 %v1793
      %2180 = vmatprep.subr.bf16.mxu0 %v1790
      %2181 = vmatpush2.bf16.msra.mxu0 %v1789
      %2182 = vmatprep.subr.bf16.mxu0 %v1786
      %2183 = vmatpush2.bf16.msra.mxu0 %v1785
      %2184 = vmatprep.subr.bf16.mxu0 %v1782
      %2185 = vmatpush2.bf16.msra.mxu0 %v1781
      %2186 = vmatprep.subr.bf16.mxu0 %v1778
      %2187 = vmatpush2.bf16.msra.mxu0 %v1777
      %2188 = vmatprep.subr.bf16.mxu0 %v1774
      %2189 = vmatpush2.bf16.msra.mxu0 %v1773
      %2190 = vmatprep.mubr.bf16.mxu0 %v712
      %2191 = vmatmul.mubr.bf16.gmra.mxu0 %v711
      %v2192 = vpop.f32.mrf.mxu0
      %v2193 = vadd.f32 %v1136, %v2192
      %v2194 = vpop.f32.mrf.mxu0
      %v2195 = vadd.f32 %v1140, %v2194
      %v2196 = vpop.f32.mrf.mxu0
      %v2197 = vadd.f32 %v1136, %v2196
      %v2198 = vpop.f32.mrf.mxu0
      %v2199 = vadd.f32 %v1140, %v2198
      %2200 = vmatprep.mubr.bf16.mxu0 %v719
      %2201 = vmatmul.mubr.bf16.gmra.mxu0 %v718
      %v2202 = vpop.f32.mrf.mxu0
      %v2203 = vadd.f32 %v1136, %v2202
      %v2204 = vpop.f32.mrf.mxu0
      %v2205 = vadd.f32 %v1140, %v2204
      %v2206 = vpop.f32.mrf.mxu0
      %v2207 = vadd.f32 %v1136, %v2206
      %v2208 = vpop.f32.mrf.mxu0
      %v2209 = vadd.f32 %v1140, %v2208
      %2210 = vmatprep.mubr.bf16.mxu0 %v726
      %2211 = vmatmul.mubr.bf16.gmra.mxu0 %v725
      %v2212 = vpop.f32.mrf.mxu0
      %v2213 = vadd.f32 %v1136, %v2212
      %v2214 = vpop.f32.mrf.mxu0
      %v2215 = vadd.f32 %v1140, %v2214
      %v2216 = vpop.f32.mrf.mxu0
      %v2217 = vadd.f32 %v1136, %v2216
      %v2218 = vpop.f32.mrf.mxu0
      %v2219 = vadd.f32 %v1140, %v2218
      %2220 = vmatprep.mubr.bf16.mxu0 %v733
      %2221 = vmatmul.mubr.bf16.gmra.mxu0 %v732
      %v2222 = vpop.f32.mrf.mxu0
      %v2223 = vadd.f32 %v1136, %v2222
      %v2224 = vpop.f32.mrf.mxu0
      %v2225 = vadd.f32 %v1140, %v2224
      %v2226 = vpop.f32.mrf.mxu0
      %v2227 = vadd.f32 %v1136, %v2226
      %v2228 = vpop.f32.mrf.mxu0
      %v2229 = vadd.f32 %v1140, %v2228
      %2230 = vmatprep.mubr.bf16.mxu0 %v740
      %2231 = vmatmul.mubr.bf16.gmra.mxu0 %v739
      %v2232 = vpop.f32.mrf.mxu0
      %v2233 = vadd.f32 %v1136, %v2232
      %v2234 = vpop.f32.mrf.mxu0
      %v2235 = vadd.f32 %v1140, %v2234
      %v2236 = vpop.f32.mrf.mxu0
      %v2237 = vadd.f32 %v1136, %v2236
      %v2238 = vpop.f32.mrf.mxu0
      %v2239 = vadd.f32 %v1140, %v2238
      %2240 = vmatprep.mubr.bf16.mxu0 %v747
      %2241 = vmatmul.mubr.bf16.gmra.mxu0 %v746
      %v2242 = vpop.f32.mrf.mxu0
      %v2243 = vadd.f32 %v1136, %v2242
      %v2244 = vpop.f32.mrf.mxu0
      %v2245 = vadd.f32 %v1140, %v2244
      %v2246 = vpop.f32.mrf.mxu0
      %v2247 = vadd.f32 %v1136, %v2246
      %v2248 = vpop.f32.mrf.mxu0
      %v2249 = vadd.f32 %v1140, %v2248
      %2250 = vmatprep.mubr.bf16.mxu0 %v754
      %2251 = vmatmul.mubr.bf16.gmra.mxu0 %v753
      %v2252 = vpop.f32.mrf.mxu0
      %v2253 = vadd.f32 %v1136, %v2252
      %v2254 = vpop.f32.mrf.mxu0
      %v2255 = vadd.f32 %v1140, %v2254
      %v2256 = vpop.f32.mrf.mxu0
      %v2257 = vadd.f32 %v1136, %v2256
      %v2258 = vpop.f32.mrf.mxu0
      %v2259 = vadd.f32 %v1140, %v2258
      %2260 = vmatprep.mubr.bf16.mxu0 %v761
      %2261 = vmatmul.mubr.bf16.gmra.mxu0 %v760
      %v2262 = vpop.f32.mrf.mxu0
      %v2263 = vadd.f32 %v1136, %v2262
      %v2264 = vpop.f32.mrf.mxu0
      %v2265 = vadd.f32 %v1140, %v2264
      %v2266 = vpop.f32.mrf.mxu0
      %v2267 = vadd.f32 %v1136, %v2266
      %v2268 = vpop.f32.mrf.mxu0
      %v2269 = vadd.f32 %v1140, %v2268
      %2270 = vdwg.mxu0
      %2271 = vmatprep.subr.bf16.mxu0 %v1834
      %2272 = vmatpush1.bf16.msra.mxu0 %v1833
      %2273 = vmatprep.subr.bf16.mxu0 %v1830
      %2274 = vmatpush1.bf16.msra.mxu0 %v1829
      %2275 = vmatprep.subr.bf16.mxu0 %v1826
      %2276 = vmatpush1.bf16.msra.mxu0 %v1825
      %2277 = vmatprep.subr.bf16.mxu0 %v1822
      %2278 = vmatpush1.bf16.msra.mxu0 %v1821
      %2279 = vmatprep.subr.bf16.mxu0 %v1818
      %2280 = vmatpush1.bf16.msra.mxu0 %v1817
      %2281 = vmatprep.subr.bf16.mxu0 %v1814
      %2282 = vmatpush1.bf16.msra.mxu0 %v1813
      %2283 = vmatprep.subr.bf16.mxu0 %v1810
      %2284 = vmatpush1.bf16.msra.mxu0 %v1809
      %2285 = vmatprep.subr.bf16.mxu0 %v1806
      %2286 = vmatpush1.bf16.msra.mxu0 %v1805
      %2287 = vmatprep.subr.bf16.mxu0 %v1866
      %2288 = vmatpush2.bf16.msra.mxu0 %v1865
      %2289 = vmatprep.subr.bf16.mxu0 %v1862
      %2290 = vmatpush2.bf16.msra.mxu0 %v1861
      %2291 = vmatprep.subr.bf16.mxu0 %v1858
      %2292 = vmatpush2.bf16.msra.mxu0 %v1857
      %2293 = vmatprep.subr.bf16.mxu0 %v1854
      %2294 = vmatpush2.bf16.msra.mxu0 %v1853
      %2295 = vmatprep.subr.bf16.mxu0 %v1850
      %2296 = vmatpush2.bf16.msra.mxu0 %v1849
      %2297 = vmatprep.subr.bf16.mxu0 %v1846
      %2298 = vmatpush2.bf16.msra.mxu0 %v1845
      %2299 = vmatprep.subr.bf16.mxu0 %v1842
      %2300 = vmatpush2.bf16.msra.mxu0 %v1841
      %2301 = vmatprep.subr.bf16.mxu0 %v1838
      %2302 = vmatpush2.bf16.msra.mxu0 %v1837
      %2303 = vmatprep.mubr.bf16.mxu0 %v714
      %2304 = vmatmul.mubr.bf16.gmra.mxu0 %v713
      %v2305 = vpop.f32.mrf.mxu0
      %v2306 = vadd.f32 %v2193, %v2305
      %v2307 = vpop.f32.mrf.mxu0
      %v2308 = vadd.f32 %v2195, %v2307
      %v2309 = vpop.f32.mrf.mxu0
      %v2310 = vadd.f32 %v2197, %v2309
      %v2311 = vpop.f32.mrf.mxu0
      %v2312 = vadd.f32 %v2199, %v2311
      %2313 = vmatprep.mubr.bf16.mxu0 %v721
      %2314 = vmatmul.mubr.bf16.gmra.mxu0 %v720
      %v2315 = vpop.f32.mrf.mxu0
      %v2316 = vadd.f32 %v2203, %v2315
      %v2317 = vpop.f32.mrf.mxu0
      %v2318 = vadd.f32 %v2205, %v2317
      %v2319 = vpop.f32.mrf.mxu0
      %v2320 = vadd.f32 %v2207, %v2319
      %v2321 = vpop.f32.mrf.mxu0
      %v2322 = vadd.f32 %v2209, %v2321
      %2323 = vmatprep.mubr.bf16.mxu0 %v728
      %2324 = vmatmul.mubr.bf16.gmra.mxu0 %v727
      %v2325 = vpop.f32.mrf.mxu0
      %v2326 = vadd.f32 %v2213, %v2325
      %v2327 = vpop.f32.mrf.mxu0
      %v2328 = vadd.f32 %v2215, %v2327
      %v2329 = vpop.f32.mrf.mxu0
      %v2330 = vadd.f32 %v2217, %v2329
      %v2331 = vpop.f32.mrf.mxu0
      %v2332 = vadd.f32 %v2219, %v2331
      %2333 = vmatprep.mubr.bf16.mxu0 %v735
      %2334 = vmatmul.mubr.bf16.gmra.mxu0 %v734
      %v2335 = vpop.f32.mrf.mxu0
      %v2336 = vadd.f32 %v2223, %v2335
      %v2337 = vpop.f32.mrf.mxu0
      %v2338 = vadd.f32 %v2225, %v2337
      %v2339 = vpop.f32.mrf.mxu0
      %v2340 = vadd.f32 %v2227, %v2339
      %v2341 = vpop.f32.mrf.mxu0
      %v2342 = vadd.f32 %v2229, %v2341
      %2343 = vmatprep.mubr.bf16.mxu0 %v742
      %2344 = vmatmul.mubr.bf16.gmra.mxu0 %v741
      %v2345 = vpop.f32.mrf.mxu0
      %v2346 = vadd.f32 %v2233, %v2345
      %v2347 = vpop.f32.mrf.mxu0
      %v2348 = vadd.f32 %v2235, %v2347
      %v2349 = vpop.f32.mrf.mxu0
      %v2350 = vadd.f32 %v2237, %v2349
      %v2351 = vpop.f32.mrf.mxu0
      %v2352 = vadd.f32 %v2239, %v2351
      %2353 = vmatprep.mubr.bf16.mxu0 %v749
      %2354 = vmatmul.mubr.bf16.gmra.mxu0 %v748
      %v2355 = vpop.f32.mrf.mxu0
      %v2356 = vadd.f32 %v2243, %v2355
      %v2357 = vpop.f32.mrf.mxu0
      %v2358 = vadd.f32 %v2245, %v2357
      %v2359 = vpop.f32.mrf.mxu0
      %v2360 = vadd.f32 %v2247, %v2359
      %v2361 = vpop.f32.mrf.mxu0
      %v2362 = vadd.f32 %v2249, %v2361
      %2363 = vmatprep.mubr.bf16.mxu0 %v756
      %2364 = vmatmul.mubr.bf16.gmra.mxu0 %v755
      %v2365 = vpop.f32.mrf.mxu0
      %v2366 = vadd.f32 %v2253, %v2365
      %v2367 = vpop.f32.mrf.mxu0
      %v2368 = vadd.f32 %v2255, %v2367
      %v2369 = vpop.f32.mrf.mxu0
      %v2370 = vadd.f32 %v2257, %v2369
      %v2371 = vpop.f32.mrf.mxu0
      %v2372 = vadd.f32 %v2259, %v2371
      %2373 = vmatprep.mubr.bf16.mxu0 %v763
      %2374 = vmatmul.mubr.bf16.gmra.mxu0 %v762
      %v2375 = vpop.f32.mrf.mxu0
      %v2376 = vadd.f32 %v2263, %v2375
      %v2377 = vpop.f32.mrf.mxu0
      %v2378 = vadd.f32 %v2265, %v2377
      %v2379 = vpop.f32.mrf.mxu0
      %v2380 = vadd.f32 %v2267, %v2379
      %v2381 = vpop.f32.mrf.mxu0
      %v2382 = vadd.f32 %v2269, %v2381
      %2383 = vdwg.mxu0
      %2384 = vmatprep.subr.bf16.mxu0 %v1898
      %2385 = vmatpush1.bf16.msra.mxu0 %v1897
      %2386 = vmatprep.subr.bf16.mxu0 %v1894
      %2387 = vmatpush1.bf16.msra.mxu0 %v1893
      %2388 = vmatprep.subr.bf16.mxu0 %v1890
      %2389 = vmatpush1.bf16.msra.mxu0 %v1889
      %2390 = vmatprep.subr.bf16.mxu0 %v1886
      %2391 = vmatpush1.bf16.msra.mxu0 %v1885
      %2392 = vmatprep.subr.bf16.mxu0 %v1882
      %2393 = vmatpush1.bf16.msra.mxu0 %v1881
      %2394 = vmatprep.subr.bf16.mxu0 %v1878
      %2395 = vmatpush1.bf16.msra.mxu0 %v1877
      %2396 = vmatprep.subr.bf16.mxu0 %v1874
      %2397 = vmatpush1.bf16.msra.mxu0 %v1873
      %2398 = vmatprep.subr.bf16.mxu0 %v1870
      %2399 = vmatpush1.bf16.msra.mxu0 %v1869
      %2400 = vmatprep.subr.bf16.mxu0 %v1930
      %2401 = vmatpush2.bf16.msra.mxu0 %v1929
      %2402 = vmatprep.subr.bf16.mxu0 %v1926
      %2403 = vmatpush2.bf16.msra.mxu0 %v1925
      %2404 = vmatprep.subr.bf16.mxu0 %v1922
      %2405 = vmatpush2.bf16.msra.mxu0 %v1921
      %2406 = vmatprep.subr.bf16.mxu0 %v1918
      %2407 = vmatpush2.bf16.msra.mxu0 %v1917
      %2408 = vmatprep.subr.bf16.mxu0 %v1914
      %2409 = vmatpush2.bf16.msra.mxu0 %v1913
      %2410 = vmatprep.subr.bf16.mxu0 %v1910
      %2411 = vmatpush2.bf16.msra.mxu0 %v1909
      %2412 = vmatprep.subr.bf16.mxu0 %v1906
      %2413 = vmatpush2.bf16.msra.mxu0 %v1905
      %2414 = vmatprep.subr.bf16.mxu0 %v1902
      %2415 = vmatpush2.bf16.msra.mxu0 %v1901
      %2416 = vmatprep.mubr.bf16.mxu0 %v716
      %2417 = vmatmul.mubr.bf16.gmra.mxu0 %v715
      %v2418 = vpop.f32.mrf.mxu0
      %v2419 = vadd.f32 %v2306, %v2418
      %v2420 = vpop.f32.mrf.mxu0
      %v2421 = vadd.f32 %v2308, %v2420
      %v2422 = vpop.f32.mrf.mxu0
      %v2423 = vadd.f32 %v2310, %v2422
      %v2424 = vpop.f32.mrf.mxu0
      %v2425 = vadd.f32 %v2312, %v2424
      %2426 = vmatprep.mubr.bf16.mxu0 %v723
      %2427 = vmatmul.mubr.bf16.gmra.mxu0 %v722
      %v2428 = vpop.f32.mrf.mxu0
      %v2429 = vadd.f32 %v2316, %v2428
      %v2430 = vpop.f32.mrf.mxu0
      %v2431 = vadd.f32 %v2318, %v2430
      %v2432 = vpop.f32.mrf.mxu0
      %v2433 = vadd.f32 %v2320, %v2432
      %v2434 = vpop.f32.mrf.mxu0
      %v2435 = vadd.f32 %v2322, %v2434
      %2436 = vmatprep.mubr.bf16.mxu0 %v730
      %2437 = vmatmul.mubr.bf16.gmra.mxu0 %v729
      %v2438 = vpop.f32.mrf.mxu0
      %v2439 = vadd.f32 %v2326, %v2438
      %v2440 = vpop.f32.mrf.mxu0
      %v2441 = vadd.f32 %v2328, %v2440
      %v2442 = vpop.f32.mrf.mxu0
      %v2443 = vadd.f32 %v2330, %v2442
      %v2444 = vpop.f32.mrf.mxu0
      %v2445 = vadd.f32 %v2332, %v2444
      %2446 = vmatprep.mubr.bf16.mxu0 %v737
      %2447 = vmatmul.mubr.bf16.gmra.mxu0 %v736
      %v2448 = vpop.f32.mrf.mxu0
      %v2449 = vadd.f32 %v2336, %v2448
      %v2450 = vpop.f32.mrf.mxu0
      %v2451 = vadd.f32 %v2338, %v2450
      %v2452 = vpop.f32.mrf.mxu0
      %v2453 = vadd.f32 %v2340, %v2452
      %v2454 = vpop.f32.mrf.mxu0
      %v2455 = vadd.f32 %v2342, %v2454
      %2456 = vmatprep.mubr.bf16.mxu0 %v744
      %2457 = vmatmul.mubr.bf16.gmra.mxu0 %v743
      %v2458 = vpop.f32.mrf.mxu0
      %v2459 = vadd.f32 %v2346, %v2458
      %v2460 = vpop.f32.mrf.mxu0
      %v2461 = vadd.f32 %v2348, %v2460
      %v2462 = vpop.f32.mrf.mxu0
      %v2463 = vadd.f32 %v2350, %v2462
      %v2464 = vpop.f32.mrf.mxu0
      %v2465 = vadd.f32 %v2352, %v2464
      %2466 = vmatprep.mubr.bf16.mxu0 %v751
      %2467 = vmatmul.mubr.bf16.gmra.mxu0 %v750
      %v2468 = vpop.f32.mrf.mxu0
      %v2469 = vadd.f32 %v2356, %v2468
      %v2470 = vpop.f32.mrf.mxu0
      %v2471 = vadd.f32 %v2358, %v2470
      %v2472 = vpop.f32.mrf.mxu0
      %v2473 = vadd.f32 %v2360, %v2472
      %v2474 = vpop.f32.mrf.mxu0
      %v2475 = vadd.f32 %v2362, %v2474
      %2476 = vmatprep.mubr.bf16.mxu0 %v758
      %2477 = vmatmul.mubr.bf16.gmra.mxu0 %v757
      %v2478 = vpop.f32.mrf.mxu0
      %v2479 = vadd.f32 %v2366, %v2478
      %v2480 = vpop.f32.mrf.mxu0
      %v2481 = vadd.f32 %v2368, %v2480
      %v2482 = vpop.f32.mrf.mxu0
      %v2483 = vadd.f32 %v2370, %v2482
      %v2484 = vpop.f32.mrf.mxu0
      %v2485 = vadd.f32 %v2372, %v2484
      %2486 = vmatprep.mubr.bf16.mxu0 %v765
      %2487 = vmatmul.mubr.bf16.gmra.mxu0 %v764
      %v2488 = vpop.f32.mrf.mxu0
      %v2489 = vadd.f32 %v2376, %v2488
      %v2490 = vpop.f32.mrf.mxu0
      %v2491 = vadd.f32 %v2378, %v2490
      %v2492 = vpop.f32.mrf.mxu0
      %v2493 = vadd.f32 %v2380, %v2492
      %v2494 = vpop.f32.mrf.mxu0
      %v2495 = vadd.f32 %v2382, %v2494
      %2496 = vdwg.mxu0
      %2497 = vmatprep.subr.bf16.mxu0 0
      %2498 = vmatpush1.bf16.msra.mxu0 0
      %2499 = vmatprep.subr.bf16.mxu0 0
      %2500 = vmatpush1.bf16.msra.mxu0 0
      %2501 = vmatprep.subr.bf16.mxu0 0
      %2502 = vmatpush1.bf16.msra.mxu0 0
      %2503 = vmatprep.subr.bf16.mxu0 0
      %2504 = vmatpush1.bf16.msra.mxu0 0
      %2505 = vmatprep.subr.bf16.mxu0 0
      %2506 = vmatpush1.bf16.msra.mxu0 0
      %2507 = vmatprep.subr.bf16.mxu0 0
      %2508 = vmatpush1.bf16.msra.mxu0 0
      %2509 = vmatprep.subr.bf16.mxu0 0
      %2510 = vmatpush1.bf16.msra.mxu0 0
      %2511 = vmatprep.subr.bf16.mxu0 %v1934
      %2512 = vmatpush1.bf16.msra.mxu0 %v1933
      %2513 = vmatprep.subr.bf16.mxu0 0
      %2514 = vmatpush2.bf16.msra.mxu0 0
      %2515 = vmatprep.subr.bf16.mxu0 0
      %2516 = vmatpush2.bf16.msra.mxu0 0
      %2517 = vmatprep.subr.bf16.mxu0 0
      %2518 = vmatpush2.bf16.msra.mxu0 0
      %2519 = vmatprep.subr.bf16.mxu0 0
      %2520 = vmatpush2.bf16.msra.mxu0 0
      %2521 = vmatprep.subr.bf16.mxu0 0
      %2522 = vmatpush2.bf16.msra.mxu0 0
      %2523 = vmatprep.subr.bf16.mxu0 0
      %2524 = vmatpush2.bf16.msra.mxu0 0
      %2525 = vmatprep.subr.bf16.mxu0 0
      %2526 = vmatpush2.bf16.msra.mxu0 0
      %2527 = vmatprep.subr.bf16.mxu0 0
      %2528 = vmatpush2.bf16.msra.mxu0 0
      %2529 = vmatprep.mubr.bf16.mxu0 0
      %2530 = vmatmul.mubr.bf16.gmra.mxu0 %v2135
      %v2531 = vpop.f32.mrf.mxu0
      %v2532 = vadd.f32 %v2419, %v2531
      %v2533 = vpop.f32.mrf.mxu0
      %v2534 = vadd.f32 %v2421, %v2533
      %v2535 = vpop.f32.mrf.mxu0
      %v2536 = vadd.f32 %v2423, %v2535
      %v2537 = vpop.f32.mrf.mxu0
      %v2538 = vadd.f32 %v2425, %v2537
      %2539 = vmatprep.mubr.bf16.mxu0 0
      %2540 = vmatmul.mubr.bf16.gmra.mxu0 %v2138
      %v2541 = vpop.f32.mrf.mxu0
      %v2542 = vadd.f32 %v2429, %v2541
      %v2543 = vpop.f32.mrf.mxu0
      %v2544 = vadd.f32 %v2431, %v2543
      %v2545 = vpop.f32.mrf.mxu0
      %v2546 = vadd.f32 %v2433, %v2545
      %v2547 = vpop.f32.mrf.mxu0
      %v2548 = vadd.f32 %v2435, %v2547
      %2549 = vmatprep.mubr.bf16.mxu0 0
      %2550 = vmatmul.mubr.bf16.gmra.mxu0 %v2141
      %v2551 = vpop.f32.mrf.mxu0
      %v2552 = vadd.f32 %v2439, %v2551
      %v2553 = vpop.f32.mrf.mxu0
      %v2554 = vadd.f32 %v2441, %v2553
      %v2555 = vpop.f32.mrf.mxu0
      %v2556 = vadd.f32 %v2443, %v2555
      %v2557 = vpop.f32.mrf.mxu0
      %v2558 = vadd.f32 %v2445, %v2557
      %2559 = vmatprep.mubr.bf16.mxu0 0
      %2560 = vmatmul.mubr.bf16.gmra.mxu0 %v2144
      %v2561 = vpop.f32.mrf.mxu0
      %v2562 = vadd.f32 %v2449, %v2561
      %v2563 = vpop.f32.mrf.mxu0
      %v2564 = vadd.f32 %v2451, %v2563
      %v2565 = vpop.f32.mrf.mxu0
      %v2566 = vadd.f32 %v2453, %v2565
      %v2567 = vpop.f32.mrf.mxu0
      %v2568 = vadd.f32 %v2455, %v2567
      %2569 = vmatprep.mubr.bf16.mxu0 0
      %2570 = vmatmul.mubr.bf16.gmra.mxu0 %v2147
      %v2571 = vpop.f32.mrf.mxu0
      %v2572 = vadd.f32 %v2459, %v2571
      %v2573 = vpop.f32.mrf.mxu0
      %v2574 = vadd.f32 %v2461, %v2573
      %v2575 = vpop.f32.mrf.mxu0
      %v2576 = vadd.f32 %v2463, %v2575
      %v2577 = vpop.f32.mrf.mxu0
      %v2578 = vadd.f32 %v2465, %v2577
      %2579 = vmatprep.mubr.bf16.mxu0 0
      %2580 = vmatmul.mubr.bf16.gmra.mxu0 %v2150
      %v2581 = vpop.f32.mrf.mxu0
      %v2582 = vadd.f32 %v2469, %v2581
      %v2583 = vpop.f32.mrf.mxu0
      %v2584 = vadd.f32 %v2471, %v2583
      %v2585 = vpop.f32.mrf.mxu0
      %v2586 = vadd.f32 %v2473, %v2585
      %v2587 = vpop.f32.mrf.mxu0
      %v2588 = vadd.f32 %v2475, %v2587
      %2589 = vmatprep.mubr.bf16.mxu0 0
      %2590 = vmatmul.mubr.bf16.gmra.mxu0 %v2153
      %v2591 = vpop.f32.mrf.mxu0
      %v2592 = vadd.f32 %v2479, %v2591
      %v2593 = vpop.f32.mrf.mxu0
      %v2594 = vadd.f32 %v2481, %v2593
      %v2595 = vpop.f32.mrf.mxu0
      %v2596 = vadd.f32 %v2483, %v2595
      %v2597 = vpop.f32.mrf.mxu0
      %v2598 = vadd.f32 %v2485, %v2597
      %2599 = vmatprep.mubr.bf16.mxu0 0
      %2600 = vmatmul.mubr.bf16.gmra.mxu0 %v2156
      %v2601 = vpop.f32.mrf.mxu0
      %v2602 = vadd.f32 %v2489, %v2601
      %v2603 = vpop.f32.mrf.mxu0
      %v2604 = vadd.f32 %v2491, %v2603
      %v2605 = vpop.f32.mrf.mxu0
      %v2606 = vadd.f32 %v2493, %v2605
      %v2607 = vpop.f32.mrf.mxu0
      %v2608 = vadd.f32 %v2495, %v2607
      %2609 = vdwg.mxu0
      %2610 = vmatprep.subr.bf16.mxu0 %v1772
      %2611 = vmatpush1.bf16.msra.mxu0 %v1771
      %2612 = vmatprep.subr.bf16.mxu0 %v1768
      %2613 = vmatpush1.bf16.msra.mxu0 %v1767
      %2614 = vmatprep.subr.bf16.mxu0 %v1764
      %2615 = vmatpush1.bf16.msra.mxu0 %v1763
      %2616 = vmatprep.subr.bf16.mxu0 %v1760
      %2617 = vmatpush1.bf16.msra.mxu0 %v1759
      %2618 = vmatprep.subr.bf16.mxu0 %v1756
      %2619 = vmatpush1.bf16.msra.mxu0 %v1755
      %2620 = vmatprep.subr.bf16.mxu0 %v1752
      %2621 = vmatpush1.bf16.msra.mxu0 %v1751
      %2622 = vmatprep.subr.bf16.mxu0 %v1748
      %2623 = vmatpush1.bf16.msra.mxu0 %v1747
      %2624 = vmatprep.subr.bf16.mxu0 %v1744
      %2625 = vmatpush1.bf16.msra.mxu0 %v1743
      %2626 = vmatprep.subr.bf16.mxu0 %v1804
      %2627 = vmatpush2.bf16.msra.mxu0 %v1803
      %2628 = vmatprep.subr.bf16.mxu0 %v1800
      %2629 = vmatpush2.bf16.msra.mxu0 %v1799
      %2630 = vmatprep.subr.bf16.mxu0 %v1796
      %2631 = vmatpush2.bf16.msra.mxu0 %v1795
      %2632 = vmatprep.subr.bf16.mxu0 %v1792
      %2633 = vmatpush2.bf16.msra.mxu0 %v1791
      %2634 = vmatprep.subr.bf16.mxu0 %v1788
      %2635 = vmatpush2.bf16.msra.mxu0 %v1787
      %2636 = vmatprep.subr.bf16.mxu0 %v1784
      %2637 = vmatpush2.bf16.msra.mxu0 %v1783
      %2638 = vmatprep.subr.bf16.mxu0 %v1780
      %2639 = vmatpush2.bf16.msra.mxu0 %v1779
      %2640 = vmatprep.subr.bf16.mxu0 %v1776
      %2641 = vmatpush2.bf16.msra.mxu0 %v1775
      %2642 = vmatprep.mubr.bf16.mxu0 %v712
      %2643 = vmatmul.mubr.bf16.gmra.mxu0 %v711
      %v2644 = vpop.f32.mrf.mxu0
      %v2645 = vadd.f32 %v1144, %v2644
      %v2646 = vpop.f32.mrf.mxu0
      %v2647 = vadd.f32 %v1148, %v2646
      %v2648 = vpop.f32.mrf.mxu0
      %v2649 = vadd.f32 %v1144, %v2648
      %v2650 = vpop.f32.mrf.mxu0
      %v2651 = vadd.f32 %v1148, %v2650
      %2652 = vmatprep.mubr.bf16.mxu0 %v719
      %2653 = vmatmul.mubr.bf16.gmra.mxu0 %v718
      %v2654 = vpop.f32.mrf.mxu0
      %v2655 = vadd.f32 %v1144, %v2654
      %v2656 = vpop.f32.mrf.mxu0
      %v2657 = vadd.f32 %v1148, %v2656
      %v2658 = vpop.f32.mrf.mxu0
      %v2659 = vadd.f32 %v1144, %v2658
      %v2660 = vpop.f32.mrf.mxu0
      %v2661 = vadd.f32 %v1148, %v2660
      %2662 = vmatprep.mubr.bf16.mxu0 %v726
      %2663 = vmatmul.mubr.bf16.gmra.mxu0 %v725
      %v2664 = vpop.f32.mrf.mxu0
      %v2665 = vadd.f32 %v1144, %v2664
      %v2666 = vpop.f32.mrf.mxu0
      %v2667 = vadd.f32 %v1148, %v2666
      %v2668 = vpop.f32.mrf.mxu0
      %v2669 = vadd.f32 %v1144, %v2668
      %v2670 = vpop.f32.mrf.mxu0
      %v2671 = vadd.f32 %v1148, %v2670
      %2672 = vmatprep.mubr.bf16.mxu0 %v733
      %2673 = vmatmul.mubr.bf16.gmra.mxu0 %v732
      %v2674 = vpop.f32.mrf.mxu0
      %v2675 = vadd.f32 %v1144, %v2674
      %v2676 = vpop.f32.mrf.mxu0
      %v2677 = vadd.f32 %v1148, %v2676
      %v2678 = vpop.f32.mrf.mxu0
      %v2679 = vadd.f32 %v1144, %v2678
      %v2680 = vpop.f32.mrf.mxu0
      %v2681 = vadd.f32 %v1148, %v2680
      %2682 = vmatprep.mubr.bf16.mxu0 %v740
      %2683 = vmatmul.mubr.bf16.gmra.mxu0 %v739
      %v2684 = vpop.f32.mrf.mxu0
      %v2685 = vadd.f32 %v1144, %v2684
      %v2686 = vpop.f32.mrf.mxu0
      %v2687 = vadd.f32 %v1148, %v2686
      %v2688 = vpop.f32.mrf.mxu0
      %v2689 = vadd.f32 %v1144, %v2688
      %v2690 = vpop.f32.mrf.mxu0
      %v2691 = vadd.f32 %v1148, %v2690
      %2692 = vmatprep.mubr.bf16.mxu0 %v747
      %2693 = vmatmul.mubr.bf16.gmra.mxu0 %v746
      %v2694 = vpop.f32.mrf.mxu0
      %v2695 = vadd.f32 %v1144, %v2694
      %v2696 = vpop.f32.mrf.mxu0
      %v2697 = vadd.f32 %v1148, %v2696
      %v2698 = vpop.f32.mrf.mxu0
      %v2699 = vadd.f32 %v1144, %v2698
      %v2700 = vpop.f32.mrf.mxu0
      %v2701 = vadd.f32 %v1148, %v2700
      %2702 = vmatprep.mubr.bf16.mxu0 %v754
      %2703 = vmatmul.mubr.bf16.gmra.mxu0 %v753
      %v2704 = vpop.f32.mrf.mxu0
      %v2705 = vadd.f32 %v1144, %v2704
      %v2706 = vpop.f32.mrf.mxu0
      %v2707 = vadd.f32 %v1148, %v2706
      %v2708 = vpop.f32.mrf.mxu0
      %v2709 = vadd.f32 %v1144, %v2708
      %v2710 = vpop.f32.mrf.mxu0
      %v2711 = vadd.f32 %v1148, %v2710
      %2712 = vmatprep.mubr.bf16.mxu0 %v761
      %2713 = vmatmul.mubr.bf16.gmra.mxu0 %v760
      %v2714 = vpop.f32.mrf.mxu0
      %v2715 = vadd.f32 %v1144, %v2714
      %v2716 = vpop.f32.mrf.mxu0
      %v2717 = vadd.f32 %v1148, %v2716
      %v2718 = vpop.f32.mrf.mxu0
      %v2719 = vadd.f32 %v1144, %v2718
      %v2720 = vpop.f32.mrf.mxu0
      %v2721 = vadd.f32 %v1148, %v2720
      %2722 = vdwg.mxu0
      %2723 = vmatprep.subr.bf16.mxu0 %v1836
      %2724 = vmatpush1.bf16.msra.mxu0 %v1835
      %2725 = vmatprep.subr.bf16.mxu0 %v1832
      %2726 = vmatpush1.bf16.msra.mxu0 %v1831
      %2727 = vmatprep.subr.bf16.mxu0 %v1828
      %2728 = vmatpush1.bf16.msra.mxu0 %v1827
      %2729 = vmatprep.subr.bf16.mxu0 %v1824
      %2730 = vmatpush1.bf16.msra.mxu0 %v1823
      %2731 = vmatprep.subr.bf16.mxu0 %v1820
      %2732 = vmatpush1.bf16.msra.mxu0 %v1819
      %2733 = vmatprep.subr.bf16.mxu0 %v1816
      %2734 = vmatpush1.bf16.msra.mxu0 %v1815
      %2735 = vmatprep.subr.bf16.mxu0 %v1812
      %2736 = vmatpush1.bf16.msra.mxu0 %v1811
      %2737 = vmatprep.subr.bf16.mxu0 %v1808
      %2738 = vmatpush1.bf16.msra.mxu0 %v1807
      %2739 = vmatprep.subr.bf16.mxu0 %v1868
      %2740 = vmatpush2.bf16.msra.mxu0 %v1867
      %2741 = vmatprep.subr.bf16.mxu0 %v1864
      %2742 = vmatpush2.bf16.msra.mxu0 %v1863
      %2743 = vmatprep.subr.bf16.mxu0 %v1860
      %2744 = vmatpush2.bf16.msra.mxu0 %v1859
      %2745 = vmatprep.subr.bf16.mxu0 %v1856
      %2746 = vmatpush2.bf16.msra.mxu0 %v1855
      %2747 = vmatprep.subr.bf16.mxu0 %v1852
      %2748 = vmatpush2.bf16.msra.mxu0 %v1851
      %2749 = vmatprep.subr.bf16.mxu0 %v1848
      %2750 = vmatpush2.bf16.msra.mxu0 %v1847
      %2751 = vmatprep.subr.bf16.mxu0 %v1844
      %2752 = vmatpush2.bf16.msra.mxu0 %v1843
      %2753 = vmatprep.subr.bf16.mxu0 %v1840
      %2754 = vmatpush2.bf16.msra.mxu0 %v1839
      %2755 = vmatprep.mubr.bf16.mxu0 %v714
      %2756 = vmatmul.mubr.bf16.gmra.mxu0 %v713
      %v2757 = vpop.f32.mrf.mxu0
      %v2758 = vadd.f32 %v2645, %v2757
      %v2759 = vpop.f32.mrf.mxu0
      %v2760 = vadd.f32 %v2647, %v2759
      %v2761 = vpop.f32.mrf.mxu0
      %v2762 = vadd.f32 %v2649, %v2761
      %v2763 = vpop.f32.mrf.mxu0
      %v2764 = vadd.f32 %v2651, %v2763
      %2765 = vmatprep.mubr.bf16.mxu0 %v721
      %2766 = vmatmul.mubr.bf16.gmra.mxu0 %v720
      %v2767 = vpop.f32.mrf.mxu0
      %v2768 = vadd.f32 %v2655, %v2767
      %v2769 = vpop.f32.mrf.mxu0
      %v2770 = vadd.f32 %v2657, %v2769
      %v2771 = vpop.f32.mrf.mxu0
      %v2772 = vadd.f32 %v2659, %v2771
      %v2773 = vpop.f32.mrf.mxu0
      %v2774 = vadd.f32 %v2661, %v2773
      %2775 = vmatprep.mubr.bf16.mxu0 %v728
      %2776 = vmatmul.mubr.bf16.gmra.mxu0 %v727
      %v2777 = vpop.f32.mrf.mxu0
      %v2778 = vadd.f32 %v2665, %v2777
      %v2779 = vpop.f32.mrf.mxu0
      %v2780 = vadd.f32 %v2667, %v2779
      %v2781 = vpop.f32.mrf.mxu0
      %v2782 = vadd.f32 %v2669, %v2781
      %v2783 = vpop.f32.mrf.mxu0
      %v2784 = vadd.f32 %v2671, %v2783
      %2785 = vmatprep.mubr.bf16.mxu0 %v735
      %2786 = vmatmul.mubr.bf16.gmra.mxu0 %v734
      %v2787 = vpop.f32.mrf.mxu0
      %v2788 = vadd.f32 %v2675, %v2787
      %v2789 = vpop.f32.mrf.mxu0
      %v2790 = vadd.f32 %v2677, %v2789
      %v2791 = vpop.f32.mrf.mxu0
      %v2792 = vadd.f32 %v2679, %v2791
      %v2793 = vpop.f32.mrf.mxu0
      %v2794 = vadd.f32 %v2681, %v2793
      %2795 = vmatprep.mubr.bf16.mxu0 %v742
      %2796 = vmatmul.mubr.bf16.gmra.mxu0 %v741
      %v2797 = vpop.f32.mrf.mxu0
      %v2798 = vadd.f32 %v2685, %v2797
      %v2799 = vpop.f32.mrf.mxu0
      %v2800 = vadd.f32 %v2687, %v2799
      %v2801 = vpop.f32.mrf.mxu0
      %v2802 = vadd.f32 %v2689, %v2801
      %v2803 = vpop.f32.mrf.mxu0
      %v2804 = vadd.f32 %v2691, %v2803
      %2805 = vmatprep.mubr.bf16.mxu0 %v749
      %2806 = vmatmul.mubr.bf16.gmra.mxu0 %v748
      %v2807 = vpop.f32.mrf.mxu0
      %v2808 = vadd.f32 %v2695, %v2807
      %v2809 = vpop.f32.mrf.mxu0
      %v2810 = vadd.f32 %v2697, %v2809
      %v2811 = vpop.f32.mrf.mxu0
      %v2812 = vadd.f32 %v2699, %v2811
      %v2813 = vpop.f32.mrf.mxu0
      %v2814 = vadd.f32 %v2701, %v2813
      %2815 = vmatprep.mubr.bf16.mxu0 %v756
      %2816 = vmatmul.mubr.bf16.gmra.mxu0 %v755
      %v2817 = vpop.f32.mrf.mxu0
      %v2818 = vadd.f32 %v2705, %v2817
      %v2819 = vpop.f32.mrf.mxu0
      %v2820 = vadd.f32 %v2707, %v2819
      %v2821 = vpop.f32.mrf.mxu0
      %v2822 = vadd.f32 %v2709, %v2821
      %v2823 = vpop.f32.mrf.mxu0
      %v2824 = vadd.f32 %v2711, %v2823
      %2825 = vmatprep.mubr.bf16.mxu0 %v763
      %2826 = vmatmul.mubr.bf16.gmra.mxu0 %v762
      %v2827 = vpop.f32.mrf.mxu0
      %v2828 = vadd.f32 %v2715, %v2827
      %v2829 = vpop.f32.mrf.mxu0
      %v2830 = vadd.f32 %v2717, %v2829
      %v2831 = vpop.f32.mrf.mxu0
      %v2832 = vadd.f32 %v2719, %v2831
      %v2833 = vpop.f32.mrf.mxu0
      %v2834 = vadd.f32 %v2721, %v2833
      %2835 = vdwg.mxu0
      %2836 = vmatprep.subr.bf16.mxu0 %v1900
      %2837 = vmatpush1.bf16.msra.mxu0 %v1899
      %2838 = vmatprep.subr.bf16.mxu0 %v1896
      %2839 = vmatpush1.bf16.msra.mxu0 %v1895
      %2840 = vmatprep.subr.bf16.mxu0 %v1892
      %2841 = vmatpush1.bf16.msra.mxu0 %v1891
      %2842 = vmatprep.subr.bf16.mxu0 %v1888
      %2843 = vmatpush1.bf16.msra.mxu0 %v1887
      %2844 = vmatprep.subr.bf16.mxu0 %v1884
      %2845 = vmatpush1.bf16.msra.mxu0 %v1883
      %2846 = vmatprep.subr.bf16.mxu0 %v1880
      %2847 = vmatpush1.bf16.msra.mxu0 %v1879
      %2848 = vmatprep.subr.bf16.mxu0 %v1876
      %2849 = vmatpush1.bf16.msra.mxu0 %v1875
      %2850 = vmatprep.subr.bf16.mxu0 %v1872
      %2851 = vmatpush1.bf16.msra.mxu0 %v1871
      %2852 = vmatprep.subr.bf16.mxu0 %v1932
      %2853 = vmatpush2.bf16.msra.mxu0 %v1931
      %2854 = vmatprep.subr.bf16.mxu0 %v1928
      %2855 = vmatpush2.bf16.msra.mxu0 %v1927
      %2856 = vmatprep.subr.bf16.mxu0 %v1924
      %2857 = vmatpush2.bf16.msra.mxu0 %v1923
      %2858 = vmatprep.subr.bf16.mxu0 %v1920
      %2859 = vmatpush2.bf16.msra.mxu0 %v1919
      %2860 = vmatprep.subr.bf16.mxu0 %v1916
      %2861 = vmatpush2.bf16.msra.mxu0 %v1915
      %2862 = vmatprep.subr.bf16.mxu0 %v1912
      %2863 = vmatpush2.bf16.msra.mxu0 %v1911
      %2864 = vmatprep.subr.bf16.mxu0 %v1908
      %2865 = vmatpush2.bf16.msra.mxu0 %v1907
      %2866 = vmatprep.subr.bf16.mxu0 %v1904
      %2867 = vmatpush2.bf16.msra.mxu0 %v1903
      %2868 = vmatprep.mubr.bf16.mxu0 %v716
      %2869 = vmatmul.mubr.bf16.gmra.mxu0 %v715
      %v2870 = vpop.f32.mrf.mxu0
      %v2871 = vadd.f32 %v2758, %v2870
      %v2872 = vpop.f32.mrf.mxu0
      %v2873 = vadd.f32 %v2760, %v2872
      %v2874 = vpop.f32.mrf.mxu0
      %v2875 = vadd.f32 %v2762, %v2874
      %v2876 = vpop.f32.mrf.mxu0
      %v2877 = vadd.f32 %v2764, %v2876
      %2878 = vmatprep.mubr.bf16.mxu0 %v723
      %2879 = vmatmul.mubr.bf16.gmra.mxu0 %v722
      %v2880 = vpop.f32.mrf.mxu0
      %v2881 = vadd.f32 %v2768, %v2880
      %v2882 = vpop.f32.mrf.mxu0
      %v2883 = vadd.f32 %v2770, %v2882
      %v2884 = vpop.f32.mrf.mxu0
      %v2885 = vadd.f32 %v2772, %v2884
      %v2886 = vpop.f32.mrf.mxu0
      %v2887 = vadd.f32 %v2774, %v2886
      %2888 = vmatprep.mubr.bf16.mxu0 %v730
      %2889 = vmatmul.mubr.bf16.gmra.mxu0 %v729
      %v2890 = vpop.f32.mrf.mxu0
      %v2891 = vadd.f32 %v2778, %v2890
      %v2892 = vpop.f32.mrf.mxu0
      %v2893 = vadd.f32 %v2780, %v2892
      %v2894 = vpop.f32.mrf.mxu0
      %v2895 = vadd.f32 %v2782, %v2894
      %v2896 = vpop.f32.mrf.mxu0
      %v2897 = vadd.f32 %v2784, %v2896
      %2898 = vmatprep.mubr.bf16.mxu0 %v737
      %2899 = vmatmul.mubr.bf16.gmra.mxu0 %v736
      %v2900 = vpop.f32.mrf.mxu0
      %v2901 = vadd.f32 %v2788, %v2900
      %v2902 = vpop.f32.mrf.mxu0
      %v2903 = vadd.f32 %v2790, %v2902
      %v2904 = vpop.f32.mrf.mxu0
      %v2905 = vadd.f32 %v2792, %v2904
      %v2906 = vpop.f32.mrf.mxu0
      %v2907 = vadd.f32 %v2794, %v2906
      %2908 = vmatprep.mubr.bf16.mxu0 %v744
      %2909 = vmatmul.mubr.bf16.gmra.mxu0 %v743
      %v2910 = vpop.f32.mrf.mxu0
      %v2911 = vadd.f32 %v2798, %v2910
      %v2912 = vpop.f32.mrf.mxu0
      %v2913 = vadd.f32 %v2800, %v2912
      %v2914 = vpop.f32.mrf.mxu0
      %v2915 = vadd.f32 %v2802, %v2914
      %v2916 = vpop.f32.mrf.mxu0
      %v2917 = vadd.f32 %v2804, %v2916
      %2918 = vmatprep.mubr.bf16.mxu0 %v751
      %2919 = vmatmul.mubr.bf16.gmra.mxu0 %v750
      %v2920 = vpop.f32.mrf.mxu0
      %v2921 = vadd.f32 %v2808, %v2920
      %v2922 = vpop.f32.mrf.mxu0
      %v2923 = vadd.f32 %v2810, %v2922
      %v2924 = vpop.f32.mrf.mxu0
      %v2925 = vadd.f32 %v2812, %v2924
      %v2926 = vpop.f32.mrf.mxu0
      %v2927 = vadd.f32 %v2814, %v2926
      %2928 = vmatprep.mubr.bf16.mxu0 %v758
      %2929 = vmatmul.mubr.bf16.gmra.mxu0 %v757
      %v2930 = vpop.f32.mrf.mxu0
      %v2931 = vadd.f32 %v2818, %v2930
      %v2932 = vpop.f32.mrf.mxu0
      %v2933 = vadd.f32 %v2820, %v2932
      %v2934 = vpop.f32.mrf.mxu0
      %v2935 = vadd.f32 %v2822, %v2934
      %v2936 = vpop.f32.mrf.mxu0
      %v2937 = vadd.f32 %v2824, %v2936
      %2938 = vmatprep.mubr.bf16.mxu0 %v765
      %2939 = vmatmul.mubr.bf16.gmra.mxu0 %v764
      %v2940 = vpop.f32.mrf.mxu0
      %v2941 = vadd.f32 %v2828, %v2940
      %v2942 = vpop.f32.mrf.mxu0
      %v2943 = vadd.f32 %v2830, %v2942
      %v2944 = vpop.f32.mrf.mxu0
      %v2945 = vadd.f32 %v2832, %v2944
      %v2946 = vpop.f32.mrf.mxu0
      %v2947 = vadd.f32 %v2834, %v2946
      %2948 = vdwg.mxu0
      %2949 = vmatprep.subr.bf16.mxu0 0
      %2950 = vmatpush1.bf16.msra.mxu0 0
      %2951 = vmatprep.subr.bf16.mxu0 0
      %2952 = vmatpush1.bf16.msra.mxu0 0
      %2953 = vmatprep.subr.bf16.mxu0 0
      %2954 = vmatpush1.bf16.msra.mxu0 0
      %2955 = vmatprep.subr.bf16.mxu0 0
      %2956 = vmatpush1.bf16.msra.mxu0 0
      %2957 = vmatprep.subr.bf16.mxu0 0
      %2958 = vmatpush1.bf16.msra.mxu0 0
      %2959 = vmatprep.subr.bf16.mxu0 0
      %2960 = vmatpush1.bf16.msra.mxu0 0
      %2961 = vmatprep.subr.bf16.mxu0 0
      %2962 = vmatpush1.bf16.msra.mxu0 0
      %2963 = vmatprep.subr.bf16.mxu0 %v1936
      %2964 = vmatpush1.bf16.msra.mxu0 %v1935
      %2965 = vmatprep.subr.bf16.mxu0 0
      %2966 = vmatpush2.bf16.msra.mxu0 0
      %2967 = vmatprep.subr.bf16.mxu0 0
      %2968 = vmatpush2.bf16.msra.mxu0 0
      %2969 = vmatprep.subr.bf16.mxu0 0
      %2970 = vmatpush2.bf16.msra.mxu0 0
      %2971 = vmatprep.subr.bf16.mxu0 0
      %2972 = vmatpush2.bf16.msra.mxu0 0
      %2973 = vmatprep.subr.bf16.mxu0 0
      %2974 = vmatpush2.bf16.msra.mxu0 0
      %2975 = vmatprep.subr.bf16.mxu0 0
      %2976 = vmatpush2.bf16.msra.mxu0 0
      %2977 = vmatprep.subr.bf16.mxu0 0
      %2978 = vmatpush2.bf16.msra.mxu0 0
      %2979 = vmatprep.subr.bf16.mxu0 0
      %2980 = vmatpush2.bf16.msra.mxu0 0
      %2981 = vmatprep.mubr.bf16.mxu0 0
      %2982 = vmatmul.mubr.bf16.gmra.mxu0 %v2135
      %v2983 = vpop.f32.mrf.mxu0
      %v2984 = vadd.f32 %v2871, %v2983
      %v2985 = vpop.f32.mrf.mxu0
      %v2986 = vadd.f32 %v2873, %v2985
      %v2987 = vpop.f32.mrf.mxu0
      %v2988 = vadd.f32 %v2875, %v2987
      %v2989 = vpop.f32.mrf.mxu0
      %v2990 = vadd.f32 %v2877, %v2989
      %2991 = vmatprep.mubr.bf16.mxu0 0
      %2992 = vmatmul.mubr.bf16.gmra.mxu0 %v2138
      %v2993 = vpop.f32.mrf.mxu0
      %v2994 = vadd.f32 %v2881, %v2993
      %v2995 = vpop.f32.mrf.mxu0
      %v2996 = vadd.f32 %v2883, %v2995
      %v2997 = vpop.f32.mrf.mxu0
      %v2998 = vadd.f32 %v2885, %v2997
      %v2999 = vpop.f32.mrf.mxu0
      %v3000 = vadd.f32 %v2887, %v2999
      %3001 = vmatprep.mubr.bf16.mxu0 0
      %3002 = vmatmul.mubr.bf16.gmra.mxu0 %v2141
      %v3003 = vpop.f32.mrf.mxu0
      %v3004 = vadd.f32 %v2891, %v3003
      %v3005 = vpop.f32.mrf.mxu0
      %v3006 = vadd.f32 %v2893, %v3005
      %v3007 = vpop.f32.mrf.mxu0
      %v3008 = vadd.f32 %v2895, %v3007
      %v3009 = vpop.f32.mrf.mxu0
      %v3010 = vadd.f32 %v2897, %v3009
      %3011 = vmatprep.mubr.bf16.mxu0 0
      %3012 = vmatmul.mubr.bf16.gmra.mxu0 %v2144
      %v3013 = vpop.f32.mrf.mxu0
      %v3014 = vadd.f32 %v2901, %v3013
      %v3015 = vpop.f32.mrf.mxu0
      %v3016 = vadd.f32 %v2903, %v3015
      %v3017 = vpop.f32.mrf.mxu0
      %v3018 = vadd.f32 %v2905, %v3017
      %v3019 = vpop.f32.mrf.mxu0
      %v3020 = vadd.f32 %v2907, %v3019
      %3021 = vmatprep.mubr.bf16.mxu0 0
      %3022 = vmatmul.mubr.bf16.gmra.mxu0 %v2147
      %v3023 = vpop.f32.mrf.mxu0
      %v3024 = vadd.f32 %v2911, %v3023
      %v3025 = vpop.f32.mrf.mxu0
      %v3026 = vadd.f32 %v2913, %v3025
      %v3027 = vpop.f32.mrf.mxu0
      %v3028 = vadd.f32 %v2915, %v3027
      %v3029 = vpop.f32.mrf.mxu0
      %v3030 = vadd.f32 %v2917, %v3029
      %3031 = vmatprep.mubr.bf16.mxu0 0
      %3032 = vmatmul.mubr.bf16.gmra.mxu0 %v2150
      %v3033 = vpop.f32.mrf.mxu0
      %v3034 = vadd.f32 %v2921, %v3033
      %v3035 = vpop.f32.mrf.mxu0
      %v3036 = vadd.f32 %v2923, %v3035
      %v3037 = vpop.f32.mrf.mxu0
      %v3038 = vadd.f32 %v2925, %v3037
      %v3039 = vpop.f32.mrf.mxu0
      %v3040 = vadd.f32 %v2927, %v3039
      %3041 = vmatprep.mubr.bf16.mxu0 0
      %3042 = vmatmul.mubr.bf16.gmra.mxu0 %v2153
      %v3043 = vpop.f32.mrf.mxu0
      %v3044 = vadd.f32 %v2931, %v3043
      %v3045 = vpop.f32.mrf.mxu0
      %v3046 = vadd.f32 %v2933, %v3045
      %v3047 = vpop.f32.mrf.mxu0
      %v3048 = vadd.f32 %v2935, %v3047
      %v3049 = vpop.f32.mrf.mxu0
      %v3050 = vadd.f32 %v2937, %v3049
      %3051 = vmatprep.mubr.bf16.mxu0 0
      %3052 = vmatmul.mubr.bf16.gmra.mxu0 %v2156
      %v3053 = vpop.f32.mrf.mxu0
      %v3054 = vadd.f32 %v2941, %v3053
      %v3055 = vpop.f32.mrf.mxu0
      %v3056 = vadd.f32 %v2943, %v3055
      %v3057 = vpop.f32.mrf.mxu0
      %v3058 = vadd.f32 %v2945, %v3057
      %v3059 = vpop.f32.mrf.mxu0
      %v3060 = vadd.f32 %v2947, %v3059
      %3061 = vdwg.mxu0
      %v3062 = vtanh.pop %v2532
      %v3063 = vtanh.pop %v2534
      %v3064 = vtanh.pop %v2984
      %v3065 = vtanh.pop %v2986
      %v3066 = vtanh.pop %v2536
      %v3067 = vtanh.pop %v2538
      %v3068 = vtanh.pop %v2988
      %v3069 = vtanh.pop %v2990
      %v3070 = vtanh.pop %v2542
      %v3071 = vtanh.pop %v2544
      %v3072 = vtanh.pop %v2994
      %v3073 = vtanh.pop %v2996
      %v3074 = vtanh.pop %v2546
      %v3075 = vtanh.pop %v2548
      %v3076 = vtanh.pop %v2998
      %v3077 = vtanh.pop %v3000
      %v3078 = vtanh.pop %v2552
      %v3079 = vtanh.pop %v2554
      %v3080 = vtanh.pop %v3004
      %v3081 = vtanh.pop %v3006
      %v3082 = vtanh.pop %v2556
      %v3083 = vtanh.pop %v2558
      %v3084 = vtanh.pop %v3008
      %v3085 = vtanh.pop %v3010
      %v3086 = vtanh.pop %v2562
      %v3087 = vtanh.pop %v2564
      %v3088 = vtanh.pop %v3014
      %v3089 = vtanh.pop %v3016
      %v3090 = vtanh.pop %v2566
      %v3091 = vtanh.pop %v2568
      %v3092 = vtanh.pop %v3018
      %v3093 = vtanh.pop %v3020
      %v3094 = vtanh.pop %v2572
      %v3095 = vtanh.pop %v2574
      %v3096 = vtanh.pop %v3024
      %v3097 = vtanh.pop %v3026
      %v3098 = vtanh.pop %v2576
      %v3099 = vtanh.pop %v2578
      %v3100 = vtanh.pop %v3028
      %v3101 = vtanh.pop %v3030
      %v3102 = vtanh.pop %v2582
      %v3103 = vtanh.pop %v2584
      %v3104 = vtanh.pop %v3034
      %v3105 = vtanh.pop %v3036
      %v3106 = vtanh.pop %v2586
      %v3107 = vtanh.pop %v2588
      %v3108 = vtanh.pop %v3038
      %v3109 = vtanh.pop %v3040
      %v3110 = vtanh.pop %v2592
      %v3111 = vtanh.pop %v2594
      %v3112 = vtanh.pop %v3044
      %v3113 = vtanh.pop %v3046
      %v3114 = vtanh.pop %v2596
      %v3115 = vtanh.pop %v2598
      %v3116 = vtanh.pop %v3048
      %v3117 = vtanh.pop %v3050
      %v3118 = vtanh.pop %v2602
      %v3119 = vtanh.pop %v2604
      %v3120 = vtanh.pop %v3054
      %v3121 = vtanh.pop %v3056
      %v3122 = vtanh.pop %v2606
      %v3123 = vtanh.pop %v2608
      %v3124 = vtanh.pop %v3058
      %v3125 = vtanh.pop %v3060
      %v3126 = vpack.c.bf16 %v3066, %v3062
      %v3127 = vpack.c.bf16 %v3067, %v3063
      %v3128 = vpack.c.bf16 %v3068, %v3064
      %v3129 = vpack.c.bf16 %v3069, %v3065
      %v3130 = vpack.c.bf16 %v3074, %v3070
      %v3131 = vpack.c.bf16 %v3075, %v3071
      %v3132 = vpack.c.bf16 %v3076, %v3072
      %v3133 = vpack.c.bf16 %v3077, %v3073
      %v3134 = vpack.c.bf16 %v3082, %v3078
      %v3135 = vpack.c.bf16 %v3083, %v3079
      %v3136 = vpack.c.bf16 %v3084, %v3080
      %v3137 = vpack.c.bf16 %v3085, %v3081
      %v3138 = vpack.c.bf16 %v3090, %v3086
      %v3139 = vpack.c.bf16 %v3091, %v3087
      %v3140 = vpack.c.bf16 %v3092, %v3088
      %v3141 = vpack.c.bf16 %v3093, %v3089
      %v3142 = vpack.c.bf16 %v3098, %v3094
      %v3143 = vpack.c.bf16 %v3099, %v3095
      %v3144 = vpack.c.bf16 %v3100, %v3096
      %v3145 = vpack.c.bf16 %v3101, %v3097
      %v3146 = vpack.c.bf16 %v3106, %v3102
      %v3147 = vpack.c.bf16 %v3107, %v3103
      %v3148 = vpack.c.bf16 %v3108, %v3104
      %v3149 = vpack.c.bf16 %v3109, %v3105
      %v3150 = vpack.c.bf16 %v3114, %v3110
      %v3151 = vpack.c.bf16 %v3115, %v3111
      %v3152 = vpack.c.bf16 %v3116, %v3112
      %v3153 = vpack.c.bf16 %v3117, %v3113
      %v3154 = vpack.c.bf16 %v3122, %v3118
      %v3155 = vpack.c.bf16 %v3123, %v3119
      %v3156 = vpack.c.bf16 %v3124, %v3120
      %v3157 = vpack.c.bf16 %v3125, %v3121
      %v3159 = vsel %vm2133, %v885, 0
      %v3162 = vsel %vm2133, %v892, 0
      %v3165 = vsel %vm2133, %v899, 0
      %v3168 = vsel %vm2133, %v906, 0
      %v3171 = vsel %vm2133, %v913, 0
      %v3174 = vsel %vm2133, %v920, 0
      %v3177 = vsel %vm2133, %v927, 0
      %v3180 = vsel %vm2133, %v934, 0
      %3182 = vmatprep.subr.bf16.mxu0 %v1770
      %3183 = vmatpush1.bf16.msra.mxu0 %v1769
      %3184 = vmatprep.subr.bf16.mxu0 %v1766
      %3185 = vmatpush1.bf16.msra.mxu0 %v1765
      %3186 = vmatprep.subr.bf16.mxu0 %v1762
      %3187 = vmatpush1.bf16.msra.mxu0 %v1761
      %3188 = vmatprep.subr.bf16.mxu0 %v1758
      %3189 = vmatpush1.bf16.msra.mxu0 %v1757
      %3190 = vmatprep.subr.bf16.mxu0 %v1754
      %3191 = vmatpush1.bf16.msra.mxu0 %v1753
      %3192 = vmatprep.subr.bf16.mxu0 %v1750
      %3193 = vmatpush1.bf16.msra.mxu0 %v1749
      %3194 = vmatprep.subr.bf16.mxu0 %v1746
      %3195 = vmatpush1.bf16.msra.mxu0 %v1745
      %3196 = vmatprep.subr.bf16.mxu0 %v1742
      %3197 = vmatpush1.bf16.msra.mxu0 %v1741
      %3198 = vmatprep.subr.bf16.mxu0 %v1802
      %3199 = vmatpush2.bf16.msra.mxu0 %v1801
      %3200 = vmatprep.subr.bf16.mxu0 %v1798
      %3201 = vmatpush2.bf16.msra.mxu0 %v1797
      %3202 = vmatprep.subr.bf16.mxu0 %v1794
      %3203 = vmatpush2.bf16.msra.mxu0 %v1793
      %3204 = vmatprep.subr.bf16.mxu0 %v1790
      %3205 = vmatpush2.bf16.msra.mxu0 %v1789
      %3206 = vmatprep.subr.bf16.mxu0 %v1786
      %3207 = vmatpush2.bf16.msra.mxu0 %v1785
      %3208 = vmatprep.subr.bf16.mxu0 %v1782
      %3209 = vmatpush2.bf16.msra.mxu0 %v1781
      %3210 = vmatprep.subr.bf16.mxu0 %v1778
      %3211 = vmatpush2.bf16.msra.mxu0 %v1777
      %3212 = vmatprep.subr.bf16.mxu0 %v1774
      %3213 = vmatpush2.bf16.msra.mxu0 %v1773
      %3214 = vmatprep.mubr.bf16.mxu0 %v880
      %3215 = vmatmul.mubr.bf16.gmra.mxu0 %v879
      %v3216 = vpop.f32.mrf.mxu0
      %v3217 = vadd.f32 %v1136, %v3216
      %v3218 = vpop.f32.mrf.mxu0
      %v3219 = vadd.f32 %v1140, %v3218
      %v3220 = vpop.f32.mrf.mxu0
      %v3221 = vadd.f32 %v1136, %v3220
      %v3222 = vpop.f32.mrf.mxu0
      %v3223 = vadd.f32 %v1140, %v3222
      %3224 = vmatprep.mubr.bf16.mxu0 %v887
      %3225 = vmatmul.mubr.bf16.gmra.mxu0 %v886
      %v3226 = vpop.f32.mrf.mxu0
      %v3227 = vadd.f32 %v1136, %v3226
      %v3228 = vpop.f32.mrf.mxu0
      %v3229 = vadd.f32 %v1140, %v3228
      %v3230 = vpop.f32.mrf.mxu0
      %v3231 = vadd.f32 %v1136, %v3230
      %v3232 = vpop.f32.mrf.mxu0
      %v3233 = vadd.f32 %v1140, %v3232
      %3234 = vmatprep.mubr.bf16.mxu0 %v894
      %3235 = vmatmul.mubr.bf16.gmra.mxu0 %v893
      %v3236 = vpop.f32.mrf.mxu0
      %v3237 = vadd.f32 %v1136, %v3236
      %v3238 = vpop.f32.mrf.mxu0
      %v3239 = vadd.f32 %v1140, %v3238
      %v3240 = vpop.f32.mrf.mxu0
      %v3241 = vadd.f32 %v1136, %v3240
      %v3242 = vpop.f32.mrf.mxu0
      %v3243 = vadd.f32 %v1140, %v3242
      %3244 = vmatprep.mubr.bf16.mxu0 %v901
      %3245 = vmatmul.mubr.bf16.gmra.mxu0 %v900
      %v3246 = vpop.f32.mrf.mxu0
      %v3247 = vadd.f32 %v1136, %v3246
      %v3248 = vpop.f32.mrf.mxu0
      %v3249 = vadd.f32 %v1140, %v3248
      %v3250 = vpop.f32.mrf.mxu0
      %v3251 = vadd.f32 %v1136, %v3250
      %v3252 = vpop.f32.mrf.mxu0
      %v3253 = vadd.f32 %v1140, %v3252
      %3254 = vmatprep.mubr.bf16.mxu0 %v908
      %3255 = vmatmul.mubr.bf16.gmra.mxu0 %v907
      %v3256 = vpop.f32.mrf.mxu0
      %v3257 = vadd.f32 %v1136, %v3256
      %v3258 = vpop.f32.mrf.mxu0
      %v3259 = vadd.f32 %v1140, %v3258
      %v3260 = vpop.f32.mrf.mxu0
      %v3261 = vadd.f32 %v1136, %v3260
      %v3262 = vpop.f32.mrf.mxu0
      %v3263 = vadd.f32 %v1140, %v3262
      %3264 = vmatprep.mubr.bf16.mxu0 %v915
      %3265 = vmatmul.mubr.bf16.gmra.mxu0 %v914
      %v3266 = vpop.f32.mrf.mxu0
      %v3267 = vadd.f32 %v1136, %v3266
      %v3268 = vpop.f32.mrf.mxu0
      %v3269 = vadd.f32 %v1140, %v3268
      %v3270 = vpop.f32.mrf.mxu0
      %v3271 = vadd.f32 %v1136, %v3270
      %v3272 = vpop.f32.mrf.mxu0
      %v3273 = vadd.f32 %v1140, %v3272
      %3274 = vmatprep.mubr.bf16.mxu0 %v922
      %3275 = vmatmul.mubr.bf16.gmra.mxu0 %v921
      %v3276 = vpop.f32.mrf.mxu0
      %v3277 = vadd.f32 %v1136, %v3276
      %v3278 = vpop.f32.mrf.mxu0
      %v3279 = vadd.f32 %v1140, %v3278
      %v3280 = vpop.f32.mrf.mxu0
      %v3281 = vadd.f32 %v1136, %v3280
      %v3282 = vpop.f32.mrf.mxu0
      %v3283 = vadd.f32 %v1140, %v3282
      %3284 = vmatprep.mubr.bf16.mxu0 %v929
      %3285 = vmatmul.mubr.bf16.gmra.mxu0 %v928
      %v3286 = vpop.f32.mrf.mxu0
      %v3287 = vadd.f32 %v1136, %v3286
      %v3288 = vpop.f32.mrf.mxu0
      %v3289 = vadd.f32 %v1140, %v3288
      %v3290 = vpop.f32.mrf.mxu0
      %v3291 = vadd.f32 %v1136, %v3290
      %v3292 = vpop.f32.mrf.mxu0
      %v3293 = vadd.f32 %v1140, %v3292
      %3294 = vdwg.mxu0
      %3295 = vmatprep.subr.bf16.mxu0 %v1834
      %3296 = vmatpush1.bf16.msra.mxu0 %v1833
      %3297 = vmatprep.subr.bf16.mxu0 %v1830
      %3298 = vmatpush1.bf16.msra.mxu0 %v1829
      %3299 = vmatprep.subr.bf16.mxu0 %v1826
      %3300 = vmatpush1.bf16.msra.mxu0 %v1825
      %3301 = vmatprep.subr.bf16.mxu0 %v1822
      %3302 = vmatpush1.bf16.msra.mxu0 %v1821
      %3303 = vmatprep.subr.bf16.mxu0 %v1818
      %3304 = vmatpush1.bf16.msra.mxu0 %v1817
      %3305 = vmatprep.subr.bf16.mxu0 %v1814
      %3306 = vmatpush1.bf16.msra.mxu0 %v1813
      %3307 = vmatprep.subr.bf16.mxu0 %v1810
      %3308 = vmatpush1.bf16.msra.mxu0 %v1809
      %3309 = vmatprep.subr.bf16.mxu0 %v1806
      %3310 = vmatpush1.bf16.msra.mxu0 %v1805
      %3311 = vmatprep.subr.bf16.mxu0 %v1866
      %3312 = vmatpush2.bf16.msra.mxu0 %v1865
      %3313 = vmatprep.subr.bf16.mxu0 %v1862
      %3314 = vmatpush2.bf16.msra.mxu0 %v1861
      %3315 = vmatprep.subr.bf16.mxu0 %v1858
      %3316 = vmatpush2.bf16.msra.mxu0 %v1857
      %3317 = vmatprep.subr.bf16.mxu0 %v1854
      %3318 = vmatpush2.bf16.msra.mxu0 %v1853
      %3319 = vmatprep.subr.bf16.mxu0 %v1850
      %3320 = vmatpush2.bf16.msra.mxu0 %v1849
      %3321 = vmatprep.subr.bf16.mxu0 %v1846
      %3322 = vmatpush2.bf16.msra.mxu0 %v1845
      %3323 = vmatprep.subr.bf16.mxu0 %v1842
      %3324 = vmatpush2.bf16.msra.mxu0 %v1841
      %3325 = vmatprep.subr.bf16.mxu0 %v1838
      %3326 = vmatpush2.bf16.msra.mxu0 %v1837
      %3327 = vmatprep.mubr.bf16.mxu0 %v882
      %3328 = vmatmul.mubr.bf16.gmra.mxu0 %v881
      %v3329 = vpop.f32.mrf.mxu0
      %v3330 = vadd.f32 %v3217, %v3329
      %v3331 = vpop.f32.mrf.mxu0
      %v3332 = vadd.f32 %v3219, %v3331
      %v3333 = vpop.f32.mrf.mxu0
      %v3334 = vadd.f32 %v3221, %v3333
      %v3335 = vpop.f32.mrf.mxu0
      %v3336 = vadd.f32 %v3223, %v3335
      %3337 = vmatprep.mubr.bf16.mxu0 %v889
      %3338 = vmatmul.mubr.bf16.gmra.mxu0 %v888
      %v3339 = vpop.f32.mrf.mxu0
      %v3340 = vadd.f32 %v3227, %v3339
      %v3341 = vpop.f32.mrf.mxu0
      %v3342 = vadd.f32 %v3229, %v3341
      %v3343 = vpop.f32.mrf.mxu0
      %v3344 = vadd.f32 %v3231, %v3343
      %v3345 = vpop.f32.mrf.mxu0
      %v3346 = vadd.f32 %v3233, %v3345
      %3347 = vmatprep.mubr.bf16.mxu0 %v896
      %3348 = vmatmul.mubr.bf16.gmra.mxu0 %v895
      %v3349 = vpop.f32.mrf.mxu0
      %v3350 = vadd.f32 %v3237, %v3349
      %v3351 = vpop.f32.mrf.mxu0
      %v3352 = vadd.f32 %v3239, %v3351
      %v3353 = vpop.f32.mrf.mxu0
      %v3354 = vadd.f32 %v3241, %v3353
      %v3355 = vpop.f32.mrf.mxu0
      %v3356 = vadd.f32 %v3243, %v3355
      %3357 = vmatprep.mubr.bf16.mxu0 %v903
      %3358 = vmatmul.mubr.bf16.gmra.mxu0 %v902
      %v3359 = vpop.f32.mrf.mxu0
      %v3360 = vadd.f32 %v3247, %v3359
      %v3361 = vpop.f32.mrf.mxu0
      %v3362 = vadd.f32 %v3249, %v3361
      %v3363 = vpop.f32.mrf.mxu0
      %v3364 = vadd.f32 %v3251, %v3363
      %v3365 = vpop.f32.mrf.mxu0
      %v3366 = vadd.f32 %v3253, %v3365
      %3367 = vmatprep.mubr.bf16.mxu0 %v910
      %3368 = vmatmul.mubr.bf16.gmra.mxu0 %v909
      %v3369 = vpop.f32.mrf.mxu0
      %v3370 = vadd.f32 %v3257, %v3369
      %v3371 = vpop.f32.mrf.mxu0
      %v3372 = vadd.f32 %v3259, %v3371
      %v3373 = vpop.f32.mrf.mxu0
      %v3374 = vadd.f32 %v3261, %v3373
      %v3375 = vpop.f32.mrf.mxu0
      %v3376 = vadd.f32 %v3263, %v3375
      %3377 = vmatprep.mubr.bf16.mxu0 %v917
      %3378 = vmatmul.mubr.bf16.gmra.mxu0 %v916
      %v3379 = vpop.f32.mrf.mxu0
      %v3380 = vadd.f32 %v3267, %v3379
      %v3381 = vpop.f32.mrf.mxu0
      %v3382 = vadd.f32 %v3269, %v3381
      %v3383 = vpop.f32.mrf.mxu0
      %v3384 = vadd.f32 %v3271, %v3383
      %v3385 = vpop.f32.mrf.mxu0
      %v3386 = vadd.f32 %v3273, %v3385
      %3387 = vmatprep.mubr.bf16.mxu0 %v924
      %3388 = vmatmul.mubr.bf16.gmra.mxu0 %v923
      %v3389 = vpop.f32.mrf.mxu0
      %v3390 = vadd.f32 %v3277, %v3389
      %v3391 = vpop.f32.mrf.mxu0
      %v3392 = vadd.f32 %v3279, %v3391
      %v3393 = vpop.f32.mrf.mxu0
      %v3394 = vadd.f32 %v3281, %v3393
      %v3395 = vpop.f32.mrf.mxu0
      %v3396 = vadd.f32 %v3283, %v3395
      %3397 = vmatprep.mubr.bf16.mxu0 %v931
      %3398 = vmatmul.mubr.bf16.gmra.mxu0 %v930
      %v3399 = vpop.f32.mrf.mxu0
      %v3400 = vadd.f32 %v3287, %v3399
      %v3401 = vpop.f32.mrf.mxu0
      %v3402 = vadd.f32 %v3289, %v3401
      %v3403 = vpop.f32.mrf.mxu0
      %v3404 = vadd.f32 %v3291, %v3403
      %v3405 = vpop.f32.mrf.mxu0
      %v3406 = vadd.f32 %v3293, %v3405
      %3407 = vdwg.mxu0
      %3408 = vmatprep.subr.bf16.mxu0 %v1898
      %3409 = vmatpush1.bf16.msra.mxu0 %v1897
      %3410 = vmatprep.subr.bf16.mxu0 %v1894
      %3411 = vmatpush1.bf16.msra.mxu0 %v1893
      %3412 = vmatprep.subr.bf16.mxu0 %v1890
      %3413 = vmatpush1.bf16.msra.mxu0 %v1889
      %3414 = vmatprep.subr.bf16.mxu0 %v1886
      %3415 = vmatpush1.bf16.msra.mxu0 %v1885
      %3416 = vmatprep.subr.bf16.mxu0 %v1882
      %3417 = vmatpush1.bf16.msra.mxu0 %v1881
      %3418 = vmatprep.subr.bf16.mxu0 %v1878
      %3419 = vmatpush1.bf16.msra.mxu0 %v1877
      %3420 = vmatprep.subr.bf16.mxu0 %v1874
      %3421 = vmatpush1.bf16.msra.mxu0 %v1873
      %3422 = vmatprep.subr.bf16.mxu0 %v1870
      %3423 = vmatpush1.bf16.msra.mxu0 %v1869
      %3424 = vmatprep.subr.bf16.mxu0 %v1930
      %3425 = vmatpush2.bf16.msra.mxu0 %v1929
      %3426 = vmatprep.subr.bf16.mxu0 %v1926
      %3427 = vmatpush2.bf16.msra.mxu0 %v1925
      %3428 = vmatprep.subr.bf16.mxu0 %v1922
      %3429 = vmatpush2.bf16.msra.mxu0 %v1921
      %3430 = vmatprep.subr.bf16.mxu0 %v1918
      %3431 = vmatpush2.bf16.msra.mxu0 %v1917
      %3432 = vmatprep.subr.bf16.mxu0 %v1914
      %3433 = vmatpush2.bf16.msra.mxu0 %v1913
      %3434 = vmatprep.subr.bf16.mxu0 %v1910
      %3435 = vmatpush2.bf16.msra.mxu0 %v1909
      %3436 = vmatprep.subr.bf16.mxu0 %v1906
      %3437 = vmatpush2.bf16.msra.mxu0 %v1905
      %3438 = vmatprep.subr.bf16.mxu0 %v1902
      %3439 = vmatpush2.bf16.msra.mxu0 %v1901
      %3440 = vmatprep.mubr.bf16.mxu0 %v884
      %3441 = vmatmul.mubr.bf16.gmra.mxu0 %v883
      %v3442 = vpop.f32.mrf.mxu0
      %v3443 = vadd.f32 %v3330, %v3442
      %v3444 = vpop.f32.mrf.mxu0
      %v3445 = vadd.f32 %v3332, %v3444
      %v3446 = vpop.f32.mrf.mxu0
      %v3447 = vadd.f32 %v3334, %v3446
      %v3448 = vpop.f32.mrf.mxu0
      %v3449 = vadd.f32 %v3336, %v3448
      %3450 = vmatprep.mubr.bf16.mxu0 %v891
      %3451 = vmatmul.mubr.bf16.gmra.mxu0 %v890
      %v3452 = vpop.f32.mrf.mxu0
      %v3453 = vadd.f32 %v3340, %v3452
      %v3454 = vpop.f32.mrf.mxu0
      %v3455 = vadd.f32 %v3342, %v3454
      %v3456 = vpop.f32.mrf.mxu0
      %v3457 = vadd.f32 %v3344, %v3456
      %v3458 = vpop.f32.mrf.mxu0
      %v3459 = vadd.f32 %v3346, %v3458
      %3460 = vmatprep.mubr.bf16.mxu0 %v898
      %3461 = vmatmul.mubr.bf16.gmra.mxu0 %v897
      %v3462 = vpop.f32.mrf.mxu0
      %v3463 = vadd.f32 %v3350, %v3462
      %v3464 = vpop.f32.mrf.mxu0
      %v3465 = vadd.f32 %v3352, %v3464
      %v3466 = vpop.f32.mrf.mxu0
      %v3467 = vadd.f32 %v3354, %v3466
      %v3468 = vpop.f32.mrf.mxu0
      %v3469 = vadd.f32 %v3356, %v3468
      %3470 = vmatprep.mubr.bf16.mxu0 %v905
      %3471 = vmatmul.mubr.bf16.gmra.mxu0 %v904
      %v3472 = vpop.f32.mrf.mxu0
      %v3473 = vadd.f32 %v3360, %v3472
      %v3474 = vpop.f32.mrf.mxu0
      %v3475 = vadd.f32 %v3362, %v3474
      %v3476 = vpop.f32.mrf.mxu0
      %v3477 = vadd.f32 %v3364, %v3476
      %v3478 = vpop.f32.mrf.mxu0
      %v3479 = vadd.f32 %v3366, %v3478
      %3480 = vmatprep.mubr.bf16.mxu0 %v912
      %3481 = vmatmul.mubr.bf16.gmra.mxu0 %v911
      %v3482 = vpop.f32.mrf.mxu0
      %v3483 = vadd.f32 %v3370, %v3482
      %v3484 = vpop.f32.mrf.mxu0
      %v3485 = vadd.f32 %v3372, %v3484
      %v3486 = vpop.f32.mrf.mxu0
      %v3487 = vadd.f32 %v3374, %v3486
      %v3488 = vpop.f32.mrf.mxu0
      %v3489 = vadd.f32 %v3376, %v3488
      %3490 = vmatprep.mubr.bf16.mxu0 %v919
      %3491 = vmatmul.mubr.bf16.gmra.mxu0 %v918
      %v3492 = vpop.f32.mrf.mxu0
      %v3493 = vadd.f32 %v3380, %v3492
      %v3494 = vpop.f32.mrf.mxu0
      %v3495 = vadd.f32 %v3382, %v3494
      %v3496 = vpop.f32.mrf.mxu0
      %v3497 = vadd.f32 %v3384, %v3496
      %v3498 = vpop.f32.mrf.mxu0
      %v3499 = vadd.f32 %v3386, %v3498
      %3500 = vmatprep.mubr.bf16.mxu0 %v926
      %3501 = vmatmul.mubr.bf16.gmra.mxu0 %v925
      %v3502 = vpop.f32.mrf.mxu0
      %v3503 = vadd.f32 %v3390, %v3502
      %v3504 = vpop.f32.mrf.mxu0
      %v3505 = vadd.f32 %v3392, %v3504
      %v3506 = vpop.f32.mrf.mxu0
      %v3507 = vadd.f32 %v3394, %v3506
      %v3508 = vpop.f32.mrf.mxu0
      %v3509 = vadd.f32 %v3396, %v3508
      %3510 = vmatprep.mubr.bf16.mxu0 %v933
      %3511 = vmatmul.mubr.bf16.gmra.mxu0 %v932
      %v3512 = vpop.f32.mrf.mxu0
      %v3513 = vadd.f32 %v3400, %v3512
      %v3514 = vpop.f32.mrf.mxu0
      %v3515 = vadd.f32 %v3402, %v3514
      %v3516 = vpop.f32.mrf.mxu0
      %v3517 = vadd.f32 %v3404, %v3516
      %v3518 = vpop.f32.mrf.mxu0
      %v3519 = vadd.f32 %v3406, %v3518
      %3520 = vdwg.mxu0
      %3521 = vmatprep.subr.bf16.mxu0 0
      %3522 = vmatpush1.bf16.msra.mxu0 0
      %3523 = vmatprep.subr.bf16.mxu0 0
      %3524 = vmatpush1.bf16.msra.mxu0 0
      %3525 = vmatprep.subr.bf16.mxu0 0
      %3526 = vmatpush1.bf16.msra.mxu0 0
      %3527 = vmatprep.subr.bf16.mxu0 0
      %3528 = vmatpush1.bf16.msra.mxu0 0
      %3529 = vmatprep.subr.bf16.mxu0 0
      %3530 = vmatpush1.bf16.msra.mxu0 0
      %3531 = vmatprep.subr.bf16.mxu0 0
      %3532 = vmatpush1.bf16.msra.mxu0 0
      %3533 = vmatprep.subr.bf16.mxu0 0
      %3534 = vmatpush1.bf16.msra.mxu0 0
      %3535 = vmatprep.subr.bf16.mxu0 %v1934
      %3536 = vmatpush1.bf16.msra.mxu0 %v1933
      %3537 = vmatprep.subr.bf16.mxu0 0
      %3538 = vmatpush2.bf16.msra.mxu0 0
      %3539 = vmatprep.subr.bf16.mxu0 0
      %3540 = vmatpush2.bf16.msra.mxu0 0
      %3541 = vmatprep.subr.bf16.mxu0 0
      %3542 = vmatpush2.bf16.msra.mxu0 0
      %3543 = vmatprep.subr.bf16.mxu0 0
      %3544 = vmatpush2.bf16.msra.mxu0 0
      %3545 = vmatprep.subr.bf16.mxu0 0
      %3546 = vmatpush2.bf16.msra.mxu0 0
      %3547 = vmatprep.subr.bf16.mxu0 0
      %3548 = vmatpush2.bf16.msra.mxu0 0
      %3549 = vmatprep.subr.bf16.mxu0 0
      %3550 = vmatpush2.bf16.msra.mxu0 0
      %3551 = vmatprep.subr.bf16.mxu0 0
      %3552 = vmatpush2.bf16.msra.mxu0 0
      %3553 = vmatprep.mubr.bf16.mxu0 0
      %3554 = vmatmul.mubr.bf16.gmra.mxu0 %v3159
      %v3555 = vpop.f32.mrf.mxu0
      %v3556 = vadd.f32 %v3443, %v3555
      %v3557 = vpop.f32.mrf.mxu0
      %v3558 = vadd.f32 %v3445, %v3557
      %v3559 = vpop.f32.mrf.mxu0
      %v3560 = vadd.f32 %v3447, %v3559
      %v3561 = vpop.f32.mrf.mxu0
      %v3562 = vadd.f32 %v3449, %v3561
      %3563 = vmatprep.mubr.bf16.mxu0 0
      %3564 = vmatmul.mubr.bf16.gmra.mxu0 %v3162
      %v3565 = vpop.f32.mrf.mxu0
      %v3566 = vadd.f32 %v3453, %v3565
      %v3567 = vpop.f32.mrf.mxu0
      %v3568 = vadd.f32 %v3455, %v3567
      %v3569 = vpop.f32.mrf.mxu0
      %v3570 = vadd.f32 %v3457, %v3569
      %v3571 = vpop.f32.mrf.mxu0
      %v3572 = vadd.f32 %v3459, %v3571
      %3573 = vmatprep.mubr.bf16.mxu0 0
      %3574 = vmatmul.mubr.bf16.gmra.mxu0 %v3165
      %v3575 = vpop.f32.mrf.mxu0
      %v3576 = vadd.f32 %v3463, %v3575
      %v3577 = vpop.f32.mrf.mxu0
      %v3578 = vadd.f32 %v3465, %v3577
      %v3579 = vpop.f32.mrf.mxu0
      %v3580 = vadd.f32 %v3467, %v3579
      %v3581 = vpop.f32.mrf.mxu0
      %v3582 = vadd.f32 %v3469, %v3581
      %3583 = vmatprep.mubr.bf16.mxu0 0
      %3584 = vmatmul.mubr.bf16.gmra.mxu0 %v3168
      %v3585 = vpop.f32.mrf.mxu0
      %v3586 = vadd.f32 %v3473, %v3585
      %v3587 = vpop.f32.mrf.mxu0
      %v3588 = vadd.f32 %v3475, %v3587
      %v3589 = vpop.f32.mrf.mxu0
      %v3590 = vadd.f32 %v3477, %v3589
      %v3591 = vpop.f32.mrf.mxu0
      %v3592 = vadd.f32 %v3479, %v3591
      %3593 = vmatprep.mubr.bf16.mxu0 0
      %3594 = vmatmul.mubr.bf16.gmra.mxu0 %v3171
      %v3595 = vpop.f32.mrf.mxu0
      %v3596 = vadd.f32 %v3483, %v3595
      %v3597 = vpop.f32.mrf.mxu0
      %v3598 = vadd.f32 %v3485, %v3597
      %v3599 = vpop.f32.mrf.mxu0
      %v3600 = vadd.f32 %v3487, %v3599
      %v3601 = vpop.f32.mrf.mxu0
      %v3602 = vadd.f32 %v3489, %v3601
      %3603 = vmatprep.mubr.bf16.mxu0 0
      %3604 = vmatmul.mubr.bf16.gmra.mxu0 %v3174
      %v3605 = vpop.f32.mrf.mxu0
      %v3606 = vadd.f32 %v3493, %v3605
      %v3607 = vpop.f32.mrf.mxu0
      %v3608 = vadd.f32 %v3495, %v3607
      %v3609 = vpop.f32.mrf.mxu0
      %v3610 = vadd.f32 %v3497, %v3609
      %v3611 = vpop.f32.mrf.mxu0
      %v3612 = vadd.f32 %v3499, %v3611
      %3613 = vmatprep.mubr.bf16.mxu0 0
      %3614 = vmatmul.mubr.bf16.gmra.mxu0 %v3177
      %v3615 = vpop.f32.mrf.mxu0
      %v3616 = vadd.f32 %v3503, %v3615
      %v3617 = vpop.f32.mrf.mxu0
      %v3618 = vadd.f32 %v3505, %v3617
      %v3619 = vpop.f32.mrf.mxu0
      %v3620 = vadd.f32 %v3507, %v3619
      %v3621 = vpop.f32.mrf.mxu0
      %v3622 = vadd.f32 %v3509, %v3621
      %3623 = vmatprep.mubr.bf16.mxu0 0
      %3624 = vmatmul.mubr.bf16.gmra.mxu0 %v3180
      %v3625 = vpop.f32.mrf.mxu0
      %v3626 = vadd.f32 %v3513, %v3625
      %v3627 = vpop.f32.mrf.mxu0
      %v3628 = vadd.f32 %v3515, %v3627
      %v3629 = vpop.f32.mrf.mxu0
      %v3630 = vadd.f32 %v3517, %v3629
      %v3631 = vpop.f32.mrf.mxu0
      %v3632 = vadd.f32 %v3519, %v3631
      %3633 = vdwg.mxu0
      %3634 = vmatprep.subr.bf16.mxu0 %v1772
      %3635 = vmatpush1.bf16.msra.mxu0 %v1771
      %3636 = vmatprep.subr.bf16.mxu0 %v1768
      %3637 = vmatpush1.bf16.msra.mxu0 %v1767
      %3638 = vmatprep.subr.bf16.mxu0 %v1764
      %3639 = vmatpush1.bf16.msra.mxu0 %v1763
      %3640 = vmatprep.subr.bf16.mxu0 %v1760
      %3641 = vmatpush1.bf16.msra.mxu0 %v1759
      %3642 = vmatprep.subr.bf16.mxu0 %v1756
      %3643 = vmatpush1.bf16.msra.mxu0 %v1755
      %3644 = vmatprep.subr.bf16.mxu0 %v1752
      %3645 = vmatpush1.bf16.msra.mxu0 %v1751
      %3646 = vmatprep.subr.bf16.mxu0 %v1748
      %3647 = vmatpush1.bf16.msra.mxu0 %v1747
      %3648 = vmatprep.subr.bf16.mxu0 %v1744
      %3649 = vmatpush1.bf16.msra.mxu0 %v1743
      %3650 = vmatprep.subr.bf16.mxu0 %v1804
      %3651 = vmatpush2.bf16.msra.mxu0 %v1803
      %3652 = vmatprep.subr.bf16.mxu0 %v1800
      %3653 = vmatpush2.bf16.msra.mxu0 %v1799
      %3654 = vmatprep.subr.bf16.mxu0 %v1796
      %3655 = vmatpush2.bf16.msra.mxu0 %v1795
      %3656 = vmatprep.subr.bf16.mxu0 %v1792
      %3657 = vmatpush2.bf16.msra.mxu0 %v1791
      %3658 = vmatprep.subr.bf16.mxu0 %v1788
      %3659 = vmatpush2.bf16.msra.mxu0 %v1787
      %3660 = vmatprep.subr.bf16.mxu0 %v1784
      %3661 = vmatpush2.bf16.msra.mxu0 %v1783
      %3662 = vmatprep.subr.bf16.mxu0 %v1780
      %3663 = vmatpush2.bf16.msra.mxu0 %v1779
      %3664 = vmatprep.subr.bf16.mxu0 %v1776
      %3665 = vmatpush2.bf16.msra.mxu0 %v1775
      %3666 = vmatprep.mubr.bf16.mxu0 %v880
      %3667 = vmatmul.mubr.bf16.gmra.mxu0 %v879
      %v3668 = vpop.f32.mrf.mxu0
      %v3669 = vadd.f32 %v1144, %v3668
      %v3670 = vpop.f32.mrf.mxu0
      %v3671 = vadd.f32 %v1148, %v3670
      %v3672 = vpop.f32.mrf.mxu0
      %v3673 = vadd.f32 %v1144, %v3672
      %v3674 = vpop.f32.mrf.mxu0
      %v3675 = vadd.f32 %v1148, %v3674
      %3676 = vmatprep.mubr.bf16.mxu0 %v887
      %3677 = vmatmul.mubr.bf16.gmra.mxu0 %v886
      %v3678 = vpop.f32.mrf.mxu0
      %v3679 = vadd.f32 %v1144, %v3678
      %v3680 = vpop.f32.mrf.mxu0
      %v3681 = vadd.f32 %v1148, %v3680
      %v3682 = vpop.f32.mrf.mxu0
      %v3683 = vadd.f32 %v1144, %v3682
      %v3684 = vpop.f32.mrf.mxu0
      %v3685 = vadd.f32 %v1148, %v3684
      %3686 = vmatprep.mubr.bf16.mxu0 %v894
      %3687 = vmatmul.mubr.bf16.gmra.mxu0 %v893
      %v3688 = vpop.f32.mrf.mxu0
      %v3689 = vadd.f32 %v1144, %v3688
      %v3690 = vpop.f32.mrf.mxu0
      %v3691 = vadd.f32 %v1148, %v3690
      %v3692 = vpop.f32.mrf.mxu0
      %v3693 = vadd.f32 %v1144, %v3692
      %v3694 = vpop.f32.mrf.mxu0
      %v3695 = vadd.f32 %v1148, %v3694
      %3696 = vmatprep.mubr.bf16.mxu0 %v901
      %3697 = vmatmul.mubr.bf16.gmra.mxu0 %v900
      %v3698 = vpop.f32.mrf.mxu0
      %v3699 = vadd.f32 %v1144, %v3698
      %v3700 = vpop.f32.mrf.mxu0
      %v3701 = vadd.f32 %v1148, %v3700
      %v3702 = vpop.f32.mrf.mxu0
      %v3703 = vadd.f32 %v1144, %v3702
      %v3704 = vpop.f32.mrf.mxu0
      %v3705 = vadd.f32 %v1148, %v3704
      %3706 = vmatprep.mubr.bf16.mxu0 %v908
      %3707 = vmatmul.mubr.bf16.gmra.mxu0 %v907
      %v3708 = vpop.f32.mrf.mxu0
      %v3709 = vadd.f32 %v1144, %v3708
      %v3710 = vpop.f32.mrf.mxu0
      %v3711 = vadd.f32 %v1148, %v3710
      %v3712 = vpop.f32.mrf.mxu0
      %v3713 = vadd.f32 %v1144, %v3712
      %v3714 = vpop.f32.mrf.mxu0
      %v3715 = vadd.f32 %v1148, %v3714
      %3716 = vmatprep.mubr.bf16.mxu0 %v915
      %3717 = vmatmul.mubr.bf16.gmra.mxu0 %v914
      %v3718 = vpop.f32.mrf.mxu0
      %v3719 = vadd.f32 %v1144, %v3718
      %v3720 = vpop.f32.mrf.mxu0
      %v3721 = vadd.f32 %v1148, %v3720
      %v3722 = vpop.f32.mrf.mxu0
      %v3723 = vadd.f32 %v1144, %v3722
      %v3724 = vpop.f32.mrf.mxu0
      %v3725 = vadd.f32 %v1148, %v3724
      %3726 = vmatprep.mubr.bf16.mxu0 %v922
      %3727 = vmatmul.mubr.bf16.gmra.mxu0 %v921
      %v3728 = vpop.f32.mrf.mxu0
      %v3729 = vadd.f32 %v1144, %v3728
      %v3730 = vpop.f32.mrf.mxu0
      %v3731 = vadd.f32 %v1148, %v3730
      %v3732 = vpop.f32.mrf.mxu0
      %v3733 = vadd.f32 %v1144, %v3732
      %v3734 = vpop.f32.mrf.mxu0
      %v3735 = vadd.f32 %v1148, %v3734
      %3736 = vmatprep.mubr.bf16.mxu0 %v929
      %3737 = vmatmul.mubr.bf16.gmra.mxu0 %v928
      %v3738 = vpop.f32.mrf.mxu0
      %v3739 = vadd.f32 %v1144, %v3738
      %v3740 = vpop.f32.mrf.mxu0
      %v3741 = vadd.f32 %v1148, %v3740
      %v3742 = vpop.f32.mrf.mxu0
      %v3743 = vadd.f32 %v1144, %v3742
      %v3744 = vpop.f32.mrf.mxu0
      %v3745 = vadd.f32 %v1148, %v3744
      %3746 = vdwg.mxu0
      %3747 = vmatprep.subr.bf16.mxu0 %v1836
      %3748 = vmatpush1.bf16.msra.mxu0 %v1835
      %3749 = vmatprep.subr.bf16.mxu0 %v1832
      %3750 = vmatpush1.bf16.msra.mxu0 %v1831
      %3751 = vmatprep.subr.bf16.mxu0 %v1828
      %3752 = vmatpush1.bf16.msra.mxu0 %v1827
      %3753 = vmatprep.subr.bf16.mxu0 %v1824
      %3754 = vmatpush1.bf16.msra.mxu0 %v1823
      %3755 = vmatprep.subr.bf16.mxu0 %v1820
      %3756 = vmatpush1.bf16.msra.mxu0 %v1819
      %3757 = vmatprep.subr.bf16.mxu0 %v1816
      %3758 = vmatpush1.bf16.msra.mxu0 %v1815
      %3759 = vmatprep.subr.bf16.mxu0 %v1812
      %3760 = vmatpush1.bf16.msra.mxu0 %v1811
      %3761 = vmatprep.subr.bf16.mxu0 %v1808
      %3762 = vmatpush1.bf16.msra.mxu0 %v1807
      %3763 = vmatprep.subr.bf16.mxu0 %v1868
      %3764 = vmatpush2.bf16.msra.mxu0 %v1867
      %3765 = vmatprep.subr.bf16.mxu0 %v1864
      %3766 = vmatpush2.bf16.msra.mxu0 %v1863
      %3767 = vmatprep.subr.bf16.mxu0 %v1860
      %3768 = vmatpush2.bf16.msra.mxu0 %v1859
      %3769 = vmatprep.subr.bf16.mxu0 %v1856
      %3770 = vmatpush2.bf16.msra.mxu0 %v1855
      %3771 = vmatprep.subr.bf16.mxu0 %v1852
      %3772 = vmatpush2.bf16.msra.mxu0 %v1851
      %3773 = vmatprep.subr.bf16.mxu0 %v1848
      %3774 = vmatpush2.bf16.msra.mxu0 %v1847
      %3775 = vmatprep.subr.bf16.mxu0 %v1844
      %3776 = vmatpush2.bf16.msra.mxu0 %v1843
      %3777 = vmatprep.subr.bf16.mxu0 %v1840
      %3778 = vmatpush2.bf16.msra.mxu0 %v1839
      %3779 = vmatprep.mubr.bf16.mxu0 %v882
      %3780 = vmatmul.mubr.bf16.gmra.mxu0 %v881
      %v3781 = vpop.f32.mrf.mxu0
      %v3782 = vadd.f32 %v3669, %v3781
      %v3783 = vpop.f32.mrf.mxu0
      %v3784 = vadd.f32 %v3671, %v3783
      %v3785 = vpop.f32.mrf.mxu0
      %v3786 = vadd.f32 %v3673, %v3785
      %v3787 = vpop.f32.mrf.mxu0
      %v3788 = vadd.f32 %v3675, %v3787
      %3789 = vmatprep.mubr.bf16.mxu0 %v889
      %3790 = vmatmul.mubr.bf16.gmra.mxu0 %v888
      %v3791 = vpop.f32.mrf.mxu0
      %v3792 = vadd.f32 %v3679, %v3791
      %v3793 = vpop.f32.mrf.mxu0
      %v3794 = vadd.f32 %v3681, %v3793
      %v3795 = vpop.f32.mrf.mxu0
      %v3796 = vadd.f32 %v3683, %v3795
      %v3797 = vpop.f32.mrf.mxu0
      %v3798 = vadd.f32 %v3685, %v3797
      %3799 = vmatprep.mubr.bf16.mxu0 %v896
      %3800 = vmatmul.mubr.bf16.gmra.mxu0 %v895
      %v3801 = vpop.f32.mrf.mxu0
      %v3802 = vadd.f32 %v3689, %v3801
      %v3803 = vpop.f32.mrf.mxu0
      %v3804 = vadd.f32 %v3691, %v3803
      %v3805 = vpop.f32.mrf.mxu0
      %v3806 = vadd.f32 %v3693, %v3805
      %v3807 = vpop.f32.mrf.mxu0
      %v3808 = vadd.f32 %v3695, %v3807
      %3809 = vmatprep.mubr.bf16.mxu0 %v903
      %3810 = vmatmul.mubr.bf16.gmra.mxu0 %v902
      %v3811 = vpop.f32.mrf.mxu0
      %v3812 = vadd.f32 %v3699, %v3811
      %v3813 = vpop.f32.mrf.mxu0
      %v3814 = vadd.f32 %v3701, %v3813
      %v3815 = vpop.f32.mrf.mxu0
      %v3816 = vadd.f32 %v3703, %v3815
      %v3817 = vpop.f32.mrf.mxu0
      %v3818 = vadd.f32 %v3705, %v3817
      %3819 = vmatprep.mubr.bf16.mxu0 %v910
      %3820 = vmatmul.mubr.bf16.gmra.mxu0 %v909
      %v3821 = vpop.f32.mrf.mxu0
      %v3822 = vadd.f32 %v3709, %v3821
      %v3823 = vpop.f32.mrf.mxu0
      %v3824 = vadd.f32 %v3711, %v3823
      %v3825 = vpop.f32.mrf.mxu0
      %v3826 = vadd.f32 %v3713, %v3825
      %v3827 = vpop.f32.mrf.mxu0
      %v3828 = vadd.f32 %v3715, %v3827
      %3829 = vmatprep.mubr.bf16.mxu0 %v917
      %3830 = vmatmul.mubr.bf16.gmra.mxu0 %v916
      %v3831 = vpop.f32.mrf.mxu0
      %v3832 = vadd.f32 %v3719, %v3831
      %v3833 = vpop.f32.mrf.mxu0
      %v3834 = vadd.f32 %v3721, %v3833
      %v3835 = vpop.f32.mrf.mxu0
      %v3836 = vadd.f32 %v3723, %v3835
      %v3837 = vpop.f32.mrf.mxu0
      %v3838 = vadd.f32 %v3725, %v3837
      %3839 = vmatprep.mubr.bf16.mxu0 %v924
      %3840 = vmatmul.mubr.bf16.gmra.mxu0 %v923
      %v3841 = vpop.f32.mrf.mxu0
      %v3842 = vadd.f32 %v3729, %v3841
      %v3843 = vpop.f32.mrf.mxu0
      %v3844 = vadd.f32 %v3731, %v3843
      %v3845 = vpop.f32.mrf.mxu0
      %v3846 = vadd.f32 %v3733, %v3845
      %v3847 = vpop.f32.mrf.mxu0
      %v3848 = vadd.f32 %v3735, %v3847
      %3849 = vmatprep.mubr.bf16.mxu0 %v931
      %3850 = vmatmul.mubr.bf16.gmra.mxu0 %v930
      %v3851 = vpop.f32.mrf.mxu0
      %v3852 = vadd.f32 %v3739, %v3851
      %v3853 = vpop.f32.mrf.mxu0
      %v3854 = vadd.f32 %v3741, %v3853
      %v3855 = vpop.f32.mrf.mxu0
      %v3856 = vadd.f32 %v3743, %v3855
      %v3857 = vpop.f32.mrf.mxu0
      %v3858 = vadd.f32 %v3745, %v3857
      %3859 = vdwg.mxu0
      %3860 = vmatprep.subr.bf16.mxu0 %v1900
      %3861 = vmatpush1.bf16.msra.mxu0 %v1899
      %3862 = vmatprep.subr.bf16.mxu0 %v1896
      %3863 = vmatpush1.bf16.msra.mxu0 %v1895
      %3864 = vmatprep.subr.bf16.mxu0 %v1892
      %3865 = vmatpush1.bf16.msra.mxu0 %v1891
      %3866 = vmatprep.subr.bf16.mxu0 %v1888
      %3867 = vmatpush1.bf16.msra.mxu0 %v1887
      %3868 = vmatprep.subr.bf16.mxu0 %v1884
      %3869 = vmatpush1.bf16.msra.mxu0 %v1883
      %3870 = vmatprep.subr.bf16.mxu0 %v1880
      %3871 = vmatpush1.bf16.msra.mxu0 %v1879
      %3872 = vmatprep.subr.bf16.mxu0 %v1876
      %3873 = vmatpush1.bf16.msra.mxu0 %v1875
      %3874 = vmatprep.subr.bf16.mxu0 %v1872
      %3875 = vmatpush1.bf16.msra.mxu0 %v1871
      %3876 = vmatprep.subr.bf16.mxu0 %v1932
      %3877 = vmatpush2.bf16.msra.mxu0 %v1931
      %3878 = vmatprep.subr.bf16.mxu0 %v1928
      %3879 = vmatpush2.bf16.msra.mxu0 %v1927
      %3880 = vmatprep.subr.bf16.mxu0 %v1924
      %3881 = vmatpush2.bf16.msra.mxu0 %v1923
      %3882 = vmatprep.subr.bf16.mxu0 %v1920
      %3883 = vmatpush2.bf16.msra.mxu0 %v1919
      %3884 = vmatprep.subr.bf16.mxu0 %v1916
      %3885 = vmatpush2.bf16.msra.mxu0 %v1915
      %3886 = vmatprep.subr.bf16.mxu0 %v1912
      %3887 = vmatpush2.bf16.msra.mxu0 %v1911
      %3888 = vmatprep.subr.bf16.mxu0 %v1908
      %3889 = vmatpush2.bf16.msra.mxu0 %v1907
      %3890 = vmatprep.subr.bf16.mxu0 %v1904
      %3891 = vmatpush2.bf16.msra.mxu0 %v1903
      %3892 = vmatprep.mubr.bf16.mxu0 %v884
      %3893 = vmatmul.mubr.bf16.gmra.mxu0 %v883
      %v3894 = vpop.f32.mrf.mxu0
      %v3895 = vadd.f32 %v3782, %v3894
      %v3896 = vpop.f32.mrf.mxu0
      %v3897 = vadd.f32 %v3784, %v3896
      %v3898 = vpop.f32.mrf.mxu0
      %v3899 = vadd.f32 %v3786, %v3898
      %v3900 = vpop.f32.mrf.mxu0
      %v3901 = vadd.f32 %v3788, %v3900
      %3902 = vmatprep.mubr.bf16.mxu0 %v891
      %3903 = vmatmul.mubr.bf16.gmra.mxu0 %v890
      %v3904 = vpop.f32.mrf.mxu0
      %v3905 = vadd.f32 %v3792, %v3904
      %v3906 = vpop.f32.mrf.mxu0
      %v3907 = vadd.f32 %v3794, %v3906
      %v3908 = vpop.f32.mrf.mxu0
      %v3909 = vadd.f32 %v3796, %v3908
      %v3910 = vpop.f32.mrf.mxu0
      %v3911 = vadd.f32 %v3798, %v3910
      %3912 = vmatprep.mubr.bf16.mxu0 %v898
      %3913 = vmatmul.mubr.bf16.gmra.mxu0 %v897
      %v3914 = vpop.f32.mrf.mxu0
      %v3915 = vadd.f32 %v3802, %v3914
      %v3916 = vpop.f32.mrf.mxu0
      %v3917 = vadd.f32 %v3804, %v3916
      %v3918 = vpop.f32.mrf.mxu0
      %v3919 = vadd.f32 %v3806, %v3918
      %v3920 = vpop.f32.mrf.mxu0
      %v3921 = vadd.f32 %v3808, %v3920
      %3922 = vmatprep.mubr.bf16.mxu0 %v905
      %3923 = vmatmul.mubr.bf16.gmra.mxu0 %v904
      %v3924 = vpop.f32.mrf.mxu0
      %v3925 = vadd.f32 %v3812, %v3924
      %v3926 = vpop.f32.mrf.mxu0
      %v3927 = vadd.f32 %v3814, %v3926
      %v3928 = vpop.f32.mrf.mxu0
      %v3929 = vadd.f32 %v3816, %v3928
      %v3930 = vpop.f32.mrf.mxu0
      %v3931 = vadd.f32 %v3818, %v3930
      %3932 = vmatprep.mubr.bf16.mxu0 %v912
      %3933 = vmatmul.mubr.bf16.gmra.mxu0 %v911
      %v3934 = vpop.f32.mrf.mxu0
      %v3935 = vadd.f32 %v3822, %v3934
      %v3936 = vpop.f32.mrf.mxu0
      %v3937 = vadd.f32 %v3824, %v3936
      %v3938 = vpop.f32.mrf.mxu0
      %v3939 = vadd.f32 %v3826, %v3938
      %v3940 = vpop.f32.mrf.mxu0
      %v3941 = vadd.f32 %v3828, %v3940
      %3942 = vmatprep.mubr.bf16.mxu0 %v919
      %3943 = vmatmul.mubr.bf16.gmra.mxu0 %v918
      %v3944 = vpop.f32.mrf.mxu0
      %v3945 = vadd.f32 %v3832, %v3944
      %v3946 = vpop.f32.mrf.mxu0
      %v3947 = vadd.f32 %v3834, %v3946
      %v3948 = vpop.f32.mrf.mxu0
      %v3949 = vadd.f32 %v3836, %v3948
      %v3950 = vpop.f32.mrf.mxu0
      %v3951 = vadd.f32 %v3838, %v3950
      %3952 = vmatprep.mubr.bf16.mxu0 %v926
      %3953 = vmatmul.mubr.bf16.gmra.mxu0 %v925
      %v3954 = vpop.f32.mrf.mxu0
      %v3955 = vadd.f32 %v3842, %v3954
      %v3956 = vpop.f32.mrf.mxu0
      %v3957 = vadd.f32 %v3844, %v3956
      %v3958 = vpop.f32.mrf.mxu0
      %v3959 = vadd.f32 %v3846, %v3958
      %v3960 = vpop.f32.mrf.mxu0
      %v3961 = vadd.f32 %v3848, %v3960
      %3962 = vmatprep.mubr.bf16.mxu0 %v933
      %3963 = vmatmul.mubr.bf16.gmra.mxu0 %v932
      %v3964 = vpop.f32.mrf.mxu0
      %v3965 = vadd.f32 %v3852, %v3964
      %v3966 = vpop.f32.mrf.mxu0
      %v3967 = vadd.f32 %v3854, %v3966
      %v3968 = vpop.f32.mrf.mxu0
      %v3969 = vadd.f32 %v3856, %v3968
      %v3970 = vpop.f32.mrf.mxu0
      %v3971 = vadd.f32 %v3858, %v3970
      %3972 = vdwg.mxu0
      %3973 = vmatprep.subr.bf16.mxu0 0
      %3974 = vmatpush1.bf16.msra.mxu0 0
      %3975 = vmatprep.subr.bf16.mxu0 0
      %3976 = vmatpush1.bf16.msra.mxu0 0
      %3977 = vmatprep.subr.bf16.mxu0 0
      %3978 = vmatpush1.bf16.msra.mxu0 0
      %3979 = vmatprep.subr.bf16.mxu0 0
      %3980 = vmatpush1.bf16.msra.mxu0 0
      %3981 = vmatprep.subr.bf16.mxu0 0
      %3982 = vmatpush1.bf16.msra.mxu0 0
      %3983 = vmatprep.subr.bf16.mxu0 0
      %3984 = vmatpush1.bf16.msra.mxu0 0
      %3985 = vmatprep.subr.bf16.mxu0 0
      %3986 = vmatpush1.bf16.msra.mxu0 0
      %3987 = vmatprep.subr.bf16.mxu0 %v1936
      %3988 = vmatpush1.bf16.msra.mxu0 %v1935
      %3989 = vmatprep.subr.bf16.mxu0 0
      %3990 = vmatpush2.bf16.msra.mxu0 0
      %3991 = vmatprep.subr.bf16.mxu0 0
      %3992 = vmatpush2.bf16.msra.mxu0 0
      %3993 = vmatprep.subr.bf16.mxu0 0
      %3994 = vmatpush2.bf16.msra.mxu0 0
      %3995 = vmatprep.subr.bf16.mxu0 0
      %3996 = vmatpush2.bf16.msra.mxu0 0
      %3997 = vmatprep.subr.bf16.mxu0 0
      %3998 = vmatpush2.bf16.msra.mxu0 0
      %3999 = vmatprep.subr.bf16.mxu0 0
      %4000 = vmatpush2.bf16.msra.mxu0 0
      %4001 = vmatprep.subr.bf16.mxu0 0
      %4002 = vmatpush2.bf16.msra.mxu0 0
      %4003 = vmatprep.subr.bf16.mxu0 0
      %4004 = vmatpush2.bf16.msra.mxu0 0
      %4005 = vmatprep.mubr.bf16.mxu0 0
      %4006 = vmatmul.mubr.bf16.gmra.mxu0 %v3159
      %v4007 = vpop.f32.mrf.mxu0
      %v4008 = vadd.f32 %v3895, %v4007
      %v4009 = vpop.f32.mrf.mxu0
      %v4010 = vadd.f32 %v3897, %v4009
      %v4011 = vpop.f32.mrf.mxu0
      %v4012 = vadd.f32 %v3899, %v4011
      %v4013 = vpop.f32.mrf.mxu0
      %v4014 = vadd.f32 %v3901, %v4013
      %4015 = vmatprep.mubr.bf16.mxu0 0
      %4016 = vmatmul.mubr.bf16.gmra.mxu0 %v3162
      %v4017 = vpop.f32.mrf.mxu0
      %v4018 = vadd.f32 %v3905, %v4017
      %v4019 = vpop.f32.mrf.mxu0
      %v4020 = vadd.f32 %v3907, %v4019
      %v4021 = vpop.f32.mrf.mxu0
      %v4022 = vadd.f32 %v3909, %v4021
      %v4023 = vpop.f32.mrf.mxu0
      %v4024 = vadd.f32 %v3911, %v4023
      %4025 = vmatprep.mubr.bf16.mxu0 0
      %4026 = vmatmul.mubr.bf16.gmra.mxu0 %v3165
      %v4027 = vpop.f32.mrf.mxu0
      %v4028 = vadd.f32 %v3915, %v4027
      %v4029 = vpop.f32.mrf.mxu0
      %v4030 = vadd.f32 %v3917, %v4029
      %v4031 = vpop.f32.mrf.mxu0
      %v4032 = vadd.f32 %v3919, %v4031
      %v4033 = vpop.f32.mrf.mxu0
      %v4034 = vadd.f32 %v3921, %v4033
      %4035 = vmatprep.mubr.bf16.mxu0 0
      %4036 = vmatmul.mubr.bf16.gmra.mxu0 %v3168
      %v4037 = vpop.f32.mrf.mxu0
      %v4038 = vadd.f32 %v3925, %v4037
      %v4039 = vpop.f32.mrf.mxu0
      %v4040 = vadd.f32 %v3927, %v4039
      %v4041 = vpop.f32.mrf.mxu0
      %v4042 = vadd.f32 %v3929, %v4041
      %v4043 = vpop.f32.mrf.mxu0
      %v4044 = vadd.f32 %v3931, %v4043
      %4045 = vmatprep.mubr.bf16.mxu0 0
      %4046 = vmatmul.mubr.bf16.gmra.mxu0 %v3171
      %v4047 = vpop.f32.mrf.mxu0
      %v4048 = vadd.f32 %v3935, %v4047
      %v4049 = vpop.f32.mrf.mxu0
      %v4050 = vadd.f32 %v3937, %v4049
      %v4051 = vpop.f32.mrf.mxu0
      %v4052 = vadd.f32 %v3939, %v4051
      %v4053 = vpop.f32.mrf.mxu0
      %v4054 = vadd.f32 %v3941, %v4053
      %4055 = vmatprep.mubr.bf16.mxu0 0
      %4056 = vmatmul.mubr.bf16.gmra.mxu0 %v3174
      %v4057 = vpop.f32.mrf.mxu0
      %v4058 = vadd.f32 %v3945, %v4057
      %v4059 = vpop.f32.mrf.mxu0
      %v4060 = vadd.f32 %v3947, %v4059
      %v4061 = vpop.f32.mrf.mxu0
      %v4062 = vadd.f32 %v3949, %v4061
      %v4063 = vpop.f32.mrf.mxu0
      %v4064 = vadd.f32 %v3951, %v4063
      %4065 = vmatprep.mubr.bf16.mxu0 0
      %4066 = vmatmul.mubr.bf16.gmra.mxu0 %v3177
      %v4067 = vpop.f32.mrf.mxu0
      %v4068 = vadd.f32 %v3955, %v4067
      %v4069 = vpop.f32.mrf.mxu0
      %v4070 = vadd.f32 %v3957, %v4069
      %v4071 = vpop.f32.mrf.mxu0
      %v4072 = vadd.f32 %v3959, %v4071
      %v4073 = vpop.f32.mrf.mxu0
      %v4074 = vadd.f32 %v3961, %v4073
      %4075 = vmatprep.mubr.bf16.mxu0 0
      %4076 = vmatmul.mubr.bf16.gmra.mxu0 %v3180
      %v4077 = vpop.f32.mrf.mxu0
      %v4078 = vadd.f32 %v3965, %v4077
      %v4079 = vpop.f32.mrf.mxu0
      %v4080 = vadd.f32 %v3967, %v4079
      %v4081 = vpop.f32.mrf.mxu0
      %v4082 = vadd.f32 %v3969, %v4081
      %v4083 = vpop.f32.mrf.mxu0
      %v4084 = vadd.f32 %v3971, %v4083
      %4085 = vdwg.mxu0
      %v4086 = vtanh.pop %v3556
      %v4087 = vtanh.pop %v3558
      %v4088 = vtanh.pop %v4008
      %v4089 = vtanh.pop %v4010
      %v4090 = vtanh.pop %v3560
      %v4091 = vtanh.pop %v3562
      %v4092 = vtanh.pop %v4012
      %v4093 = vtanh.pop %v4014
      %v4094 = vtanh.pop %v3566
      %v4095 = vtanh.pop %v3568
      %v4096 = vtanh.pop %v4018
      %v4097 = vtanh.pop %v4020
      %v4098 = vtanh.pop %v3570
      %v4099 = vtanh.pop %v3572
      %v4100 = vtanh.pop %v4022
      %v4101 = vtanh.pop %v4024
      %v4102 = vtanh.pop %v3576
      %v4103 = vtanh.pop %v3578
      %v4104 = vtanh.pop %v4028
      %v4105 = vtanh.pop %v4030
      %v4106 = vtanh.pop %v3580
      %v4107 = vtanh.pop %v3582
      %v4108 = vtanh.pop %v4032
      %v4109 = vtanh.pop %v4034
      %v4110 = vtanh.pop %v3586
      %v4111 = vtanh.pop %v3588
      %v4112 = vtanh.pop %v4038
      %v4113 = vtanh.pop %v4040
      %v4114 = vtanh.pop %v3590
      %v4115 = vtanh.pop %v3592
      %v4116 = vtanh.pop %v4042
      %v4117 = vtanh.pop %v4044
      %v4118 = vtanh.pop %v3596
      %v4119 = vtanh.pop %v3598
      %v4120 = vtanh.pop %v4048
      %v4121 = vtanh.pop %v4050
      %v4122 = vtanh.pop %v3600
      %v4123 = vtanh.pop %v3602
      %v4124 = vtanh.pop %v4052
      %v4125 = vtanh.pop %v4054
      %v4126 = vtanh.pop %v3606
      %v4127 = vtanh.pop %v3608
      %v4128 = vtanh.pop %v4058
      %v4129 = vtanh.pop %v4060
      %v4130 = vtanh.pop %v3610
      %v4131 = vtanh.pop %v3612
      %v4132 = vtanh.pop %v4062
      %v4133 = vtanh.pop %v4064
      %v4134 = vtanh.pop %v3616
      %v4135 = vtanh.pop %v3618
      %v4136 = vtanh.pop %v4068
      %v4137 = vtanh.pop %v4070
      %v4138 = vtanh.pop %v3620
      %v4139 = vtanh.pop %v3622
      %v4140 = vtanh.pop %v4072
      %v4141 = vtanh.pop %v4074
      %v4142 = vtanh.pop %v3626
      %v4143 = vtanh.pop %v3628
      %v4144 = vtanh.pop %v4078
      %v4145 = vtanh.pop %v4080
      %v4146 = vtanh.pop %v3630
      %v4147 = vtanh.pop %v3632
      %v4148 = vtanh.pop %v4082
      %v4149 = vtanh.pop %v4084
      %v4150 = vpack.c.bf16 %v4090, %v4086
      %v4151 = vpack.c.bf16 %v4091, %v4087
      %v4152 = vpack.c.bf16 %v4092, %v4088
      %v4153 = vpack.c.bf16 %v4093, %v4089
      %v4154 = vpack.c.bf16 %v4098, %v4094
      %v4155 = vpack.c.bf16 %v4099, %v4095
      %v4156 = vpack.c.bf16 %v4100, %v4096
      %v4157 = vpack.c.bf16 %v4101, %v4097
      %v4158 = vpack.c.bf16 %v4106, %v4102
      %v4159 = vpack.c.bf16 %v4107, %v4103
      %v4160 = vpack.c.bf16 %v4108, %v4104
      %v4161 = vpack.c.bf16 %v4109, %v4105
      %v4162 = vpack.c.bf16 %v4114, %v4110
      %v4163 = vpack.c.bf16 %v4115, %v4111
      %v4164 = vpack.c.bf16 %v4116, %v4112
      %v4165 = vpack.c.bf16 %v4117, %v4113
      %v4166 = vpack.c.bf16 %v4122, %v4118
      %v4167 = vpack.c.bf16 %v4123, %v4119
      %v4168 = vpack.c.bf16 %v4124, %v4120
      %v4169 = vpack.c.bf16 %v4125, %v4121
      %v4170 = vpack.c.bf16 %v4130, %v4126
      %v4171 = vpack.c.bf16 %v4131, %v4127
      %v4172 = vpack.c.bf16 %v4132, %v4128
      %v4173 = vpack.c.bf16 %v4133, %v4129
      %v4174 = vpack.c.bf16 %v4138, %v4134
      %v4175 = vpack.c.bf16 %v4139, %v4135
      %v4176 = vpack.c.bf16 %v4140, %v4136
      %v4177 = vpack.c.bf16 %v4141, %v4137
      %v4178 = vpack.c.bf16 %v4146, %v4142
      %v4179 = vpack.c.bf16 %v4147, %v4143
      %v4180 = vpack.c.bf16 %v4148, %v4144
      %v4181 = vpack.c.bf16 %v4149, %v4145
      %v4182 = vld [vmem:[%s2] sm:$0xff]
      %v4183 = vld [vmem:[%s2 + $0x8] sm:$0xff]
      %v4184 = vld [vmem:[%s2 + $0x10] sm:$0xff]
      %v4185 = vld [vmem:[%s2 + $0x18] sm:$0xff]
      %v4186 = vld [vmem:[%s2 + $0x20] sm:$0xff]
      %v4187 = vld [vmem:[%s2 + $0x28] sm:$0xff]
      %v4188 = vld [vmem:[%s2 + $0x30] sm:$0xff]
      %v4189 = vld [vmem:[%s2 + $0x38] sm:$0xff]
      %v4190 = vld [vmem:[%s2 + $0x40] sm:$0xff]
      %v4191 = vld [vmem:[%s2 + $0x48] sm:$0xff]
      %v4192 = vld [vmem:[%s2 + $0x50] sm:$0xff]
      %v4193 = vld [vmem:[%s2 + $0x58] sm:$0xff]
      %v4194 = vld [vmem:[%s2 + $0x60] sm:$0xff]
      %v4195 = vld [vmem:[%s2 + $0x68] sm:$0xff]
      %v4196 = vld [vmem:[%s2 + $0x70] sm:$0xff]
      %v4197 = vld [vmem:[%s2 + $0x78] sm:$0xff]
      %v4198 = vld [vmem:[%s2 + $0x80] sm:$0xff]
      %v4199 = vld [vmem:[%s2 + $0x88] sm:$0xff]
      %v4200 = vld [vmem:[%s2 + $0x90] sm:$0xff]
      %v4201 = vld [vmem:[%s2 + $0x98] sm:$0xff]
      %v4202 = vld [vmem:[%s2 + $0xa0] sm:$0xff]
      %v4203 = vld [vmem:[%s2 + $0xa8] sm:$0xff]
      %v4204 = vld [vmem:[%s2 + $0xb0] sm:$0xff]
      %v4205 = vld [vmem:[%s2 + $0xb8] sm:$0xff]
      %v4206 = vld [vmem:[%s2 + $0xc0] sm:$0xff]
      %v4207 = vld [vmem:[%s2 + $0xc8] sm:$0xff]
      %v4208 = vld [vmem:[%s2 + $0xd0] sm:$0xff]
      %v4209 = vld [vmem:[%s2 + $0xd8] sm:$0xff]
      %v4210 = vld [vmem:[%s2 + $0xe0] sm:$0xff]
      %v4211 = vld [vmem:[%s2 + $0xe8] sm:$0xff]
      %v4212 = vld [vmem:[%s2 + $0xf0] sm:$0xff]
      %v4213 = vld [vmem:[%s2 + $0xf8] sm:$0xff]
      %v4214 = vld [vmem:[%s2 + $0x100] sm:$0xff]
      %v4215 = vld [vmem:[%s2 + $0x108] sm:$0xff]
      %v4216 = vld [vmem:[%s2 + $0x110] sm:$0xff]
      %v4217 = vld [vmem:[%s2 + $0x118] sm:$0xff]
      %v4218 = vld [vmem:[%s2 + $0x120] sm:$0xff]
      %v4219 = vld [vmem:[%s2 + $0x128] sm:$0xff]
      %v4220 = vld [vmem:[%s2 + $0x130] sm:$0xff]
      %v4221 = vld [vmem:[%s2 + $0x138] sm:$0xff]
      %v4222 = vld [vmem:[%s2 + $0x140] sm:$0xff]
      %v4223 = vld [vmem:[%s2 + $0x148] sm:$0xff]
      %v4224 = vld [vmem:[%s2 + $0x150] sm:$0xff]
      %v4225 = vld [vmem:[%s2 + $0x158] sm:$0xff]
      %v4226 = vld [vmem:[%s2 + $0x160] sm:$0xff]
      %v4227 = vld [vmem:[%s2 + $0x168] sm:$0xff]
      %v4228 = vld [vmem:[%s2 + $0x170] sm:$0xff]
      %v4229 = vld [vmem:[%s2 + $0x178] sm:$0xff]
      %v4230 = vld [vmem:[%s2 + $0x180] sm:$0xff]
      %v4231 = vld [vmem:[%s2 + $0x188] sm:$0xff]
      %v4232 = vld [vmem:[%s2 + $0x190] sm:$0xff]
      %v4233 = vld [vmem:[%s2 + $0x198] sm:$0xff]
      %v4234 = vld [vmem:[%s2 + $0x1a0] sm:$0xff]
      %v4235 = vld [vmem:[%s2 + $0x1a8] sm:$0xff]
      %v4236 = vld [vmem:[%s2 + $0x1b0] sm:$0xff]
      %v4237 = vld [vmem:[%s2 + $0x1b8] sm:$0xff]
      %v4238 = vld [vmem:[%s2 + $0x1c0] sm:$0xff]
      %v4239 = vld [vmem:[%s2 + $0x1c8] sm:$0xff]
      %v4240 = vld [vmem:[%s2 + $0x1d0] sm:$0xff]
      %v4241 = vld [vmem:[%s2 + $0x1d8] sm:$0xff]
      %v4242 = vld [vmem:[%s2 + $0x1e0] sm:$0xff]
      %v4243 = vld [vmem:[%s2 + $0x1e8] sm:$0xff]
      %v4244 = vld [vmem:[%s2 + $0x1f0] sm:$0xff]
      %v4245 = vld [vmem:[%s2 + $0x1f8] sm:$0xff]
      %v4246 = vld [vmem:[%s10] sm:$0x3]
      %v4248 = vlaneseq
      %v4249 = vshrl.u32 %v4248, 7
      %v4250 = vsub.s32 0, %v4249
      %v4251 = vrot.slane %v4246, %v4250
      %v4252 = vlaneseq
      %v4253 = vshrl.u32 %v4252, 7
      %v4254 = vsub.s32 1, %v4253
      %v4255 = vrot.slane %v4246, %v4254
      %v4322 = vunpack.c.l.b16 %v4182
      %v4323 = vunpack.c.h.b16 %v4182
      %v4324 = vunpack.c.l.b16 %v4183
      %v4325 = vunpack.c.h.b16 %v4183
      %v4326 = vunpack.c.l.b16 %v4184
      %v4327 = vunpack.c.h.b16 %v4184
      %v4328 = vunpack.c.l.b16 %v4185
      %v4329 = vunpack.c.h.b16 %v4185
      %v4330 = vunpack.c.l.b16 %v4186
      %v4331 = vunpack.c.h.b16 %v4186
      %v4332 = vunpack.c.l.b16 %v4187
      %v4333 = vunpack.c.h.b16 %v4187
      %v4334 = vunpack.c.l.b16 %v4188
      %v4335 = vunpack.c.h.b16 %v4188
      %v4336 = vunpack.c.l.b16 %v4189
      %v4337 = vunpack.c.h.b16 %v4189
      %v4338 = vunpack.c.l.b16 %v4190
      %v4339 = vunpack.c.h.b16 %v4190
      %v4340 = vunpack.c.l.b16 %v4191
      %v4341 = vunpack.c.h.b16 %v4191
      %v4342 = vunpack.c.l.b16 %v4192
      %v4343 = vunpack.c.h.b16 %v4192
      %v4344 = vunpack.c.l.b16 %v4193
      %v4345 = vunpack.c.h.b16 %v4193
      %v4346 = vunpack.c.l.b16 %v4194
      %v4347 = vunpack.c.h.b16 %v4194
      %v4348 = vunpack.c.l.b16 %v4195
      %v4349 = vunpack.c.h.b16 %v4195
      %v4350 = vunpack.c.l.b16 %v4196
      %v4351 = vunpack.c.h.b16 %v4196
      %v4352 = vunpack.c.l.b16 %v4197
      %v4353 = vunpack.c.h.b16 %v4197
      %v4354 = vunpack.c.l.b16 %v4198
      %v4355 = vunpack.c.h.b16 %v4198
      %v4356 = vunpack.c.l.b16 %v4199
      %v4357 = vunpack.c.h.b16 %v4199
      %v4358 = vunpack.c.l.b16 %v4200
      %v4359 = vunpack.c.h.b16 %v4200
      %v4360 = vunpack.c.l.b16 %v4201
      %v4361 = vunpack.c.h.b16 %v4201
      %v4362 = vunpack.c.l.b16 %v4202
      %v4363 = vunpack.c.h.b16 %v4202
      %v4364 = vunpack.c.l.b16 %v4203
      %v4365 = vunpack.c.h.b16 %v4203
      %v4366 = vunpack.c.l.b16 %v4204
      %v4367 = vunpack.c.h.b16 %v4204
      %v4368 = vunpack.c.l.b16 %v4205
      %v4369 = vunpack.c.h.b16 %v4205
      %v4370 = vunpack.c.l.b16 %v4206
      %v4371 = vunpack.c.h.b16 %v4206
      %v4372 = vunpack.c.l.b16 %v4207
      %v4373 = vunpack.c.h.b16 %v4207
      %v4374 = vunpack.c.l.b16 %v4208
      %v4375 = vunpack.c.h.b16 %v4208
      %v4376 = vunpack.c.l.b16 %v4209
      %v4377 = vunpack.c.h.b16 %v4209
      %v4378 = vunpack.c.l.b16 %v4210
      %v4379 = vunpack.c.h.b16 %v4210
      %v4380 = vunpack.c.l.b16 %v4211
      %v4381 = vunpack.c.h.b16 %v4211
      %v4382 = vunpack.c.l.b16 %v4212
      %v4383 = vunpack.c.h.b16 %v4212
      %v4384 = vunpack.c.l.b16 %v4213
      %v4385 = vunpack.c.h.b16 %v4213
      %v4386 = vunpack.c.l.b16 %v4214
      %v4387 = vunpack.c.h.b16 %v4214
      %v4388 = vunpack.c.l.b16 %v4215
      %v4389 = vunpack.c.h.b16 %v4215
      %v4390 = vunpack.c.l.b16 %v4216
      %v4391 = vunpack.c.h.b16 %v4216
      %v4392 = vunpack.c.l.b16 %v4217
      %v4393 = vunpack.c.h.b16 %v4217
      %v4394 = vunpack.c.l.b16 %v4218
      %v4395 = vunpack.c.h.b16 %v4218
      %v4396 = vunpack.c.l.b16 %v4219
      %v4397 = vunpack.c.h.b16 %v4219
      %v4398 = vunpack.c.l.b16 %v4220
      %v4399 = vunpack.c.h.b16 %v4220
      %v4400 = vunpack.c.l.b16 %v4221
      %v4401 = vunpack.c.h.b16 %v4221
      %v4402 = vunpack.c.l.b16 %v4222
      %v4403 = vunpack.c.h.b16 %v4222
      %v4404 = vunpack.c.l.b16 %v4223
      %v4405 = vunpack.c.h.b16 %v4223
      %v4406 = vunpack.c.l.b16 %v4224
      %v4407 = vunpack.c.h.b16 %v4224
      %v4408 = vunpack.c.l.b16 %v4225
      %v4409 = vunpack.c.h.b16 %v4225
      %v4410 = vunpack.c.l.b16 %v4226
      %v4411 = vunpack.c.h.b16 %v4226
      %v4412 = vunpack.c.l.b16 %v4227
      %v4413 = vunpack.c.h.b16 %v4227
      %v4414 = vunpack.c.l.b16 %v4228
      %v4415 = vunpack.c.h.b16 %v4228
      %v4416 = vunpack.c.l.b16 %v4229
      %v4417 = vunpack.c.h.b16 %v4229
      %v4418 = vunpack.c.l.b16 %v4230
      %v4419 = vunpack.c.h.b16 %v4230
      %v4420 = vunpack.c.l.b16 %v4231
      %v4421 = vunpack.c.h.b16 %v4231
      %v4422 = vunpack.c.l.b16 %v4232
      %v4423 = vunpack.c.h.b16 %v4232
      %v4424 = vunpack.c.l.b16 %v4233
      %v4425 = vunpack.c.h.b16 %v4233
      %v4426 = vunpack.c.l.b16 %v4234
      %v4427 = vunpack.c.h.b16 %v4234
      %v4428 = vunpack.c.l.b16 %v4235
      %v4429 = vunpack.c.h.b16 %v4235
      %v4430 = vunpack.c.l.b16 %v4236
      %v4431 = vunpack.c.h.b16 %v4236
      %v4432 = vunpack.c.l.b16 %v4237
      %v4433 = vunpack.c.h.b16 %v4237
      %v4434 = vunpack.c.l.b16 %v4238
      %v4435 = vunpack.c.h.b16 %v4238
      %v4436 = vunpack.c.l.b16 %v4239
      %v4437 = vunpack.c.h.b16 %v4239
      %v4438 = vunpack.c.l.b16 %v4240
      %v4439 = vunpack.c.h.b16 %v4240
      %v4440 = vunpack.c.l.b16 %v4241
      %v4441 = vunpack.c.h.b16 %v4241
      %v4442 = vunpack.c.l.b16 %v4242
      %v4443 = vunpack.c.h.b16 %v4242
      %v4444 = vunpack.c.l.b16 %v4243
      %v4445 = vunpack.c.h.b16 %v4243
      %v4446 = vunpack.c.l.b16 %v4244
      %v4447 = vunpack.c.h.b16 %v4244
      %v4448 = vunpack.c.l.b16 %v4245
      %v4449 = vunpack.c.h.b16 %v4245
      %v4450 = vpack.c.b16 %v4324, %v4322
      %v4451 = vpack.c.b16 %v4325, %v4323
      %v4452 = vpack.c.b16 %v4328, %v4326
      %v4453 = vpack.c.b16 %v4329, %v4327
      %v4454 = vpack.c.b16 %v4332, %v4330
      %v4455 = vpack.c.b16 %v4333, %v4331
      %v4456 = vpack.c.b16 %v4336, %v4334
      %v4457 = vpack.c.b16 %v4337, %v4335
      %v4458 = vpack.c.b16 %v4340, %v4338
      %v4459 = vpack.c.b16 %v4341, %v4339
      %v4460 = vpack.c.b16 %v4344, %v4342
      %v4461 = vpack.c.b16 %v4345, %v4343
      %v4462 = vpack.c.b16 %v4348, %v4346
      %v4463 = vpack.c.b16 %v4349, %v4347
      %v4464 = vpack.c.b16 %v4352, %v4350
      %v4465 = vpack.c.b16 %v4353, %v4351
      %v4466 = vpack.c.b16 %v4356, %v4354
      %v4467 = vpack.c.b16 %v4357, %v4355
      %v4468 = vpack.c.b16 %v4360, %v4358
      %v4469 = vpack.c.b16 %v4361, %v4359
      %v4470 = vpack.c.b16 %v4364, %v4362
      %v4471 = vpack.c.b16 %v4365, %v4363
      %v4472 = vpack.c.b16 %v4368, %v4366
      %v4473 = vpack.c.b16 %v4369, %v4367
      %v4474 = vpack.c.b16 %v4372, %v4370
      %v4475 = vpack.c.b16 %v4373, %v4371
      %v4476 = vpack.c.b16 %v4376, %v4374
      %v4477 = vpack.c.b16 %v4377, %v4375
      %v4478 = vpack.c.b16 %v4380, %v4378
      %v4479 = vpack.c.b16 %v4381, %v4379
      %v4480 = vpack.c.b16 %v4384, %v4382
      %v4481 = vpack.c.b16 %v4385, %v4383
      %v4482 = vpack.c.b16 %v4388, %v4386
      %v4483 = vpack.c.b16 %v4389, %v4387
      %v4484 = vpack.c.b16 %v4392, %v4390
      %v4485 = vpack.c.b16 %v4393, %v4391
      %v4486 = vpack.c.b16 %v4396, %v4394
      %v4487 = vpack.c.b16 %v4397, %v4395
      %v4488 = vpack.c.b16 %v4400, %v4398
      %v4489 = vpack.c.b16 %v4401, %v4399
      %v4490 = vpack.c.b16 %v4404, %v4402
      %v4491 = vpack.c.b16 %v4405, %v4403
      %v4492 = vpack.c.b16 %v4408, %v4406
      %v4493 = vpack.c.b16 %v4409, %v4407
      %v4494 = vpack.c.b16 %v4412, %v4410
      %v4495 = vpack.c.b16 %v4413, %v4411
      %v4496 = vpack.c.b16 %v4416, %v4414
      %v4497 = vpack.c.b16 %v4417, %v4415
      %v4498 = vpack.c.b16 %v4420, %v4418
      %v4499 = vpack.c.b16 %v4421, %v4419
      %v4500 = vpack.c.b16 %v4424, %v4422
      %v4501 = vpack.c.b16 %v4425, %v4423
      %v4502 = vpack.c.b16 %v4428, %v4426
      %v4503 = vpack.c.b16 %v4429, %v4427
      %v4504 = vpack.c.b16 %v4432, %v4430
      %v4505 = vpack.c.b16 %v4433, %v4431
      %v4506 = vpack.c.b16 %v4436, %v4434
      %v4507 = vpack.c.b16 %v4437, %v4435
      %v4508 = vpack.c.b16 %v4440, %v4438
      %v4509 = vpack.c.b16 %v4441, %v4439
      %v4510 = vpack.c.b16 %v4444, %v4442
      %v4511 = vpack.c.b16 %v4445, %v4443
      %v4512 = vpack.c.b16 %v4448, %v4446
      %v4513 = vpack.c.b16 %v4449, %v4447
      %4578 = vmatprep.subr.bf16.mxu0 %v4465
      %4579 = vmatpush1.bf16.msra.mxu0 %v4464
      %4580 = vmatprep.subr.bf16.mxu0 %v4463
      %4581 = vmatpush1.bf16.msra.mxu0 %v4462
      %4582 = vmatprep.subr.bf16.mxu0 %v4461
      %4583 = vmatpush1.bf16.msra.mxu0 %v4460
      %4584 = vmatprep.subr.bf16.mxu0 %v4459
      %4585 = vmatpush1.bf16.msra.mxu0 %v4458
      %4586 = vmatprep.subr.bf16.mxu0 %v4457
      %4587 = vmatpush1.bf16.msra.mxu0 %v4456
      %4588 = vmatprep.subr.bf16.mxu0 %v4455
      %4589 = vmatpush1.bf16.msra.mxu0 %v4454
      %4590 = vmatprep.subr.bf16.mxu0 %v4453
      %4591 = vmatpush1.bf16.msra.mxu0 %v4452
      %4592 = vmatprep.subr.bf16.mxu0 %v4451
      %4593 = vmatpush1.bf16.msra.mxu0 %v4450
      %4594 = vmatprep.subr.bf16.mxu0 %v4481
      %4595 = vmatpush2.bf16.msra.mxu0 %v4480
      %4596 = vmatprep.subr.bf16.mxu0 %v4479
      %4597 = vmatpush2.bf16.msra.mxu0 %v4478
      %4598 = vmatprep.subr.bf16.mxu0 %v4477
      %4599 = vmatpush2.bf16.msra.mxu0 %v4476
      %4600 = vmatprep.subr.bf16.mxu0 %v4475
      %4601 = vmatpush2.bf16.msra.mxu0 %v4474
      %4602 = vmatprep.subr.bf16.mxu0 %v4473
      %4603 = vmatpush2.bf16.msra.mxu0 %v4472
      %4604 = vmatprep.subr.bf16.mxu0 %v4471
      %4605 = vmatpush2.bf16.msra.mxu0 %v4470
      %4606 = vmatprep.subr.bf16.mxu0 %v4469
      %4607 = vmatpush2.bf16.msra.mxu0 %v4468
      %4608 = vmatprep.subr.bf16.mxu0 %v4467
      %4609 = vmatpush2.bf16.msra.mxu0 %v4466
      %4610 = vmatprep.mubr.bf16.mxu0 %v3127
      %4611 = vmatmul.mubr.bf16.gmra.mxu0 %v3126
      %v4612 = vpop.f32.mrf.mxu0
      %v4613 = vadd.f32 %v4251, %v4612
      %v4614 = vpop.f32.mrf.mxu0
      %v4615 = vadd.f32 %v4255, %v4614
      %v4616 = vpop.f32.mrf.mxu0
      %v4617 = vadd.f32 %v4251, %v4616
      %v4618 = vpop.f32.mrf.mxu0
      %v4619 = vadd.f32 %v4255, %v4618
      %4620 = vmatprep.mubr.bf16.mxu0 %v3131
      %4621 = vmatmul.mubr.bf16.gmra.mxu0 %v3130
      %v4622 = vpop.f32.mrf.mxu0
      %v4623 = vadd.f32 %v4251, %v4622
      %v4624 = vpop.f32.mrf.mxu0
      %v4625 = vadd.f32 %v4255, %v4624
      %v4626 = vpop.f32.mrf.mxu0
      %v4627 = vadd.f32 %v4251, %v4626
      %v4628 = vpop.f32.mrf.mxu0
      %v4629 = vadd.f32 %v4255, %v4628
      %4630 = vmatprep.mubr.bf16.mxu0 %v3135
      %4631 = vmatmul.mubr.bf16.gmra.mxu0 %v3134
      %v4632 = vpop.f32.mrf.mxu0
      %v4633 = vadd.f32 %v4251, %v4632
      %v4634 = vpop.f32.mrf.mxu0
      %v4635 = vadd.f32 %v4255, %v4634
      %v4636 = vpop.f32.mrf.mxu0
      %v4637 = vadd.f32 %v4251, %v4636
      %v4638 = vpop.f32.mrf.mxu0
      %v4639 = vadd.f32 %v4255, %v4638
      %4640 = vmatprep.mubr.bf16.mxu0 %v3139
      %4641 = vmatmul.mubr.bf16.gmra.mxu0 %v3138
      %v4642 = vpop.f32.mrf.mxu0
      %v4643 = vadd.f32 %v4251, %v4642
      %v4644 = vpop.f32.mrf.mxu0
      %v4645 = vadd.f32 %v4255, %v4644
      %v4646 = vpop.f32.mrf.mxu0
      %v4647 = vadd.f32 %v4251, %v4646
      %v4648 = vpop.f32.mrf.mxu0
      %v4649 = vadd.f32 %v4255, %v4648
      %4650 = vmatprep.mubr.bf16.mxu0 %v3143
      %4651 = vmatmul.mubr.bf16.gmra.mxu0 %v3142
      %v4652 = vpop.f32.mrf.mxu0
      %v4653 = vadd.f32 %v4251, %v4652
      %v4654 = vpop.f32.mrf.mxu0
      %v4655 = vadd.f32 %v4255, %v4654
      %v4656 = vpop.f32.mrf.mxu0
      %v4657 = vadd.f32 %v4251, %v4656
      %v4658 = vpop.f32.mrf.mxu0
      %v4659 = vadd.f32 %v4255, %v4658
      %4660 = vmatprep.mubr.bf16.mxu0 %v3147
      %4661 = vmatmul.mubr.bf16.gmra.mxu0 %v3146
      %v4662 = vpop.f32.mrf.mxu0
      %v4663 = vadd.f32 %v4251, %v4662
      %v4664 = vpop.f32.mrf.mxu0
      %v4665 = vadd.f32 %v4255, %v4664
      %v4666 = vpop.f32.mrf.mxu0
      %v4667 = vadd.f32 %v4251, %v4666
      %v4668 = vpop.f32.mrf.mxu0
      %v4669 = vadd.f32 %v4255, %v4668
      %4670 = vmatprep.mubr.bf16.mxu0 %v3151
      %4671 = vmatmul.mubr.bf16.gmra.mxu0 %v3150
      %v4672 = vpop.f32.mrf.mxu0
      %v4673 = vadd.f32 %v4251, %v4672
      %v4674 = vpop.f32.mrf.mxu0
      %v4675 = vadd.f32 %v4255, %v4674
      %v4676 = vpop.f32.mrf.mxu0
      %v4677 = vadd.f32 %v4251, %v4676
      %v4678 = vpop.f32.mrf.mxu0
      %v4679 = vadd.f32 %v4255, %v4678
      %4680 = vmatprep.mubr.bf16.mxu0 %v3155
      %4681 = vmatmul.mubr.bf16.gmra.mxu0 %v3154
      %v4682 = vpop.f32.mrf.mxu0
      %v4683 = vadd.f32 %v4251, %v4682
      %v4684 = vpop.f32.mrf.mxu0
      %v4685 = vadd.f32 %v4255, %v4684
      %v4686 = vpop.f32.mrf.mxu0
      %v4687 = vadd.f32 %v4251, %v4686
      %v4688 = vpop.f32.mrf.mxu0
      %v4689 = vadd.f32 %v4255, %v4688
      %4690 = vdwg.mxu0
      %4691 = vmatprep.subr.bf16.mxu0 %v4497
      %4692 = vmatpush1.bf16.msra.mxu0 %v4496
      %4693 = vmatprep.subr.bf16.mxu0 %v4495
      %4694 = vmatpush1.bf16.msra.mxu0 %v4494
      %4695 = vmatprep.subr.bf16.mxu0 %v4493
      %4696 = vmatpush1.bf16.msra.mxu0 %v4492
      %4697 = vmatprep.subr.bf16.mxu0 %v4491
      %4698 = vmatpush1.bf16.msra.mxu0 %v4490
      %4699 = vmatprep.subr.bf16.mxu0 %v4489
      %4700 = vmatpush1.bf16.msra.mxu0 %v4488
      %4701 = vmatprep.subr.bf16.mxu0 %v4487
      %4702 = vmatpush1.bf16.msra.mxu0 %v4486
      %4703 = vmatprep.subr.bf16.mxu0 %v4485
      %4704 = vmatpush1.bf16.msra.mxu0 %v4484
      %4705 = vmatprep.subr.bf16.mxu0 %v4483
      %4706 = vmatpush1.bf16.msra.mxu0 %v4482
      %4707 = vmatprep.subr.bf16.mxu0 %v4513
      %4708 = vmatpush2.bf16.msra.mxu0 %v4512
      %4709 = vmatprep.subr.bf16.mxu0 %v4511
      %4710 = vmatpush2.bf16.msra.mxu0 %v4510
      %4711 = vmatprep.subr.bf16.mxu0 %v4509
      %4712 = vmatpush2.bf16.msra.mxu0 %v4508
      %4713 = vmatprep.subr.bf16.mxu0 %v4507
      %4714 = vmatpush2.bf16.msra.mxu0 %v4506
      %4715 = vmatprep.subr.bf16.mxu0 %v4505
      %4716 = vmatpush2.bf16.msra.mxu0 %v4504
      %4717 = vmatprep.subr.bf16.mxu0 %v4503
      %4718 = vmatpush2.bf16.msra.mxu0 %v4502
      %4719 = vmatprep.subr.bf16.mxu0 %v4501
      %4720 = vmatpush2.bf16.msra.mxu0 %v4500
      %4721 = vmatprep.subr.bf16.mxu0 %v4499
      %4722 = vmatpush2.bf16.msra.mxu0 %v4498
      %4723 = vmatprep.mubr.bf16.mxu0 %v3129
      %4724 = vmatmul.mubr.bf16.gmra.mxu0 %v3128
      %v4725 = vpop.f32.mrf.mxu0
      %v4726 = vadd.f32 %v4613, %v4725
      %v4727 = vpop.f32.mrf.mxu0
      %v4728 = vadd.f32 %v4615, %v4727
      %v4729 = vpop.f32.mrf.mxu0
      %v4730 = vadd.f32 %v4617, %v4729
      %v4731 = vpop.f32.mrf.mxu0
      %v4732 = vadd.f32 %v4619, %v4731
      %4733 = vmatprep.mubr.bf16.mxu0 %v3133
      %4734 = vmatmul.mubr.bf16.gmra.mxu0 %v3132
      %v4735 = vpop.f32.mrf.mxu0
      %v4736 = vadd.f32 %v4623, %v4735
      %v4737 = vpop.f32.mrf.mxu0
      %v4738 = vadd.f32 %v4625, %v4737
      %v4739 = vpop.f32.mrf.mxu0
      %v4740 = vadd.f32 %v4627, %v4739
      %v4741 = vpop.f32.mrf.mxu0
      %v4742 = vadd.f32 %v4629, %v4741
      %4743 = vmatprep.mubr.bf16.mxu0 %v3137
      %4744 = vmatmul.mubr.bf16.gmra.mxu0 %v3136
      %v4745 = vpop.f32.mrf.mxu0
      %v4746 = vadd.f32 %v4633, %v4745
      %v4747 = vpop.f32.mrf.mxu0
      %v4748 = vadd.f32 %v4635, %v4747
      %v4749 = vpop.f32.mrf.mxu0
      %v4750 = vadd.f32 %v4637, %v4749
      %v4751 = vpop.f32.mrf.mxu0
      %v4752 = vadd.f32 %v4639, %v4751
      %4753 = vmatprep.mubr.bf16.mxu0 %v3141
      %4754 = vmatmul.mubr.bf16.gmra.mxu0 %v3140
      %v4755 = vpop.f32.mrf.mxu0
      %v4756 = vadd.f32 %v4643, %v4755
      %v4757 = vpop.f32.mrf.mxu0
      %v4758 = vadd.f32 %v4645, %v4757
      %v4759 = vpop.f32.mrf.mxu0
      %v4760 = vadd.f32 %v4647, %v4759
      %v4761 = vpop.f32.mrf.mxu0
      %v4762 = vadd.f32 %v4649, %v4761
      %4763 = vmatprep.mubr.bf16.mxu0 %v3145
      %4764 = vmatmul.mubr.bf16.gmra.mxu0 %v3144
      %v4765 = vpop.f32.mrf.mxu0
      %v4766 = vadd.f32 %v4653, %v4765
      %v4767 = vpop.f32.mrf.mxu0
      %v4768 = vadd.f32 %v4655, %v4767
      %v4769 = vpop.f32.mrf.mxu0
      %v4770 = vadd.f32 %v4657, %v4769
      %v4771 = vpop.f32.mrf.mxu0
      %v4772 = vadd.f32 %v4659, %v4771
      %4773 = vmatprep.mubr.bf16.mxu0 %v3149
      %4774 = vmatmul.mubr.bf16.gmra.mxu0 %v3148
      %v4775 = vpop.f32.mrf.mxu0
      %v4776 = vadd.f32 %v4663, %v4775
      %v4777 = vpop.f32.mrf.mxu0
      %v4778 = vadd.f32 %v4665, %v4777
      %v4779 = vpop.f32.mrf.mxu0
      %v4780 = vadd.f32 %v4667, %v4779
      %v4781 = vpop.f32.mrf.mxu0
      %v4782 = vadd.f32 %v4669, %v4781
      %4783 = vmatprep.mubr.bf16.mxu0 %v3153
      %4784 = vmatmul.mubr.bf16.gmra.mxu0 %v3152
      %v4785 = vpop.f32.mrf.mxu0
      %v4786 = vadd.f32 %v4673, %v4785
      %v4787 = vpop.f32.mrf.mxu0
      %v4788 = vadd.f32 %v4675, %v4787
      %v4789 = vpop.f32.mrf.mxu0
      %v4790 = vadd.f32 %v4677, %v4789
      %v4791 = vpop.f32.mrf.mxu0
      %v4792 = vadd.f32 %v4679, %v4791
      %4793 = vmatprep.mubr.bf16.mxu0 %v3157
      %4794 = vmatmul.mubr.bf16.gmra.mxu0 %v3156
      %v4795 = vpop.f32.mrf.mxu0
      %v4796 = vadd.f32 %v4683, %v4795
      %v4797 = vpop.f32.mrf.mxu0
      %v4798 = vadd.f32 %v4685, %v4797
      %v4799 = vpop.f32.mrf.mxu0
      %v4800 = vadd.f32 %v4687, %v4799
      %v4801 = vpop.f32.mrf.mxu0
      %v4802 = vadd.f32 %v4689, %v4801
      %4803 = vdwg.mxu0
      %v4804 = vtanh.pop %v4726
      %v4805 = vtanh.pop %v4728
      %v4806 = vtanh.pop %v4730
      %v4807 = vtanh.pop %v4732
      %v4808 = vtanh.pop %v4736
      %v4809 = vtanh.pop %v4738
      %v4810 = vtanh.pop %v4740
      %v4811 = vtanh.pop %v4742
      %v4812 = vtanh.pop %v4746
      %v4813 = vtanh.pop %v4748
      %v4814 = vtanh.pop %v4750
      %v4815 = vtanh.pop %v4752
      %v4816 = vtanh.pop %v4756
      %v4817 = vtanh.pop %v4758
      %v4818 = vtanh.pop %v4760
      %v4819 = vtanh.pop %v4762
      %v4820 = vtanh.pop %v4766
      %v4821 = vtanh.pop %v4768
      %v4822 = vtanh.pop %v4770
      %v4823 = vtanh.pop %v4772
      %v4824 = vtanh.pop %v4776
      %v4825 = vtanh.pop %v4778
      %v4826 = vtanh.pop %v4780
      %v4827 = vtanh.pop %v4782
      %v4828 = vtanh.pop %v4786
      %v4829 = vtanh.pop %v4788
      %v4830 = vtanh.pop %v4790
      %v4831 = vtanh.pop %v4792
      %v4832 = vtanh.pop %v4796
      %v4833 = vtanh.pop %v4798
      %v4834 = vtanh.pop %v4800
      %v4835 = vtanh.pop %v4802
      %v4836 = vpack.c.bf16 %v4806, %v4804
      %v4837 = vpack.c.bf16 %v4807, %v4805
      %v4838 = vpack.c.bf16 %v4810, %v4808
      %v4839 = vpack.c.bf16 %v4811, %v4809
      %v4840 = vpack.c.bf16 %v4814, %v4812
      %v4841 = vpack.c.bf16 %v4815, %v4813
      %v4842 = vpack.c.bf16 %v4818, %v4816
      %v4843 = vpack.c.bf16 %v4819, %v4817
      %v4844 = vpack.c.bf16 %v4822, %v4820
      %v4845 = vpack.c.bf16 %v4823, %v4821
      %v4846 = vpack.c.bf16 %v4826, %v4824
      %v4847 = vpack.c.bf16 %v4827, %v4825
      %v4848 = vpack.c.bf16 %v4830, %v4828
      %v4849 = vpack.c.bf16 %v4831, %v4829
      %v4850 = vpack.c.bf16 %v4834, %v4832
      %v4851 = vpack.c.bf16 %v4835, %v4833
      %4852 = vmatprep.subr.bf16.mxu0 %v4465
      %4853 = vmatpush1.bf16.msra.mxu0 %v4464
      %4854 = vmatprep.subr.bf16.mxu0 %v4463
      %4855 = vmatpush1.bf16.msra.mxu0 %v4462
      %4856 = vmatprep.subr.bf16.mxu0 %v4461
      %4857 = vmatpush1.bf16.msra.mxu0 %v4460
      %4858 = vmatprep.subr.bf16.mxu0 %v4459
      %4859 = vmatpush1.bf16.msra.mxu0 %v4458
      %4860 = vmatprep.subr.bf16.mxu0 %v4457
      %4861 = vmatpush1.bf16.msra.mxu0 %v4456
      %4862 = vmatprep.subr.bf16.mxu0 %v4455
      %4863 = vmatpush1.bf16.msra.mxu0 %v4454
      %4864 = vmatprep.subr.bf16.mxu0 %v4453
      %4865 = vmatpush1.bf16.msra.mxu0 %v4452
      %4866 = vmatprep.subr.bf16.mxu0 %v4451
      %4867 = vmatpush1.bf16.msra.mxu0 %v4450
      %4868 = vmatprep.subr.bf16.mxu0 %v4481
      %4869 = vmatpush2.bf16.msra.mxu0 %v4480
      %4870 = vmatprep.subr.bf16.mxu0 %v4479
      %4871 = vmatpush2.bf16.msra.mxu0 %v4478
      %4872 = vmatprep.subr.bf16.mxu0 %v4477
      %4873 = vmatpush2.bf16.msra.mxu0 %v4476
      %4874 = vmatprep.subr.bf16.mxu0 %v4475
      %4875 = vmatpush2.bf16.msra.mxu0 %v4474
      %4876 = vmatprep.subr.bf16.mxu0 %v4473
      %4877 = vmatpush2.bf16.msra.mxu0 %v4472
      %4878 = vmatprep.subr.bf16.mxu0 %v4471
      %4879 = vmatpush2.bf16.msra.mxu0 %v4470
      %4880 = vmatprep.subr.bf16.mxu0 %v4469
      %4881 = vmatpush2.bf16.msra.mxu0 %v4468
      %4882 = vmatprep.subr.bf16.mxu0 %v4467
      %4883 = vmatpush2.bf16.msra.mxu0 %v4466
      %4884 = vmatprep.mubr.bf16.mxu0 %v4151
      %4885 = vmatmul.mubr.bf16.gmra.mxu0 %v4150
      %v4886 = vpop.f32.mrf.mxu0
      %v4887 = vadd.f32 %v4251, %v4886
      %v4888 = vpop.f32.mrf.mxu0
      %v4889 = vadd.f32 %v4255, %v4888
      %v4890 = vpop.f32.mrf.mxu0
      %v4891 = vadd.f32 %v4251, %v4890
      %v4892 = vpop.f32.mrf.mxu0
      %v4893 = vadd.f32 %v4255, %v4892
      %4894 = vmatprep.mubr.bf16.mxu0 %v4155
      %4895 = vmatmul.mubr.bf16.gmra.mxu0 %v4154
      %v4896 = vpop.f32.mrf.mxu0
      %v4897 = vadd.f32 %v4251, %v4896
      %v4898 = vpop.f32.mrf.mxu0
      %v4899 = vadd.f32 %v4255, %v4898
      %v4900 = vpop.f32.mrf.mxu0
      %v4901 = vadd.f32 %v4251, %v4900
      %v4902 = vpop.f32.mrf.mxu0
      %v4903 = vadd.f32 %v4255, %v4902
      %4904 = vmatprep.mubr.bf16.mxu0 %v4159
      %4905 = vmatmul.mubr.bf16.gmra.mxu0 %v4158
      %v4906 = vpop.f32.mrf.mxu0
      %v4907 = vadd.f32 %v4251, %v4906
      %v4908 = vpop.f32.mrf.mxu0
      %v4909 = vadd.f32 %v4255, %v4908
      %v4910 = vpop.f32.mrf.mxu0
      %v4911 = vadd.f32 %v4251, %v4910
      %v4912 = vpop.f32.mrf.mxu0
      %v4913 = vadd.f32 %v4255, %v4912
      %4914 = vmatprep.mubr.bf16.mxu0 %v4163
      %4915 = vmatmul.mubr.bf16.gmra.mxu0 %v4162
      %v4916 = vpop.f32.mrf.mxu0
      %v4917 = vadd.f32 %v4251, %v4916
      %v4918 = vpop.f32.mrf.mxu0
      %v4919 = vadd.f32 %v4255, %v4918
      %v4920 = vpop.f32.mrf.mxu0
      %v4921 = vadd.f32 %v4251, %v4920
      %v4922 = vpop.f32.mrf.mxu0
      %v4923 = vadd.f32 %v4255, %v4922
      %4924 = vmatprep.mubr.bf16.mxu0 %v4167
      %4925 = vmatmul.mubr.bf16.gmra.mxu0 %v4166
      %v4926 = vpop.f32.mrf.mxu0
      %v4927 = vadd.f32 %v4251, %v4926
      %v4928 = vpop.f32.mrf.mxu0
      %v4929 = vadd.f32 %v4255, %v4928
      %v4930 = vpop.f32.mrf.mxu0
      %v4931 = vadd.f32 %v4251, %v4930
      %v4932 = vpop.f32.mrf.mxu0
      %v4933 = vadd.f32 %v4255, %v4932
      %4934 = vmatprep.mubr.bf16.mxu0 %v4171
      %4935 = vmatmul.mubr.bf16.gmra.mxu0 %v4170
      %v4936 = vpop.f32.mrf.mxu0
      %v4937 = vadd.f32 %v4251, %v4936
      %v4938 = vpop.f32.mrf.mxu0
      %v4939 = vadd.f32 %v4255, %v4938
      %v4940 = vpop.f32.mrf.mxu0
      %v4941 = vadd.f32 %v4251, %v4940
      %v4942 = vpop.f32.mrf.mxu0
      %v4943 = vadd.f32 %v4255, %v4942
      %4944 = vmatprep.mubr.bf16.mxu0 %v4175
      %4945 = vmatmul.mubr.bf16.gmra.mxu0 %v4174
      %v4946 = vpop.f32.mrf.mxu0
      %v4947 = vadd.f32 %v4251, %v4946
      %v4948 = vpop.f32.mrf.mxu0
      %v4949 = vadd.f32 %v4255, %v4948
      %v4950 = vpop.f32.mrf.mxu0
      %v4951 = vadd.f32 %v4251, %v4950
      %v4952 = vpop.f32.mrf.mxu0
      %v4953 = vadd.f32 %v4255, %v4952
      %4954 = vmatprep.mubr.bf16.mxu0 %v4179
      %4955 = vmatmul.mubr.bf16.gmra.mxu0 %v4178
      %v4956 = vpop.f32.mrf.mxu0
      %v4957 = vadd.f32 %v4251, %v4956
      %v4958 = vpop.f32.mrf.mxu0
      %v4959 = vadd.f32 %v4255, %v4958
      %v4960 = vpop.f32.mrf.mxu0
      %v4961 = vadd.f32 %v4251, %v4960
      %v4962 = vpop.f32.mrf.mxu0
      %v4963 = vadd.f32 %v4255, %v4962
      %4964 = vdwg.mxu0
      %4965 = vmatprep.subr.bf16.mxu0 %v4497
      %4966 = vmatpush1.bf16.msra.mxu0 %v4496
      %4967 = vmatprep.subr.bf16.mxu0 %v4495
      %4968 = vmatpush1.bf16.msra.mxu0 %v4494
      %4969 = vmatprep.subr.bf16.mxu0 %v4493
      %4970 = vmatpush1.bf16.msra.mxu0 %v4492
      %4971 = vmatprep.subr.bf16.mxu0 %v4491
      %4972 = vmatpush1.bf16.msra.mxu0 %v4490
      %4973 = vmatprep.subr.bf16.mxu0 %v4489
      %4974 = vmatpush1.bf16.msra.mxu0 %v4488
      %4975 = vmatprep.subr.bf16.mxu0 %v4487
      %4976 = vmatpush1.bf16.msra.mxu0 %v4486
      %4977 = vmatprep.subr.bf16.mxu0 %v4485
      %4978 = vmatpush1.bf16.msra.mxu0 %v4484
      %4979 = vmatprep.subr.bf16.mxu0 %v4483
      %4980 = vmatpush1.bf16.msra.mxu0 %v4482
      %4981 = vmatprep.subr.bf16.mxu0 %v4513
      %4982 = vmatpush2.bf16.msra.mxu0 %v4512
      %4983 = vmatprep.subr.bf16.mxu0 %v4511
      %4984 = vmatpush2.bf16.msra.mxu0 %v4510
      %4985 = vmatprep.subr.bf16.mxu0 %v4509
      %4986 = vmatpush2.bf16.msra.mxu0 %v4508
      %4987 = vmatprep.subr.bf16.mxu0 %v4507
      %4988 = vmatpush2.bf16.msra.mxu0 %v4506
      %4989 = vmatprep.subr.bf16.mxu0 %v4505
      %4990 = vmatpush2.bf16.msra.mxu0 %v4504
      %4991 = vmatprep.subr.bf16.mxu0 %v4503
      %4992 = vmatpush2.bf16.msra.mxu0 %v4502
      %4993 = vmatprep.subr.bf16.mxu0 %v4501
      %4994 = vmatpush2.bf16.msra.mxu0 %v4500
      %4995 = vmatprep.subr.bf16.mxu0 %v4499
      %4996 = vmatpush2.bf16.msra.mxu0 %v4498
      %4997 = vmatprep.mubr.bf16.mxu0 %v4153
      %4998 = vmatmul.mubr.bf16.gmra.mxu0 %v4152
      %v4999 = vpop.f32.mrf.mxu0
      %v5000 = vadd.f32 %v4887, %v4999
      %v5001 = vpop.f32.mrf.mxu0
      %v5002 = vadd.f32 %v4889, %v5001
      %v5003 = vpop.f32.mrf.mxu0
      %v5004 = vadd.f32 %v4891, %v5003
      %v5005 = vpop.f32.mrf.mxu0
      %v5006 = vadd.f32 %v4893, %v5005
      %5007 = vmatprep.mubr.bf16.mxu0 %v4157
      %5008 = vmatmul.mubr.bf16.gmra.mxu0 %v4156
      %v5009 = vpop.f32.mrf.mxu0
      %v5010 = vadd.f32 %v4897, %v5009
      %v5011 = vpop.f32.mrf.mxu0
      %v5012 = vadd.f32 %v4899, %v5011
      %v5013 = vpop.f32.mrf.mxu0
      %v5014 = vadd.f32 %v4901, %v5013
      %v5015 = vpop.f32.mrf.mxu0
      %v5016 = vadd.f32 %v4903, %v5015
      %5017 = vmatprep.mubr.bf16.mxu0 %v4161
      %5018 = vmatmul.mubr.bf16.gmra.mxu0 %v4160
      %v5019 = vpop.f32.mrf.mxu0
      %v5020 = vadd.f32 %v4907, %v5019
      %v5021 = vpop.f32.mrf.mxu0
      %v5022 = vadd.f32 %v4909, %v5021
      %v5023 = vpop.f32.mrf.mxu0
      %v5024 = vadd.f32 %v4911, %v5023
      %v5025 = vpop.f32.mrf.mxu0
      %v5026 = vadd.f32 %v4913, %v5025
      %5027 = vmatprep.mubr.bf16.mxu0 %v4165
      %5028 = vmatmul.mubr.bf16.gmra.mxu0 %v4164
      %v5029 = vpop.f32.mrf.mxu0
      %v5030 = vadd.f32 %v4917, %v5029
      %v5031 = vpop.f32.mrf.mxu0
      %v5032 = vadd.f32 %v4919, %v5031
      %v5033 = vpop.f32.mrf.mxu0
      %v5034 = vadd.f32 %v4921, %v5033
      %v5035 = vpop.f32.mrf.mxu0
      %v5036 = vadd.f32 %v4923, %v5035
      %5037 = vmatprep.mubr.bf16.mxu0 %v4169
      %5038 = vmatmul.mubr.bf16.gmra.mxu0 %v4168
      %v5039 = vpop.f32.mrf.mxu0
      %v5040 = vadd.f32 %v4927, %v5039
      %v5041 = vpop.f32.mrf.mxu0
      %v5042 = vadd.f32 %v4929, %v5041
      %v5043 = vpop.f32.mrf.mxu0
      %v5044 = vadd.f32 %v4931, %v5043
      %v5045 = vpop.f32.mrf.mxu0
      %v5046 = vadd.f32 %v4933, %v5045
      %5047 = vmatprep.mubr.bf16.mxu0 %v4173
      %5048 = vmatmul.mubr.bf16.gmra.mxu0 %v4172
      %v5049 = vpop.f32.mrf.mxu0
      %v5050 = vadd.f32 %v4937, %v5049
      %v5051 = vpop.f32.mrf.mxu0
      %v5052 = vadd.f32 %v4939, %v5051
      %v5053 = vpop.f32.mrf.mxu0
      %v5054 = vadd.f32 %v4941, %v5053
      %v5055 = vpop.f32.mrf.mxu0
      %v5056 = vadd.f32 %v4943, %v5055
      %5057 = vmatprep.mubr.bf16.mxu0 %v4177
      %5058 = vmatmul.mubr.bf16.gmra.mxu0 %v4176
      %v5059 = vpop.f32.mrf.mxu0
      %v5060 = vadd.f32 %v4947, %v5059
      %v5061 = vpop.f32.mrf.mxu0
      %v5062 = vadd.f32 %v4949, %v5061
      %v5063 = vpop.f32.mrf.mxu0
      %v5064 = vadd.f32 %v4951, %v5063
      %v5065 = vpop.f32.mrf.mxu0
      %v5066 = vadd.f32 %v4953, %v5065
      %5067 = vmatprep.mubr.bf16.mxu0 %v4181
      %5068 = vmatmul.mubr.bf16.gmra.mxu0 %v4180
      %v5069 = vpop.f32.mrf.mxu0
      %v5070 = vadd.f32 %v4957, %v5069
      %v5071 = vpop.f32.mrf.mxu0
      %v5072 = vadd.f32 %v4959, %v5071
      %v5073 = vpop.f32.mrf.mxu0
      %v5074 = vadd.f32 %v4961, %v5073
      %v5075 = vpop.f32.mrf.mxu0
      %v5076 = vadd.f32 %v4963, %v5075
      %5077 = vdwg.mxu0
      %v5078 = vtanh.pop %v5000
      %v5079 = vtanh.pop %v5002
      %v5080 = vtanh.pop %v5004
      %v5081 = vtanh.pop %v5006
      %v5082 = vtanh.pop %v5010
      %v5083 = vtanh.pop %v5012
      %v5084 = vtanh.pop %v5014
      %v5085 = vtanh.pop %v5016
      %v5086 = vtanh.pop %v5020
      %v5087 = vtanh.pop %v5022
      %v5088 = vtanh.pop %v5024
      %v5089 = vtanh.pop %v5026
      %v5090 = vtanh.pop %v5030
      %v5091 = vtanh.pop %v5032
      %v5092 = vtanh.pop %v5034
      %v5093 = vtanh.pop %v5036
      %v5094 = vtanh.pop %v5040
      %v5095 = vtanh.pop %v5042
      %v5096 = vtanh.pop %v5044
      %v5097 = vtanh.pop %v5046
      %v5098 = vtanh.pop %v5050
      %v5099 = vtanh.pop %v5052
      %v5100 = vtanh.pop %v5054
      %v5101 = vtanh.pop %v5056
      %v5102 = vtanh.pop %v5060
      %v5103 = vtanh.pop %v5062
      %v5104 = vtanh.pop %v5064
      %v5105 = vtanh.pop %v5066
      %v5106 = vtanh.pop %v5070
      %v5107 = vtanh.pop %v5072
      %v5108 = vtanh.pop %v5074
      %v5109 = vtanh.pop %v5076
      %v5110 = vpack.c.bf16 %v5080, %v5078
      %v5111 = vpack.c.bf16 %v5081, %v5079
      %v5112 = vpack.c.bf16 %v5084, %v5082
      %v5113 = vpack.c.bf16 %v5085, %v5083
      %v5114 = vpack.c.bf16 %v5088, %v5086
      %v5115 = vpack.c.bf16 %v5089, %v5087
      %v5116 = vpack.c.bf16 %v5092, %v5090
      %v5117 = vpack.c.bf16 %v5093, %v5091
      %v5118 = vpack.c.bf16 %v5096, %v5094
      %v5119 = vpack.c.bf16 %v5097, %v5095
      %v5120 = vpack.c.bf16 %v5100, %v5098
      %v5121 = vpack.c.bf16 %v5101, %v5099
      %v5122 = vpack.c.bf16 %v5104, %v5102
      %v5123 = vpack.c.bf16 %v5105, %v5103
      %v5124 = vpack.c.bf16 %v5108, %v5106
      %v5125 = vpack.c.bf16 %v5109, %v5107
      %v5126 = vld [vmem:[%s3] sm:$0xf]
      %v5127 = vld [vmem:[%s3 + $0x4] sm:$0xf]
      %v5128 = vld [vmem:[%s3 + $0x8] sm:$0xf]
      %v5129 = vld [vmem:[%s3 + $0xc] sm:$0xf]
      %v5130 = vld [vmem:[%s3 + $0x10] sm:$0xf]
      %v5131 = vld [vmem:[%s3 + $0x14] sm:$0xf]
      %v5132 = vld [vmem:[%s3 + $0x18] sm:$0xf]
      %v5133 = vld [vmem:[%s3 + $0x1c] sm:$0xf]
      %v5134 = vld [vmem:[%s3 + $0x20] sm:$0xf]
      %v5135 = vld [vmem:[%s3 + $0x24] sm:$0xf]
      %v5136 = vld [vmem:[%s3 + $0x28] sm:$0xf]
      %v5137 = vld [vmem:[%s3 + $0x2c] sm:$0xf]
      %v5138 = vld [vmem:[%s3 + $0x30] sm:$0xf]
      %v5139 = vld [vmem:[%s3 + $0x34] sm:$0xf]
      %v5140 = vld [vmem:[%s3 + $0x38] sm:$0xf]
      %v5141 = vld [vmem:[%s3 + $0x3c] sm:$0xf]
      %v5142 = vld [vmem:[%s3 + $0x40] sm:$0xf]
      %v5143 = vld [vmem:[%s3 + $0x44] sm:$0xf]
      %v5144 = vld [vmem:[%s3 + $0x48] sm:$0xf]
      %v5145 = vld [vmem:[%s3 + $0x4c] sm:$0xf]
      %v5146 = vld [vmem:[%s3 + $0x50] sm:$0xf]
      %v5147 = vld [vmem:[%s3 + $0x54] sm:$0xf]
      %v5148 = vld [vmem:[%s3 + $0x58] sm:$0xf]
      %v5149 = vld [vmem:[%s3 + $0x5c] sm:$0xf]
      %v5150 = vld [vmem:[%s3 + $0x60] sm:$0xf]
      %v5151 = vld [vmem:[%s3 + $0x64] sm:$0xf]
      %v5152 = vld [vmem:[%s3 + $0x68] sm:$0xf]
      %v5153 = vld [vmem:[%s3 + $0x6c] sm:$0xf]
      %v5154 = vld [vmem:[%s3 + $0x70] sm:$0xf]
      %v5155 = vld [vmem:[%s3 + $0x74] sm:$0xf]
      %v5156 = vld [vmem:[%s3 + $0x78] sm:$0xf]
      %v5157 = vld [vmem:[%s3 + $0x7c] sm:$0xf]
      %v5158 = vld [vmem:[%s11] sm:$0x1]
      %v5160 = vlaneseq
      %v5161 = vshrl.u32 %v5160, 7
      %v5162 = vsub.s32 0, %v5161
      %v5163 = vrot.slane %v5158, %v5162
      %v5197 = vunpack.c.l.b16 %v5126
      %v5198 = vunpack.c.l.b16 %v5127
      %v5199 = vunpack.c.l.b16 %v5128
      %v5200 = vunpack.c.l.b16 %v5129
      %v5201 = vunpack.c.l.b16 %v5130
      %v5202 = vunpack.c.l.b16 %v5131
      %v5203 = vunpack.c.l.b16 %v5132
      %v5204 = vunpack.c.l.b16 %v5133
      %v5205 = vunpack.c.l.b16 %v5134
      %v5206 = vunpack.c.l.b16 %v5135
      %v5207 = vunpack.c.l.b16 %v5136
      %v5208 = vunpack.c.l.b16 %v5137
      %v5209 = vunpack.c.l.b16 %v5138
      %v5210 = vunpack.c.l.b16 %v5139
      %v5211 = vunpack.c.l.b16 %v5140
      %v5212 = vunpack.c.l.b16 %v5141
      %v5213 = vunpack.c.l.b16 %v5142
      %v5214 = vunpack.c.l.b16 %v5143
      %v5215 = vunpack.c.l.b16 %v5144
      %v5216 = vunpack.c.l.b16 %v5145
      %v5217 = vunpack.c.l.b16 %v5146
      %v5218 = vunpack.c.l.b16 %v5147
      %v5219 = vunpack.c.l.b16 %v5148
      %v5220 = vunpack.c.l.b16 %v5149
      %v5221 = vunpack.c.l.b16 %v5150
      %v5222 = vunpack.c.l.b16 %v5151
      %v5223 = vunpack.c.l.b16 %v5152
      %v5224 = vunpack.c.l.b16 %v5153
      %v5225 = vunpack.c.l.b16 %v5154
      %v5226 = vunpack.c.l.b16 %v5155
      %v5227 = vunpack.c.l.b16 %v5156
      %v5228 = vunpack.c.l.b16 %v5157
      %v5229 = vpack.c.b16 %v5198, %v5197
      %v5230 = vpack.c.b16 %v5200, %v5199
      %v5231 = vpack.c.b16 %v5202, %v5201
      %v5232 = vpack.c.b16 %v5204, %v5203
      %v5233 = vpack.c.b16 %v5206, %v5205
      %v5234 = vpack.c.b16 %v5208, %v5207
      %v5235 = vpack.c.b16 %v5210, %v5209
      %v5236 = vpack.c.b16 %v5212, %v5211
      %v5237 = vpack.c.b16 %v5214, %v5213
      %v5238 = vpack.c.b16 %v5216, %v5215
      %v5239 = vpack.c.b16 %v5218, %v5217
      %v5240 = vpack.c.b16 %v5220, %v5219
      %v5241 = vpack.c.b16 %v5222, %v5221
      %v5242 = vpack.c.b16 %v5224, %v5223
      %v5243 = vpack.c.b16 %v5226, %v5225
      %v5244 = vpack.c.b16 %v5228, %v5227
      %5261 = vmatprep.subr.bf16.mxu0 0
      %5262 = vmatpush1.bf16.msra.mxu0 %v5236
      %5263 = vmatprep.subr.bf16.mxu0 0
      %5264 = vmatpush1.bf16.msra.mxu0 %v5235
      %5265 = vmatprep.subr.bf16.mxu0 0
      %5266 = vmatpush1.bf16.msra.mxu0 %v5234
      %5267 = vmatprep.subr.bf16.mxu0 0
      %5268 = vmatpush1.bf16.msra.mxu0 %v5233
      %5269 = vmatprep.subr.bf16.mxu0 0
      %5270 = vmatpush1.bf16.msra.mxu0 %v5232
      %5271 = vmatprep.subr.bf16.mxu0 0
      %5272 = vmatpush1.bf16.msra.mxu0 %v5231
      %5273 = vmatprep.subr.bf16.mxu0 0
      %5274 = vmatpush1.bf16.msra.mxu0 %v5230
      %5275 = vmatprep.subr.bf16.mxu0 0
      %5276 = vmatpush1.bf16.msra.mxu0 %v5229
      %5277 = vmatprep.subr.bf16.mxu0 0
      %5278 = vmatpush2.bf16.msra.mxu0 %v5244
      %5279 = vmatprep.subr.bf16.mxu0 0
      %5280 = vmatpush2.bf16.msra.mxu0 %v5243
      %5281 = vmatprep.subr.bf16.mxu0 0
      %5282 = vmatpush2.bf16.msra.mxu0 %v5242
      %5283 = vmatprep.subr.bf16.mxu0 0
      %5284 = vmatpush2.bf16.msra.mxu0 %v5241
      %5285 = vmatprep.subr.bf16.mxu0 0
      %5286 = vmatpush2.bf16.msra.mxu0 %v5240
      %5287 = vmatprep.subr.bf16.mxu0 0
      %5288 = vmatpush2.bf16.msra.mxu0 %v5239
      %5289 = vmatprep.subr.bf16.mxu0 0
      %5290 = vmatpush2.bf16.msra.mxu0 %v5238
      %5291 = vmatprep.subr.bf16.mxu0 0
      %5292 = vmatpush2.bf16.msra.mxu0 %v5237
      %5293 = vmatprep.mubr.bf16.mxu0 %v4837
      %5294 = vmatmul.mubr.bf16.gmra.mxu0 %v4836
      %v5295 = vpop.f32.mrf.mxu0
      %v5296 = vadd.f32 %v5163, %v5295
      %v5297 = vpop.f32.mrf.mxu0
      %v5298 = vpop.f32.mrf.mxu0
      %v5299 = vadd.f32 %v5163, %v5298
      %v5300 = vpop.f32.mrf.mxu0
      %5301 = vmatprep.mubr.bf16.mxu0 %v4839
      %5302 = vmatmul.mubr.bf16.gmra.mxu0 %v4838
      %v5303 = vpop.f32.mrf.mxu0
      %v5304 = vadd.f32 %v5163, %v5303
      %v5305 = vpop.f32.mrf.mxu0
      %v5306 = vpop.f32.mrf.mxu0
      %v5307 = vadd.f32 %v5163, %v5306
      %v5308 = vpop.f32.mrf.mxu0
      %5309 = vmatprep.mubr.bf16.mxu0 %v4841
      %5310 = vmatmul.mubr.bf16.gmra.mxu0 %v4840
      %v5311 = vpop.f32.mrf.mxu0
      %v5312 = vadd.f32 %v5163, %v5311
      %v5313 = vpop.f32.mrf.mxu0
      %v5314 = vpop.f32.mrf.mxu0
      %v5315 = vadd.f32 %v5163, %v5314
      %v5316 = vpop.f32.mrf.mxu0
      %5317 = vmatprep.mubr.bf16.mxu0 %v4843
      %5318 = vmatmul.mubr.bf16.gmra.mxu0 %v4842
      %v5319 = vpop.f32.mrf.mxu0
      %v5320 = vadd.f32 %v5163, %v5319
      %v5321 = vpop.f32.mrf.mxu0
      %v5322 = vpop.f32.mrf.mxu0
      %v5323 = vadd.f32 %v5163, %v5322
      %v5324 = vpop.f32.mrf.mxu0
      %5325 = vmatprep.mubr.bf16.mxu0 %v4845
      %5326 = vmatmul.mubr.bf16.gmra.mxu0 %v4844
      %v5327 = vpop.f32.mrf.mxu0
      %v5328 = vadd.f32 %v5163, %v5327
      %v5329 = vpop.f32.mrf.mxu0
      %v5330 = vpop.f32.mrf.mxu0
      %v5331 = vadd.f32 %v5163, %v5330
      %v5332 = vpop.f32.mrf.mxu0
      %5333 = vmatprep.mubr.bf16.mxu0 %v4847
      %5334 = vmatmul.mubr.bf16.gmra.mxu0 %v4846
      %v5335 = vpop.f32.mrf.mxu0
      %v5336 = vadd.f32 %v5163, %v5335
      %v5337 = vpop.f32.mrf.mxu0
      %v5338 = vpop.f32.mrf.mxu0
      %v5339 = vadd.f32 %v5163, %v5338
      %v5340 = vpop.f32.mrf.mxu0
      %5341 = vmatprep.mubr.bf16.mxu0 %v4849
      %5342 = vmatmul.mubr.bf16.gmra.mxu0 %v4848
      %v5343 = vpop.f32.mrf.mxu0
      %v5344 = vadd.f32 %v5163, %v5343
      %v5345 = vpop.f32.mrf.mxu0
      %v5346 = vpop.f32.mrf.mxu0
      %v5347 = vadd.f32 %v5163, %v5346
      %v5348 = vpop.f32.mrf.mxu0
      %5349 = vmatprep.mubr.bf16.mxu0 %v4851
      %5350 = vmatmul.mubr.bf16.gmra.mxu0 %v4850
      %v5351 = vpop.f32.mrf.mxu0
      %v5352 = vadd.f32 %v5163, %v5351
      %v5353 = vpop.f32.mrf.mxu0
      %v5354 = vpop.f32.mrf.mxu0
      %v5355 = vadd.f32 %v5163, %v5354
      %v5356 = vpop.f32.mrf.mxu0
      %5357 = vdwg.mxu0
      %v5358 = vtanh.pop %v5296
      %v5359 = vtanh.pop %v5299
      %v5360 = vtanh.pop %v5304
      %v5361 = vtanh.pop %v5307
      %v5362 = vtanh.pop %v5312
      %v5363 = vtanh.pop %v5315
      %v5364 = vtanh.pop %v5320
      %v5365 = vtanh.pop %v5323
      %v5366 = vtanh.pop %v5328
      %v5367 = vtanh.pop %v5331
      %v5368 = vtanh.pop %v5336
      %v5369 = vtanh.pop %v5339
      %v5370 = vtanh.pop %v5344
      %v5371 = vtanh.pop %v5347
      %v5372 = vtanh.pop %v5352
      %v5373 = vtanh.pop %v5355
      %v5374 = vpack.c.bf16 %v5359, %v5358
      %v5375 = vpack.c.bf16 %v5361, %v5360
      %v5376 = vpack.c.bf16 %v5363, %v5362
      %v5377 = vpack.c.bf16 %v5365, %v5364
      %v5378 = vpack.c.bf16 %v5367, %v5366
      %v5379 = vpack.c.bf16 %v5369, %v5368
      %v5380 = vpack.c.bf16 %v5371, %v5370
      %v5381 = vpack.c.bf16 %v5373, %v5372
      %5382 = vmatprep.subr.bf16.mxu0 0
      %5383 = vmatpush1.bf16.msra.mxu0 %v5236
      %5384 = vmatprep.subr.bf16.mxu0 0
      %5385 = vmatpush1.bf16.msra.mxu0 %v5235
      %5386 = vmatprep.subr.bf16.mxu0 0
      %5387 = vmatpush1.bf16.msra.mxu0 %v5234
      %5388 = vmatprep.subr.bf16.mxu0 0
      %5389 = vmatpush1.bf16.msra.mxu0 %v5233
      %5390 = vmatprep.subr.bf16.mxu0 0
      %5391 = vmatpush1.bf16.msra.mxu0 %v5232
      %5392 = vmatprep.subr.bf16.mxu0 0
      %5393 = vmatpush1.bf16.msra.mxu0 %v5231
      %5394 = vmatprep.subr.bf16.mxu0 0
      %5395 = vmatpush1.bf16.msra.mxu0 %v5230
      %5396 = vmatprep.subr.bf16.mxu0 0
      %5397 = vmatpush1.bf16.msra.mxu0 %v5229
      %5398 = vmatprep.subr.bf16.mxu0 0
      %5399 = vmatpush2.bf16.msra.mxu0 %v5244
      %5400 = vmatprep.subr.bf16.mxu0 0
      %5401 = vmatpush2.bf16.msra.mxu0 %v5243
      %5402 = vmatprep.subr.bf16.mxu0 0
      %5403 = vmatpush2.bf16.msra.mxu0 %v5242
      %5404 = vmatprep.subr.bf16.mxu0 0
      %5405 = vmatpush2.bf16.msra.mxu0 %v5241
      %5406 = vmatprep.subr.bf16.mxu0 0
      %5407 = vmatpush2.bf16.msra.mxu0 %v5240
      %5408 = vmatprep.subr.bf16.mxu0 0
      %5409 = vmatpush2.bf16.msra.mxu0 %v5239
      %5410 = vmatprep.subr.bf16.mxu0 0
      %5411 = vmatpush2.bf16.msra.mxu0 %v5238
      %5412 = vmatprep.subr.bf16.mxu0 0
      %5413 = vmatpush2.bf16.msra.mxu0 %v5237
      %5414 = vmatprep.mubr.bf16.mxu0 %v5111
      %5415 = vmatmul.mubr.bf16.gmra.mxu0 %v5110
      %v5416 = vpop.f32.mrf.mxu0
      %v5417 = vadd.f32 %v5163, %v5416
      %v5418 = vpop.f32.mrf.mxu0
      %v5419 = vpop.f32.mrf.mxu0
      %v5420 = vadd.f32 %v5163, %v5419
      %v5421 = vpop.f32.mrf.mxu0
      %5422 = vmatprep.mubr.bf16.mxu0 %v5113
      %5423 = vmatmul.mubr.bf16.gmra.mxu0 %v5112
      %v5424 = vpop.f32.mrf.mxu0
      %v5425 = vadd.f32 %v5163, %v5424
      %v5426 = vpop.f32.mrf.mxu0
      %v5427 = vpop.f32.mrf.mxu0
      %v5428 = vadd.f32 %v5163, %v5427
      %v5429 = vpop.f32.mrf.mxu0
      %5430 = vmatprep.mubr.bf16.mxu0 %v5115
      %5431 = vmatmul.mubr.bf16.gmra.mxu0 %v5114
      %v5432 = vpop.f32.mrf.mxu0
      %v5433 = vadd.f32 %v5163, %v5432
      %v5434 = vpop.f32.mrf.mxu0
      %v5435 = vpop.f32.mrf.mxu0
      %v5436 = vadd.f32 %v5163, %v5435
      %v5437 = vpop.f32.mrf.mxu0
      %5438 = vmatprep.mubr.bf16.mxu0 %v5117
      %5439 = vmatmul.mubr.bf16.gmra.mxu0 %v5116
      %v5440 = vpop.f32.mrf.mxu0
      %v5441 = vadd.f32 %v5163, %v5440
      %v5442 = vpop.f32.mrf.mxu0
      %v5443 = vpop.f32.mrf.mxu0
      %v5444 = vadd.f32 %v5163, %v5443
      %v5445 = vpop.f32.mrf.mxu0
      %5446 = vmatprep.mubr.bf16.mxu0 %v5119
      %5447 = vmatmul.mubr.bf16.gmra.mxu0 %v5118
      %v5448 = vpop.f32.mrf.mxu0
      %v5449 = vadd.f32 %v5163, %v5448
      %v5450 = vpop.f32.mrf.mxu0
      %v5451 = vpop.f32.mrf.mxu0
      %v5452 = vadd.f32 %v5163, %v5451
      %v5453 = vpop.f32.mrf.mxu0
      %5454 = vmatprep.mubr.bf16.mxu0 %v5121
      %5455 = vmatmul.mubr.bf16.gmra.mxu0 %v5120
      %v5456 = vpop.f32.mrf.mxu0
      %v5457 = vadd.f32 %v5163, %v5456
      %v5458 = vpop.f32.mrf.mxu0
      %v5459 = vpop.f32.mrf.mxu0
      %v5460 = vadd.f32 %v5163, %v5459
      %v5461 = vpop.f32.mrf.mxu0
      %5462 = vmatprep.mubr.bf16.mxu0 %v5123
      %5463 = vmatmul.mubr.bf16.gmra.mxu0 %v5122
      %v5464 = vpop.f32.mrf.mxu0
      %v5465 = vadd.f32 %v5163, %v5464
      %v5466 = vpop.f32.mrf.mxu0
      %v5467 = vpop.f32.mrf.mxu0
      %v5468 = vadd.f32 %v5163, %v5467
      %v5469 = vpop.f32.mrf.mxu0
      %5470 = vmatprep.mubr.bf16.mxu0 %v5125
      %5471 = vmatmul.mubr.bf16.gmra.mxu0 %v5124
      %v5472 = vpop.f32.mrf.mxu0
      %v5473 = vadd.f32 %v5163, %v5472
      %v5474 = vpop.f32.mrf.mxu0
      %v5475 = vpop.f32.mrf.mxu0
      %v5476 = vadd.f32 %v5163, %v5475
      %v5477 = vpop.f32.mrf.mxu0
      %5478 = vdwg.mxu0
      %v5479 = vtanh.pop %v5417
      %v5480 = vtanh.pop %v5420
      %v5481 = vtanh.pop %v5425
      %v5482 = vtanh.pop %v5428
      %v5483 = vtanh.pop %v5433
      %v5484 = vtanh.pop %v5436
      %v5485 = vtanh.pop %v5441
      %v5486 = vtanh.pop %v5444
      %v5487 = vtanh.pop %v5449
      %v5488 = vtanh.pop %v5452
      %v5489 = vtanh.pop %v5457
      %v5490 = vtanh.pop %v5460
      %v5491 = vtanh.pop %v5465
      %v5492 = vtanh.pop %v5468
      %v5493 = vtanh.pop %v5473
      %v5494 = vtanh.pop %v5476
      %v5495 = vpack.c.bf16 %v5480, %v5479
      %v5496 = vpack.c.bf16 %v5482, %v5481
      %v5497 = vpack.c.bf16 %v5484, %v5483
      %v5498 = vpack.c.bf16 %v5486, %v5485
      %v5499 = vpack.c.bf16 %v5488, %v5487
      %v5500 = vpack.c.bf16 %v5490, %v5489
      %v5501 = vpack.c.bf16 %v5492, %v5491
      %v5502 = vpack.c.bf16 %v5494, %v5493
      %v5503 = vld [vmem:[%s4] sm:$0xf]
      %v5504 = vld [vmem:[%s4 + $0x4] sm:$0xf]
      %v5505 = vld [vmem:[%s4 + $0x8] sm:$0xf]
      %v5506 = vld [vmem:[%s4 + $0xc] sm:$0xf]
      %v5507 = vld [vmem:[%s4 + $0x10] sm:$0xf]
      %v5508 = vld [vmem:[%s4 + $0x14] sm:$0xf]
      %v5509 = vld [vmem:[%s4 + $0x18] sm:$0xf]
      %v5510 = vld [vmem:[%s4 + $0x1c] sm:$0xf]
      %v5511 = vld [vmem:[%s4 + $0x20] sm:$0xf]
      %v5512 = vld [vmem:[%s4 + $0x24] sm:$0xf]
      %v5513 = vld [vmem:[%s4 + $0x28] sm:$0xf]
      %v5514 = vld [vmem:[%s4 + $0x2c] sm:$0xf]
      %v5515 = vld [vmem:[%s4 + $0x30] sm:$0xf]
      %v5516 = vld [vmem:[%s4 + $0x34] sm:$0xf]
      %v5517 = vld [vmem:[%s4 + $0x38] sm:$0xf]
      %v5518 = vld [vmem:[%s4 + $0x3c] sm:$0xf]
      %v5519 = vld [vmem:[%s12] sm:$0x1]
      %v5521 = vlaneseq
      %v5522 = vshrl.u32 %v5521, 7
      %v5523 = vsub.s32 0, %v5522
      %v5524 = vrot.slane %v5519, %v5523
      %v5542 = vunpack.c.l.b16 %v5503
      %v5543 = vunpack.c.l.b16 %v5504
      %v5544 = vunpack.c.l.b16 %v5505
      %v5545 = vunpack.c.l.b16 %v5506
      %v5546 = vunpack.c.l.b16 %v5507
      %v5547 = vunpack.c.l.b16 %v5508
      %v5548 = vunpack.c.l.b16 %v5509
      %v5549 = vunpack.c.l.b16 %v5510
      %v5550 = vunpack.c.l.b16 %v5511
      %v5551 = vunpack.c.l.b16 %v5512
      %v5552 = vunpack.c.l.b16 %v5513
      %v5553 = vunpack.c.l.b16 %v5514
      %v5554 = vunpack.c.l.b16 %v5515
      %v5555 = vunpack.c.l.b16 %v5516
      %v5556 = vunpack.c.l.b16 %v5517
      %v5557 = vunpack.c.l.b16 %v5518
      %v5558 = vpack.c.b16 %v5543, %v5542
      %v5559 = vpack.c.b16 %v5545, %v5544
      %v5560 = vpack.c.b16 %v5547, %v5546
      %v5561 = vpack.c.b16 %v5549, %v5548
      %v5562 = vpack.c.b16 %v5551, %v5550
      %v5563 = vpack.c.b16 %v5553, %v5552
      %v5564 = vpack.c.b16 %v5555, %v5554
      %v5565 = vpack.c.b16 %v5557, %v5556
      %5574 = vmatprep.subr.bf16.mxu0 0
      %5575 = vmatpush1.bf16.msra.mxu0 %v5565
      %5576 = vmatprep.subr.bf16.mxu0 0
      %5577 = vmatpush1.bf16.msra.mxu0 %v5564
      %5578 = vmatprep.subr.bf16.mxu0 0
      %5579 = vmatpush1.bf16.msra.mxu0 %v5563
      %5580 = vmatprep.subr.bf16.mxu0 0
      %5581 = vmatpush1.bf16.msra.mxu0 %v5562
      %5582 = vmatprep.subr.bf16.mxu0 0
      %5583 = vmatpush1.bf16.msra.mxu0 %v5561
      %5584 = vmatprep.subr.bf16.mxu0 0
      %5585 = vmatpush1.bf16.msra.mxu0 %v5560
      %5586 = vmatprep.subr.bf16.mxu0 0
      %5587 = vmatpush1.bf16.msra.mxu0 %v5559
      %5588 = vmatprep.subr.bf16.mxu0 0
      %5589 = vmatpush1.bf16.msra.mxu0 %v5558
      %5590 = vmatprep.subr.bf16.mxu0 0
      %5591 = vmatpush2.bf16.msra.mxu0 0
      %5592 = vmatprep.subr.bf16.mxu0 0
      %5593 = vmatpush2.bf16.msra.mxu0 0
      %5594 = vmatprep.subr.bf16.mxu0 0
      %5595 = vmatpush2.bf16.msra.mxu0 0
      %5596 = vmatprep.subr.bf16.mxu0 0
      %5597 = vmatpush2.bf16.msra.mxu0 0
      %5598 = vmatprep.subr.bf16.mxu0 0
      %5599 = vmatpush2.bf16.msra.mxu0 0
      %5600 = vmatprep.subr.bf16.mxu0 0
      %5601 = vmatpush2.bf16.msra.mxu0 0
      %5602 = vmatprep.subr.bf16.mxu0 0
      %5603 = vmatpush2.bf16.msra.mxu0 0
      %5604 = vmatprep.subr.bf16.mxu0 0
      %5605 = vmatpush2.bf16.msra.mxu0 0
      %5606 = vmatprep.mubr.bf16.mxu0 0
      %5607 = vmatmul.mubr.bf16.gmra.mxu0 %v5374
      %v5608 = vpop.f32.mrf.mxu0
      %v5609 = vadd.f32 %v5524, %v5608
      %v5610 = vpop.f32.mrf.mxu0
      %v5611 = vpop.f32.mrf.mxu0
      %v5612 = vadd.f32 %v5524, %v5611
      %v5613 = vpop.f32.mrf.mxu0
      %5614 = vmatprep.mubr.bf16.mxu0 0
      %5615 = vmatmul.mubr.bf16.gmra.mxu0 %v5375
      %v5616 = vpop.f32.mrf.mxu0
      %v5617 = vadd.f32 %v5524, %v5616
      %v5618 = vpop.f32.mrf.mxu0
      %v5619 = vpop.f32.mrf.mxu0
      %v5620 = vadd.f32 %v5524, %v5619
      %v5621 = vpop.f32.mrf.mxu0
      %5622 = vmatprep.mubr.bf16.mxu0 0
      %5623 = vmatmul.mubr.bf16.gmra.mxu0 %v5376
      %v5624 = vpop.f32.mrf.mxu0
      %v5625 = vadd.f32 %v5524, %v5624
      %v5626 = vpop.f32.mrf.mxu0
      %v5627 = vpop.f32.mrf.mxu0
      %v5628 = vadd.f32 %v5524, %v5627
      %v5629 = vpop.f32.mrf.mxu0
      %5630 = vmatprep.mubr.bf16.mxu0 0
      %5631 = vmatmul.mubr.bf16.gmra.mxu0 %v5377
      %v5632 = vpop.f32.mrf.mxu0
      %v5633 = vadd.f32 %v5524, %v5632
      %v5634 = vpop.f32.mrf.mxu0
      %v5635 = vpop.f32.mrf.mxu0
      %v5636 = vadd.f32 %v5524, %v5635
      %v5637 = vpop.f32.mrf.mxu0
      %5638 = vmatprep.mubr.bf16.mxu0 0
      %5639 = vmatmul.mubr.bf16.gmra.mxu0 %v5378
      %v5640 = vpop.f32.mrf.mxu0
      %v5641 = vadd.f32 %v5524, %v5640
      %v5642 = vpop.f32.mrf.mxu0
      %v5643 = vpop.f32.mrf.mxu0
      %v5644 = vadd.f32 %v5524, %v5643
      %v5645 = vpop.f32.mrf.mxu0
      %5646 = vmatprep.mubr.bf16.mxu0 0
      %5647 = vmatmul.mubr.bf16.gmra.mxu0 %v5379
      %v5648 = vpop.f32.mrf.mxu0
      %v5649 = vadd.f32 %v5524, %v5648
      %v5650 = vpop.f32.mrf.mxu0
      %v5651 = vpop.f32.mrf.mxu0
      %v5652 = vadd.f32 %v5524, %v5651
      %v5653 = vpop.f32.mrf.mxu0
      %5654 = vmatprep.mubr.bf16.mxu0 0
      %5655 = vmatmul.mubr.bf16.gmra.mxu0 %v5380
      %v5656 = vpop.f32.mrf.mxu0
      %v5657 = vadd.f32 %v5524, %v5656
      %v5658 = vpop.f32.mrf.mxu0
      %v5659 = vpop.f32.mrf.mxu0
      %v5660 = vadd.f32 %v5524, %v5659
      %v5661 = vpop.f32.mrf.mxu0
      %5662 = vmatprep.mubr.bf16.mxu0 0
      %5663 = vmatmul.mubr.bf16.gmra.mxu0 %v5381
      %v5664 = vpop.f32.mrf.mxu0
      %v5665 = vadd.f32 %v5524, %v5664
      %v5666 = vpop.f32.mrf.mxu0
      %v5667 = vpop.f32.mrf.mxu0
      %v5668 = vadd.f32 %v5524, %v5667
      %v5669 = vpop.f32.mrf.mxu0
      %5670 = vdwg.mxu0
      %5671 = vmatprep.subr.bf16.mxu0 0
      %5672 = vmatpush1.bf16.msra.mxu0 %v5565
      %5673 = vmatprep.subr.bf16.mxu0 0
      %5674 = vmatpush1.bf16.msra.mxu0 %v5564
      %5675 = vmatprep.subr.bf16.mxu0 0
      %5676 = vmatpush1.bf16.msra.mxu0 %v5563
      %5677 = vmatprep.subr.bf16.mxu0 0
      %5678 = vmatpush1.bf16.msra.mxu0 %v5562
      %5679 = vmatprep.subr.bf16.mxu0 0
      %5680 = vmatpush1.bf16.msra.mxu0 %v5561
      %5681 = vmatprep.subr.bf16.mxu0 0
      %5682 = vmatpush1.bf16.msra.mxu0 %v5560
      %5683 = vmatprep.subr.bf16.mxu0 0
      %5684 = vmatpush1.bf16.msra.mxu0 %v5559
      %5685 = vmatprep.subr.bf16.mxu0 0
      %5686 = vmatpush1.bf16.msra.mxu0 %v5558
      %5687 = vmatprep.subr.bf16.mxu0 0
      %5688 = vmatpush2.bf16.msra.mxu0 0
      %5689 = vmatprep.subr.bf16.mxu0 0
      %5690 = vmatpush2.bf16.msra.mxu0 0
      %5691 = vmatprep.subr.bf16.mxu0 0
      %5692 = vmatpush2.bf16.msra.mxu0 0
      %5693 = vmatprep.subr.bf16.mxu0 0
      %5694 = vmatpush2.bf16.msra.mxu0 0
      %5695 = vmatprep.subr.bf16.mxu0 0
      %5696 = vmatpush2.bf16.msra.mxu0 0
      %5697 = vmatprep.subr.bf16.mxu0 0
      %5698 = vmatpush2.bf16.msra.mxu0 0
      %5699 = vmatprep.subr.bf16.mxu0 0
      %5700 = vmatpush2.bf16.msra.mxu0 0
      %5701 = vmatprep.subr.bf16.mxu0 0
      %5702 = vmatpush2.bf16.msra.mxu0 0
      %5703 = vmatprep.mubr.bf16.mxu0 0
      %5704 = vmatmul.mubr.bf16.gmra.mxu0 %v5495
      %v5705 = vpop.f32.mrf.mxu0
      %v5706 = vadd.f32 %v5524, %v5705
      %v5707 = vpop.f32.mrf.mxu0
      %v5708 = vpop.f32.mrf.mxu0
      %v5709 = vadd.f32 %v5524, %v5708
      %v5710 = vpop.f32.mrf.mxu0
      %5711 = vmatprep.mubr.bf16.mxu0 0
      %5712 = vmatmul.mubr.bf16.gmra.mxu0 %v5496
      %v5713 = vpop.f32.mrf.mxu0
      %v5714 = vadd.f32 %v5524, %v5713
      %v5715 = vpop.f32.mrf.mxu0
      %v5716 = vpop.f32.mrf.mxu0
      %v5717 = vadd.f32 %v5524, %v5716
      %v5718 = vpop.f32.mrf.mxu0
      %5719 = vmatprep.mubr.bf16.mxu0 0
      %5720 = vmatmul.mubr.bf16.gmra.mxu0 %v5497
      %v5721 = vpop.f32.mrf.mxu0
      %v5722 = vadd.f32 %v5524, %v5721
      %v5723 = vpop.f32.mrf.mxu0
      %v5724 = vpop.f32.mrf.mxu0
      %v5725 = vadd.f32 %v5524, %v5724
      %v5726 = vpop.f32.mrf.mxu0
      %5727 = vmatprep.mubr.bf16.mxu0 0
      %5728 = vmatmul.mubr.bf16.gmra.mxu0 %v5498
      %v5729 = vpop.f32.mrf.mxu0
      %v5730 = vadd.f32 %v5524, %v5729
      %v5731 = vpop.f32.mrf.mxu0
      %v5732 = vpop.f32.mrf.mxu0
      %v5733 = vadd.f32 %v5524, %v5732
      %v5734 = vpop.f32.mrf.mxu0
      %5735 = vmatprep.mubr.bf16.mxu0 0
      %5736 = vmatmul.mubr.bf16.gmra.mxu0 %v5499
      %v5737 = vpop.f32.mrf.mxu0
      %v5738 = vadd.f32 %v5524, %v5737
      %v5739 = vpop.f32.mrf.mxu0
      %v5740 = vpop.f32.mrf.mxu0
      %v5741 = vadd.f32 %v5524, %v5740
      %v5742 = vpop.f32.mrf.mxu0
      %5743 = vmatprep.mubr.bf16.mxu0 0
      %5744 = vmatmul.mubr.bf16.gmra.mxu0 %v5500
      %v5745 = vpop.f32.mrf.mxu0
      %v5746 = vadd.f32 %v5524, %v5745
      %v5747 = vpop.f32.mrf.mxu0
      %v5748 = vpop.f32.mrf.mxu0
      %v5749 = vadd.f32 %v5524, %v5748
      %v5750 = vpop.f32.mrf.mxu0
      %5751 = vmatprep.mubr.bf16.mxu0 0
      %5752 = vmatmul.mubr.bf16.gmra.mxu0 %v5501
      %v5753 = vpop.f32.mrf.mxu0
      %v5754 = vadd.f32 %v5524, %v5753
      %v5755 = vpop.f32.mrf.mxu0
      %v5756 = vpop.f32.mrf.mxu0
      %v5757 = vadd.f32 %v5524, %v5756
      %v5758 = vpop.f32.mrf.mxu0
      %5759 = vmatprep.mubr.bf16.mxu0 0
      %5760 = vmatmul.mubr.bf16.gmra.mxu0 %v5502
      %v5761 = vpop.f32.mrf.mxu0
      %v5762 = vadd.f32 %v5524, %v5761
      %v5763 = vpop.f32.mrf.mxu0
      %v5764 = vpop.f32.mrf.mxu0
      %v5765 = vadd.f32 %v5524, %v5764
      %v5766 = vpop.f32.mrf.mxu0
      %5767 = vdwg.mxu0
      %vm5768 = vcmask 261120
      %5769 = vst.msk [vmem:[%s596] sm:$0xff] %vm5768, %v5609
      %5770 = vst.msk [vmem:[%s596 + $0x8] sm:$0xff] %vm5768, %v5612
      %5771 = vst.msk [vmem:[%s596 + $0x10] sm:$0xff] %vm5768, %v5617
      %5772 = vst.msk [vmem:[%s596 + $0x18] sm:$0xff] %vm5768, %v5620
      %5773 = vst.msk [vmem:[%s596 + $0x20] sm:$0xff] %vm5768, %v5625
      %5774 = vst.msk [vmem:[%s596 + $0x28] sm:$0xff] %vm5768, %v5628
      %5775 = vst.msk [vmem:[%s596 + $0x30] sm:$0xff] %vm5768, %v5633
      %5776 = vst.msk [vmem:[%s596 + $0x38] sm:$0xff] %vm5768, %v5636
      %5777 = vst.msk [vmem:[%s596 + $0x40] sm:$0xff] %vm5768, %v5641
      %5778 = vst.msk [vmem:[%s596 + $0x48] sm:$0xff] %vm5768, %v5644
      %5779 = vst.msk [vmem:[%s596 + $0x50] sm:$0xff] %vm5768, %v5649
      %5780 = vst.msk [vmem:[%s596 + $0x58] sm:$0xff] %vm5768, %v5652
      %5781 = vst.msk [vmem:[%s596 + $0x60] sm:$0xff] %vm5768, %v5657
      %5782 = vst.msk [vmem:[%s596 + $0x68] sm:$0xff] %vm5768, %v5660
      %5783 = vst.msk [vmem:[%s596 + $0x70] sm:$0xff] %vm5768, %v5665
      %5784 = vst.msk [vmem:[%s596 + $0x78] sm:$0xff] %vm5768, %v5668
      %5785 = vst.msk [vmem:[%s596 + $0x80] sm:$0xff] %vm5768, %v5706
      %5786 = vst.msk [vmem:[%s596 + $0x88] sm:$0xff] %vm5768, %v5709
      %5787 = vst.msk [vmem:[%s596 + $0x90] sm:$0xff] %vm5768, %v5714
      %5788 = vst.msk [vmem:[%s596 + $0x98] sm:$0xff] %vm5768, %v5717
      %5789 = vst.msk [vmem:[%s596 + $0xa0] sm:$0xff] %vm5768, %v5722
      %5790 = vst.msk [vmem:[%s596 + $0xa8] sm:$0xff] %vm5768, %v5725
      %5791 = vst.msk [vmem:[%s596 + $0xb0] sm:$0xff] %vm5768, %v5730
      %5792 = vst.msk [vmem:[%s596 + $0xb8] sm:$0xff] %vm5768, %v5733
      %5793 = vst.msk [vmem:[%s596 + $0xc0] sm:$0xff] %vm5768, %v5738
      %5794 = vst.msk [vmem:[%s596 + $0xc8] sm:$0xff] %vm5768, %v5741
      %5795 = vst.msk [vmem:[%s596 + $0xd0] sm:$0xff] %vm5768, %v5746
      %5796 = vst.msk [vmem:[%s596 + $0xd8] sm:$0xff] %vm5768, %v5749
      %5797 = vst.msk [vmem:[%s596 + $0xe0] sm:$0xff] %vm5768, %v5754
      %5798 = vst.msk [vmem:[%s596 + $0xe8] sm:$0xff] %vm5768, %v5757
      %5799 = vst.msk [vmem:[%s596 + $0xf0] sm:$0xff] %vm5768, %v5762
      %5800 = vst.msk [vmem:[%s596 + $0xf8] sm:$0xff] %vm5768, %v5765
      %v5801 = vtanh.pop %v5609
      %v5802 = vtanh.pop %v5612
      %v5803 = vtanh.pop %v5617
      %v5804 = vtanh.pop %v5620
      %v5805 = vtanh.pop %v5625
      %v5806 = vtanh.pop %v5628
      %v5807 = vtanh.pop %v5633
      %v5808 = vtanh.pop %v5636
      %v5809 = vtanh.pop %v5641
      %v5810 = vtanh.pop %v5644
      %v5811 = vtanh.pop %v5649
      %v5812 = vtanh.pop %v5652
      %v5813 = vtanh.pop %v5657
      %v5814 = vtanh.pop %v5660
      %v5815 = vtanh.pop %v5665
      %v5816 = vtanh.pop %v5668
      %v5817 = vpack.c.bf16 %v5802, %v5801
      %v5818 = vpack.c.bf16 %v5804, %v5803
      %v5819 = vpack.c.bf16 %v5806, %v5805
      %v5820 = vpack.c.bf16 %v5808, %v5807
      %v5821 = vpack.c.bf16 %v5810, %v5809
      %v5822 = vpack.c.bf16 %v5812, %v5811
      %v5823 = vpack.c.bf16 %v5814, %v5813
      %v5824 = vpack.c.bf16 %v5816, %v5815
      %v5825 = vtanh.pop %v5706
      %v5826 = vtanh.pop %v5709
      %v5827 = vtanh.pop %v5714
      %v5828 = vtanh.pop %v5717
      %v5829 = vtanh.pop %v5722
      %v5830 = vtanh.pop %v5725
      %v5831 = vtanh.pop %v5730
      %v5832 = vtanh.pop %v5733
      %v5833 = vtanh.pop %v5738
      %v5834 = vtanh.pop %v5741
      %v5835 = vtanh.pop %v5746
      %v5836 = vtanh.pop %v5749
      %v5837 = vtanh.pop %v5754
      %v5838 = vtanh.pop %v5757
      %v5839 = vtanh.pop %v5762
      %v5840 = vtanh.pop %v5765
      %v5841 = vpack.c.bf16 %v5826, %v5825
      %v5842 = vpack.c.bf16 %v5828, %v5827
      %v5843 = vpack.c.bf16 %v5830, %v5829
      %v5844 = vpack.c.bf16 %v5832, %v5831
      %v5845 = vpack.c.bf16 %v5834, %v5833
      %v5846 = vpack.c.bf16 %v5836, %v5835
      %v5847 = vpack.c.bf16 %v5838, %v5837
      %v5848 = vpack.c.bf16 %v5840, %v5839
      %v5849 = vld [vmem:[%s5] sm:$0xf]
      %v5850 = vld [vmem:[%s5 + $0x4] sm:$0xf]
      %v5851 = vld [vmem:[%s5 + $0x8] sm:$0xf]
      %v5852 = vld [vmem:[%s5 + $0xc] sm:$0xf]
      %v5853 = vld [vmem:[%s13] sm:$0x1]
      %v5855 = vlaneseq
      %v5856 = vshrl.u32 %v5855, 7
      %v5857 = vsub.s32 0, %v5856
      %v5858 = vrot.slane %v5853, %v5857
      %v5864 = vunpack.c.l.b16 %v5849
      %v5865 = vunpack.c.l.b16 %v5850
      %v5866 = vunpack.c.l.b16 %v5851
      %v5867 = vunpack.c.l.b16 %v5852
      %v5868 = vpack.c.b16 %v5865, %v5864
      %v5869 = vpack.c.b16 %v5867, %v5866
      %v5873 = vsel %vm5768, %v5817, 0
      %v5876 = vsel %vm5768, %v5818, 0
      %v5879 = vsel %vm5768, %v5819, 0
      %v5882 = vsel %vm5768, %v5820, 0
      %v5885 = vsel %vm5768, %v5821, 0
      %v5888 = vsel %vm5768, %v5822, 0
      %v5891 = vsel %vm5768, %v5823, 0
      %v5894 = vsel %vm5768, %v5824, 0
      %5896 = vmatprep.subr.bf16.mxu0 0
      %5897 = vmatpush1.bf16.msra.mxu0 0
      %5898 = vmatprep.subr.bf16.mxu0 0
      %5899 = vmatpush1.bf16.msra.mxu0 0
      %5900 = vmatprep.subr.bf16.mxu0 0
      %5901 = vmatpush1.bf16.msra.mxu0 0
      %5902 = vmatprep.subr.bf16.mxu0 0
      %5903 = vmatpush1.bf16.msra.mxu0 0
      %5904 = vmatprep.subr.bf16.mxu0 0
      %5905 = vmatpush1.bf16.msra.mxu0 0
      %5906 = vmatprep.subr.bf16.mxu0 0
      %5907 = vmatpush1.bf16.msra.mxu0 0
      %5908 = vmatprep.subr.bf16.mxu0 0
      %5909 = vmatpush1.bf16.msra.mxu0 %v5869
      %5910 = vmatprep.subr.bf16.mxu0 0
      %5911 = vmatpush1.bf16.msra.mxu0 %v5868
      %5912 = vmatprep.subr.bf16.mxu0 0
      %5913 = vmatpush2.bf16.msra.mxu0 0
      %5914 = vmatprep.subr.bf16.mxu0 0
      %5915 = vmatpush2.bf16.msra.mxu0 0
      %5916 = vmatprep.subr.bf16.mxu0 0
      %5917 = vmatpush2.bf16.msra.mxu0 0
      %5918 = vmatprep.subr.bf16.mxu0 0
      %5919 = vmatpush2.bf16.msra.mxu0 0
      %5920 = vmatprep.subr.bf16.mxu0 0
      %5921 = vmatpush2.bf16.msra.mxu0 0
      %5922 = vmatprep.subr.bf16.mxu0 0
      %5923 = vmatpush2.bf16.msra.mxu0 0
      %5924 = vmatprep.subr.bf16.mxu0 0
      %5925 = vmatpush2.bf16.msra.mxu0 0
      %5926 = vmatprep.subr.bf16.mxu0 0
      %5927 = vmatpush2.bf16.msra.mxu0 0
      %5928 = vmatprep.mubr.bf16.mxu0 0
      %5929 = vmatmul.mubr.bf16.gmra.mxu0 %v5873
      %v5930 = vpop.f32.mrf.mxu0
      %v5931 = vadd.f32 %v5858, %v5930
      %v5932 = vpop.f32.mrf.mxu0
      %v5933 = vpop.f32.mrf.mxu0
      %v5934 = vadd.f32 %v5858, %v5933
      %v5935 = vpop.f32.mrf.mxu0
      %5936 = vmatprep.mubr.bf16.mxu0 0
      %5937 = vmatmul.mubr.bf16.gmra.mxu0 %v5876
      %v5938 = vpop.f32.mrf.mxu0
      %v5939 = vadd.f32 %v5858, %v5938
      %v5940 = vpop.f32.mrf.mxu0
      %v5941 = vpop.f32.mrf.mxu0
      %v5942 = vadd.f32 %v5858, %v5941
      %v5943 = vpop.f32.mrf.mxu0
      %5944 = vmatprep.mubr.bf16.mxu0 0
      %5945 = vmatmul.mubr.bf16.gmra.mxu0 %v5879
      %v5946 = vpop.f32.mrf.mxu0
      %v5947 = vadd.f32 %v5858, %v5946
      %v5948 = vpop.f32.mrf.mxu0
      %v5949 = vpop.f32.mrf.mxu0
      %v5950 = vadd.f32 %v5858, %v5949
      %v5951 = vpop.f32.mrf.mxu0
      %5952 = vmatprep.mubr.bf16.mxu0 0
      %5953 = vmatmul.mubr.bf16.gmra.mxu0 %v5882
      %v5954 = vpop.f32.mrf.mxu0
      %v5955 = vadd.f32 %v5858, %v5954
      %v5956 = vpop.f32.mrf.mxu0
      %v5957 = vpop.f32.mrf.mxu0
      %v5958 = vadd.f32 %v5858, %v5957
      %v5959 = vpop.f32.mrf.mxu0
      %5960 = vmatprep.mubr.bf16.mxu0 0
      %5961 = vmatmul.mubr.bf16.gmra.mxu0 %v5885
      %v5962 = vpop.f32.mrf.mxu0
      %v5963 = vadd.f32 %v5858, %v5962
      %v5964 = vpop.f32.mrf.mxu0
      %v5965 = vpop.f32.mrf.mxu0
      %v5966 = vadd.f32 %v5858, %v5965
      %v5967 = vpop.f32.mrf.mxu0
      %5968 = vmatprep.mubr.bf16.mxu0 0
      %5969 = vmatmul.mubr.bf16.gmra.mxu0 %v5888
      %v5970 = vpop.f32.mrf.mxu0
      %v5971 = vadd.f32 %v5858, %v5970
      %v5972 = vpop.f32.mrf.mxu0
      %v5973 = vpop.f32.mrf.mxu0
      %v5974 = vadd.f32 %v5858, %v5973
      %v5975 = vpop.f32.mrf.mxu0
      %5976 = vmatprep.mubr.bf16.mxu0 0
      %5977 = vmatmul.mubr.bf16.gmra.mxu0 %v5891
      %v5978 = vpop.f32.mrf.mxu0
      %v5979 = vadd.f32 %v5858, %v5978
      %v5980 = vpop.f32.mrf.mxu0
      %v5981 = vpop.f32.mrf.mxu0
      %v5982 = vadd.f32 %v5858, %v5981
      %v5983 = vpop.f32.mrf.mxu0
      %5984 = vmatprep.mubr.bf16.mxu0 0
      %5985 = vmatmul.mubr.bf16.gmra.mxu0 %v5894
      %v5986 = vpop.f32.mrf.mxu0
      %v5987 = vadd.f32 %v5858, %v5986
      %v5988 = vpop.f32.mrf.mxu0
      %v5989 = vpop.f32.mrf.mxu0
      %v5990 = vadd.f32 %v5858, %v5989
      %v5991 = vpop.f32.mrf.mxu0
      %5992 = vdwg.mxu0
      %v5993 = vtanh.pop %v5931
      %v5994 = vtanh.pop %v5934
      %v5995 = vtanh.pop %v5939
      %v5996 = vtanh.pop %v5942
      %v5997 = vtanh.pop %v5947
      %v5998 = vtanh.pop %v5950
      %v5999 = vtanh.pop %v5955
      %v6000 = vtanh.pop %v5958
      %v6001 = vtanh.pop %v5963
      %v6002 = vtanh.pop %v5966
      %v6003 = vtanh.pop %v5971
      %v6004 = vtanh.pop %v5974
      %v6005 = vtanh.pop %v5979
      %v6006 = vtanh.pop %v5982
      %v6007 = vtanh.pop %v5987
      %v6008 = vtanh.pop %v5990
      %v6009 = vpack.c.bf16 %v5994, %v5993
      %v6010 = vpack.c.bf16 %v5996, %v5995
      %v6011 = vpack.c.bf16 %v5998, %v5997
      %v6012 = vpack.c.bf16 %v6000, %v5999
      %v6013 = vpack.c.bf16 %v6002, %v6001
      %v6014 = vpack.c.bf16 %v6004, %v6003
      %v6015 = vpack.c.bf16 %v6006, %v6005
      %v6016 = vpack.c.bf16 %v6008, %v6007
      %v6018 = vsel %vm5768, %v5841, 0
      %v6021 = vsel %vm5768, %v5842, 0
      %v6024 = vsel %vm5768, %v5843, 0
      %v6027 = vsel %vm5768, %v5844, 0
      %v6030 = vsel %vm5768, %v5845, 0
      %v6033 = vsel %vm5768, %v5846, 0
      %v6036 = vsel %vm5768, %v5847, 0
      %v6039 = vsel %vm5768, %v5848, 0
      %6041 = vmatprep.subr.bf16.mxu0 0
      %6042 = vmatpush1.bf16.msra.mxu0 0
      %6043 = vmatprep.subr.bf16.mxu0 0
      %6044 = vmatpush1.bf16.msra.mxu0 0
      %6045 = vmatprep.subr.bf16.mxu0 0
      %6046 = vmatpush1.bf16.msra.mxu0 0
      %6047 = vmatprep.subr.bf16.mxu0 0
      %6048 = vmatpush1.bf16.msra.mxu0 0
      %6049 = vmatprep.subr.bf16.mxu0 0
      %6050 = vmatpush1.bf16.msra.mxu0 0
      %6051 = vmatprep.subr.bf16.mxu0 0
      %6052 = vmatpush1.bf16.msra.mxu0 0
      %6053 = vmatprep.subr.bf16.mxu0 0
      %6054 = vmatpush1.bf16.msra.mxu0 %v5869
      %6055 = vmatprep.subr.bf16.mxu0 0
      %6056 = vmatpush1.bf16.msra.mxu0 %v5868
      %6057 = vmatprep.subr.bf16.mxu0 0
      %6058 = vmatpush2.bf16.msra.mxu0 0
      %6059 = vmatprep.subr.bf16.mxu0 0
      %6060 = vmatpush2.bf16.msra.mxu0 0
      %6061 = vmatprep.subr.bf16.mxu0 0
      %6062 = vmatpush2.bf16.msra.mxu0 0
      %6063 = vmatprep.subr.bf16.mxu0 0
      %6064 = vmatpush2.bf16.msra.mxu0 0
      %6065 = vmatprep.subr.bf16.mxu0 0
      %6066 = vmatpush2.bf16.msra.mxu0 0
      %6067 = vmatprep.subr.bf16.mxu0 0
      %6068 = vmatpush2.bf16.msra.mxu0 0
      %6069 = vmatprep.subr.bf16.mxu0 0
      %6070 = vmatpush2.bf16.msra.mxu0 0
      %6071 = vmatprep.subr.bf16.mxu0 0
      %6072 = vmatpush2.bf16.msra.mxu0 0
      %6073 = vmatprep.mubr.bf16.mxu0 0
      %6074 = vmatmul.mubr.bf16.gmra.mxu0 %v6018
      %v6075 = vpop.f32.mrf.mxu0
      %v6076 = vadd.f32 %v5858, %v6075
      %v6077 = vpop.f32.mrf.mxu0
      %v6078 = vpop.f32.mrf.mxu0
      %v6079 = vadd.f32 %v5858, %v6078
      %v6080 = vpop.f32.mrf.mxu0
      %6081 = vmatprep.mubr.bf16.mxu0 0
      %6082 = vmatmul.mubr.bf16.gmra.mxu0 %v6021
      %v6083 = vpop.f32.mrf.mxu0
      %v6084 = vadd.f32 %v5858, %v6083
      %v6085 = vpop.f32.mrf.mxu0
      %v6086 = vpop.f32.mrf.mxu0
      %v6087 = vadd.f32 %v5858, %v6086
      %v6088 = vpop.f32.mrf.mxu0
      %6089 = vmatprep.mubr.bf16.mxu0 0
      %6090 = vmatmul.mubr.bf16.gmra.mxu0 %v6024
      %v6091 = vpop.f32.mrf.mxu0
      %v6092 = vadd.f32 %v5858, %v6091
      %v6093 = vpop.f32.mrf.mxu0
      %v6094 = vpop.f32.mrf.mxu0
      %v6095 = vadd.f32 %v5858, %v6094
      %v6096 = vpop.f32.mrf.mxu0
      %6097 = vmatprep.mubr.bf16.mxu0 0
      %6098 = vmatmul.mubr.bf16.gmra.mxu0 %v6027
      %v6099 = vpop.f32.mrf.mxu0
      %v6100 = vadd.f32 %v5858, %v6099
      %v6101 = vpop.f32.mrf.mxu0
      %v6102 = vpop.f32.mrf.mxu0
      %v6103 = vadd.f32 %v5858, %v6102
      %v6104 = vpop.f32.mrf.mxu0
      %6105 = vmatprep.mubr.bf16.mxu0 0
      %6106 = vmatmul.mubr.bf16.gmra.mxu0 %v6030
      %v6107 = vpop.f32.mrf.mxu0
      %v6108 = vadd.f32 %v5858, %v6107
      %v6109 = vpop.f32.mrf.mxu0
      %v6110 = vpop.f32.mrf.mxu0
      %v6111 = vadd.f32 %v5858, %v6110
      %v6112 = vpop.f32.mrf.mxu0
      %6113 = vmatprep.mubr.bf16.mxu0 0
      %6114 = vmatmul.mubr.bf16.gmra.mxu0 %v6033
      %v6115 = vpop.f32.mrf.mxu0
      %v6116 = vadd.f32 %v5858, %v6115
      %v6117 = vpop.f32.mrf.mxu0
      %v6118 = vpop.f32.mrf.mxu0
      %v6119 = vadd.f32 %v5858, %v6118
      %v6120 = vpop.f32.mrf.mxu0
      %6121 = vmatprep.mubr.bf16.mxu0 0
      %6122 = vmatmul.mubr.bf16.gmra.mxu0 %v6036
      %v6123 = vpop.f32.mrf.mxu0
      %v6124 = vadd.f32 %v5858, %v6123
      %v6125 = vpop.f32.mrf.mxu0
      %v6126 = vpop.f32.mrf.mxu0
      %v6127 = vadd.f32 %v5858, %v6126
      %v6128 = vpop.f32.mrf.mxu0
      %6129 = vmatprep.mubr.bf16.mxu0 0
      %6130 = vmatmul.mubr.bf16.gmra.mxu0 %v6039
      %v6131 = vpop.f32.mrf.mxu0
      %v6132 = vadd.f32 %v5858, %v6131
      %v6133 = vpop.f32.mrf.mxu0
      %v6134 = vpop.f32.mrf.mxu0
      %v6135 = vadd.f32 %v5858, %v6134
      %v6136 = vpop.f32.mrf.mxu0
      %6137 = vdwg.mxu0
      %v6138 = vtanh.pop %v6076
      %v6139 = vtanh.pop %v6079
      %v6140 = vtanh.pop %v6084
      %v6141 = vtanh.pop %v6087
      %v6142 = vtanh.pop %v6092
      %v6143 = vtanh.pop %v6095
      %v6144 = vtanh.pop %v6100
      %v6145 = vtanh.pop %v6103
      %v6146 = vtanh.pop %v6108
      %v6147 = vtanh.pop %v6111
      %v6148 = vtanh.pop %v6116
      %v6149 = vtanh.pop %v6119
      %v6150 = vtanh.pop %v6124
      %v6151 = vtanh.pop %v6127
      %v6152 = vtanh.pop %v6132
      %v6153 = vtanh.pop %v6135
      %v6154 = vpack.c.bf16 %v6139, %v6138
      %v6155 = vpack.c.bf16 %v6141, %v6140
      %v6156 = vpack.c.bf16 %v6143, %v6142
      %v6157 = vpack.c.bf16 %v6145, %v6144
      %v6158 = vpack.c.bf16 %v6147, %v6146
      %v6159 = vpack.c.bf16 %v6149, %v6148
      %v6160 = vpack.c.bf16 %v6151, %v6150
      %v6161 = vpack.c.bf16 %v6153, %v6152
      %v6162 = vld [vmem:[%s6] sm:$0xff]
      %v6163 = vld [vmem:[%s6 + $0x8] sm:$0xff]
      %v6164 = vld [vmem:[%s6 + $0x10] sm:$0xff]
      %v6165 = vld [vmem:[%s6 + $0x18] sm:$0xff]
      %v6166 = vld [vmem:[%s6 + $0x20] sm:$0xff]
      %v6167 = vld [vmem:[%s6 + $0x28] sm:$0xff]
      %v6168 = vld [vmem:[%s6 + $0x30] sm:$0xff]
      %v6169 = vld [vmem:[%s6 + $0x38] sm:$0xff]
      %v6170 = vld [vmem:[%s6 + $0x40] sm:$0xff]
      %v6171 = vld [vmem:[%s6 + $0x48] sm:$0xff]
      %v6172 = vld [vmem:[%s6 + $0x50] sm:$0xff]
      %v6173 = vld [vmem:[%s6 + $0x58] sm:$0xff]
      %v6174 = vld [vmem:[%s6 + $0x60] sm:$0xff]
      %v6175 = vld [vmem:[%s6 + $0x68] sm:$0xff]
      %v6176 = vld [vmem:[%s6 + $0x70] sm:$0xff]
      %v6177 = vld [vmem:[%s6 + $0x78] sm:$0xff]
      %v6178 = vld [vmem:[%s14] sm:$0x3]
      %v6180 = vlaneseq
      %v6181 = vshrl.u32 %v6180, 7
      %v6182 = vsub.s32 0, %v6181
      %v6183 = vrot.slane %v6178, %v6182
      %v6184 = vlaneseq
      %v6185 = vshrl.u32 %v6184, 7
      %v6186 = vsub.s32 1, %v6185
      %v6187 = vrot.slane %v6178, %v6186
      %v6206 = vunpack.c.l.b16 %v6162
      %v6207 = vunpack.c.h.b16 %v6162
      %v6208 = vunpack.c.l.b16 %v6163
      %v6209 = vunpack.c.h.b16 %v6163
      %v6210 = vunpack.c.l.b16 %v6164
      %v6211 = vunpack.c.h.b16 %v6164
      %v6212 = vunpack.c.l.b16 %v6165
      %v6213 = vunpack.c.h.b16 %v6165
      %v6214 = vunpack.c.l.b16 %v6166
      %v6215 = vunpack.c.h.b16 %v6166
      %v6216 = vunpack.c.l.b16 %v6167
      %v6217 = vunpack.c.h.b16 %v6167
      %v6218 = vunpack.c.l.b16 %v6168
      %v6219 = vunpack.c.h.b16 %v6168
      %v6220 = vunpack.c.l.b16 %v6169
      %v6221 = vunpack.c.h.b16 %v6169
      %v6222 = vunpack.c.l.b16 %v6170
      %v6223 = vunpack.c.h.b16 %v6170
      %v6224 = vunpack.c.l.b16 %v6171
      %v6225 = vunpack.c.h.b16 %v6171
      %v6226 = vunpack.c.l.b16 %v6172
      %v6227 = vunpack.c.h.b16 %v6172
      %v6228 = vunpack.c.l.b16 %v6173
      %v6229 = vunpack.c.h.b16 %v6173
      %v6230 = vunpack.c.l.b16 %v6174
      %v6231 = vunpack.c.h.b16 %v6174
      %v6232 = vunpack.c.l.b16 %v6175
      %v6233 = vunpack.c.h.b16 %v6175
      %v6234 = vunpack.c.l.b16 %v6176
      %v6235 = vunpack.c.h.b16 %v6176
      %v6236 = vunpack.c.l.b16 %v6177
      %v6237 = vunpack.c.h.b16 %v6177
      %v6238 = vpack.c.b16 %v6208, %v6206
      %v6239 = vpack.c.b16 %v6209, %v6207
      %v6240 = vpack.c.b16 %v6212, %v6210
      %v6241 = vpack.c.b16 %v6213, %v6211
      %v6242 = vpack.c.b16 %v6216, %v6214
      %v6243 = vpack.c.b16 %v6217, %v6215
      %v6244 = vpack.c.b16 %v6220, %v6218
      %v6245 = vpack.c.b16 %v6221, %v6219
      %v6246 = vpack.c.b16 %v6224, %v6222
      %v6247 = vpack.c.b16 %v6225, %v6223
      %v6248 = vpack.c.b16 %v6228, %v6226
      %v6249 = vpack.c.b16 %v6229, %v6227
      %v6250 = vpack.c.b16 %v6232, %v6230
      %v6251 = vpack.c.b16 %v6233, %v6231
      %v6252 = vpack.c.b16 %v6236, %v6234
      %v6253 = vpack.c.b16 %v6237, %v6235
      %6270 = vmatprep.subr.bf16.mxu0 %v6253
      %6271 = vmatpush1.bf16.msra.mxu0 %v6252
      %6272 = vmatprep.subr.bf16.mxu0 %v6251
      %6273 = vmatpush1.bf16.msra.mxu0 %v6250
      %6274 = vmatprep.subr.bf16.mxu0 %v6249
      %6275 = vmatpush1.bf16.msra.mxu0 %v6248
      %6276 = vmatprep.subr.bf16.mxu0 %v6247
      %6277 = vmatpush1.bf16.msra.mxu0 %v6246
      %6278 = vmatprep.subr.bf16.mxu0 %v6245
      %6279 = vmatpush1.bf16.msra.mxu0 %v6244
      %6280 = vmatprep.subr.bf16.mxu0 %v6243
      %6281 = vmatpush1.bf16.msra.mxu0 %v6242
      %6282 = vmatprep.subr.bf16.mxu0 %v6241
      %6283 = vmatpush1.bf16.msra.mxu0 %v6240
      %6284 = vmatprep.subr.bf16.mxu0 %v6239
      %6285 = vmatpush1.bf16.msra.mxu0 %v6238
      %6286 = vmatprep.subr.bf16.mxu0 0
      %6287 = vmatpush2.bf16.msra.mxu0 0
      %6288 = vmatprep.subr.bf16.mxu0 0
      %6289 = vmatpush2.bf16.msra.mxu0 0
      %6290 = vmatprep.subr.bf16.mxu0 0
      %6291 = vmatpush2.bf16.msra.mxu0 0
      %6292 = vmatprep.subr.bf16.mxu0 0
      %6293 = vmatpush2.bf16.msra.mxu0 0
      %6294 = vmatprep.subr.bf16.mxu0 0
      %6295 = vmatpush2.bf16.msra.mxu0 0
      %6296 = vmatprep.subr.bf16.mxu0 0
      %6297 = vmatpush2.bf16.msra.mxu0 0
      %6298 = vmatprep.subr.bf16.mxu0 0
      %6299 = vmatpush2.bf16.msra.mxu0 0
      %6300 = vmatprep.subr.bf16.mxu0 0
      %6301 = vmatpush2.bf16.msra.mxu0 0
      %6302 = vmatprep.mubr.bf16.mxu0 0
      %6303 = vmatmul.mubr.bf16.gmra.mxu0 %v6009
      %v6304 = vpop.f32.mrf.mxu0
      %v6305 = vadd.f32 %v6183, %v6304
      %v6306 = vpop.f32.mrf.mxu0
      %v6307 = vadd.f32 %v6187, %v6306
      %v6308 = vpop.f32.mrf.mxu0
      %v6309 = vadd.f32 %v6183, %v6308
      %v6310 = vpop.f32.mrf.mxu0
      %v6311 = vadd.f32 %v6187, %v6310
      %6312 = vmatprep.mubr.bf16.mxu0 0
      %6313 = vmatmul.mubr.bf16.gmra.mxu0 %v6010
      %v6314 = vpop.f32.mrf.mxu0
      %v6315 = vadd.f32 %v6183, %v6314
      %v6316 = vpop.f32.mrf.mxu0
      %v6317 = vadd.f32 %v6187, %v6316
      %v6318 = vpop.f32.mrf.mxu0
      %v6319 = vadd.f32 %v6183, %v6318
      %v6320 = vpop.f32.mrf.mxu0
      %v6321 = vadd.f32 %v6187, %v6320
      %6322 = vmatprep.mubr.bf16.mxu0 0
      %6323 = vmatmul.mubr.bf16.gmra.mxu0 %v6011
      %v6324 = vpop.f32.mrf.mxu0
      %v6325 = vadd.f32 %v6183, %v6324
      %v6326 = vpop.f32.mrf.mxu0
      %v6327 = vadd.f32 %v6187, %v6326
      %v6328 = vpop.f32.mrf.mxu0
      %v6329 = vadd.f32 %v6183, %v6328
      %v6330 = vpop.f32.mrf.mxu0
      %v6331 = vadd.f32 %v6187, %v6330
      %6332 = vmatprep.mubr.bf16.mxu0 0
      %6333 = vmatmul.mubr.bf16.gmra.mxu0 %v6012
      %v6334 = vpop.f32.mrf.mxu0
      %v6335 = vadd.f32 %v6183, %v6334
      %v6336 = vpop.f32.mrf.mxu0
      %v6337 = vadd.f32 %v6187, %v6336
      %v6338 = vpop.f32.mrf.mxu0
      %v6339 = vadd.f32 %v6183, %v6338
      %v6340 = vpop.f32.mrf.mxu0
      %v6341 = vadd.f32 %v6187, %v6340
      %6342 = vmatprep.mubr.bf16.mxu0 0
      %6343 = vmatmul.mubr.bf16.gmra.mxu0 %v6013
      %v6344 = vpop.f32.mrf.mxu0
      %v6345 = vadd.f32 %v6183, %v6344
      %v6346 = vpop.f32.mrf.mxu0
      %v6347 = vadd.f32 %v6187, %v6346
      %v6348 = vpop.f32.mrf.mxu0
      %v6349 = vadd.f32 %v6183, %v6348
      %v6350 = vpop.f32.mrf.mxu0
      %v6351 = vadd.f32 %v6187, %v6350
      %6352 = vmatprep.mubr.bf16.mxu0 0
      %6353 = vmatmul.mubr.bf16.gmra.mxu0 %v6014
      %v6354 = vpop.f32.mrf.mxu0
      %v6355 = vadd.f32 %v6183, %v6354
      %v6356 = vpop.f32.mrf.mxu0
      %v6357 = vadd.f32 %v6187, %v6356
      %v6358 = vpop.f32.mrf.mxu0
      %v6359 = vadd.f32 %v6183, %v6358
      %v6360 = vpop.f32.mrf.mxu0
      %v6361 = vadd.f32 %v6187, %v6360
      %6362 = vmatprep.mubr.bf16.mxu0 0
      %6363 = vmatmul.mubr.bf16.gmra.mxu0 %v6015
      %v6364 = vpop.f32.mrf.mxu0
      %v6365 = vadd.f32 %v6183, %v6364
      %v6366 = vpop.f32.mrf.mxu0
      %v6367 = vadd.f32 %v6187, %v6366
      %v6368 = vpop.f32.mrf.mxu0
      %v6369 = vadd.f32 %v6183, %v6368
      %v6370 = vpop.f32.mrf.mxu0
      %v6371 = vadd.f32 %v6187, %v6370
      %6372 = vmatprep.mubr.bf16.mxu0 0
      %6373 = vmatmul.mubr.bf16.gmra.mxu0 %v6016
      %v6374 = vpop.f32.mrf.mxu0
      %v6375 = vadd.f32 %v6183, %v6374
      %v6376 = vpop.f32.mrf.mxu0
      %v6377 = vadd.f32 %v6187, %v6376
      %v6378 = vpop.f32.mrf.mxu0
      %v6379 = vadd.f32 %v6183, %v6378
      %v6380 = vpop.f32.mrf.mxu0
      %v6381 = vadd.f32 %v6187, %v6380
      %6382 = vdwg.mxu0
      %v6383 = vtanh.pop %v6305
      %v6384 = vtanh.pop %v6307
      %v6385 = vtanh.pop %v6309
      %v6386 = vtanh.pop %v6311
      %v6387 = vtanh.pop %v6315
      %v6388 = vtanh.pop %v6317
      %v6389 = vtanh.pop %v6319
      %v6390 = vtanh.pop %v6321
      %v6391 = vtanh.pop %v6325
      %v6392 = vtanh.pop %v6327
      %v6393 = vtanh.pop %v6329
      %v6394 = vtanh.pop %v6331
      %v6395 = vtanh.pop %v6335
      %v6396 = vtanh.pop %v6337
      %v6397 = vtanh.pop %v6339
      %v6398 = vtanh.pop %v6341
      %v6399 = vtanh.pop %v6345
      %v6400 = vtanh.pop %v6347
      %v6401 = vtanh.pop %v6349
      %v6402 = vtanh.pop %v6351
      %v6403 = vtanh.pop %v6355
      %v6404 = vtanh.pop %v6357
      %v6405 = vtanh.pop %v6359
      %v6406 = vtanh.pop %v6361
      %v6407 = vtanh.pop %v6365
      %v6408 = vtanh.pop %v6367
      %v6409 = vtanh.pop %v6369
      %v6410 = vtanh.pop %v6371
      %v6411 = vtanh.pop %v6375
      %v6412 = vtanh.pop %v6377
      %v6413 = vtanh.pop %v6379
      %v6414 = vtanh.pop %v6381
      %v6415 = vpack.c.bf16 %v6385, %v6383
      %v6416 = vpack.c.bf16 %v6386, %v6384
      %v6417 = vpack.c.bf16 %v6389, %v6387
      %v6418 = vpack.c.bf16 %v6390, %v6388
      %v6419 = vpack.c.bf16 %v6393, %v6391
      %v6420 = vpack.c.bf16 %v6394, %v6392
      %v6421 = vpack.c.bf16 %v6397, %v6395
      %v6422 = vpack.c.bf16 %v6398, %v6396
      %v6423 = vpack.c.bf16 %v6401, %v6399
      %v6424 = vpack.c.bf16 %v6402, %v6400
      %v6425 = vpack.c.bf16 %v6405, %v6403
      %v6426 = vpack.c.bf16 %v6406, %v6404
      %v6427 = vpack.c.bf16 %v6409, %v6407
      %v6428 = vpack.c.bf16 %v6410, %v6408
      %v6429 = vpack.c.bf16 %v6413, %v6411
      %v6430 = vpack.c.bf16 %v6414, %v6412
      %6431 = vmatprep.subr.bf16.mxu0 %v6253
      %6432 = vmatpush1.bf16.msra.mxu0 %v6252
      %6433 = vmatprep.subr.bf16.mxu0 %v6251
      %6434 = vmatpush1.bf16.msra.mxu0 %v6250
      %6435 = vmatprep.subr.bf16.mxu0 %v6249
      %6436 = vmatpush1.bf16.msra.mxu0 %v6248
      %6437 = vmatprep.subr.bf16.mxu0 %v6247
      %6438 = vmatpush1.bf16.msra.mxu0 %v6246
      %6439 = vmatprep.subr.bf16.mxu0 %v6245
      %6440 = vmatpush1.bf16.msra.mxu0 %v6244
      %6441 = vmatprep.subr.bf16.mxu0 %v6243
      %6442 = vmatpush1.bf16.msra.mxu0 %v6242
      %6443 = vmatprep.subr.bf16.mxu0 %v6241
      %6444 = vmatpush1.bf16.msra.mxu0 %v6240
      %6445 = vmatprep.subr.bf16.mxu0 %v6239
      %6446 = vmatpush1.bf16.msra.mxu0 %v6238
      %6447 = vmatprep.subr.bf16.mxu0 0
      %6448 = vmatpush2.bf16.msra.mxu0 0
      %6449 = vmatprep.subr.bf16.mxu0 0
      %6450 = vmatpush2.bf16.msra.mxu0 0
      %6451 = vmatprep.subr.bf16.mxu0 0
      %6452 = vmatpush2.bf16.msra.mxu0 0
      %6453 = vmatprep.subr.bf16.mxu0 0
      %6454 = vmatpush2.bf16.msra.mxu0 0
      %6455 = vmatprep.subr.bf16.mxu0 0
      %6456 = vmatpush2.bf16.msra.mxu0 0
      %6457 = vmatprep.subr.bf16.mxu0 0
      %6458 = vmatpush2.bf16.msra.mxu0 0
      %6459 = vmatprep.subr.bf16.mxu0 0
      %6460 = vmatpush2.bf16.msra.mxu0 0
      %6461 = vmatprep.subr.bf16.mxu0 0
      %6462 = vmatpush2.bf16.msra.mxu0 0
      %6463 = vmatprep.mubr.bf16.mxu0 0
      %6464 = vmatmul.mubr.bf16.gmra.mxu0 %v6154
      %v6465 = vpop.f32.mrf.mxu0
      %v6466 = vadd.f32 %v6183, %v6465
      %v6467 = vpop.f32.mrf.mxu0
      %v6468 = vadd.f32 %v6187, %v6467
      %v6469 = vpop.f32.mrf.mxu0
      %v6470 = vadd.f32 %v6183, %v6469
      %v6471 = vpop.f32.mrf.mxu0
      %v6472 = vadd.f32 %v6187, %v6471
      %6473 = vmatprep.mubr.bf16.mxu0 0
      %6474 = vmatmul.mubr.bf16.gmra.mxu0 %v6155
      %v6475 = vpop.f32.mrf.mxu0
      %v6476 = vadd.f32 %v6183, %v6475
      %v6477 = vpop.f32.mrf.mxu0
      %v6478 = vadd.f32 %v6187, %v6477
      %v6479 = vpop.f32.mrf.mxu0
      %v6480 = vadd.f32 %v6183, %v6479
      %v6481 = vpop.f32.mrf.mxu0
      %v6482 = vadd.f32 %v6187, %v6481
      %6483 = vmatprep.mubr.bf16.mxu0 0
      %6484 = vmatmul.mubr.bf16.gmra.mxu0 %v6156
      %v6485 = vpop.f32.mrf.mxu0
      %v6486 = vadd.f32 %v6183, %v6485
      %v6487 = vpop.f32.mrf.mxu0
      %v6488 = vadd.f32 %v6187, %v6487
      %v6489 = vpop.f32.mrf.mxu0
      %v6490 = vadd.f32 %v6183, %v6489
      %v6491 = vpop.f32.mrf.mxu0
      %v6492 = vadd.f32 %v6187, %v6491
      %6493 = vmatprep.mubr.bf16.mxu0 0
      %6494 = vmatmul.mubr.bf16.gmra.mxu0 %v6157
      %v6495 = vpop.f32.mrf.mxu0
      %v6496 = vadd.f32 %v6183, %v6495
      %v6497 = vpop.f32.mrf.mxu0
      %v6498 = vadd.f32 %v6187, %v6497
      %v6499 = vpop.f32.mrf.mxu0
      %v6500 = vadd.f32 %v6183, %v6499
      %v6501 = vpop.f32.mrf.mxu0
      %v6502 = vadd.f32 %v6187, %v6501
      %6503 = vmatprep.mubr.bf16.mxu0 0
      %6504 = vmatmul.mubr.bf16.gmra.mxu0 %v6158
      %v6505 = vpop.f32.mrf.mxu0
      %v6506 = vadd.f32 %v6183, %v6505
      %v6507 = vpop.f32.mrf.mxu0
      %v6508 = vadd.f32 %v6187, %v6507
      %v6509 = vpop.f32.mrf.mxu0
      %v6510 = vadd.f32 %v6183, %v6509
      %v6511 = vpop.f32.mrf.mxu0
      %v6512 = vadd.f32 %v6187, %v6511
      %6513 = vmatprep.mubr.bf16.mxu0 0
      %6514 = vmatmul.mubr.bf16.gmra.mxu0 %v6159
      %v6515 = vpop.f32.mrf.mxu0
      %v6516 = vadd.f32 %v6183, %v6515
      %v6517 = vpop.f32.mrf.mxu0
      %v6518 = vadd.f32 %v6187, %v6517
      %v6519 = vpop.f32.mrf.mxu0
      %v6520 = vadd.f32 %v6183, %v6519
      %v6521 = vpop.f32.mrf.mxu0
      %v6522 = vadd.f32 %v6187, %v6521
      %6523 = vmatprep.mubr.bf16.mxu0 0
      %6524 = vmatmul.mubr.bf16.gmra.mxu0 %v6160
      %v6525 = vpop.f32.mrf.mxu0
      %v6526 = vadd.f32 %v6183, %v6525
      %v6527 = vpop.f32.mrf.mxu0
      %v6528 = vadd.f32 %v6187, %v6527
      %v6529 = vpop.f32.mrf.mxu0
      %v6530 = vadd.f32 %v6183, %v6529
      %v6531 = vpop.f32.mrf.mxu0
      %v6532 = vadd.f32 %v6187, %v6531
      %6533 = vmatprep.mubr.bf16.mxu0 0
      %6534 = vmatmul.mubr.bf16.gmra.mxu0 %v6161
      %v6535 = vpop.f32.mrf.mxu0
      %v6536 = vadd.f32 %v6183, %v6535
      %v6537 = vpop.f32.mrf.mxu0
      %v6538 = vadd.f32 %v6187, %v6537
      %v6539 = vpop.f32.mrf.mxu0
      %v6540 = vadd.f32 %v6183, %v6539
      %v6541 = vpop.f32.mrf.mxu0
      %v6542 = vadd.f32 %v6187, %v6541
      %6543 = vdwg.mxu0
      %v6544 = vtanh.pop %v6466
      %v6545 = vtanh.pop %v6468
      %v6546 = vtanh.pop %v6470
      %v6547 = vtanh.pop %v6472
      %v6548 = vtanh.pop %v6476
      %v6549 = vtanh.pop %v6478
      %v6550 = vtanh.pop %v6480
      %v6551 = vtanh.pop %v6482
      %v6552 = vtanh.pop %v6486
      %v6553 = vtanh.pop %v6488
      %v6554 = vtanh.pop %v6490
      %v6555 = vtanh.pop %v6492
      %v6556 = vtanh.pop %v6496
      %v6557 = vtanh.pop %v6498
      %v6558 = vtanh.pop %v6500
      %v6559 = vtanh.pop %v6502
      %v6560 = vtanh.pop %v6506
      %v6561 = vtanh.pop %v6508
      %v6562 = vtanh.pop %v6510
      %v6563 = vtanh.pop %v6512
      %v6564 = vtanh.pop %v6516
      %v6565 = vtanh.pop %v6518
      %v6566 = vtanh.pop %v6520
      %v6567 = vtanh.pop %v6522
      %v6568 = vtanh.pop %v6526
      %v6569 = vtanh.pop %v6528
      %v6570 = vtanh.pop %v6530
      %v6571 = vtanh.pop %v6532
      %v6572 = vtanh.pop %v6536
      %v6573 = vtanh.pop %v6538
      %v6574 = vtanh.pop %v6540
      %v6575 = vtanh.pop %v6542
      %v6576 = vpack.c.bf16 %v6546, %v6544
      %v6577 = vpack.c.bf16 %v6547, %v6545
      %v6578 = vpack.c.bf16 %v6550, %v6548
      %v6579 = vpack.c.bf16 %v6551, %v6549
      %v6580 = vpack.c.bf16 %v6554, %v6552
      %v6581 = vpack.c.bf16 %v6555, %v6553
      %v6582 = vpack.c.bf16 %v6558, %v6556
      %v6583 = vpack.c.bf16 %v6559, %v6557
      %v6584 = vpack.c.bf16 %v6562, %v6560
      %v6585 = vpack.c.bf16 %v6563, %v6561
      %v6586 = vpack.c.bf16 %v6566, %v6564
      %v6587 = vpack.c.bf16 %v6567, %v6565
      %v6588 = vpack.c.bf16 %v6570, %v6568
      %v6589 = vpack.c.bf16 %v6571, %v6569
      %v6590 = vpack.c.bf16 %v6574, %v6572
      %v6591 = vpack.c.bf16 %v6575, %v6573
      %v6592 = vld [vmem:[%s7] sm:$0xff]
      %v6593 = vld [vmem:[%s7 + $0x8] sm:$0xff]
      %v6594 = vld [vmem:[%s7 + $0x10] sm:$0xff]
      %v6595 = vld [vmem:[%s7 + $0x18] sm:$0xff]
      %v6596 = vld [vmem:[%s7 + $0x20] sm:$0xff]
      %v6597 = vld [vmem:[%s7 + $0x28] sm:$0xff]
      %v6598 = vld [vmem:[%s7 + $0x30] sm:$0xff]
      %v6599 = vld [vmem:[%s7 + $0x38] sm:$0xff]
      %v6600 = vld [vmem:[%s7 + $0x40] sm:$0xff]
      %v6601 = vld [vmem:[%s7 + $0x48] sm:$0xff]
      %v6602 = vld [vmem:[%s7 + $0x50] sm:$0xff]
      %v6603 = vld [vmem:[%s7 + $0x58] sm:$0xff]
      %v6604 = vld [vmem:[%s7 + $0x60] sm:$0xff]
      %v6605 = vld [vmem:[%s7 + $0x68] sm:$0xff]
      %v6606 = vld [vmem:[%s7 + $0x70] sm:$0xff]
      %v6607 = vld [vmem:[%s7 + $0x78] sm:$0xff]
      %v6608 = vld [vmem:[%s7 + $0x80] sm:$0xff]
      %v6609 = vld [vmem:[%s7 + $0x88] sm:$0xff]
      %v6610 = vld [vmem:[%s7 + $0x90] sm:$0xff]
      %v6611 = vld [vmem:[%s7 + $0x98] sm:$0xff]
      %v6612 = vld [vmem:[%s7 + $0xa0] sm:$0xff]
      %v6613 = vld [vmem:[%s7 + $0xa8] sm:$0xff]
      %v6614 = vld [vmem:[%s7 + $0xb0] sm:$0xff]
      %v6615 = vld [vmem:[%s7 + $0xb8] sm:$0xff]
      %v6616 = vld [vmem:[%s7 + $0xc0] sm:$0xff]
      %v6617 = vld [vmem:[%s7 + $0xc8] sm:$0xff]
      %v6618 = vld [vmem:[%s7 + $0xd0] sm:$0xff]
      %v6619 = vld [vmem:[%s7 + $0xd8] sm:$0xff]
      %v6620 = vld [vmem:[%s7 + $0xe0] sm:$0xff]
      %v6621 = vld [vmem:[%s7 + $0xe8] sm:$0xff]
      %v6622 = vld [vmem:[%s7 + $0xf0] sm:$0xff]
      %v6623 = vld [vmem:[%s7 + $0xf8] sm:$0xff]
      %v6624 = vld [vmem:[%s7 + $0x100] sm:$0xff]
      %v6625 = vld [vmem:[%s7 + $0x108] sm:$0xff]
      %v6626 = vld [vmem:[%s7 + $0x110] sm:$0xff]
      %v6627 = vld [vmem:[%s7 + $0x118] sm:$0xff]
      %v6628 = vld [vmem:[%s7 + $0x120] sm:$0xff]
      %v6629 = vld [vmem:[%s7 + $0x128] sm:$0xff]
      %v6630 = vld [vmem:[%s7 + $0x130] sm:$0xff]
      %v6631 = vld [vmem:[%s7 + $0x138] sm:$0xff]
      %v6632 = vld [vmem:[%s7 + $0x140] sm:$0xff]
      %v6633 = vld [vmem:[%s7 + $0x148] sm:$0xff]
      %v6634 = vld [vmem:[%s7 + $0x150] sm:$0xff]
      %v6635 = vld [vmem:[%s7 + $0x158] sm:$0xff]
      %v6636 = vld [vmem:[%s7 + $0x160] sm:$0xff]
      %v6637 = vld [vmem:[%s7 + $0x168] sm:$0xff]
      %v6638 = vld [vmem:[%s7 + $0x170] sm:$0xff]
      %v6639 = vld [vmem:[%s7 + $0x178] sm:$0xff]
      %v6640 = vld [vmem:[%s7 + $0x180] sm:$0xff]
      %v6641 = vld [vmem:[%s7 + $0x188] sm:$0xff]
      %v6642 = vld [vmem:[%s7 + $0x190] sm:$0xff]
      %v6643 = vld [vmem:[%s7 + $0x198] sm:$0xff]
      %v6644 = vld [vmem:[%s7 + $0x1a0] sm:$0xff]
      %v6645 = vld [vmem:[%s7 + $0x1a8] sm:$0xff]
      %v6646 = vld [vmem:[%s7 + $0x1b0] sm:$0xff]
      %v6647 = vld [vmem:[%s7 + $0x1b8] sm:$0xff]
      %v6648 = vld [vmem:[%s7 + $0x1c0] sm:$0xff]
      %v6649 = vld [vmem:[%s7 + $0x1c8] sm:$0xff]
      %v6650 = vld [vmem:[%s7 + $0x1d0] sm:$0xff]
      %v6651 = vld [vmem:[%s7 + $0x1d8] sm:$0xff]
      %v6652 = vld [vmem:[%s7 + $0x1e0] sm:$0xff]
      %v6653 = vld [vmem:[%s7 + $0x1e8] sm:$0xff]
      %v6654 = vld [vmem:[%s7 + $0x1f0] sm:$0xff]
      %v6655 = vld [vmem:[%s7 + $0x1f8] sm:$0xff]
      %v6656 = vld [vmem:[%s15] sm:$0xf]
      %v6658 = vlaneseq
      %v6659 = vshrl.u32 %v6658, 7
      %v6660 = vsub.s32 0, %v6659
      %v6661 = vrot.slane %v6656, %v6660
      %v6662 = vlaneseq
      %v6663 = vshrl.u32 %v6662, 7
      %v6664 = vsub.s32 1, %v6663
      %v6665 = vrot.slane %v6656, %v6664
      %v6666 = vlaneseq
      %v6667 = vshrl.u32 %v6666, 7
      %v6668 = vsub.s32 2, %v6667
      %v6669 = vrot.slane %v6656, %v6668
      %v6670 = vlaneseq
      %v6671 = vshrl.u32 %v6670, 7
      %v6672 = vsub.s32 3, %v6671
      %v6673 = vrot.slane %v6656, %v6672
      %v6742 = vunpack.c.l.b16 %v6592
      %v6743 = vunpack.c.h.b16 %v6592
      %v6744 = vunpack.c.l.b16 %v6593
      %v6745 = vunpack.c.h.b16 %v6593
      %v6746 = vunpack.c.l.b16 %v6594
      %v6747 = vunpack.c.h.b16 %v6594
      %v6748 = vunpack.c.l.b16 %v6595
      %v6749 = vunpack.c.h.b16 %v6595
      %v6750 = vunpack.c.l.b16 %v6596
      %v6751 = vunpack.c.h.b16 %v6596
      %v6752 = vunpack.c.l.b16 %v6597
      %v6753 = vunpack.c.h.b16 %v6597
      %v6754 = vunpack.c.l.b16 %v6598
      %v6755 = vunpack.c.h.b16 %v6598
      %v6756 = vunpack.c.l.b16 %v6599
      %v6757 = vunpack.c.h.b16 %v6599
      %v6758 = vunpack.c.l.b16 %v6600
      %v6759 = vunpack.c.h.b16 %v6600
      %v6760 = vunpack.c.l.b16 %v6601
      %v6761 = vunpack.c.h.b16 %v6601
      %v6762 = vunpack.c.l.b16 %v6602
      %v6763 = vunpack.c.h.b16 %v6602
      %v6764 = vunpack.c.l.b16 %v6603
      %v6765 = vunpack.c.h.b16 %v6603
      %v6766 = vunpack.c.l.b16 %v6604
      %v6767 = vunpack.c.h.b16 %v6604
      %v6768 = vunpack.c.l.b16 %v6605
      %v6769 = vunpack.c.h.b16 %v6605
      %v6770 = vunpack.c.l.b16 %v6606
      %v6771 = vunpack.c.h.b16 %v6606
      %v6772 = vunpack.c.l.b16 %v6607
      %v6773 = vunpack.c.h.b16 %v6607
      %v6774 = vunpack.c.l.b16 %v6608
      %v6775 = vunpack.c.h.b16 %v6608
      %v6776 = vunpack.c.l.b16 %v6609
      %v6777 = vunpack.c.h.b16 %v6609
      %v6778 = vunpack.c.l.b16 %v6610
      %v6779 = vunpack.c.h.b16 %v6610
      %v6780 = vunpack.c.l.b16 %v6611
      %v6781 = vunpack.c.h.b16 %v6611
      %v6782 = vunpack.c.l.b16 %v6612
      %v6783 = vunpack.c.h.b16 %v6612
      %v6784 = vunpack.c.l.b16 %v6613
      %v6785 = vunpack.c.h.b16 %v6613
      %v6786 = vunpack.c.l.b16 %v6614
      %v6787 = vunpack.c.h.b16 %v6614
      %v6788 = vunpack.c.l.b16 %v6615
      %v6789 = vunpack.c.h.b16 %v6615
      %v6790 = vunpack.c.l.b16 %v6616
      %v6791 = vunpack.c.h.b16 %v6616
      %v6792 = vunpack.c.l.b16 %v6617
      %v6793 = vunpack.c.h.b16 %v6617
      %v6794 = vunpack.c.l.b16 %v6618
      %v6795 = vunpack.c.h.b16 %v6618
      %v6796 = vunpack.c.l.b16 %v6619
      %v6797 = vunpack.c.h.b16 %v6619
      %v6798 = vunpack.c.l.b16 %v6620
      %v6799 = vunpack.c.h.b16 %v6620
      %v6800 = vunpack.c.l.b16 %v6621
      %v6801 = vunpack.c.h.b16 %v6621
      %v6802 = vunpack.c.l.b16 %v6622
      %v6803 = vunpack.c.h.b16 %v6622
      %v6804 = vunpack.c.l.b16 %v6623
      %v6805 = vunpack.c.h.b16 %v6623
      %v6806 = vunpack.c.l.b16 %v6624
      %v6807 = vunpack.c.h.b16 %v6624
      %v6808 = vunpack.c.l.b16 %v6625
      %v6809 = vunpack.c.h.b16 %v6625
      %v6810 = vunpack.c.l.b16 %v6626
      %v6811 = vunpack.c.h.b16 %v6626
      %v6812 = vunpack.c.l.b16 %v6627
      %v6813 = vunpack.c.h.b16 %v6627
      %v6814 = vunpack.c.l.b16 %v6628
      %v6815 = vunpack.c.h.b16 %v6628
      %v6816 = vunpack.c.l.b16 %v6629
      %v6817 = vunpack.c.h.b16 %v6629
      %v6818 = vunpack.c.l.b16 %v6630
      %v6819 = vunpack.c.h.b16 %v6630
      %v6820 = vunpack.c.l.b16 %v6631
      %v6821 = vunpack.c.h.b16 %v6631
      %v6822 = vunpack.c.l.b16 %v6632
      %v6823 = vunpack.c.h.b16 %v6632
      %v6824 = vunpack.c.l.b16 %v6633
      %v6825 = vunpack.c.h.b16 %v6633
      %v6826 = vunpack.c.l.b16 %v6634
      %v6827 = vunpack.c.h.b16 %v6634
      %v6828 = vunpack.c.l.b16 %v6635
      %v6829 = vunpack.c.h.b16 %v6635
      %v6830 = vunpack.c.l.b16 %v6636
      %v6831 = vunpack.c.h.b16 %v6636
      %v6832 = vunpack.c.l.b16 %v6637
      %v6833 = vunpack.c.h.b16 %v6637
      %v6834 = vunpack.c.l.b16 %v6638
      %v6835 = vunpack.c.h.b16 %v6638
      %v6836 = vunpack.c.l.b16 %v6639
      %v6837 = vunpack.c.h.b16 %v6639
      %v6838 = vunpack.c.l.b16 %v6640
      %v6839 = vunpack.c.h.b16 %v6640
      %v6840 = vunpack.c.l.b16 %v6641
      %v6841 = vunpack.c.h.b16 %v6641
      %v6842 = vunpack.c.l.b16 %v6642
      %v6843 = vunpack.c.h.b16 %v6642
      %v6844 = vunpack.c.l.b16 %v6643
      %v6845 = vunpack.c.h.b16 %v6643
      %v6846 = vunpack.c.l.b16 %v6644
      %v6847 = vunpack.c.h.b16 %v6644
      %v6848 = vunpack.c.l.b16 %v6645
      %v6849 = vunpack.c.h.b16 %v6645
      %v6850 = vunpack.c.l.b16 %v6646
      %v6851 = vunpack.c.h.b16 %v6646
      %v6852 = vunpack.c.l.b16 %v6647
      %v6853 = vunpack.c.h.b16 %v6647
      %v6854 = vunpack.c.l.b16 %v6648
      %v6855 = vunpack.c.h.b16 %v6648
      %v6856 = vunpack.c.l.b16 %v6649
      %v6857 = vunpack.c.h.b16 %v6649
      %v6858 = vunpack.c.l.b16 %v6650
      %v6859 = vunpack.c.h.b16 %v6650
      %v6860 = vunpack.c.l.b16 %v6651
      %v6861 = vunpack.c.h.b16 %v6651
      %v6862 = vunpack.c.l.b16 %v6652
      %v6863 = vunpack.c.h.b16 %v6652
      %v6864 = vunpack.c.l.b16 %v6653
      %v6865 = vunpack.c.h.b16 %v6653
      %v6866 = vunpack.c.l.b16 %v6654
      %v6867 = vunpack.c.h.b16 %v6654
      %v6868 = vunpack.c.l.b16 %v6655
      %v6869 = vunpack.c.h.b16 %v6655
      %v6870 = vpack.c.b16 %v6746, %v6742
      %v6871 = vpack.c.b16 %v6747, %v6743
      %v6872 = vpack.c.b16 %v6748, %v6744
      %v6873 = vpack.c.b16 %v6749, %v6745
      %v6874 = vpack.c.b16 %v6754, %v6750
      %v6875 = vpack.c.b16 %v6755, %v6751
      %v6876 = vpack.c.b16 %v6756, %v6752
      %v6877 = vpack.c.b16 %v6757, %v6753
      %v6878 = vpack.c.b16 %v6762, %v6758
      %v6879 = vpack.c.b16 %v6763, %v6759
      %v6880 = vpack.c.b16 %v6764, %v6760
      %v6881 = vpack.c.b16 %v6765, %v6761
      %v6882 = vpack.c.b16 %v6770, %v6766
      %v6883 = vpack.c.b16 %v6771, %v6767
      %v6884 = vpack.c.b16 %v6772, %v6768
      %v6885 = vpack.c.b16 %v6773, %v6769
      %v6886 = vpack.c.b16 %v6778, %v6774
      %v6887 = vpack.c.b16 %v6779, %v6775
      %v6888 = vpack.c.b16 %v6780, %v6776
      %v6889 = vpack.c.b16 %v6781, %v6777
      %v6890 = vpack.c.b16 %v6786, %v6782
      %v6891 = vpack.c.b16 %v6787, %v6783
      %v6892 = vpack.c.b16 %v6788, %v6784
      %v6893 = vpack.c.b16 %v6789, %v6785
      %v6894 = vpack.c.b16 %v6794, %v6790
      %v6895 = vpack.c.b16 %v6795, %v6791
      %v6896 = vpack.c.b16 %v6796, %v6792
      %v6897 = vpack.c.b16 %v6797, %v6793
      %v6898 = vpack.c.b16 %v6802, %v6798
      %v6899 = vpack.c.b16 %v6803, %v6799
      %v6900 = vpack.c.b16 %v6804, %v6800
      %v6901 = vpack.c.b16 %v6805, %v6801
      %v6902 = vpack.c.b16 %v6810, %v6806
      %v6903 = vpack.c.b16 %v6811, %v6807
      %v6904 = vpack.c.b16 %v6812, %v6808
      %v6905 = vpack.c.b16 %v6813, %v6809
      %v6906 = vpack.c.b16 %v6818, %v6814
      %v6907 = vpack.c.b16 %v6819, %v6815
      %v6908 = vpack.c.b16 %v6820, %v6816
      %v6909 = vpack.c.b16 %v6821, %v6817
      %v6910 = vpack.c.b16 %v6826, %v6822
      %v6911 = vpack.c.b16 %v6827, %v6823
      %v6912 = vpack.c.b16 %v6828, %v6824
      %v6913 = vpack.c.b16 %v6829, %v6825
      %v6914 = vpack.c.b16 %v6834, %v6830
      %v6915 = vpack.c.b16 %v6835, %v6831
      %v6916 = vpack.c.b16 %v6836, %v6832
      %v6917 = vpack.c.b16 %v6837, %v6833
      %v6918 = vpack.c.b16 %v6842, %v6838
      %v6919 = vpack.c.b16 %v6843, %v6839
      %v6920 = vpack.c.b16 %v6844, %v6840
      %v6921 = vpack.c.b16 %v6845, %v6841
      %v6922 = vpack.c.b16 %v6850, %v6846
      %v6923 = vpack.c.b16 %v6851, %v6847
      %v6924 = vpack.c.b16 %v6852, %v6848
      %v6925 = vpack.c.b16 %v6853, %v6849
      %v6926 = vpack.c.b16 %v6858, %v6854
      %v6927 = vpack.c.b16 %v6859, %v6855
      %v6928 = vpack.c.b16 %v6860, %v6856
      %v6929 = vpack.c.b16 %v6861, %v6857
      %v6930 = vpack.c.b16 %v6866, %v6862
      %v6931 = vpack.c.b16 %v6867, %v6863
      %v6932 = vpack.c.b16 %v6868, %v6864
      %v6933 = vpack.c.b16 %v6869, %v6865
      %6998 = vmatprep.subr.bf16.mxu0 %v6899
      %6999 = vmatpush1.bf16.msra.mxu0 %v6898
      %7000 = vmatprep.subr.bf16.mxu0 %v6895
      %7001 = vmatpush1.bf16.msra.mxu0 %v6894
      %7002 = vmatprep.subr.bf16.mxu0 %v6891
      %7003 = vmatpush1.bf16.msra.mxu0 %v6890
      %7004 = vmatprep.subr.bf16.mxu0 %v6887
      %7005 = vmatpush1.bf16.msra.mxu0 %v6886
      %7006 = vmatprep.subr.bf16.mxu0 %v6883
      %7007 = vmatpush1.bf16.msra.mxu0 %v6882
      %7008 = vmatprep.subr.bf16.mxu0 %v6879
      %7009 = vmatpush1.bf16.msra.mxu0 %v6878
      %7010 = vmatprep.subr.bf16.mxu0 %v6875
      %7011 = vmatpush1.bf16.msra.mxu0 %v6874
      %7012 = vmatprep.subr.bf16.mxu0 %v6871
      %7013 = vmatpush1.bf16.msra.mxu0 %v6870
      %7014 = vmatprep.subr.bf16.mxu0 %v6931
      %7015 = vmatpush2.bf16.msra.mxu0 %v6930
      %7016 = vmatprep.subr.bf16.mxu0 %v6927
      %7017 = vmatpush2.bf16.msra.mxu0 %v6926
      %7018 = vmatprep.subr.bf16.mxu0 %v6923
      %7019 = vmatpush2.bf16.msra.mxu0 %v6922
      %7020 = vmatprep.subr.bf16.mxu0 %v6919
      %7021 = vmatpush2.bf16.msra.mxu0 %v6918
      %7022 = vmatprep.subr.bf16.mxu0 %v6915
      %7023 = vmatpush2.bf16.msra.mxu0 %v6914
      %7024 = vmatprep.subr.bf16.mxu0 %v6911
      %7025 = vmatpush2.bf16.msra.mxu0 %v6910
      %7026 = vmatprep.subr.bf16.mxu0 %v6907
      %7027 = vmatpush2.bf16.msra.mxu0 %v6906
      %7028 = vmatprep.subr.bf16.mxu0 %v6903
      %7029 = vmatpush2.bf16.msra.mxu0 %v6902
      %7030 = vmatprep.mubr.bf16.mxu0 %v6416
      %7031 = vmatmul.mubr.bf16.gmra.mxu0 %v6415
      %v7032 = vpop.f32.mrf.mxu0
      %v7033 = vadd.f32 %v6661, %v7032
      %v7034 = vpop.f32.mrf.mxu0
      %v7035 = vadd.f32 %v6665, %v7034
      %v7036 = vpop.f32.mrf.mxu0
      %v7037 = vadd.f32 %v6661, %v7036
      %v7038 = vpop.f32.mrf.mxu0
      %v7039 = vadd.f32 %v6665, %v7038
      %7040 = vmatprep.mubr.bf16.mxu0 %v6418
      %7041 = vmatmul.mubr.bf16.gmra.mxu0 %v6417
      %v7042 = vpop.f32.mrf.mxu0
      %v7043 = vadd.f32 %v6661, %v7042
      %v7044 = vpop.f32.mrf.mxu0
      %v7045 = vadd.f32 %v6665, %v7044
      %v7046 = vpop.f32.mrf.mxu0
      %v7047 = vadd.f32 %v6661, %v7046
      %v7048 = vpop.f32.mrf.mxu0
      %v7049 = vadd.f32 %v6665, %v7048
      %7050 = vmatprep.mubr.bf16.mxu0 %v6420
      %7051 = vmatmul.mubr.bf16.gmra.mxu0 %v6419
      %v7052 = vpop.f32.mrf.mxu0
      %v7053 = vadd.f32 %v6661, %v7052
      %v7054 = vpop.f32.mrf.mxu0
      %v7055 = vadd.f32 %v6665, %v7054
      %v7056 = vpop.f32.mrf.mxu0
      %v7057 = vadd.f32 %v6661, %v7056
      %v7058 = vpop.f32.mrf.mxu0
      %v7059 = vadd.f32 %v6665, %v7058
      %7060 = vmatprep.mubr.bf16.mxu0 %v6422
      %7061 = vmatmul.mubr.bf16.gmra.mxu0 %v6421
      %v7062 = vpop.f32.mrf.mxu0
      %v7063 = vadd.f32 %v6661, %v7062
      %v7064 = vpop.f32.mrf.mxu0
      %v7065 = vadd.f32 %v6665, %v7064
      %v7066 = vpop.f32.mrf.mxu0
      %v7067 = vadd.f32 %v6661, %v7066
      %v7068 = vpop.f32.mrf.mxu0
      %v7069 = vadd.f32 %v6665, %v7068
      %7070 = vmatprep.mubr.bf16.mxu0 %v6424
      %7071 = vmatmul.mubr.bf16.gmra.mxu0 %v6423
      %v7072 = vpop.f32.mrf.mxu0
      %v7073 = vadd.f32 %v6661, %v7072
      %v7074 = vpop.f32.mrf.mxu0
      %v7075 = vadd.f32 %v6665, %v7074
      %v7076 = vpop.f32.mrf.mxu0
      %v7077 = vadd.f32 %v6661, %v7076
      %v7078 = vpop.f32.mrf.mxu0
      %v7079 = vadd.f32 %v6665, %v7078
      %7080 = vmatprep.mubr.bf16.mxu0 %v6426
      %7081 = vmatmul.mubr.bf16.gmra.mxu0 %v6425
      %v7082 = vpop.f32.mrf.mxu0
      %v7083 = vadd.f32 %v6661, %v7082
      %v7084 = vpop.f32.mrf.mxu0
      %v7085 = vadd.f32 %v6665, %v7084
      %v7086 = vpop.f32.mrf.mxu0
      %v7087 = vadd.f32 %v6661, %v7086
      %v7088 = vpop.f32.mrf.mxu0
      %v7089 = vadd.f32 %v6665, %v7088
      %7090 = vmatprep.mubr.bf16.mxu0 %v6428
      %7091 = vmatmul.mubr.bf16.gmra.mxu0 %v6427
      %v7092 = vpop.f32.mrf.mxu0
      %v7093 = vadd.f32 %v6661, %v7092
      %v7094 = vpop.f32.mrf.mxu0
      %v7095 = vadd.f32 %v6665, %v7094
      %v7096 = vpop.f32.mrf.mxu0
      %v7097 = vadd.f32 %v6661, %v7096
      %v7098 = vpop.f32.mrf.mxu0
      %v7099 = vadd.f32 %v6665, %v7098
      %7100 = vmatprep.mubr.bf16.mxu0 %v6430
      %7101 = vmatmul.mubr.bf16.gmra.mxu0 %v6429
      %v7102 = vpop.f32.mrf.mxu0
      %v7103 = vadd.f32 %v6661, %v7102
      %v7104 = vpop.f32.mrf.mxu0
      %v7105 = vadd.f32 %v6665, %v7104
      %v7106 = vpop.f32.mrf.mxu0
      %v7107 = vadd.f32 %v6661, %v7106
      %v7108 = vpop.f32.mrf.mxu0
      %v7109 = vadd.f32 %v6665, %v7108
      %7110 = vdwg.mxu0
      %7111 = vmatprep.subr.bf16.mxu0 %v6901
      %7112 = vmatpush1.bf16.msra.mxu0 %v6900
      %7113 = vmatprep.subr.bf16.mxu0 %v6897
      %7114 = vmatpush1.bf16.msra.mxu0 %v6896
      %7115 = vmatprep.subr.bf16.mxu0 %v6893
      %7116 = vmatpush1.bf16.msra.mxu0 %v6892
      %7117 = vmatprep.subr.bf16.mxu0 %v6889
      %7118 = vmatpush1.bf16.msra.mxu0 %v6888
      %7119 = vmatprep.subr.bf16.mxu0 %v6885
      %7120 = vmatpush1.bf16.msra.mxu0 %v6884
      %7121 = vmatprep.subr.bf16.mxu0 %v6881
      %7122 = vmatpush1.bf16.msra.mxu0 %v6880
      %7123 = vmatprep.subr.bf16.mxu0 %v6877
      %7124 = vmatpush1.bf16.msra.mxu0 %v6876
      %7125 = vmatprep.subr.bf16.mxu0 %v6873
      %7126 = vmatpush1.bf16.msra.mxu0 %v6872
      %7127 = vmatprep.subr.bf16.mxu0 %v6933
      %7128 = vmatpush2.bf16.msra.mxu0 %v6932
      %7129 = vmatprep.subr.bf16.mxu0 %v6929
      %7130 = vmatpush2.bf16.msra.mxu0 %v6928
      %7131 = vmatprep.subr.bf16.mxu0 %v6925
      %7132 = vmatpush2.bf16.msra.mxu0 %v6924
      %7133 = vmatprep.subr.bf16.mxu0 %v6921
      %7134 = vmatpush2.bf16.msra.mxu0 %v6920
      %7135 = vmatprep.subr.bf16.mxu0 %v6917
      %7136 = vmatpush2.bf16.msra.mxu0 %v6916
      %7137 = vmatprep.subr.bf16.mxu0 %v6913
      %7138 = vmatpush2.bf16.msra.mxu0 %v6912
      %7139 = vmatprep.subr.bf16.mxu0 %v6909
      %7140 = vmatpush2.bf16.msra.mxu0 %v6908
      %7141 = vmatprep.subr.bf16.mxu0 %v6905
      %7142 = vmatpush2.bf16.msra.mxu0 %v6904
      %7143 = vmatprep.mubr.bf16.mxu0 %v6416
      %7144 = vmatmul.mubr.bf16.gmra.mxu0 %v6415
      %v7145 = vpop.f32.mrf.mxu0
      %v7146 = vadd.f32 %v6669, %v7145
      %v7147 = vpop.f32.mrf.mxu0
      %v7148 = vadd.f32 %v6673, %v7147
      %v7149 = vpop.f32.mrf.mxu0
      %v7150 = vadd.f32 %v6669, %v7149
      %v7151 = vpop.f32.mrf.mxu0
      %v7152 = vadd.f32 %v6673, %v7151
      %7153 = vmatprep.mubr.bf16.mxu0 %v6418
      %7154 = vmatmul.mubr.bf16.gmra.mxu0 %v6417
      %v7155 = vpop.f32.mrf.mxu0
      %v7156 = vadd.f32 %v6669, %v7155
      %v7157 = vpop.f32.mrf.mxu0
      %v7158 = vadd.f32 %v6673, %v7157
      %v7159 = vpop.f32.mrf.mxu0
      %v7160 = vadd.f32 %v6669, %v7159
      %v7161 = vpop.f32.mrf.mxu0
      %v7162 = vadd.f32 %v6673, %v7161
      %7163 = vmatprep.mubr.bf16.mxu0 %v6420
      %7164 = vmatmul.mubr.bf16.gmra.mxu0 %v6419
      %v7165 = vpop.f32.mrf.mxu0
      %v7166 = vadd.f32 %v6669, %v7165
      %v7167 = vpop.f32.mrf.mxu0
      %v7168 = vadd.f32 %v6673, %v7167
      %v7169 = vpop.f32.mrf.mxu0
      %v7170 = vadd.f32 %v6669, %v7169
      %v7171 = vpop.f32.mrf.mxu0
      %v7172 = vadd.f32 %v6673, %v7171
      %7173 = vmatprep.mubr.bf16.mxu0 %v6422
      %7174 = vmatmul.mubr.bf16.gmra.mxu0 %v6421
      %v7175 = vpop.f32.mrf.mxu0
      %v7176 = vadd.f32 %v6669, %v7175
      %v7177 = vpop.f32.mrf.mxu0
      %v7178 = vadd.f32 %v6673, %v7177
      %v7179 = vpop.f32.mrf.mxu0
      %v7180 = vadd.f32 %v6669, %v7179
      %v7181 = vpop.f32.mrf.mxu0
      %v7182 = vadd.f32 %v6673, %v7181
      %7183 = vmatprep.mubr.bf16.mxu0 %v6424
      %7184 = vmatmul.mubr.bf16.gmra.mxu0 %v6423
      %v7185 = vpop.f32.mrf.mxu0
      %v7186 = vadd.f32 %v6669, %v7185
      %v7187 = vpop.f32.mrf.mxu0
      %v7188 = vadd.f32 %v6673, %v7187
      %v7189 = vpop.f32.mrf.mxu0
      %v7190 = vadd.f32 %v6669, %v7189
      %v7191 = vpop.f32.mrf.mxu0
      %v7192 = vadd.f32 %v6673, %v7191
      %7193 = vmatprep.mubr.bf16.mxu0 %v6426
      %7194 = vmatmul.mubr.bf16.gmra.mxu0 %v6425
      %v7195 = vpop.f32.mrf.mxu0
      %v7196 = vadd.f32 %v6669, %v7195
      %v7197 = vpop.f32.mrf.mxu0
      %v7198 = vadd.f32 %v6673, %v7197
      %v7199 = vpop.f32.mrf.mxu0
      %v7200 = vadd.f32 %v6669, %v7199
      %v7201 = vpop.f32.mrf.mxu0
      %v7202 = vadd.f32 %v6673, %v7201
      %7203 = vmatprep.mubr.bf16.mxu0 %v6428
      %7204 = vmatmul.mubr.bf16.gmra.mxu0 %v6427
      %v7205 = vpop.f32.mrf.mxu0
      %v7206 = vadd.f32 %v6669, %v7205
      %v7207 = vpop.f32.mrf.mxu0
      %v7208 = vadd.f32 %v6673, %v7207
      %v7209 = vpop.f32.mrf.mxu0
      %v7210 = vadd.f32 %v6669, %v7209
      %v7211 = vpop.f32.mrf.mxu0
      %v7212 = vadd.f32 %v6673, %v7211
      %7213 = vmatprep.mubr.bf16.mxu0 %v6430
      %7214 = vmatmul.mubr.bf16.gmra.mxu0 %v6429
      %v7215 = vpop.f32.mrf.mxu0
      %v7216 = vadd.f32 %v6669, %v7215
      %v7217 = vpop.f32.mrf.mxu0
      %v7218 = vadd.f32 %v6673, %v7217
      %v7219 = vpop.f32.mrf.mxu0
      %v7220 = vadd.f32 %v6669, %v7219
      %v7221 = vpop.f32.mrf.mxu0
      %v7222 = vadd.f32 %v6673, %v7221
      %7223 = vdwg.mxu0
      %v7224 = vtanh.pop %v7033
      %v7225 = vtanh.pop %v7035
      %v7226 = vtanh.pop %v7146
      %v7227 = vtanh.pop %v7148
      %v7228 = vtanh.pop %v7037
      %v7229 = vtanh.pop %v7039
      %v7230 = vtanh.pop %v7150
      %v7231 = vtanh.pop %v7152
      %v7232 = vtanh.pop %v7043
      %v7233 = vtanh.pop %v7045
      %v7234 = vtanh.pop %v7156
      %v7235 = vtanh.pop %v7158
      %v7236 = vtanh.pop %v7047
      %v7237 = vtanh.pop %v7049
      %v7238 = vtanh.pop %v7160
      %v7239 = vtanh.pop %v7162
      %v7240 = vtanh.pop %v7053
      %v7241 = vtanh.pop %v7055
      %v7242 = vtanh.pop %v7166
      %v7243 = vtanh.pop %v7168
      %v7244 = vtanh.pop %v7057
      %v7245 = vtanh.pop %v7059
      %v7246 = vtanh.pop %v7170
      %v7247 = vtanh.pop %v7172
      %v7248 = vtanh.pop %v7063
      %v7249 = vtanh.pop %v7065
      %v7250 = vtanh.pop %v7176
      %v7251 = vtanh.pop %v7178
      %v7252 = vtanh.pop %v7067
      %v7253 = vtanh.pop %v7069
      %v7254 = vtanh.pop %v7180
      %v7255 = vtanh.pop %v7182
      %v7256 = vtanh.pop %v7073
      %v7257 = vtanh.pop %v7075
      %v7258 = vtanh.pop %v7186
      %v7259 = vtanh.pop %v7188
      %v7260 = vtanh.pop %v7077
      %v7261 = vtanh.pop %v7079
      %v7262 = vtanh.pop %v7190
      %v7263 = vtanh.pop %v7192
      %v7264 = vtanh.pop %v7083
      %v7265 = vtanh.pop %v7085
      %v7266 = vtanh.pop %v7196
      %v7267 = vtanh.pop %v7198
      %v7268 = vtanh.pop %v7087
      %v7269 = vtanh.pop %v7089
      %v7270 = vtanh.pop %v7200
      %v7271 = vtanh.pop %v7202
      %v7272 = vtanh.pop %v7093
      %v7273 = vtanh.pop %v7095
      %v7274 = vtanh.pop %v7206
      %v7275 = vtanh.pop %v7208
      %v7276 = vtanh.pop %v7097
      %v7277 = vtanh.pop %v7099
      %v7278 = vtanh.pop %v7210
      %v7279 = vtanh.pop %v7212
      %v7280 = vtanh.pop %v7103
      %v7281 = vtanh.pop %v7105
      %v7282 = vtanh.pop %v7216
      %v7283 = vtanh.pop %v7218
      %v7284 = vtanh.pop %v7107
      %v7285 = vtanh.pop %v7109
      %v7286 = vtanh.pop %v7220
      %v7287 = vtanh.pop %v7222
      %v7288 = vpack.c.bf16 %v7228, %v7224
      %v7289 = vpack.c.bf16 %v7229, %v7225
      %v7290 = vpack.c.bf16 %v7230, %v7226
      %v7291 = vpack.c.bf16 %v7231, %v7227
      %v7292 = vpack.c.bf16 %v7236, %v7232
      %v7293 = vpack.c.bf16 %v7237, %v7233
      %v7294 = vpack.c.bf16 %v7238, %v7234
      %v7295 = vpack.c.bf16 %v7239, %v7235
      %v7296 = vpack.c.bf16 %v7244, %v7240
      %v7297 = vpack.c.bf16 %v7245, %v7241
      %v7298 = vpack.c.bf16 %v7246, %v7242
      %v7299 = vpack.c.bf16 %v7247, %v7243
      %v7300 = vpack.c.bf16 %v7252, %v7248
      %v7301 = vpack.c.bf16 %v7253, %v7249
      %v7302 = vpack.c.bf16 %v7254, %v7250
      %v7303 = vpack.c.bf16 %v7255, %v7251
      %v7304 = vpack.c.bf16 %v7260, %v7256
      %v7305 = vpack.c.bf16 %v7261, %v7257
      %v7306 = vpack.c.bf16 %v7262, %v7258
      %v7307 = vpack.c.bf16 %v7263, %v7259
      %v7308 = vpack.c.bf16 %v7268, %v7264
      %v7309 = vpack.c.bf16 %v7269, %v7265
      %v7310 = vpack.c.bf16 %v7270, %v7266
      %v7311 = vpack.c.bf16 %v7271, %v7267
      %v7312 = vpack.c.bf16 %v7276, %v7272
      %v7313 = vpack.c.bf16 %v7277, %v7273
      %v7314 = vpack.c.bf16 %v7278, %v7274
      %v7315 = vpack.c.bf16 %v7279, %v7275
      %v7316 = vpack.c.bf16 %v7284, %v7280
      %v7317 = vpack.c.bf16 %v7285, %v7281
      %v7318 = vpack.c.bf16 %v7286, %v7282
      %v7319 = vpack.c.bf16 %v7287, %v7283
      %7320 = vmatprep.subr.bf16.mxu0 %v6899
      %7321 = vmatpush1.bf16.msra.mxu0 %v6898
      %7322 = vmatprep.subr.bf16.mxu0 %v6895
      %7323 = vmatpush1.bf16.msra.mxu0 %v6894
      %7324 = vmatprep.subr.bf16.mxu0 %v6891
      %7325 = vmatpush1.bf16.msra.mxu0 %v6890
      %7326 = vmatprep.subr.bf16.mxu0 %v6887
      %7327 = vmatpush1.bf16.msra.mxu0 %v6886
      %7328 = vmatprep.subr.bf16.mxu0 %v6883
      %7329 = vmatpush1.bf16.msra.mxu0 %v6882
      %7330 = vmatprep.subr.bf16.mxu0 %v6879
      %7331 = vmatpush1.bf16.msra.mxu0 %v6878
      %7332 = vmatprep.subr.bf16.mxu0 %v6875
      %7333 = vmatpush1.bf16.msra.mxu0 %v6874
      %7334 = vmatprep.subr.bf16.mxu0 %v6871
      %7335 = vmatpush1.bf16.msra.mxu0 %v6870
      %7336 = vmatprep.subr.bf16.mxu0 %v6931
      %7337 = vmatpush2.bf16.msra.mxu0 %v6930
      %7338 = vmatprep.subr.bf16.mxu0 %v6927
      %7339 = vmatpush2.bf16.msra.mxu0 %v6926
      %7340 = vmatprep.subr.bf16.mxu0 %v6923
      %7341 = vmatpush2.bf16.msra.mxu0 %v6922
      %7342 = vmatprep.subr.bf16.mxu0 %v6919
      %7343 = vmatpush2.bf16.msra.mxu0 %v6918
      %7344 = vmatprep.subr.bf16.mxu0 %v6915
      %7345 = vmatpush2.bf16.msra.mxu0 %v6914
      %7346 = vmatprep.subr.bf16.mxu0 %v6911
      %7347 = vmatpush2.bf16.msra.mxu0 %v6910
      %7348 = vmatprep.subr.bf16.mxu0 %v6907
      %7349 = vmatpush2.bf16.msra.mxu0 %v6906
      %7350 = vmatprep.subr.bf16.mxu0 %v6903
      %7351 = vmatpush2.bf16.msra.mxu0 %v6902
      %7352 = vmatprep.mubr.bf16.mxu0 %v6577
      %7353 = vmatmul.mubr.bf16.gmra.mxu0 %v6576
      %v7354 = vpop.f32.mrf.mxu0
      %v7355 = vadd.f32 %v6661, %v7354
      %v7356 = vpop.f32.mrf.mxu0
      %v7357 = vadd.f32 %v6665, %v7356
      %v7358 = vpop.f32.mrf.mxu0
      %v7359 = vadd.f32 %v6661, %v7358
      %v7360 = vpop.f32.mrf.mxu0
      %v7361 = vadd.f32 %v6665, %v7360
      %7362 = vmatprep.mubr.bf16.mxu0 %v6579
      %7363 = vmatmul.mubr.bf16.gmra.mxu0 %v6578
      %v7364 = vpop.f32.mrf.mxu0
      %v7365 = vadd.f32 %v6661, %v7364
      %v7366 = vpop.f32.mrf.mxu0
      %v7367 = vadd.f32 %v6665, %v7366
      %v7368 = vpop.f32.mrf.mxu0
      %v7369 = vadd.f32 %v6661, %v7368
      %v7370 = vpop.f32.mrf.mxu0
      %v7371 = vadd.f32 %v6665, %v7370
      %7372 = vmatprep.mubr.bf16.mxu0 %v6581
      %7373 = vmatmul.mubr.bf16.gmra.mxu0 %v6580
      %v7374 = vpop.f32.mrf.mxu0
      %v7375 = vadd.f32 %v6661, %v7374
      %v7376 = vpop.f32.mrf.mxu0
      %v7377 = vadd.f32 %v6665, %v7376
      %v7378 = vpop.f32.mrf.mxu0
      %v7379 = vadd.f32 %v6661, %v7378
      %v7380 = vpop.f32.mrf.mxu0
      %v7381 = vadd.f32 %v6665, %v7380
      %7382 = vmatprep.mubr.bf16.mxu0 %v6583
      %7383 = vmatmul.mubr.bf16.gmra.mxu0 %v6582
      %v7384 = vpop.f32.mrf.mxu0
      %v7385 = vadd.f32 %v6661, %v7384
      %v7386 = vpop.f32.mrf.mxu0
      %v7387 = vadd.f32 %v6665, %v7386
      %v7388 = vpop.f32.mrf.mxu0
      %v7389 = vadd.f32 %v6661, %v7388
      %v7390 = vpop.f32.mrf.mxu0
      %v7391 = vadd.f32 %v6665, %v7390
      %7392 = vmatprep.mubr.bf16.mxu0 %v6585
      %7393 = vmatmul.mubr.bf16.gmra.mxu0 %v6584
      %v7394 = vpop.f32.mrf.mxu0
      %v7395 = vadd.f32 %v6661, %v7394
      %v7396 = vpop.f32.mrf.mxu0
      %v7397 = vadd.f32 %v6665, %v7396
      %v7398 = vpop.f32.mrf.mxu0
      %v7399 = vadd.f32 %v6661, %v7398
      %v7400 = vpop.f32.mrf.mxu0
      %v7401 = vadd.f32 %v6665, %v7400
      %7402 = vmatprep.mubr.bf16.mxu0 %v6587
      %7403 = vmatmul.mubr.bf16.gmra.mxu0 %v6586
      %v7404 = vpop.f32.mrf.mxu0
      %v7405 = vadd.f32 %v6661, %v7404
      %v7406 = vpop.f32.mrf.mxu0
      %v7407 = vadd.f32 %v6665, %v7406
      %v7408 = vpop.f32.mrf.mxu0
      %v7409 = vadd.f32 %v6661, %v7408
      %v7410 = vpop.f32.mrf.mxu0
      %v7411 = vadd.f32 %v6665, %v7410
      %7412 = vmatprep.mubr.bf16.mxu0 %v6589
      %7413 = vmatmul.mubr.bf16.gmra.mxu0 %v6588
      %v7414 = vpop.f32.mrf.mxu0
      %v7415 = vadd.f32 %v6661, %v7414
      %v7416 = vpop.f32.mrf.mxu0
      %v7417 = vadd.f32 %v6665, %v7416
      %v7418 = vpop.f32.mrf.mxu0
      %v7419 = vadd.f32 %v6661, %v7418
      %v7420 = vpop.f32.mrf.mxu0
      %v7421 = vadd.f32 %v6665, %v7420
      %7422 = vmatprep.mubr.bf16.mxu0 %v6591
      %7423 = vmatmul.mubr.bf16.gmra.mxu0 %v6590
      %v7424 = vpop.f32.mrf.mxu0
      %v7425 = vadd.f32 %v6661, %v7424
      %v7426 = vpop.f32.mrf.mxu0
      %v7427 = vadd.f32 %v6665, %v7426
      %v7428 = vpop.f32.mrf.mxu0
      %v7429 = vadd.f32 %v6661, %v7428
      %v7430 = vpop.f32.mrf.mxu0
      %v7431 = vadd.f32 %v6665, %v7430
      %7432 = vdwg.mxu0
      %7433 = vmatprep.subr.bf16.mxu0 %v6901
      %7434 = vmatpush1.bf16.msra.mxu0 %v6900
      %7435 = vmatprep.subr.bf16.mxu0 %v6897
      %7436 = vmatpush1.bf16.msra.mxu0 %v6896
      %7437 = vmatprep.subr.bf16.mxu0 %v6893
      %7438 = vmatpush1.bf16.msra.mxu0 %v6892
      %7439 = vmatprep.subr.bf16.mxu0 %v6889
      %7440 = vmatpush1.bf16.msra.mxu0 %v6888
      %7441 = vmatprep.subr.bf16.mxu0 %v6885
      %7442 = vmatpush1.bf16.msra.mxu0 %v6884
      %7443 = vmatprep.subr.bf16.mxu0 %v6881
      %7444 = vmatpush1.bf16.msra.mxu0 %v6880
      %7445 = vmatprep.subr.bf16.mxu0 %v6877
      %7446 = vmatpush1.bf16.msra.mxu0 %v6876
      %7447 = vmatprep.subr.bf16.mxu0 %v6873
      %7448 = vmatpush1.bf16.msra.mxu0 %v6872
      %7449 = vmatprep.subr.bf16.mxu0 %v6933
      %7450 = vmatpush2.bf16.msra.mxu0 %v6932
      %7451 = vmatprep.subr.bf16.mxu0 %v6929
      %7452 = vmatpush2.bf16.msra.mxu0 %v6928
      %7453 = vmatprep.subr.bf16.mxu0 %v6925
      %7454 = vmatpush2.bf16.msra.mxu0 %v6924
      %7455 = vmatprep.subr.bf16.mxu0 %v6921
      %7456 = vmatpush2.bf16.msra.mxu0 %v6920
      %7457 = vmatprep.subr.bf16.mxu0 %v6917
      %7458 = vmatpush2.bf16.msra.mxu0 %v6916
      %7459 = vmatprep.subr.bf16.mxu0 %v6913
      %7460 = vmatpush2.bf16.msra.mxu0 %v6912
      %7461 = vmatprep.subr.bf16.mxu0 %v6909
      %7462 = vmatpush2.bf16.msra.mxu0 %v6908
      %7463 = vmatprep.subr.bf16.mxu0 %v6905
      %7464 = vmatpush2.bf16.msra.mxu0 %v6904
      %7465 = vmatprep.mubr.bf16.mxu0 %v6577
      %7466 = vmatmul.mubr.bf16.gmra.mxu0 %v6576
      %v7467 = vpop.f32.mrf.mxu0
      %v7468 = vadd.f32 %v6669, %v7467
      %v7469 = vpop.f32.mrf.mxu0
      %v7470 = vadd.f32 %v6673, %v7469
      %v7471 = vpop.f32.mrf.mxu0
      %v7472 = vadd.f32 %v6669, %v7471
      %v7473 = vpop.f32.mrf.mxu0
      %v7474 = vadd.f32 %v6673, %v7473
      %7475 = vmatprep.mubr.bf16.mxu0 %v6579
      %7476 = vmatmul.mubr.bf16.gmra.mxu0 %v6578
      %v7477 = vpop.f32.mrf.mxu0
      %v7478 = vadd.f32 %v6669, %v7477
      %v7479 = vpop.f32.mrf.mxu0
      %v7480 = vadd.f32 %v6673, %v7479
      %v7481 = vpop.f32.mrf.mxu0
      %v7482 = vadd.f32 %v6669, %v7481
      %v7483 = vpop.f32.mrf.mxu0
      %v7484 = vadd.f32 %v6673, %v7483
      %7485 = vmatprep.mubr.bf16.mxu0 %v6581
      %7486 = vmatmul.mubr.bf16.gmra.mxu0 %v6580
      %v7487 = vpop.f32.mrf.mxu0
      %v7488 = vadd.f32 %v6669, %v7487
      %v7489 = vpop.f32.mrf.mxu0
      %v7490 = vadd.f32 %v6673, %v7489
      %v7491 = vpop.f32.mrf.mxu0
      %v7492 = vadd.f32 %v6669, %v7491
      %v7493 = vpop.f32.mrf.mxu0
      %v7494 = vadd.f32 %v6673, %v7493
      %7495 = vmatprep.mubr.bf16.mxu0 %v6583
      %7496 = vmatmul.mubr.bf16.gmra.mxu0 %v6582
      %v7497 = vpop.f32.mrf.mxu0
      %v7498 = vadd.f32 %v6669, %v7497
      %v7499 = vpop.f32.mrf.mxu0
      %v7500 = vadd.f32 %v6673, %v7499
      %v7501 = vpop.f32.mrf.mxu0
      %v7502 = vadd.f32 %v6669, %v7501
      %v7503 = vpop.f32.mrf.mxu0
      %v7504 = vadd.f32 %v6673, %v7503
      %7505 = vmatprep.mubr.bf16.mxu0 %v6585
      %7506 = vmatmul.mubr.bf16.gmra.mxu0 %v6584
      %v7507 = vpop.f32.mrf.mxu0
      %v7508 = vadd.f32 %v6669, %v7507
      %v7509 = vpop.f32.mrf.mxu0
      %v7510 = vadd.f32 %v6673, %v7509
      %v7511 = vpop.f32.mrf.mxu0
      %v7512 = vadd.f32 %v6669, %v7511
      %v7513 = vpop.f32.mrf.mxu0
      %v7514 = vadd.f32 %v6673, %v7513
      %7515 = vmatprep.mubr.bf16.mxu0 %v6587
      %7516 = vmatmul.mubr.bf16.gmra.mxu0 %v6586
      %v7517 = vpop.f32.mrf.mxu0
      %v7518 = vadd.f32 %v6669, %v7517
      %v7519 = vpop.f32.mrf.mxu0
      %v7520 = vadd.f32 %v6673, %v7519
      %v7521 = vpop.f32.mrf.mxu0
      %v7522 = vadd.f32 %v6669, %v7521
      %v7523 = vpop.f32.mrf.mxu0
      %v7524 = vadd.f32 %v6673, %v7523
      %7525 = vmatprep.mubr.bf16.mxu0 %v6589
      %7526 = vmatmul.mubr.bf16.gmra.mxu0 %v6588
      %v7527 = vpop.f32.mrf.mxu0
      %v7528 = vadd.f32 %v6669, %v7527
      %v7529 = vpop.f32.mrf.mxu0
      %v7530 = vadd.f32 %v6673, %v7529
      %v7531 = vpop.f32.mrf.mxu0
      %v7532 = vadd.f32 %v6669, %v7531
      %v7533 = vpop.f32.mrf.mxu0
      %v7534 = vadd.f32 %v6673, %v7533
      %7535 = vmatprep.mubr.bf16.mxu0 %v6591
      %7536 = vmatmul.mubr.bf16.gmra.mxu0 %v6590
      %v7537 = vpop.f32.mrf.mxu0
      %v7538 = vadd.f32 %v6669, %v7537
      %v7539 = vpop.f32.mrf.mxu0
      %v7540 = vadd.f32 %v6673, %v7539
      %v7541 = vpop.f32.mrf.mxu0
      %v7542 = vadd.f32 %v6669, %v7541
      %v7543 = vpop.f32.mrf.mxu0
      %v7544 = vadd.f32 %v6673, %v7543
      %7545 = vdwg.mxu0
      %v7546 = vtanh.pop %v7355
      %v7547 = vtanh.pop %v7357
      %v7548 = vtanh.pop %v7468
      %v7549 = vtanh.pop %v7470
      %v7550 = vtanh.pop %v7359
      %v7551 = vtanh.pop %v7361
      %v7552 = vtanh.pop %v7472
      %v7553 = vtanh.pop %v7474
      %v7554 = vtanh.pop %v7365
      %v7555 = vtanh.pop %v7367
      %v7556 = vtanh.pop %v7478
      %v7557 = vtanh.pop %v7480
      %v7558 = vtanh.pop %v7369
      %v7559 = vtanh.pop %v7371
      %v7560 = vtanh.pop %v7482
      %v7561 = vtanh.pop %v7484
      %v7562 = vtanh.pop %v7375
      %v7563 = vtanh.pop %v7377
      %v7564 = vtanh.pop %v7488
      %v7565 = vtanh.pop %v7490
      %v7566 = vtanh.pop %v7379
      %v7567 = vtanh.pop %v7381
      %v7568 = vtanh.pop %v7492
      %v7569 = vtanh.pop %v7494
      %v7570 = vtanh.pop %v7385
      %v7571 = vtanh.pop %v7387
      %v7572 = vtanh.pop %v7498
      %v7573 = vtanh.pop %v7500
      %v7574 = vtanh.pop %v7389
      %v7575 = vtanh.pop %v7391
      %v7576 = vtanh.pop %v7502
      %v7577 = vtanh.pop %v7504
      %v7578 = vtanh.pop %v7395
      %v7579 = vtanh.pop %v7397
      %v7580 = vtanh.pop %v7508
      %v7581 = vtanh.pop %v7510
      %v7582 = vtanh.pop %v7399
      %v7583 = vtanh.pop %v7401
      %v7584 = vtanh.pop %v7512
      %v7585 = vtanh.pop %v7514
      %v7586 = vtanh.pop %v7405
      %v7587 = vtanh.pop %v7407
      %v7588 = vtanh.pop %v7518
      %v7589 = vtanh.pop %v7520
      %v7590 = vtanh.pop %v7409
      %v7591 = vtanh.pop %v7411
      %v7592 = vtanh.pop %v7522
      %v7593 = vtanh.pop %v7524
      %v7594 = vtanh.pop %v7415
      %v7595 = vtanh.pop %v7417
      %v7596 = vtanh.pop %v7528
      %v7597 = vtanh.pop %v7530
      %v7598 = vtanh.pop %v7419
      %v7599 = vtanh.pop %v7421
      %v7600 = vtanh.pop %v7532
      %v7601 = vtanh.pop %v7534
      %v7602 = vtanh.pop %v7425
      %v7603 = vtanh.pop %v7427
      %v7604 = vtanh.pop %v7538
      %v7605 = vtanh.pop %v7540
      %v7606 = vtanh.pop %v7429
      %v7607 = vtanh.pop %v7431
      %v7608 = vtanh.pop %v7542
      %v7609 = vtanh.pop %v7544
      %v7610 = vpack.c.bf16 %v7550, %v7546
      %v7611 = vpack.c.bf16 %v7551, %v7547
      %v7612 = vpack.c.bf16 %v7552, %v7548
      %v7613 = vpack.c.bf16 %v7553, %v7549
      %v7614 = vpack.c.bf16 %v7558, %v7554
      %v7615 = vpack.c.bf16 %v7559, %v7555
      %v7616 = vpack.c.bf16 %v7560, %v7556
      %v7617 = vpack.c.bf16 %v7561, %v7557
      %v7618 = vpack.c.bf16 %v7566, %v7562
      %v7619 = vpack.c.bf16 %v7567, %v7563
      %v7620 = vpack.c.bf16 %v7568, %v7564
      %v7621 = vpack.c.bf16 %v7569, %v7565
      %v7622 = vpack.c.bf16 %v7574, %v7570
      %v7623 = vpack.c.bf16 %v7575, %v7571
      %v7624 = vpack.c.bf16 %v7576, %v7572
      %v7625 = vpack.c.bf16 %v7577, %v7573
      %v7626 = vpack.c.bf16 %v7582, %v7578
      %v7627 = vpack.c.bf16 %v7583, %v7579
      %v7628 = vpack.c.bf16 %v7584, %v7580
      %v7629 = vpack.c.bf16 %v7585, %v7581
      %v7630 = vpack.c.bf16 %v7590, %v7586
      %v7631 = vpack.c.bf16 %v7591, %v7587
      %v7632 = vpack.c.bf16 %v7592, %v7588
      %v7633 = vpack.c.bf16 %v7593, %v7589
      %v7634 = vpack.c.bf16 %v7598, %v7594
      %v7635 = vpack.c.bf16 %v7599, %v7595
      %v7636 = vpack.c.bf16 %v7600, %v7596
      %v7637 = vpack.c.bf16 %v7601, %v7597
      %v7638 = vpack.c.bf16 %v7606, %v7602
      %v7639 = vpack.c.bf16 %v7607, %v7603
      %v7640 = vpack.c.bf16 %v7608, %v7604
      %v7641 = vpack.c.bf16 %v7609, %v7605
      %v7642 = vld [vmem:[%s8] sm:$0xff]
      %v7643 = vld [vmem:[%s8 + $0x8] sm:$0xff]
      %v7644 = vld [vmem:[%s8 + $0x10] sm:$0xff]
      %v7645 = vld [vmem:[%s8 + $0x18] sm:$0xf]
      %v7646 = vld [vmem:[%s8 + $0x1c] sm:$0xff]
      %v7647 = vld [vmem:[%s8 + $0x24] sm:$0xff]
      %v7648 = vld [vmem:[%s8 + $0x2c] sm:$0xff]
      %v7649 = vld [vmem:[%s8 + $0x34] sm:$0xf]
      %v7650 = vld [vmem:[%s8 + $0x38] sm:$0xff]
      %v7651 = vld [vmem:[%s8 + $0x40] sm:$0xff]
      %v7652 = vld [vmem:[%s8 + $0x48] sm:$0xff]
      %v7653 = vld [vmem:[%s8 + $0x50] sm:$0xf]
      %v7654 = vld [vmem:[%s8 + $0x54] sm:$0xff]
      %v7655 = vld [vmem:[%s8 + $0x5c] sm:$0xff]
      %v7656 = vld [vmem:[%s8 + $0x64] sm:$0xff]
      %v7657 = vld [vmem:[%s8 + $0x6c] sm:$0xf]
      %v7658 = vld [vmem:[%s8 + $0x70] sm:$0xff]
      %v7659 = vld [vmem:[%s8 + $0x78] sm:$0xff]
      %v7660 = vld [vmem:[%s8 + $0x80] sm:$0xff]
      %v7661 = vld [vmem:[%s8 + $0x88] sm:$0xf]
      %v7662 = vld [vmem:[%s8 + $0x8c] sm:$0xff]
      %v7663 = vld [vmem:[%s8 + $0x94] sm:$0xff]
      %v7664 = vld [vmem:[%s8 + $0x9c] sm:$0xff]
      %v7665 = vld [vmem:[%s8 + $0xa4] sm:$0xf]
      %v7666 = vld [vmem:[%s8 + $0xa8] sm:$0xff]
      %v7667 = vld [vmem:[%s8 + $0xb0] sm:$0xff]
      %v7668 = vld [vmem:[%s8 + $0xb8] sm:$0xff]
      %v7669 = vld [vmem:[%s8 + $0xc0] sm:$0xf]
      %v7670 = vld [vmem:[%s8 + $0xc4] sm:$0xff]
      %v7671 = vld [vmem:[%s8 + $0xcc] sm:$0xff]
      %v7672 = vld [vmem:[%s8 + $0xd4] sm:$0xff]
      %v7673 = vld [vmem:[%s8 + $0xdc] sm:$0xf]
      %v7674 = vld [vmem:[%s8 + $0xe0] sm:$0xff]
      %v7675 = vld [vmem:[%s8 + $0xe8] sm:$0xff]
      %v7676 = vld [vmem:[%s8 + $0xf0] sm:$0xff]
      %v7677 = vld [vmem:[%s8 + $0xf8] sm:$0xf]
      %v7678 = vld [vmem:[%s8 + $0xfc] sm:$0xff]
      %v7679 = vld [vmem:[%s8 + $0x104] sm:$0xff]
      %v7680 = vld [vmem:[%s8 + $0x10c] sm:$0xff]
      %v7681 = vld [vmem:[%s8 + $0x114] sm:$0xf]
      %v7682 = vld [vmem:[%s8 + $0x118] sm:$0xff]
      %v7683 = vld [vmem:[%s8 + $0x120] sm:$0xff]
      %v7684 = vld [vmem:[%s8 + $0x128] sm:$0xff]
      %v7685 = vld [vmem:[%s8 + $0x130] sm:$0xf]
      %v7686 = vld [vmem:[%s8 + $0x134] sm:$0xff]
      %v7687 = vld [vmem:[%s8 + $0x13c] sm:$0xff]
      %v7688 = vld [vmem:[%s8 + $0x144] sm:$0xff]
      %v7689 = vld [vmem:[%s8 + $0x14c] sm:$0xf]
      %v7690 = vld [vmem:[%s8 + $0x150] sm:$0xff]
      %v7691 = vld [vmem:[%s8 + $0x158] sm:$0xff]
      %v7692 = vld [vmem:[%s8 + $0x160] sm:$0xff]
      %v7693 = vld [vmem:[%s8 + $0x168] sm:$0xf]
      %v7694 = vld [vmem:[%s8 + $0x16c] sm:$0xff]
      %v7695 = vld [vmem:[%s8 + $0x174] sm:$0xff]
      %v7696 = vld [vmem:[%s8 + $0x17c] sm:$0xff]
      %v7697 = vld [vmem:[%s8 + $0x184] sm:$0xf]
      %v7698 = vld [vmem:[%s8 + $0x188] sm:$0xff]
      %v7699 = vld [vmem:[%s8 + $0x190] sm:$0xff]
      %v7700 = vld [vmem:[%s8 + $0x198] sm:$0xff]
      %v7701 = vld [vmem:[%s8 + $0x1a0] sm:$0xf]
      %v7702 = vld [vmem:[%s8 + $0x1a4] sm:$0xff]
      %v7703 = vld [vmem:[%s8 + $0x1ac] sm:$0xff]
      %v7704 = vld [vmem:[%s8 + $0x1b4] sm:$0xff]
      %v7705 = vld [vmem:[%s8 + $0x1bc] sm:$0xf]
      %v7706 = vld [vmem:[%s8 + $0x1c0] sm:$0xff]
      %v7707 = vld [vmem:[%s8 + $0x1c8] sm:$0xff]
      %v7708 = vld [vmem:[%s8 + $0x1d0] sm:$0xff]
      %v7709 = vld [vmem:[%s8 + $0x1d8] sm:$0xf]
      %v7710 = vld [vmem:[%s8 + $0x1dc] sm:$0xff]
      %v7711 = vld [vmem:[%s8 + $0x1e4] sm:$0xff]
      %v7712 = vld [vmem:[%s8 + $0x1ec] sm:$0xff]
      %v7713 = vld [vmem:[%s8 + $0x1f4] sm:$0xf]
      %v7714 = vld [vmem:[%s8 + $0x1f8] sm:$0xff]
      %v7715 = vld [vmem:[%s8 + $0x200] sm:$0xff]
      %v7716 = vld [vmem:[%s8 + $0x208] sm:$0xff]
      %v7717 = vld [vmem:[%s8 + $0x210] sm:$0xf]
      %v7718 = vld [vmem:[%s8 + $0x214] sm:$0xff]
      %v7719 = vld [vmem:[%s8 + $0x21c] sm:$0xff]
      %v7720 = vld [vmem:[%s8 + $0x224] sm:$0xff]
      %v7721 = vld [vmem:[%s8 + $0x22c] sm:$0xf]
      %v7722 = vld [vmem:[%s8 + $0x230] sm:$0xff]
      %v7723 = vld [vmem:[%s8 + $0x238] sm:$0xff]
      %v7724 = vld [vmem:[%s8 + $0x240] sm:$0xff]
      %v7725 = vld [vmem:[%s8 + $0x248] sm:$0xf]
      %v7726 = vld [vmem:[%s8 + $0x24c] sm:$0xff]
      %v7727 = vld [vmem:[%s8 + $0x254] sm:$0xff]
      %v7728 = vld [vmem:[%s8 + $0x25c] sm:$0xff]
      %v7729 = vld [vmem:[%s8 + $0x264] sm:$0xf]
      %v7730 = vld [vmem:[%s8 + $0x268] sm:$0xff]
      %v7731 = vld [vmem:[%s8 + $0x270] sm:$0xff]
      %v7732 = vld [vmem:[%s8 + $0x278] sm:$0xff]
      %v7733 = vld [vmem:[%s8 + $0x280] sm:$0xf]
      %v7734 = vld [vmem:[%s8 + $0x284] sm:$0xff]
      %v7735 = vld [vmem:[%s8 + $0x28c] sm:$0xff]
      %v7736 = vld [vmem:[%s8 + $0x294] sm:$0xff]
      %v7737 = vld [vmem:[%s8 + $0x29c] sm:$0xf]
      %v7738 = vld [vmem:[%s8 + $0x2a0] sm:$0xff]
      %v7739 = vld [vmem:[%s8 + $0x2a8] sm:$0xff]
      %v7740 = vld [vmem:[%s8 + $0x2b0] sm:$0xff]
      %v7741 = vld [vmem:[%s8 + $0x2b8] sm:$0xf]
      %v7742 = vld [vmem:[%s8 + $0x2bc] sm:$0xff]
      %v7743 = vld [vmem:[%s8 + $0x2c4] sm:$0xff]
      %v7744 = vld [vmem:[%s8 + $0x2cc] sm:$0xff]
      %v7745 = vld [vmem:[%s8 + $0x2d4] sm:$0xf]
      %v7746 = vld [vmem:[%s8 + $0x2d8] sm:$0xff]
      %v7747 = vld [vmem:[%s8 + $0x2e0] sm:$0xff]
      %v7748 = vld [vmem:[%s8 + $0x2e8] sm:$0xff]
      %v7749 = vld [vmem:[%s8 + $0x2f0] sm:$0xf]
      %v7750 = vld [vmem:[%s8 + $0x2f4] sm:$0xff]
      %v7751 = vld [vmem:[%s8 + $0x2fc] sm:$0xff]
      %v7752 = vld [vmem:[%s8 + $0x304] sm:$0xff]
      %v7753 = vld [vmem:[%s8 + $0x30c] sm:$0xf]
      %v7754 = vld [vmem:[%s8 + $0x310] sm:$0xff]
      %v7755 = vld [vmem:[%s8 + $0x318] sm:$0xff]
      %v7756 = vld [vmem:[%s8 + $0x320] sm:$0xff]
      %v7757 = vld [vmem:[%s8 + $0x328] sm:$0xf]
      %v7758 = vld [vmem:[%s8 + $0x32c] sm:$0xff]
      %v7759 = vld [vmem:[%s8 + $0x334] sm:$0xff]
      %v7760 = vld [vmem:[%s8 + $0x33c] sm:$0xff]
      %v7761 = vld [vmem:[%s8 + $0x344] sm:$0xf]
      %v7762 = vld [vmem:[%s8 + $0x348] sm:$0xff]
      %v7763 = vld [vmem:[%s8 + $0x350] sm:$0xff]
      %v7764 = vld [vmem:[%s8 + $0x358] sm:$0xff]
      %v7765 = vld [vmem:[%s8 + $0x360] sm:$0xf]
      %v7766 = vld [vmem:[%s8 + $0x364] sm:$0xff]
      %v7767 = vld [vmem:[%s8 + $0x36c] sm:$0xff]
      %v7768 = vld [vmem:[%s8 + $0x374] sm:$0xff]
      %v7769 = vld [vmem:[%s8 + $0x37c] sm:$0xf]
      %v7770 = vld [vmem:[%s8 + $0x380] sm:$0xff]
      %v7771 = vld [vmem:[%s8 + $0x388] sm:$0xff]
      %v7772 = vld [vmem:[%s8 + $0x390] sm:$0xff]
      %v7773 = vld [vmem:[%s8 + $0x398] sm:$0xf]
      %v7774 = vld [vmem:[%s8 + $0x39c] sm:$0xff]
      %v7775 = vld [vmem:[%s8 + $0x3a4] sm:$0xff]
      %v7776 = vld [vmem:[%s8 + $0x3ac] sm:$0xff]
      %v7777 = vld [vmem:[%s8 + $0x3b4] sm:$0xf]
      %v7778 = vld [vmem:[%s8 + $0x3b8] sm:$0xff]
      %v7779 = vld [vmem:[%s8 + $0x3c0] sm:$0xff]
      %v7780 = vld [vmem:[%s8 + $0x3c8] sm:$0xff]
      %v7781 = vld [vmem:[%s8 + $0x3d0] sm:$0xf]
      %v7782 = vld [vmem:[%s8 + $0x3d4] sm:$0xff]
      %v7783 = vld [vmem:[%s8 + $0x3dc] sm:$0xff]
      %v7784 = vld [vmem:[%s8 + $0x3e4] sm:$0xff]
      %v7785 = vld [vmem:[%s8 + $0x3ec] sm:$0xf]
      %v7786 = vld [vmem:[%s8 + $0x3f0] sm:$0xff]
      %v7787 = vld [vmem:[%s8 + $0x3f8] sm:$0xff]
      %v7788 = vld [vmem:[%s8 + $0x400] sm:$0xff]
      %v7789 = vld [vmem:[%s8 + $0x408] sm:$0xf]
      %v7790 = vld [vmem:[%s8 + $0x40c] sm:$0xff]
      %v7791 = vld [vmem:[%s8 + $0x414] sm:$0xff]
      %v7792 = vld [vmem:[%s8 + $0x41c] sm:$0xff]
      %v7793 = vld [vmem:[%s8 + $0x424] sm:$0xf]
      %v7794 = vld [vmem:[%s8 + $0x428] sm:$0xff]
      %v7795 = vld [vmem:[%s8 + $0x430] sm:$0xff]
      %v7796 = vld [vmem:[%s8 + $0x438] sm:$0xff]
      %v7797 = vld [vmem:[%s8 + $0x440] sm:$0xf]
      %v7798 = vld [vmem:[%s8 + $0x444] sm:$0xff]
      %v7799 = vld [vmem:[%s8 + $0x44c] sm:$0xff]
      %v7800 = vld [vmem:[%s8 + $0x454] sm:$0xff]
      %v7801 = vld [vmem:[%s8 + $0x45c] sm:$0xf]
      %v7802 = vld [vmem:[%s8 + $0x460] sm:$0xff]
      %v7803 = vld [vmem:[%s8 + $0x468] sm:$0xff]
      %v7804 = vld [vmem:[%s8 + $0x470] sm:$0xff]
      %v7805 = vld [vmem:[%s8 + $0x478] sm:$0xf]
      %v7806 = vld [vmem:[%s8 + $0x47c] sm:$0xff]
      %v7807 = vld [vmem:[%s8 + $0x484] sm:$0xff]
      %v7808 = vld [vmem:[%s8 + $0x48c] sm:$0xff]
      %v7809 = vld [vmem:[%s8 + $0x494] sm:$0xf]
      %v7810 = vld [vmem:[%s8 + $0x498] sm:$0xff]
      %v7811 = vld [vmem:[%s8 + $0x4a0] sm:$0xff]
      %v7812 = vld [vmem:[%s8 + $0x4a8] sm:$0xff]
      %v7813 = vld [vmem:[%s8 + $0x4b0] sm:$0xf]
      %v7814 = vld [vmem:[%s8 + $0x4b4] sm:$0xff]
      %v7815 = vld [vmem:[%s8 + $0x4bc] sm:$0xff]
      %v7816 = vld [vmem:[%s8 + $0x4c4] sm:$0xff]
      %v7817 = vld [vmem:[%s8 + $0x4cc] sm:$0xf]
      %v7818 = vld [vmem:[%s8 + $0x4d0] sm:$0xff]
      %v7819 = vld [vmem:[%s8 + $0x4d8] sm:$0xff]
      %v7820 = vld [vmem:[%s8 + $0x4e0] sm:$0xff]
      %v7821 = vld [vmem:[%s8 + $0x4e8] sm:$0xf]
      %v7822 = vld [vmem:[%s8 + $0x4ec] sm:$0xff]
      %v7823 = vld [vmem:[%s8 + $0x4f4] sm:$0xff]
      %v7824 = vld [vmem:[%s8 + $0x4fc] sm:$0xff]
      %v7825 = vld [vmem:[%s8 + $0x504] sm:$0xf]
      %v7826 = vld [vmem:[%s8 + $0x508] sm:$0xff]
      %v7827 = vld [vmem:[%s8 + $0x510] sm:$0xff]
      %v7828 = vld [vmem:[%s8 + $0x518] sm:$0xff]
      %v7829 = vld [vmem:[%s8 + $0x520] sm:$0xf]
      %v7830 = vld [vmem:[%s8 + $0x524] sm:$0xff]
      %v7831 = vld [vmem:[%s8 + $0x52c] sm:$0xff]
      %v7832 = vld [vmem:[%s8 + $0x534] sm:$0xff]
      %v7833 = vld [vmem:[%s8 + $0x53c] sm:$0xf]
      %v7834 = vld [vmem:[%s8 + $0x540] sm:$0xff]
      %v7835 = vld [vmem:[%s8 + $0x548] sm:$0xff]
      %v7836 = vld [vmem:[%s8 + $0x550] sm:$0xff]
      %v7837 = vld [vmem:[%s8 + $0x558] sm:$0xf]
      %v7838 = vld [vmem:[%s8 + $0x55c] sm:$0xff]
      %v7839 = vld [vmem:[%s8 + $0x564] sm:$0xff]
      %v7840 = vld [vmem:[%s8 + $0x56c] sm:$0xff]
      %v7841 = vld [vmem:[%s8 + $0x574] sm:$0xf]
      %v7842 = vld [vmem:[%s8 + $0x578] sm:$0xff]
      %v7843 = vld [vmem:[%s8 + $0x580] sm:$0xff]
      %v7844 = vld [vmem:[%s8 + $0x588] sm:$0xff]
      %v7845 = vld [vmem:[%s8 + $0x590] sm:$0xf]
      %v7846 = vld [vmem:[%s8 + $0x594] sm:$0xff]
      %v7847 = vld [vmem:[%s8 + $0x59c] sm:$0xff]
      %v7848 = vld [vmem:[%s8 + $0x5a4] sm:$0xff]
      %v7849 = vld [vmem:[%s8 + $0x5ac] sm:$0xf]
      %v7850 = vld [vmem:[%s8 + $0x5b0] sm:$0xff]
      %v7851 = vld [vmem:[%s8 + $0x5b8] sm:$0xff]
      %v7852 = vld [vmem:[%s8 + $0x5c0] sm:$0xff]
      %v7853 = vld [vmem:[%s8 + $0x5c8] sm:$0xf]
      %v7854 = vld [vmem:[%s8 + $0x5cc] sm:$0xff]
      %v7855 = vld [vmem:[%s8 + $0x5d4] sm:$0xff]
      %v7856 = vld [vmem:[%s8 + $0x5dc] sm:$0xff]
      %v7857 = vld [vmem:[%s8 + $0x5e4] sm:$0xf]
      %v7858 = vld [vmem:[%s8 + $0x5e8] sm:$0xff]
      %v7859 = vld [vmem:[%s8 + $0x5f0] sm:$0xff]
      %v7860 = vld [vmem:[%s8 + $0x5f8] sm:$0xff]
      %v7861 = vld [vmem:[%s8 + $0x600] sm:$0xf]
      %v7862 = vld [vmem:[%s8 + $0x604] sm:$0xff]
      %v7863 = vld [vmem:[%s8 + $0x60c] sm:$0xff]
      %v7864 = vld [vmem:[%s8 + $0x614] sm:$0xff]
      %v7865 = vld [vmem:[%s8 + $0x61c] sm:$0xf]
      %v7866 = vld [vmem:[%s8 + $0x620] sm:$0xff]
      %v7867 = vld [vmem:[%s8 + $0x628] sm:$0xff]
      %v7868 = vld [vmem:[%s8 + $0x630] sm:$0xff]
      %v7869 = vld [vmem:[%s8 + $0x638] sm:$0xf]
      %v7870 = vld [vmem:[%s8 + $0x63c] sm:$0xff]
      %v7871 = vld [vmem:[%s8 + $0x644] sm:$0xff]
      %v7872 = vld [vmem:[%s8 + $0x64c] sm:$0xff]
      %v7873 = vld [vmem:[%s8 + $0x654] sm:$0xf]
      %v7874 = vld [vmem:[%s8 + $0x658] sm:$0xff]
      %v7875 = vld [vmem:[%s8 + $0x660] sm:$0xff]
      %v7876 = vld [vmem:[%s8 + $0x668] sm:$0xff]
      %v7877 = vld [vmem:[%s8 + $0x670] sm:$0xf]
      %v7878 = vld [vmem:[%s8 + $0x674] sm:$0xff]
      %v7879 = vld [vmem:[%s8 + $0x67c] sm:$0xff]
      %v7880 = vld [vmem:[%s8 + $0x684] sm:$0xff]
      %v7881 = vld [vmem:[%s8 + $0x68c] sm:$0xf]
      %v7882 = vld [vmem:[%s8 + $0x690] sm:$0xff]
      %v7883 = vld [vmem:[%s8 + $0x698] sm:$0xff]
      %v7884 = vld [vmem:[%s8 + $0x6a0] sm:$0xff]
      %v7885 = vld [vmem:[%s8 + $0x6a8] sm:$0xf]
      %v7886 = vld [vmem:[%s8 + $0x6ac] sm:$0xff]
      %v7887 = vld [vmem:[%s8 + $0x6b4] sm:$0xff]
      %v7888 = vld [vmem:[%s8 + $0x6bc] sm:$0xff]
      %v7889 = vld [vmem:[%s8 + $0x6c4] sm:$0xf]
      %v7890 = vld [vmem:[%s8 + $0x6c8] sm:$0xff]
      %v7891 = vld [vmem:[%s8 + $0x6d0] sm:$0xff]
      %v7892 = vld [vmem:[%s8 + $0x6d8] sm:$0xff]
      %v7893 = vld [vmem:[%s8 + $0x6e0] sm:$0xf]
      %v7894 = vld [vmem:[%s8 + $0x6e4] sm:$0xff]
      %v7895 = vld [vmem:[%s8 + $0x6ec] sm:$0xff]
      %v7896 = vld [vmem:[%s8 + $0x6f4] sm:$0xff]
      %v7897 = vld [vmem:[%s8 + $0x6fc] sm:$0xf]
      %v7898 = vld [vmem:[%s16] sm:$0x7f]
      %v7900 = vlaneseq
      %v7901 = vshrl.u32 %v7900, 7
      %v7902 = vsub.s32 0, %v7901
      %v7903 = vrot.slane %v7898, %v7902
      %v7904 = vlaneseq
      %v7905 = vshrl.u32 %v7904, 7
      %v7906 = vsub.s32 1, %v7905
      %v7907 = vrot.slane %v7898, %v7906
      %v7908 = vlaneseq
      %v7909 = vshrl.u32 %v7908, 7
      %v7910 = vsub.s32 2, %v7909
      %v7911 = vrot.slane %v7898, %v7910
      %v7912 = vlaneseq
      %v7913 = vshrl.u32 %v7912, 7
      %v7914 = vsub.s32 3, %v7913
      %v7915 = vrot.slane %v7898, %v7914
      %v7916 = vlaneseq
      %v7917 = vshrl.u32 %v7916, 7
      %v7918 = vsub.s32 4, %v7917
      %v7919 = vrot.slane %v7898, %v7918
      %v7920 = vlaneseq
      %v7921 = vshrl.u32 %v7920, 7
      %v7922 = vsub.s32 5, %v7921
      %v7923 = vrot.slane %v7898, %v7922
      %v7924 = vlaneseq
      %v7925 = vshrl.u32 %v7924, 7
      %v7926 = vsub.s32 6, %v7925
      %v7927 = vrot.slane %v7898, %v7926
      %v8191 = vunpack.c.l.b16 %v7642
      %v8192 = vunpack.c.h.b16 %v7642
      %v8193 = vunpack.c.l.b16 %v7643
      %v8194 = vunpack.c.h.b16 %v7643
      %v8195 = vunpack.c.l.b16 %v7644
      %v8196 = vunpack.c.h.b16 %v7644
      %v8197 = vunpack.c.l.b16 %v7645
      %v8198 = vunpack.c.l.b16 %v7646
      %v8199 = vunpack.c.h.b16 %v7646
      %v8200 = vunpack.c.l.b16 %v7647
      %v8201 = vunpack.c.h.b16 %v7647
      %v8202 = vunpack.c.l.b16 %v7648
      %v8203 = vunpack.c.h.b16 %v7648
      %v8204 = vunpack.c.l.b16 %v7649
      %v8205 = vunpack.c.l.b16 %v7650
      %v8206 = vunpack.c.h.b16 %v7650
      %v8207 = vunpack.c.l.b16 %v7651
      %v8208 = vunpack.c.h.b16 %v7651
      %v8209 = vunpack.c.l.b16 %v7652
      %v8210 = vunpack.c.h.b16 %v7652
      %v8211 = vunpack.c.l.b16 %v7653
      %v8212 = vunpack.c.l.b16 %v7654
      %v8213 = vunpack.c.h.b16 %v7654
      %v8214 = vunpack.c.l.b16 %v7655
      %v8215 = vunpack.c.h.b16 %v7655
      %v8216 = vunpack.c.l.b16 %v7656
      %v8217 = vunpack.c.h.b16 %v7656
      %v8218 = vunpack.c.l.b16 %v7657
      %v8219 = vunpack.c.l.b16 %v7658
      %v8220 = vunpack.c.h.b16 %v7658
      %v8221 = vunpack.c.l.b16 %v7659
      %v8222 = vunpack.c.h.b16 %v7659
      %v8223 = vunpack.c.l.b16 %v7660
      %v8224 = vunpack.c.h.b16 %v7660
      %v8225 = vunpack.c.l.b16 %v7661
      %v8226 = vunpack.c.l.b16 %v7662
      %v8227 = vunpack.c.h.b16 %v7662
      %v8228 = vunpack.c.l.b16 %v7663
      %v8229 = vunpack.c.h.b16 %v7663
      %v8230 = vunpack.c.l.b16 %v7664
      %v8231 = vunpack.c.h.b16 %v7664
      %v8232 = vunpack.c.l.b16 %v7665
      %v8233 = vunpack.c.l.b16 %v7666
      %v8234 = vunpack.c.h.b16 %v7666
      %v8235 = vunpack.c.l.b16 %v7667
      %v8236 = vunpack.c.h.b16 %v7667
      %v8237 = vunpack.c.l.b16 %v7668
      %v8238 = vunpack.c.h.b16 %v7668
      %v8239 = vunpack.c.l.b16 %v7669
      %v8240 = vunpack.c.l.b16 %v7670
      %v8241 = vunpack.c.h.b16 %v7670
      %v8242 = vunpack.c.l.b16 %v7671
      %v8243 = vunpack.c.h.b16 %v7671
      %v8244 = vunpack.c.l.b16 %v7672
      %v8245 = vunpack.c.h.b16 %v7672
      %v8246 = vunpack.c.l.b16 %v7673
      %v8247 = vunpack.c.l.b16 %v7674
      %v8248 = vunpack.c.h.b16 %v7674
      %v8249 = vunpack.c.l.b16 %v7675
      %v8250 = vunpack.c.h.b16 %v7675
      %v8251 = vunpack.c.l.b16 %v7676
      %v8252 = vunpack.c.h.b16 %v7676
      %v8253 = vunpack.c.l.b16 %v7677
      %v8254 = vunpack.c.l.b16 %v7678
      %v8255 = vunpack.c.h.b16 %v7678
      %v8256 = vunpack.c.l.b16 %v7679
      %v8257 = vunpack.c.h.b16 %v7679
      %v8258 = vunpack.c.l.b16 %v7680
      %v8259 = vunpack.c.h.b16 %v7680
      %v8260 = vunpack.c.l.b16 %v7681
      %v8261 = vunpack.c.l.b16 %v7682
      %v8262 = vunpack.c.h.b16 %v7682
      %v8263 = vunpack.c.l.b16 %v7683
      %v8264 = vunpack.c.h.b16 %v7683
      %v8265 = vunpack.c.l.b16 %v7684
      %v8266 = vunpack.c.h.b16 %v7684
      %v8267 = vunpack.c.l.b16 %v7685
      %v8268 = vunpack.c.l.b16 %v7686
      %v8269 = vunpack.c.h.b16 %v7686
      %v8270 = vunpack.c.l.b16 %v7687
      %v8271 = vunpack.c.h.b16 %v7687
      %v8272 = vunpack.c.l.b16 %v7688
      %v8273 = vunpack.c.h.b16 %v7688
      %v8274 = vunpack.c.l.b16 %v7689
      %v8275 = vunpack.c.l.b16 %v7690
      %v8276 = vunpack.c.h.b16 %v7690
      %v8277 = vunpack.c.l.b16 %v7691
      %v8278 = vunpack.c.h.b16 %v7691
      %v8279 = vunpack.c.l.b16 %v7692
      %v8280 = vunpack.c.h.b16 %v7692
      %v8281 = vunpack.c.l.b16 %v7693
      %v8282 = vunpack.c.l.b16 %v7694
      %v8283 = vunpack.c.h.b16 %v7694
      %v8284 = vunpack.c.l.b16 %v7695
      %v8285 = vunpack.c.h.b16 %v7695
      %v8286 = vunpack.c.l.b16 %v7696
      %v8287 = vunpack.c.h.b16 %v7696
      %v8288 = vunpack.c.l.b16 %v7697
      %v8289 = vunpack.c.l.b16 %v7698
      %v8290 = vunpack.c.h.b16 %v7698
      %v8291 = vunpack.c.l.b16 %v7699
      %v8292 = vunpack.c.h.b16 %v7699
      %v8293 = vunpack.c.l.b16 %v7700
      %v8294 = vunpack.c.h.b16 %v7700
      %v8295 = vunpack.c.l.b16 %v7701
      %v8296 = vunpack.c.l.b16 %v7702
      %v8297 = vunpack.c.h.b16 %v7702
      %v8298 = vunpack.c.l.b16 %v7703
      %v8299 = vunpack.c.h.b16 %v7703
      %v8300 = vunpack.c.l.b16 %v7704
      %v8301 = vunpack.c.h.b16 %v7704
      %v8302 = vunpack.c.l.b16 %v7705
      %v8303 = vunpack.c.l.b16 %v7706
      %v8304 = vunpack.c.h.b16 %v7706
      %v8305 = vunpack.c.l.b16 %v7707
      %v8306 = vunpack.c.h.b16 %v7707
      %v8307 = vunpack.c.l.b16 %v7708
      %v8308 = vunpack.c.h.b16 %v7708
      %v8309 = vunpack.c.l.b16 %v7709
      %v8310 = vunpack.c.l.b16 %v7710
      %v8311 = vunpack.c.h.b16 %v7710
      %v8312 = vunpack.c.l.b16 %v7711
      %v8313 = vunpack.c.h.b16 %v7711
      %v8314 = vunpack.c.l.b16 %v7712
      %v8315 = vunpack.c.h.b16 %v7712
      %v8316 = vunpack.c.l.b16 %v7713
      %v8317 = vunpack.c.l.b16 %v7714
      %v8318 = vunpack.c.h.b16 %v7714
      %v8319 = vunpack.c.l.b16 %v7715
      %v8320 = vunpack.c.h.b16 %v7715
      %v8321 = vunpack.c.l.b16 %v7716
      %v8322 = vunpack.c.h.b16 %v7716
      %v8323 = vunpack.c.l.b16 %v7717
      %v8324 = vunpack.c.l.b16 %v7718
      %v8325 = vunpack.c.h.b16 %v7718
      %v8326 = vunpack.c.l.b16 %v7719
      %v8327 = vunpack.c.h.b16 %v7719
      %v8328 = vunpack.c.l.b16 %v7720
      %v8329 = vunpack.c.h.b16 %v7720
      %v8330 = vunpack.c.l.b16 %v7721
      %v8331 = vunpack.c.l.b16 %v7722
      %v8332 = vunpack.c.h.b16 %v7722
      %v8333 = vunpack.c.l.b16 %v7723
      %v8334 = vunpack.c.h.b16 %v7723
      %v8335 = vunpack.c.l.b16 %v7724
      %v8336 = vunpack.c.h.b16 %v7724
      %v8337 = vunpack.c.l.b16 %v7725
      %v8338 = vunpack.c.l.b16 %v7726
      %v8339 = vunpack.c.h.b16 %v7726
      %v8340 = vunpack.c.l.b16 %v7727
      %v8341 = vunpack.c.h.b16 %v7727
      %v8342 = vunpack.c.l.b16 %v7728
      %v8343 = vunpack.c.h.b16 %v7728
      %v8344 = vunpack.c.l.b16 %v7729
      %v8345 = vunpack.c.l.b16 %v7730
      %v8346 = vunpack.c.h.b16 %v7730
      %v8347 = vunpack.c.l.b16 %v7731
      %v8348 = vunpack.c.h.b16 %v7731
      %v8349 = vunpack.c.l.b16 %v7732
      %v8350 = vunpack.c.h.b16 %v7732
      %v8351 = vunpack.c.l.b16 %v7733
      %v8352 = vunpack.c.l.b16 %v7734
      %v8353 = vunpack.c.h.b16 %v7734
      %v8354 = vunpack.c.l.b16 %v7735
      %v8355 = vunpack.c.h.b16 %v7735
      %v8356 = vunpack.c.l.b16 %v7736
      %v8357 = vunpack.c.h.b16 %v7736
      %v8358 = vunpack.c.l.b16 %v7737
      %v8359 = vunpack.c.l.b16 %v7738
      %v8360 = vunpack.c.h.b16 %v7738
      %v8361 = vunpack.c.l.b16 %v7739
      %v8362 = vunpack.c.h.b16 %v7739
      %v8363 = vunpack.c.l.b16 %v7740
      %v8364 = vunpack.c.h.b16 %v7740
      %v8365 = vunpack.c.l.b16 %v7741
      %v8366 = vunpack.c.l.b16 %v7742
      %v8367 = vunpack.c.h.b16 %v7742
      %v8368 = vunpack.c.l.b16 %v7743
      %v8369 = vunpack.c.h.b16 %v7743
      %v8370 = vunpack.c.l.b16 %v7744
      %v8371 = vunpack.c.h.b16 %v7744
      %v8372 = vunpack.c.l.b16 %v7745
      %v8373 = vunpack.c.l.b16 %v7746
      %v8374 = vunpack.c.h.b16 %v7746
      %v8375 = vunpack.c.l.b16 %v7747
      %v8376 = vunpack.c.h.b16 %v7747
      %v8377 = vunpack.c.l.b16 %v7748
      %v8378 = vunpack.c.h.b16 %v7748
      %v8379 = vunpack.c.l.b16 %v7749
      %v8380 = vunpack.c.l.b16 %v7750
      %v8381 = vunpack.c.h.b16 %v7750
      %v8382 = vunpack.c.l.b16 %v7751
      %v8383 = vunpack.c.h.b16 %v7751
      %v8384 = vunpack.c.l.b16 %v7752
      %v8385 = vunpack.c.h.b16 %v7752
      %v8386 = vunpack.c.l.b16 %v7753
      %v8387 = vunpack.c.l.b16 %v7754
      %v8388 = vunpack.c.h.b16 %v7754
      %v8389 = vunpack.c.l.b16 %v7755
      %v8390 = vunpack.c.h.b16 %v7755
      %v8391 = vunpack.c.l.b16 %v7756
      %v8392 = vunpack.c.h.b16 %v7756
      %v8393 = vunpack.c.l.b16 %v7757
      %v8394 = vunpack.c.l.b16 %v7758
      %v8395 = vunpack.c.h.b16 %v7758
      %v8396 = vunpack.c.l.b16 %v7759
      %v8397 = vunpack.c.h.b16 %v7759
      %v8398 = vunpack.c.l.b16 %v7760
      %v8399 = vunpack.c.h.b16 %v7760
      %v8400 = vunpack.c.l.b16 %v7761
      %v8401 = vunpack.c.l.b16 %v7762
      %v8402 = vunpack.c.h.b16 %v7762
      %v8403 = vunpack.c.l.b16 %v7763
      %v8404 = vunpack.c.h.b16 %v7763
      %v8405 = vunpack.c.l.b16 %v7764
      %v8406 = vunpack.c.h.b16 %v7764
      %v8407 = vunpack.c.l.b16 %v7765
      %v8408 = vunpack.c.l.b16 %v7766
      %v8409 = vunpack.c.h.b16 %v7766
      %v8410 = vunpack.c.l.b16 %v7767
      %v8411 = vunpack.c.h.b16 %v7767
      %v8412 = vunpack.c.l.b16 %v7768
      %v8413 = vunpack.c.h.b16 %v7768
      %v8414 = vunpack.c.l.b16 %v7769
      %v8415 = vunpack.c.l.b16 %v7770
      %v8416 = vunpack.c.h.b16 %v7770
      %v8417 = vunpack.c.l.b16 %v7771
      %v8418 = vunpack.c.h.b16 %v7771
      %v8419 = vunpack.c.l.b16 %v7772
      %v8420 = vunpack.c.h.b16 %v7772
      %v8421 = vunpack.c.l.b16 %v7773
      %v8422 = vunpack.c.l.b16 %v7774
      %v8423 = vunpack.c.h.b16 %v7774
      %v8424 = vunpack.c.l.b16 %v7775
      %v8425 = vunpack.c.h.b16 %v7775
      %v8426 = vunpack.c.l.b16 %v7776
      %v8427 = vunpack.c.h.b16 %v7776
      %v8428 = vunpack.c.l.b16 %v7777
      %v8429 = vunpack.c.l.b16 %v7778
      %v8430 = vunpack.c.h.b16 %v7778
      %v8431 = vunpack.c.l.b16 %v7779
      %v8432 = vunpack.c.h.b16 %v7779
      %v8433 = vunpack.c.l.b16 %v7780
      %v8434 = vunpack.c.h.b16 %v7780
      %v8435 = vunpack.c.l.b16 %v7781
      %v8436 = vunpack.c.l.b16 %v7782
      %v8437 = vunpack.c.h.b16 %v7782
      %v8438 = vunpack.c.l.b16 %v7783
      %v8439 = vunpack.c.h.b16 %v7783
      %v8440 = vunpack.c.l.b16 %v7784
      %v8441 = vunpack.c.h.b16 %v7784
      %v8442 = vunpack.c.l.b16 %v7785
      %v8443 = vunpack.c.l.b16 %v7786
      %v8444 = vunpack.c.h.b16 %v7786
      %v8445 = vunpack.c.l.b16 %v7787
      %v8446 = vunpack.c.h.b16 %v7787
      %v8447 = vunpack.c.l.b16 %v7788
      %v8448 = vunpack.c.h.b16 %v7788
      %v8449 = vunpack.c.l.b16 %v7789
      %v8450 = vunpack.c.l.b16 %v7790
      %v8451 = vunpack.c.h.b16 %v7790
      %v8452 = vunpack.c.l.b16 %v7791
      %v8453 = vunpack.c.h.b16 %v7791
      %v8454 = vunpack.c.l.b16 %v7792
      %v8455 = vunpack.c.h.b16 %v7792
      %v8456 = vunpack.c.l.b16 %v7793
      %v8457 = vunpack.c.l.b16 %v7794
      %v8458 = vunpack.c.h.b16 %v7794
      %v8459 = vunpack.c.l.b16 %v7795
      %v8460 = vunpack.c.h.b16 %v7795
      %v8461 = vunpack.c.l.b16 %v7796
      %v8462 = vunpack.c.h.b16 %v7796
      %v8463 = vunpack.c.l.b16 %v7797
      %v8464 = vunpack.c.l.b16 %v7798
      %v8465 = vunpack.c.h.b16 %v7798
      %v8466 = vunpack.c.l.b16 %v7799
      %v8467 = vunpack.c.h.b16 %v7799
      %v8468 = vunpack.c.l.b16 %v7800
      %v8469 = vunpack.c.h.b16 %v7800
      %v8470 = vunpack.c.l.b16 %v7801
      %v8471 = vunpack.c.l.b16 %v7802
      %v8472 = vunpack.c.h.b16 %v7802
      %v8473 = vunpack.c.l.b16 %v7803
      %v8474 = vunpack.c.h.b16 %v7803
      %v8475 = vunpack.c.l.b16 %v7804
      %v8476 = vunpack.c.h.b16 %v7804
      %v8477 = vunpack.c.l.b16 %v7805
      %v8478 = vunpack.c.l.b16 %v7806
      %v8479 = vunpack.c.h.b16 %v7806
      %v8480 = vunpack.c.l.b16 %v7807
      %v8481 = vunpack.c.h.b16 %v7807
      %v8482 = vunpack.c.l.b16 %v7808
      %v8483 = vunpack.c.h.b16 %v7808
      %v8484 = vunpack.c.l.b16 %v7809
      %v8485 = vunpack.c.l.b16 %v7810
      %v8486 = vunpack.c.h.b16 %v7810
      %v8487 = vunpack.c.l.b16 %v7811
      %v8488 = vunpack.c.h.b16 %v7811
      %v8489 = vunpack.c.l.b16 %v7812
      %v8490 = vunpack.c.h.b16 %v7812
      %v8491 = vunpack.c.l.b16 %v7813
      %v8492 = vunpack.c.l.b16 %v7814
      %v8493 = vunpack.c.h.b16 %v7814
      %v8494 = vunpack.c.l.b16 %v7815
      %v8495 = vunpack.c.h.b16 %v7815
      %v8496 = vunpack.c.l.b16 %v7816
      %v8497 = vunpack.c.h.b16 %v7816
      %v8498 = vunpack.c.l.b16 %v7817
      %v8499 = vunpack.c.l.b16 %v7818
      %v8500 = vunpack.c.h.b16 %v7818
      %v8501 = vunpack.c.l.b16 %v7819
      %v8502 = vunpack.c.h.b16 %v7819
      %v8503 = vunpack.c.l.b16 %v7820
      %v8504 = vunpack.c.h.b16 %v7820
      %v8505 = vunpack.c.l.b16 %v7821
      %v8506 = vunpack.c.l.b16 %v7822
      %v8507 = vunpack.c.h.b16 %v7822
      %v8508 = vunpack.c.l.b16 %v7823
      %v8509 = vunpack.c.h.b16 %v7823
      %v8510 = vunpack.c.l.b16 %v7824
      %v8511 = vunpack.c.h.b16 %v7824
      %v8512 = vunpack.c.l.b16 %v7825
      %v8513 = vunpack.c.l.b16 %v7826
      %v8514 = vunpack.c.h.b16 %v7826
      %v8515 = vunpack.c.l.b16 %v7827
      %v8516 = vunpack.c.h.b16 %v7827
      %v8517 = vunpack.c.l.b16 %v7828
      %v8518 = vunpack.c.h.b16 %v7828
      %v8519 = vunpack.c.l.b16 %v7829
      %v8520 = vunpack.c.l.b16 %v7830
      %v8521 = vunpack.c.h.b16 %v7830
      %v8522 = vunpack.c.l.b16 %v7831
      %v8523 = vunpack.c.h.b16 %v7831
      %v8524 = vunpack.c.l.b16 %v7832
      %v8525 = vunpack.c.h.b16 %v7832
      %v8526 = vunpack.c.l.b16 %v7833
      %v8527 = vunpack.c.l.b16 %v7834
      %v8528 = vunpack.c.h.b16 %v7834
      %v8529 = vunpack.c.l.b16 %v7835
      %v8530 = vunpack.c.h.b16 %v7835
      %v8531 = vunpack.c.l.b16 %v7836
      %v8532 = vunpack.c.h.b16 %v7836
      %v8533 = vunpack.c.l.b16 %v7837
      %v8534 = vunpack.c.l.b16 %v7838
      %v8535 = vunpack.c.h.b16 %v7838
      %v8536 = vunpack.c.l.b16 %v7839
      %v8537 = vunpack.c.h.b16 %v7839
      %v8538 = vunpack.c.l.b16 %v7840
      %v8539 = vunpack.c.h.b16 %v7840
      %v8540 = vunpack.c.l.b16 %v7841
      %v8541 = vunpack.c.l.b16 %v7842
      %v8542 = vunpack.c.h.b16 %v7842
      %v8543 = vunpack.c.l.b16 %v7843
      %v8544 = vunpack.c.h.b16 %v7843
      %v8545 = vunpack.c.l.b16 %v7844
      %v8546 = vunpack.c.h.b16 %v7844
      %v8547 = vunpack.c.l.b16 %v7845
      %v8548 = vunpack.c.l.b16 %v7846
      %v8549 = vunpack.c.h.b16 %v7846
      %v8550 = vunpack.c.l.b16 %v7847
      %v8551 = vunpack.c.h.b16 %v7847
      %v8552 = vunpack.c.l.b16 %v7848
      %v8553 = vunpack.c.h.b16 %v7848
      %v8554 = vunpack.c.l.b16 %v7849
      %v8555 = vunpack.c.l.b16 %v7850
      %v8556 = vunpack.c.h.b16 %v7850
      %v8557 = vunpack.c.l.b16 %v7851
      %v8558 = vunpack.c.h.b16 %v7851
      %v8559 = vunpack.c.l.b16 %v7852
      %v8560 = vunpack.c.h.b16 %v7852
      %v8561 = vunpack.c.l.b16 %v7853
      %v8562 = vunpack.c.l.b16 %v7854
      %v8563 = vunpack.c.h.b16 %v7854
      %v8564 = vunpack.c.l.b16 %v7855
      %v8565 = vunpack.c.h.b16 %v7855
      %v8566 = vunpack.c.l.b16 %v7856
      %v8567 = vunpack.c.h.b16 %v7856
      %v8568 = vunpack.c.l.b16 %v7857
      %v8569 = vunpack.c.l.b16 %v7858
      %v8570 = vunpack.c.h.b16 %v7858
      %v8571 = vunpack.c.l.b16 %v7859
      %v8572 = vunpack.c.h.b16 %v7859
      %v8573 = vunpack.c.l.b16 %v7860
      %v8574 = vunpack.c.h.b16 %v7860
      %v8575 = vunpack.c.l.b16 %v7861
      %v8576 = vunpack.c.l.b16 %v7862
      %v8577 = vunpack.c.h.b16 %v7862
      %v8578 = vunpack.c.l.b16 %v7863
      %v8579 = vunpack.c.h.b16 %v7863
      %v8580 = vunpack.c.l.b16 %v7864
      %v8581 = vunpack.c.h.b16 %v7864
      %v8582 = vunpack.c.l.b16 %v7865
      %v8583 = vunpack.c.l.b16 %v7866
      %v8584 = vunpack.c.h.b16 %v7866
      %v8585 = vunpack.c.l.b16 %v7867
      %v8586 = vunpack.c.h.b16 %v7867
      %v8587 = vunpack.c.l.b16 %v7868
      %v8588 = vunpack.c.h.b16 %v7868
      %v8589 = vunpack.c.l.b16 %v7869
      %v8590 = vunpack.c.l.b16 %v7870
      %v8591 = vunpack.c.h.b16 %v7870
      %v8592 = vunpack.c.l.b16 %v7871
      %v8593 = vunpack.c.h.b16 %v7871
      %v8594 = vunpack.c.l.b16 %v7872
      %v8595 = vunpack.c.h.b16 %v7872
      %v8596 = vunpack.c.l.b16 %v7873
      %v8597 = vunpack.c.l.b16 %v7874
      %v8598 = vunpack.c.h.b16 %v7874
      %v8599 = vunpack.c.l.b16 %v7875
      %v8600 = vunpack.c.h.b16 %v7875
      %v8601 = vunpack.c.l.b16 %v7876
      %v8602 = vunpack.c.h.b16 %v7876
      %v8603 = vunpack.c.l.b16 %v7877
      %v8604 = vunpack.c.l.b16 %v7878
      %v8605 = vunpack.c.h.b16 %v7878
      %v8606 = vunpack.c.l.b16 %v7879
      %v8607 = vunpack.c.h.b16 %v7879
      %v8608 = vunpack.c.l.b16 %v7880
      %v8609 = vunpack.c.h.b16 %v7880
      %v8610 = vunpack.c.l.b16 %v7881
      %v8611 = vunpack.c.l.b16 %v7882
      %v8612 = vunpack.c.h.b16 %v7882
      %v8613 = vunpack.c.l.b16 %v7883
      %v8614 = vunpack.c.h.b16 %v7883
      %v8615 = vunpack.c.l.b16 %v7884
      %v8616 = vunpack.c.h.b16 %v7884
      %v8617 = vunpack.c.l.b16 %v7885
      %v8618 = vunpack.c.l.b16 %v7886
      %v8619 = vunpack.c.h.b16 %v7886
      %v8620 = vunpack.c.l.b16 %v7887
      %v8621 = vunpack.c.h.b16 %v7887
      %v8622 = vunpack.c.l.b16 %v7888
      %v8623 = vunpack.c.h.b16 %v7888
      %v8624 = vunpack.c.l.b16 %v7889
      %v8625 = vunpack.c.l.b16 %v7890
      %v8626 = vunpack.c.h.b16 %v7890
      %v8627 = vunpack.c.l.b16 %v7891
      %v8628 = vunpack.c.h.b16 %v7891
      %v8629 = vunpack.c.l.b16 %v7892
      %v8630 = vunpack.c.h.b16 %v7892
      %v8631 = vunpack.c.l.b16 %v7893
      %v8632 = vunpack.c.l.b16 %v7894
      %v8633 = vunpack.c.h.b16 %v7894
      %v8634 = vunpack.c.l.b16 %v7895
      %v8635 = vunpack.c.h.b16 %v7895
      %v8636 = vunpack.c.l.b16 %v7896
      %v8637 = vunpack.c.h.b16 %v7896
      %v8638 = vunpack.c.l.b16 %v7897
      %v8639 = vpack.c.b16 %v8198, %v8191
      %v8640 = vpack.c.b16 %v8199, %v8192
      %v8641 = vpack.c.b16 %v8200, %v8193
      %v8642 = vpack.c.b16 %v8201, %v8194
      %v8643 = vpack.c.b16 %v8202, %v8195
      %v8644 = vpack.c.b16 %v8203, %v8196
      %v8645 = vpack.c.b16 %v8204, %v8197
      %v8646 = vpack.c.b16 %v8212, %v8205
      %v8647 = vpack.c.b16 %v8213, %v8206
      %v8648 = vpack.c.b16 %v8214, %v8207
      %v8649 = vpack.c.b16 %v8215, %v8208
      %v8650 = vpack.c.b16 %v8216, %v8209
      %v8651 = vpack.c.b16 %v8217, %v8210
      %v8652 = vpack.c.b16 %v8218, %v8211
      %v8653 = vpack.c.b16 %v8226, %v8219
      %v8654 = vpack.c.b16 %v8227, %v8220
      %v8655 = vpack.c.b16 %v8228, %v8221
      %v8656 = vpack.c.b16 %v8229, %v8222
      %v8657 = vpack.c.b16 %v8230, %v8223
      %v8658 = vpack.c.b16 %v8231, %v8224
      %v8659 = vpack.c.b16 %v8232, %v8225
      %v8660 = vpack.c.b16 %v8240, %v8233
      %v8661 = vpack.c.b16 %v8241, %v8234
      %v8662 = vpack.c.b16 %v8242, %v8235
      %v8663 = vpack.c.b16 %v8243, %v8236
      %v8664 = vpack.c.b16 %v8244, %v8237
      %v8665 = vpack.c.b16 %v8245, %v8238
      %v8666 = vpack.c.b16 %v8246, %v8239
      %v8667 = vpack.c.b16 %v8254, %v8247
      %v8668 = vpack.c.b16 %v8255, %v8248
      %v8669 = vpack.c.b16 %v8256, %v8249
      %v8670 = vpack.c.b16 %v8257, %v8250
      %v8671 = vpack.c.b16 %v8258, %v8251
      %v8672 = vpack.c.b16 %v8259, %v8252
      %v8673 = vpack.c.b16 %v8260, %v8253
      %v8674 = vpack.c.b16 %v8268, %v8261
      %v8675 = vpack.c.b16 %v8269, %v8262
      %v8676 = vpack.c.b16 %v8270, %v8263
      %v8677 = vpack.c.b16 %v8271, %v8264
      %v8678 = vpack.c.b16 %v8272, %v8265
      %v8679 = vpack.c.b16 %v8273, %v8266
      %v8680 = vpack.c.b16 %v8274, %v8267
      %v8681 = vpack.c.b16 %v8282, %v8275
      %v8682 = vpack.c.b16 %v8283, %v8276
      %v8683 = vpack.c.b16 %v8284, %v8277
      %v8684 = vpack.c.b16 %v8285, %v8278
      %v8685 = vpack.c.b16 %v8286, %v8279
      %v8686 = vpack.c.b16 %v8287, %v8280
      %v8687 = vpack.c.b16 %v8288, %v8281
      %v8688 = vpack.c.b16 %v8296, %v8289
      %v8689 = vpack.c.b16 %v8297, %v8290
      %v8690 = vpack.c.b16 %v8298, %v8291
      %v8691 = vpack.c.b16 %v8299, %v8292
      %v8692 = vpack.c.b16 %v8300, %v8293
      %v8693 = vpack.c.b16 %v8301, %v8294
      %v8694 = vpack.c.b16 %v8302, %v8295
      %v8695 = vpack.c.b16 %v8310, %v8303
      %v8696 = vpack.c.b16 %v8311, %v8304
      %v8697 = vpack.c.b16 %v8312, %v8305
      %v8698 = vpack.c.b16 %v8313, %v8306
      %v8699 = vpack.c.b16 %v8314, %v8307
      %v8700 = vpack.c.b16 %v8315, %v8308
      %v8701 = vpack.c.b16 %v8316, %v8309
      %v8702 = vpack.c.b16 %v8324, %v8317
      %v8703 = vpack.c.b16 %v8325, %v8318
      %v8704 = vpack.c.b16 %v8326, %v8319
      %v8705 = vpack.c.b16 %v8327, %v8320
      %v8706 = vpack.c.b16 %v8328, %v8321
      %v8707 = vpack.c.b16 %v8329, %v8322
      %v8708 = vpack.c.b16 %v8330, %v8323
      %v8709 = vpack.c.b16 %v8338, %v8331
      %v8710 = vpack.c.b16 %v8339, %v8332
      %v8711 = vpack.c.b16 %v8340, %v8333
      %v8712 = vpack.c.b16 %v8341, %v8334
      %v8713 = vpack.c.b16 %v8342, %v8335
      %v8714 = vpack.c.b16 %v8343, %v8336
      %v8715 = vpack.c.b16 %v8344, %v8337
      %v8716 = vpack.c.b16 %v8352, %v8345
      %v8717 = vpack.c.b16 %v8353, %v8346
      %v8718 = vpack.c.b16 %v8354, %v8347
      %v8719 = vpack.c.b16 %v8355, %v8348
      %v8720 = vpack.c.b16 %v8356, %v8349
      %v8721 = vpack.c.b16 %v8357, %v8350
      %v8722 = vpack.c.b16 %v8358, %v8351
      %v8723 = vpack.c.b16 %v8366, %v8359
      %v8724 = vpack.c.b16 %v8367, %v8360
      %v8725 = vpack.c.b16 %v8368, %v8361
      %v8726 = vpack.c.b16 %v8369, %v8362
      %v8727 = vpack.c.b16 %v8370, %v8363
      %v8728 = vpack.c.b16 %v8371, %v8364
      %v8729 = vpack.c.b16 %v8372, %v8365
      %v8730 = vpack.c.b16 %v8380, %v8373
      %v8731 = vpack.c.b16 %v8381, %v8374
      %v8732 = vpack.c.b16 %v8382, %v8375
      %v8733 = vpack.c.b16 %v8383, %v8376
      %v8734 = vpack.c.b16 %v8384, %v8377
      %v8735 = vpack.c.b16 %v8385, %v8378
      %v8736 = vpack.c.b16 %v8386, %v8379
      %v8737 = vpack.c.b16 %v8394, %v8387
      %v8738 = vpack.c.b16 %v8395, %v8388
      %v8739 = vpack.c.b16 %v8396, %v8389
      %v8740 = vpack.c.b16 %v8397, %v8390
      %v8741 = vpack.c.b16 %v8398, %v8391
      %v8742 = vpack.c.b16 %v8399, %v8392
      %v8743 = vpack.c.b16 %v8400, %v8393
      %v8744 = vpack.c.b16 %v8408, %v8401
      %v8745 = vpack.c.b16 %v8409, %v8402
      %v8746 = vpack.c.b16 %v8410, %v8403
      %v8747 = vpack.c.b16 %v8411, %v8404
      %v8748 = vpack.c.b16 %v8412, %v8405
      %v8749 = vpack.c.b16 %v8413, %v8406
      %v8750 = vpack.c.b16 %v8414, %v8407
      %v8751 = vpack.c.b16 %v8422, %v8415
      %v8752 = vpack.c.b16 %v8423, %v8416
      %v8753 = vpack.c.b16 %v8424, %v8417
      %v8754 = vpack.c.b16 %v8425, %v8418
      %v8755 = vpack.c.b16 %v8426, %v8419
      %v8756 = vpack.c.b16 %v8427, %v8420
      %v8757 = vpack.c.b16 %v8428, %v8421
      %v8758 = vpack.c.b16 %v8436, %v8429
      %v8759 = vpack.c.b16 %v8437, %v8430
      %v8760 = vpack.c.b16 %v8438, %v8431
      %v8761 = vpack.c.b16 %v8439, %v8432
      %v8762 = vpack.c.b16 %v8440, %v8433
      %v8763 = vpack.c.b16 %v8441, %v8434
      %v8764 = vpack.c.b16 %v8442, %v8435
      %v8765 = vpack.c.b16 %v8450, %v8443
      %v8766 = vpack.c.b16 %v8451, %v8444
      %v8767 = vpack.c.b16 %v8452, %v8445
      %v8768 = vpack.c.b16 %v8453, %v8446
      %v8769 = vpack.c.b16 %v8454, %v8447
      %v8770 = vpack.c.b16 %v8455, %v8448
      %v8771 = vpack.c.b16 %v8456, %v8449
      %v8772 = vpack.c.b16 %v8464, %v8457
      %v8773 = vpack.c.b16 %v8465, %v8458
      %v8774 = vpack.c.b16 %v8466, %v8459
      %v8775 = vpack.c.b16 %v8467, %v8460
      %v8776 = vpack.c.b16 %v8468, %v8461
      %v8777 = vpack.c.b16 %v8469, %v8462
      %v8778 = vpack.c.b16 %v8470, %v8463
      %v8779 = vpack.c.b16 %v8478, %v8471
      %v8780 = vpack.c.b16 %v8479, %v8472
      %v8781 = vpack.c.b16 %v8480, %v8473
      %v8782 = vpack.c.b16 %v8481, %v8474
      %v8783 = vpack.c.b16 %v8482, %v8475
      %v8784 = vpack.c.b16 %v8483, %v8476
      %v8785 = vpack.c.b16 %v8484, %v8477
      %v8786 = vpack.c.b16 %v8492, %v8485
      %v8787 = vpack.c.b16 %v8493, %v8486
      %v8788 = vpack.c.b16 %v8494, %v8487
      %v8789 = vpack.c.b16 %v8495, %v8488
      %v8790 = vpack.c.b16 %v8496, %v8489
      %v8791 = vpack.c.b16 %v8497, %v8490
      %v8792 = vpack.c.b16 %v8498, %v8491
      %v8793 = vpack.c.b16 %v8506, %v8499
      %v8794 = vpack.c.b16 %v8507, %v8500
      %v8795 = vpack.c.b16 %v8508, %v8501
      %v8796 = vpack.c.b16 %v8509, %v8502
      %v8797 = vpack.c.b16 %v8510, %v8503
      %v8798 = vpack.c.b16 %v8511, %v8504
      %v8799 = vpack.c.b16 %v8512, %v8505
      %v8800 = vpack.c.b16 %v8520, %v8513
      %v8801 = vpack.c.b16 %v8521, %v8514
      %v8802 = vpack.c.b16 %v8522, %v8515
      %v8803 = vpack.c.b16 %v8523, %v8516
      %v8804 = vpack.c.b16 %v8524, %v8517
      %v8805 = vpack.c.b16 %v8525, %v8518
      %v8806 = vpack.c.b16 %v8526, %v8519
      %v8807 = vpack.c.b16 %v8534, %v8527
      %v8808 = vpack.c.b16 %v8535, %v8528
      %v8809 = vpack.c.b16 %v8536, %v8529
      %v8810 = vpack.c.b16 %v8537, %v8530
      %v8811 = vpack.c.b16 %v8538, %v8531
      %v8812 = vpack.c.b16 %v8539, %v8532
      %v8813 = vpack.c.b16 %v8540, %v8533
      %v8814 = vpack.c.b16 %v8548, %v8541
      %v8815 = vpack.c.b16 %v8549, %v8542
      %v8816 = vpack.c.b16 %v8550, %v8543
      %v8817 = vpack.c.b16 %v8551, %v8544
      %v8818 = vpack.c.b16 %v8552, %v8545
      %v8819 = vpack.c.b16 %v8553, %v8546
      %v8820 = vpack.c.b16 %v8554, %v8547
      %v8821 = vpack.c.b16 %v8562, %v8555
      %v8822 = vpack.c.b16 %v8563, %v8556
      %v8823 = vpack.c.b16 %v8564, %v8557
      %v8824 = vpack.c.b16 %v8565, %v8558
      %v8825 = vpack.c.b16 %v8566, %v8559
      %v8826 = vpack.c.b16 %v8567, %v8560
      %v8827 = vpack.c.b16 %v8568, %v8561
      %v8828 = vpack.c.b16 %v8576, %v8569
      %v8829 = vpack.c.b16 %v8577, %v8570
      %v8830 = vpack.c.b16 %v8578, %v8571
      %v8831 = vpack.c.b16 %v8579, %v8572
      %v8832 = vpack.c.b16 %v8580, %v8573
      %v8833 = vpack.c.b16 %v8581, %v8574
      %v8834 = vpack.c.b16 %v8582, %v8575
      %v8835 = vpack.c.b16 %v8590, %v8583
      %v8836 = vpack.c.b16 %v8591, %v8584
      %v8837 = vpack.c.b16 %v8592, %v8585
      %v8838 = vpack.c.b16 %v8593, %v8586
      %v8839 = vpack.c.b16 %v8594, %v8587
      %v8840 = vpack.c.b16 %v8595, %v8588
      %v8841 = vpack.c.b16 %v8596, %v8589
      %v8842 = vpack.c.b16 %v8604, %v8597
      %v8843 = vpack.c.b16 %v8605, %v8598
      %v8844 = vpack.c.b16 %v8606, %v8599
      %v8845 = vpack.c.b16 %v8607, %v8600
      %v8846 = vpack.c.b16 %v8608, %v8601
      %v8847 = vpack.c.b16 %v8609, %v8602
      %v8848 = vpack.c.b16 %v8610, %v8603
      %v8849 = vpack.c.b16 %v8618, %v8611
      %v8850 = vpack.c.b16 %v8619, %v8612
      %v8851 = vpack.c.b16 %v8620, %v8613
      %v8852 = vpack.c.b16 %v8621, %v8614
      %v8853 = vpack.c.b16 %v8622, %v8615
      %v8854 = vpack.c.b16 %v8623, %v8616
      %v8855 = vpack.c.b16 %v8624, %v8617
      %v8856 = vpack.c.b16 %v8632, %v8625
      %v8857 = vpack.c.b16 %v8633, %v8626
      %v8858 = vpack.c.b16 %v8634, %v8627
      %v8859 = vpack.c.b16 %v8635, %v8628
      %v8860 = vpack.c.b16 %v8636, %v8629
      %v8861 = vpack.c.b16 %v8637, %v8630
      %v8862 = vpack.c.b16 %v8638, %v8631
      %9087 = vmatprep.subr.bf16.mxu0 %v8689
      %9088 = vmatpush1.bf16.msra.mxu0 %v8688
      %9089 = vmatprep.subr.bf16.mxu0 %v8682
      %9090 = vmatpush1.bf16.msra.mxu0 %v8681
      %9091 = vmatprep.subr.bf16.mxu0 %v8675
      %9092 = vmatpush1.bf16.msra.mxu0 %v8674
      %9093 = vmatprep.subr.bf16.mxu0 %v8668
      %9094 = vmatpush1.bf16.msra.mxu0 %v8667
      %9095 = vmatprep.subr.bf16.mxu0 %v8661
      %9096 = vmatpush1.bf16.msra.mxu0 %v8660
      %9097 = vmatprep.subr.bf16.mxu0 %v8654
      %9098 = vmatpush1.bf16.msra.mxu0 %v8653
      %9099 = vmatprep.subr.bf16.mxu0 %v8647
      %9100 = vmatpush1.bf16.msra.mxu0 %v8646
      %9101 = vmatprep.subr.bf16.mxu0 %v8640
      %9102 = vmatpush1.bf16.msra.mxu0 %v8639
      %9103 = vmatprep.subr.bf16.mxu0 %v8745
      %9104 = vmatpush2.bf16.msra.mxu0 %v8744
      %9105 = vmatprep.subr.bf16.mxu0 %v8738
      %9106 = vmatpush2.bf16.msra.mxu0 %v8737
      %9107 = vmatprep.subr.bf16.mxu0 %v8731
      %9108 = vmatpush2.bf16.msra.mxu0 %v8730
      %9109 = vmatprep.subr.bf16.mxu0 %v8724
      %9110 = vmatpush2.bf16.msra.mxu0 %v8723
      %9111 = vmatprep.subr.bf16.mxu0 %v8717
      %9112 = vmatpush2.bf16.msra.mxu0 %v8716
      %9113 = vmatprep.subr.bf16.mxu0 %v8710
      %9114 = vmatpush2.bf16.msra.mxu0 %v8709
      %9115 = vmatprep.subr.bf16.mxu0 %v8703
      %9116 = vmatpush2.bf16.msra.mxu0 %v8702
      %9117 = vmatprep.subr.bf16.mxu0 %v8696
      %9118 = vmatpush2.bf16.msra.mxu0 %v8695
      %9119 = vmatprep.mubr.bf16.mxu0 %v7289
      %9120 = vmatmul.mubr.bf16.gmra.mxu0 %v7288
      %v9121 = vpop.f32.mrf.mxu0
      %v9122 = vadd.f32 %v7903, %v9121
      %v9123 = vpop.f32.mrf.mxu0
      %v9124 = vadd.f32 %v7907, %v9123
      %v9125 = vpop.f32.mrf.mxu0
      %v9126 = vadd.f32 %v7903, %v9125
      %v9127 = vpop.f32.mrf.mxu0
      %v9128 = vadd.f32 %v7907, %v9127
      %9129 = vmatprep.mubr.bf16.mxu0 %v7293
      %9130 = vmatmul.mubr.bf16.gmra.mxu0 %v7292
      %v9131 = vpop.f32.mrf.mxu0
      %v9132 = vadd.f32 %v7903, %v9131
      %v9133 = vpop.f32.mrf.mxu0
      %v9134 = vadd.f32 %v7907, %v9133
      %v9135 = vpop.f32.mrf.mxu0
      %v9136 = vadd.f32 %v7903, %v9135
      %v9137 = vpop.f32.mrf.mxu0
      %v9138 = vadd.f32 %v7907, %v9137
      %9139 = vmatprep.mubr.bf16.mxu0 %v7297
      %9140 = vmatmul.mubr.bf16.gmra.mxu0 %v7296
      %v9141 = vpop.f32.mrf.mxu0
      %v9142 = vadd.f32 %v7903, %v9141
      %v9143 = vpop.f32.mrf.mxu0
      %v9144 = vadd.f32 %v7907, %v9143
      %v9145 = vpop.f32.mrf.mxu0
      %v9146 = vadd.f32 %v7903, %v9145
      %v9147 = vpop.f32.mrf.mxu0
      %v9148 = vadd.f32 %v7907, %v9147
      %9149 = vmatprep.mubr.bf16.mxu0 %v7301
      %9150 = vmatmul.mubr.bf16.gmra.mxu0 %v7300
      %v9151 = vpop.f32.mrf.mxu0
      %v9152 = vadd.f32 %v7903, %v9151
      %v9153 = vpop.f32.mrf.mxu0
      %v9154 = vadd.f32 %v7907, %v9153
      %v9155 = vpop.f32.mrf.mxu0
      %v9156 = vadd.f32 %v7903, %v9155
      %v9157 = vpop.f32.mrf.mxu0
      %v9158 = vadd.f32 %v7907, %v9157
      %9159 = vmatprep.mubr.bf16.mxu0 %v7305
      %9160 = vmatmul.mubr.bf16.gmra.mxu0 %v7304
      %v9161 = vpop.f32.mrf.mxu0
      %v9162 = vadd.f32 %v7903, %v9161
      %v9163 = vpop.f32.mrf.mxu0
      %v9164 = vadd.f32 %v7907, %v9163
      %v9165 = vpop.f32.mrf.mxu0
      %v9166 = vadd.f32 %v7903, %v9165
      %v9167 = vpop.f32.mrf.mxu0
      %v9168 = vadd.f32 %v7907, %v9167
      %9169 = vmatprep.mubr.bf16.mxu0 %v7309
      %9170 = vmatmul.mubr.bf16.gmra.mxu0 %v7308
      %v9171 = vpop.f32.mrf.mxu0
      %v9172 = vadd.f32 %v7903, %v9171
      %v9173 = vpop.f32.mrf.mxu0
      %v9174 = vadd.f32 %v7907, %v9173
      %v9175 = vpop.f32.mrf.mxu0
      %v9176 = vadd.f32 %v7903, %v9175
      %v9177 = vpop.f32.mrf.mxu0
      %v9178 = vadd.f32 %v7907, %v9177
      %9179 = vmatprep.mubr.bf16.mxu0 %v7313
      %9180 = vmatmul.mubr.bf16.gmra.mxu0 %v7312
      %v9181 = vpop.f32.mrf.mxu0
      %v9182 = vadd.f32 %v7903, %v9181
      %v9183 = vpop.f32.mrf.mxu0
      %v9184 = vadd.f32 %v7907, %v9183
      %v9185 = vpop.f32.mrf.mxu0
      %v9186 = vadd.f32 %v7903, %v9185
      %v9187 = vpop.f32.mrf.mxu0
      %v9188 = vadd.f32 %v7907, %v9187
      %9189 = vmatprep.mubr.bf16.mxu0 %v7317
      %9190 = vmatmul.mubr.bf16.gmra.mxu0 %v7316
      %v9191 = vpop.f32.mrf.mxu0
      %v9192 = vadd.f32 %v7903, %v9191
      %v9193 = vpop.f32.mrf.mxu0
      %v9194 = vadd.f32 %v7907, %v9193
      %v9195 = vpop.f32.mrf.mxu0
      %v9196 = vadd.f32 %v7903, %v9195
      %v9197 = vpop.f32.mrf.mxu0
      %v9198 = vadd.f32 %v7907, %v9197
      %9199 = vdwg.mxu0
      %9200 = vmatprep.subr.bf16.mxu0 %v8801
      %9201 = vmatpush1.bf16.msra.mxu0 %v8800
      %9202 = vmatprep.subr.bf16.mxu0 %v8794
      %9203 = vmatpush1.bf16.msra.mxu0 %v8793
      %9204 = vmatprep.subr.bf16.mxu0 %v8787
      %9205 = vmatpush1.bf16.msra.mxu0 %v8786
      %9206 = vmatprep.subr.bf16.mxu0 %v8780
      %9207 = vmatpush1.bf16.msra.mxu0 %v8779
      %9208 = vmatprep.subr.bf16.mxu0 %v8773
      %9209 = vmatpush1.bf16.msra.mxu0 %v8772
      %9210 = vmatprep.subr.bf16.mxu0 %v8766
      %9211 = vmatpush1.bf16.msra.mxu0 %v8765
      %9212 = vmatprep.subr.bf16.mxu0 %v8759
      %9213 = vmatpush1.bf16.msra.mxu0 %v8758
      %9214 = vmatprep.subr.bf16.mxu0 %v8752
      %9215 = vmatpush1.bf16.msra.mxu0 %v8751
      %9216 = vmatprep.subr.bf16.mxu0 %v8857
      %9217 = vmatpush2.bf16.msra.mxu0 %v8856
      %9218 = vmatprep.subr.bf16.mxu0 %v8850
      %9219 = vmatpush2.bf16.msra.mxu0 %v8849
      %9220 = vmatprep.subr.bf16.mxu0 %v8843
      %9221 = vmatpush2.bf16.msra.mxu0 %v8842
      %9222 = vmatprep.subr.bf16.mxu0 %v8836
      %9223 = vmatpush2.bf16.msra.mxu0 %v8835
      %9224 = vmatprep.subr.bf16.mxu0 %v8829
      %9225 = vmatpush2.bf16.msra.mxu0 %v8828
      %9226 = vmatprep.subr.bf16.mxu0 %v8822
      %9227 = vmatpush2.bf16.msra.mxu0 %v8821
      %9228 = vmatprep.subr.bf16.mxu0 %v8815
      %9229 = vmatpush2.bf16.msra.mxu0 %v8814
      %9230 = vmatprep.subr.bf16.mxu0 %v8808
      %9231 = vmatpush2.bf16.msra.mxu0 %v8807
      %9232 = vmatprep.mubr.bf16.mxu0 %v7291
      %9233 = vmatmul.mubr.bf16.gmra.mxu0 %v7290
      %v9234 = vpop.f32.mrf.mxu0
      %v9235 = vadd.f32 %v9122, %v9234
      %v9236 = vpop.f32.mrf.mxu0
      %v9237 = vadd.f32 %v9124, %v9236
      %v9238 = vpop.f32.mrf.mxu0
      %v9239 = vadd.f32 %v9126, %v9238
      %v9240 = vpop.f32.mrf.mxu0
      %v9241 = vadd.f32 %v9128, %v9240
      %9242 = vmatprep.mubr.bf16.mxu0 %v7295
      %9243 = vmatmul.mubr.bf16.gmra.mxu0 %v7294
      %v9244 = vpop.f32.mrf.mxu0
      %v9245 = vadd.f32 %v9132, %v9244
      %v9246 = vpop.f32.mrf.mxu0
      %v9247 = vadd.f32 %v9134, %v9246
      %v9248 = vpop.f32.mrf.mxu0
      %v9249 = vadd.f32 %v9136, %v9248
      %v9250 = vpop.f32.mrf.mxu0
      %v9251 = vadd.f32 %v9138, %v9250
      %9252 = vmatprep.mubr.bf16.mxu0 %v7299
      %9253 = vmatmul.mubr.bf16.gmra.mxu0 %v7298
      %v9254 = vpop.f32.mrf.mxu0
      %v9255 = vadd.f32 %v9142, %v9254
      %v9256 = vpop.f32.mrf.mxu0
      %v9257 = vadd.f32 %v9144, %v9256
      %v9258 = vpop.f32.mrf.mxu0
      %v9259 = vadd.f32 %v9146, %v9258
      %v9260 = vpop.f32.mrf.mxu0
      %v9261 = vadd.f32 %v9148, %v9260
      %9262 = vmatprep.mubr.bf16.mxu0 %v7303
      %9263 = vmatmul.mubr.bf16.gmra.mxu0 %v7302
      %v9264 = vpop.f32.mrf.mxu0
      %v9265 = vadd.f32 %v9152, %v9264
      %v9266 = vpop.f32.mrf.mxu0
      %v9267 = vadd.f32 %v9154, %v9266
      %v9268 = vpop.f32.mrf.mxu0
      %v9269 = vadd.f32 %v9156, %v9268
      %v9270 = vpop.f32.mrf.mxu0
      %v9271 = vadd.f32 %v9158, %v9270
      %9272 = vmatprep.mubr.bf16.mxu0 %v7307
      %9273 = vmatmul.mubr.bf16.gmra.mxu0 %v7306
      %v9274 = vpop.f32.mrf.mxu0
      %v9275 = vadd.f32 %v9162, %v9274
      %v9276 = vpop.f32.mrf.mxu0
      %v9277 = vadd.f32 %v9164, %v9276
      %v9278 = vpop.f32.mrf.mxu0
      %v9279 = vadd.f32 %v9166, %v9278
      %v9280 = vpop.f32.mrf.mxu0
      %v9281 = vadd.f32 %v9168, %v9280
      %9282 = vmatprep.mubr.bf16.mxu0 %v7311
      %9283 = vmatmul.mubr.bf16.gmra.mxu0 %v7310
      %v9284 = vpop.f32.mrf.mxu0
      %v9285 = vadd.f32 %v9172, %v9284
      %v9286 = vpop.f32.mrf.mxu0
      %v9287 = vadd.f32 %v9174, %v9286
      %v9288 = vpop.f32.mrf.mxu0
      %v9289 = vadd.f32 %v9176, %v9288
      %v9290 = vpop.f32.mrf.mxu0
      %v9291 = vadd.f32 %v9178, %v9290
      %9292 = vmatprep.mubr.bf16.mxu0 %v7315
      %9293 = vmatmul.mubr.bf16.gmra.mxu0 %v7314
      %v9294 = vpop.f32.mrf.mxu0
      %v9295 = vadd.f32 %v9182, %v9294
      %v9296 = vpop.f32.mrf.mxu0
      %v9297 = vadd.f32 %v9184, %v9296
      %v9298 = vpop.f32.mrf.mxu0
      %v9299 = vadd.f32 %v9186, %v9298
      %v9300 = vpop.f32.mrf.mxu0
      %v9301 = vadd.f32 %v9188, %v9300
      %9302 = vmatprep.mubr.bf16.mxu0 %v7319
      %9303 = vmatmul.mubr.bf16.gmra.mxu0 %v7318
      %v9304 = vpop.f32.mrf.mxu0
      %v9305 = vadd.f32 %v9192, %v9304
      %v9306 = vpop.f32.mrf.mxu0
      %v9307 = vadd.f32 %v9194, %v9306
      %v9308 = vpop.f32.mrf.mxu0
      %v9309 = vadd.f32 %v9196, %v9308
      %v9310 = vpop.f32.mrf.mxu0
      %v9311 = vadd.f32 %v9198, %v9310
      %9312 = vdwg.mxu0
      %9313 = vmatprep.subr.bf16.mxu0 %v8691
      %9314 = vmatpush1.bf16.msra.mxu0 %v8690
      %9315 = vmatprep.subr.bf16.mxu0 %v8684
      %9316 = vmatpush1.bf16.msra.mxu0 %v8683
      %9317 = vmatprep.subr.bf16.mxu0 %v8677
      %9318 = vmatpush1.bf16.msra.mxu0 %v8676
      %9319 = vmatprep.subr.bf16.mxu0 %v8670
      %9320 = vmatpush1.bf16.msra.mxu0 %v8669
      %9321 = vmatprep.subr.bf16.mxu0 %v8663
      %9322 = vmatpush1.bf16.msra.mxu0 %v8662
      %9323 = vmatprep.subr.bf16.mxu0 %v8656
      %9324 = vmatpush1.bf16.msra.mxu0 %v8655
      %9325 = vmatprep.subr.bf16.mxu0 %v8649
      %9326 = vmatpush1.bf16.msra.mxu0 %v8648
      %9327 = vmatprep.subr.bf16.mxu0 %v8642
      %9328 = vmatpush1.bf16.msra.mxu0 %v8641
      %9329 = vmatprep.subr.bf16.mxu0 %v8747
      %9330 = vmatpush2.bf16.msra.mxu0 %v8746
      %9331 = vmatprep.subr.bf16.mxu0 %v8740
      %9332 = vmatpush2.bf16.msra.mxu0 %v8739
      %9333 = vmatprep.subr.bf16.mxu0 %v8733
      %9334 = vmatpush2.bf16.msra.mxu0 %v8732
      %9335 = vmatprep.subr.bf16.mxu0 %v8726
      %9336 = vmatpush2.bf16.msra.mxu0 %v8725
      %9337 = vmatprep.subr.bf16.mxu0 %v8719
      %9338 = vmatpush2.bf16.msra.mxu0 %v8718
      %9339 = vmatprep.subr.bf16.mxu0 %v8712
      %9340 = vmatpush2.bf16.msra.mxu0 %v8711
      %9341 = vmatprep.subr.bf16.mxu0 %v8705
      %9342 = vmatpush2.bf16.msra.mxu0 %v8704
      %9343 = vmatprep.subr.bf16.mxu0 %v8698
      %9344 = vmatpush2.bf16.msra.mxu0 %v8697
      %9345 = vmatprep.mubr.bf16.mxu0 %v7289
      %9346 = vmatmul.mubr.bf16.gmra.mxu0 %v7288
      %v9347 = vpop.f32.mrf.mxu0
      %v9348 = vadd.f32 %v7911, %v9347
      %v9349 = vpop.f32.mrf.mxu0
      %v9350 = vadd.f32 %v7915, %v9349
      %v9351 = vpop.f32.mrf.mxu0
      %v9352 = vadd.f32 %v7911, %v9351
      %v9353 = vpop.f32.mrf.mxu0
      %v9354 = vadd.f32 %v7915, %v9353
      %9355 = vmatprep.mubr.bf16.mxu0 %v7293
      %9356 = vmatmul.mubr.bf16.gmra.mxu0 %v7292
      %v9357 = vpop.f32.mrf.mxu0
      %v9358 = vadd.f32 %v7911, %v9357
      %v9359 = vpop.f32.mrf.mxu0
      %v9360 = vadd.f32 %v7915, %v9359
      %v9361 = vpop.f32.mrf.mxu0
      %v9362 = vadd.f32 %v7911, %v9361
      %v9363 = vpop.f32.mrf.mxu0
      %v9364 = vadd.f32 %v7915, %v9363
      %9365 = vmatprep.mubr.bf16.mxu0 %v7297
      %9366 = vmatmul.mubr.bf16.gmra.mxu0 %v7296
      %v9367 = vpop.f32.mrf.mxu0
      %v9368 = vadd.f32 %v7911, %v9367
      %v9369 = vpop.f32.mrf.mxu0
      %v9370 = vadd.f32 %v7915, %v9369
      %v9371 = vpop.f32.mrf.mxu0
      %v9372 = vadd.f32 %v7911, %v9371
      %v9373 = vpop.f32.mrf.mxu0
      %v9374 = vadd.f32 %v7915, %v9373
      %9375 = vmatprep.mubr.bf16.mxu0 %v7301
      %9376 = vmatmul.mubr.bf16.gmra.mxu0 %v7300
      %v9377 = vpop.f32.mrf.mxu0
      %v9378 = vadd.f32 %v7911, %v9377
      %v9379 = vpop.f32.mrf.mxu0
      %v9380 = vadd.f32 %v7915, %v9379
      %v9381 = vpop.f32.mrf.mxu0
      %v9382 = vadd.f32 %v7911, %v9381
      %v9383 = vpop.f32.mrf.mxu0
      %v9384 = vadd.f32 %v7915, %v9383
      %9385 = vmatprep.mubr.bf16.mxu0 %v7305
      %9386 = vmatmul.mubr.bf16.gmra.mxu0 %v7304
      %v9387 = vpop.f32.mrf.mxu0
      %v9388 = vadd.f32 %v7911, %v9387
      %v9389 = vpop.f32.mrf.mxu0
      %v9390 = vadd.f32 %v7915, %v9389
      %v9391 = vpop.f32.mrf.mxu0
      %v9392 = vadd.f32 %v7911, %v9391
      %v9393 = vpop.f32.mrf.mxu0
      %v9394 = vadd.f32 %v7915, %v9393
      %9395 = vmatprep.mubr.bf16.mxu0 %v7309
      %9396 = vmatmul.mubr.bf16.gmra.mxu0 %v7308
      %v9397 = vpop.f32.mrf.mxu0
      %v9398 = vadd.f32 %v7911, %v9397
      %v9399 = vpop.f32.mrf.mxu0
      %v9400 = vadd.f32 %v7915, %v9399
      %v9401 = vpop.f32.mrf.mxu0
      %v9402 = vadd.f32 %v7911, %v9401
      %v9403 = vpop.f32.mrf.mxu0
      %v9404 = vadd.f32 %v7915, %v9403
      %9405 = vmatprep.mubr.bf16.mxu0 %v7313
      %9406 = vmatmul.mubr.bf16.gmra.mxu0 %v7312
      %v9407 = vpop.f32.mrf.mxu0
      %v9408 = vadd.f32 %v7911, %v9407
      %v9409 = vpop.f32.mrf.mxu0
      %v9410 = vadd.f32 %v7915, %v9409
      %v9411 = vpop.f32.mrf.mxu0
      %v9412 = vadd.f32 %v7911, %v9411
      %v9413 = vpop.f32.mrf.mxu0
      %v9414 = vadd.f32 %v7915, %v9413
      %9415 = vmatprep.mubr.bf16.mxu0 %v7317
      %9416 = vmatmul.mubr.bf16.gmra.mxu0 %v7316
      %v9417 = vpop.f32.mrf.mxu0
      %v9418 = vadd.f32 %v7911, %v9417
      %v9419 = vpop.f32.mrf.mxu0
      %v9420 = vadd.f32 %v7915, %v9419
      %v9421 = vpop.f32.mrf.mxu0
      %v9422 = vadd.f32 %v7911, %v9421
      %v9423 = vpop.f32.mrf.mxu0
      %v9424 = vadd.f32 %v7915, %v9423
      %9425 = vdwg.mxu0
      %9426 = vmatprep.subr.bf16.mxu0 %v8803
      %9427 = vmatpush1.bf16.msra.mxu0 %v8802
      %9428 = vmatprep.subr.bf16.mxu0 %v8796
      %9429 = vmatpush1.bf16.msra.mxu0 %v8795
      %9430 = vmatprep.subr.bf16.mxu0 %v8789
      %9431 = vmatpush1.bf16.msra.mxu0 %v8788
      %9432 = vmatprep.subr.bf16.mxu0 %v8782
      %9433 = vmatpush1.bf16.msra.mxu0 %v8781
      %9434 = vmatprep.subr.bf16.mxu0 %v8775
      %9435 = vmatpush1.bf16.msra.mxu0 %v8774
      %9436 = vmatprep.subr.bf16.mxu0 %v8768
      %9437 = vmatpush1.bf16.msra.mxu0 %v8767
      %9438 = vmatprep.subr.bf16.mxu0 %v8761
      %9439 = vmatpush1.bf16.msra.mxu0 %v8760
      %9440 = vmatprep.subr.bf16.mxu0 %v8754
      %9441 = vmatpush1.bf16.msra.mxu0 %v8753
      %9442 = vmatprep.subr.bf16.mxu0 %v8859
      %9443 = vmatpush2.bf16.msra.mxu0 %v8858
      %9444 = vmatprep.subr.bf16.mxu0 %v8852
      %9445 = vmatpush2.bf16.msra.mxu0 %v8851
      %9446 = vmatprep.subr.bf16.mxu0 %v8845
      %9447 = vmatpush2.bf16.msra.mxu0 %v8844
      %9448 = vmatprep.subr.bf16.mxu0 %v8838
      %9449 = vmatpush2.bf16.msra.mxu0 %v8837
      %9450 = vmatprep.subr.bf16.mxu0 %v8831
      %9451 = vmatpush2.bf16.msra.mxu0 %v8830
      %9452 = vmatprep.subr.bf16.mxu0 %v8824
      %9453 = vmatpush2.bf16.msra.mxu0 %v8823
      %9454 = vmatprep.subr.bf16.mxu0 %v8817
      %9455 = vmatpush2.bf16.msra.mxu0 %v8816
      %9456 = vmatprep.subr.bf16.mxu0 %v8810
      %9457 = vmatpush2.bf16.msra.mxu0 %v8809
      %9458 = vmatprep.mubr.bf16.mxu0 %v7291
      %9459 = vmatmul.mubr.bf16.gmra.mxu0 %v7290
      %v9460 = vpop.f32.mrf.mxu0
      %v9461 = vadd.f32 %v9348, %v9460
      %v9462 = vpop.f32.mrf.mxu0
      %v9463 = vadd.f32 %v9350, %v9462
      %v9464 = vpop.f32.mrf.mxu0
      %v9465 = vadd.f32 %v9352, %v9464
      %v9466 = vpop.f32.mrf.mxu0
      %v9467 = vadd.f32 %v9354, %v9466
      %9468 = vmatprep.mubr.bf16.mxu0 %v7295
      %9469 = vmatmul.mubr.bf16.gmra.mxu0 %v7294
      %v9470 = vpop.f32.mrf.mxu0
      %v9471 = vadd.f32 %v9358, %v9470
      %v9472 = vpop.f32.mrf.mxu0
      %v9473 = vadd.f32 %v9360, %v9472
      %v9474 = vpop.f32.mrf.mxu0
      %v9475 = vadd.f32 %v9362, %v9474
      %v9476 = vpop.f32.mrf.mxu0
      %v9477 = vadd.f32 %v9364, %v9476
      %9478 = vmatprep.mubr.bf16.mxu0 %v7299
      %9479 = vmatmul.mubr.bf16.gmra.mxu0 %v7298
      %v9480 = vpop.f32.mrf.mxu0
      %v9481 = vadd.f32 %v9368, %v9480
      %v9482 = vpop.f32.mrf.mxu0
      %v9483 = vadd.f32 %v9370, %v9482
      %v9484 = vpop.f32.mrf.mxu0
      %v9485 = vadd.f32 %v9372, %v9484
      %v9486 = vpop.f32.mrf.mxu0
      %v9487 = vadd.f32 %v9374, %v9486
      %9488 = vmatprep.mubr.bf16.mxu0 %v7303
      %9489 = vmatmul.mubr.bf16.gmra.mxu0 %v7302
      %v9490 = vpop.f32.mrf.mxu0
      %v9491 = vadd.f32 %v9378, %v9490
      %v9492 = vpop.f32.mrf.mxu0
      %v9493 = vadd.f32 %v9380, %v9492
      %v9494 = vpop.f32.mrf.mxu0
      %v9495 = vadd.f32 %v9382, %v9494
      %v9496 = vpop.f32.mrf.mxu0
      %v9497 = vadd.f32 %v9384, %v9496
      %9498 = vmatprep.mubr.bf16.mxu0 %v7307
      %9499 = vmatmul.mubr.bf16.gmra.mxu0 %v7306
      %v9500 = vpop.f32.mrf.mxu0
      %v9501 = vadd.f32 %v9388, %v9500
      %v9502 = vpop.f32.mrf.mxu0
      %v9503 = vadd.f32 %v9390, %v9502
      %v9504 = vpop.f32.mrf.mxu0
      %v9505 = vadd.f32 %v9392, %v9504
      %v9506 = vpop.f32.mrf.mxu0
      %v9507 = vadd.f32 %v9394, %v9506
      %9508 = vmatprep.mubr.bf16.mxu0 %v7311
      %9509 = vmatmul.mubr.bf16.gmra.mxu0 %v7310
      %v9510 = vpop.f32.mrf.mxu0
      %v9511 = vadd.f32 %v9398, %v9510
      %v9512 = vpop.f32.mrf.mxu0
      %v9513 = vadd.f32 %v9400, %v9512
      %v9514 = vpop.f32.mrf.mxu0
      %v9515 = vadd.f32 %v9402, %v9514
      %v9516 = vpop.f32.mrf.mxu0
      %v9517 = vadd.f32 %v9404, %v9516
      %9518 = vmatprep.mubr.bf16.mxu0 %v7315
      %9519 = vmatmul.mubr.bf16.gmra.mxu0 %v7314
      %v9520 = vpop.f32.mrf.mxu0
      %v9521 = vadd.f32 %v9408, %v9520
      %v9522 = vpop.f32.mrf.mxu0
      %v9523 = vadd.f32 %v9410, %v9522
      %v9524 = vpop.f32.mrf.mxu0
      %v9525 = vadd.f32 %v9412, %v9524
      %v9526 = vpop.f32.mrf.mxu0
      %v9527 = vadd.f32 %v9414, %v9526
      %9528 = vmatprep.mubr.bf16.mxu0 %v7319
      %9529 = vmatmul.mubr.bf16.gmra.mxu0 %v7318
      %v9530 = vpop.f32.mrf.mxu0
      %v9531 = vadd.f32 %v9418, %v9530
      %v9532 = vpop.f32.mrf.mxu0
      %v9533 = vadd.f32 %v9420, %v9532
      %v9534 = vpop.f32.mrf.mxu0
      %v9535 = vadd.f32 %v9422, %v9534
      %v9536 = vpop.f32.mrf.mxu0
      %v9537 = vadd.f32 %v9424, %v9536
      %9538 = vdwg.mxu0
      %9539 = vmatprep.subr.bf16.mxu0 %v8693
      %9540 = vmatpush1.bf16.msra.mxu0 %v8692
      %9541 = vmatprep.subr.bf16.mxu0 %v8686
      %9542 = vmatpush1.bf16.msra.mxu0 %v8685
      %9543 = vmatprep.subr.bf16.mxu0 %v8679
      %9544 = vmatpush1.bf16.msra.mxu0 %v8678
      %9545 = vmatprep.subr.bf16.mxu0 %v8672
      %9546 = vmatpush1.bf16.msra.mxu0 %v8671
      %9547 = vmatprep.subr.bf16.mxu0 %v8665
      %9548 = vmatpush1.bf16.msra.mxu0 %v8664
      %9549 = vmatprep.subr.bf16.mxu0 %v8658
      %9550 = vmatpush1.bf16.msra.mxu0 %v8657
      %9551 = vmatprep.subr.bf16.mxu0 %v8651
      %9552 = vmatpush1.bf16.msra.mxu0 %v8650
      %9553 = vmatprep.subr.bf16.mxu0 %v8644
      %9554 = vmatpush1.bf16.msra.mxu0 %v8643
      %9555 = vmatprep.subr.bf16.mxu0 %v8749
      %9556 = vmatpush2.bf16.msra.mxu0 %v8748
      %9557 = vmatprep.subr.bf16.mxu0 %v8742
      %9558 = vmatpush2.bf16.msra.mxu0 %v8741
      %9559 = vmatprep.subr.bf16.mxu0 %v8735
      %9560 = vmatpush2.bf16.msra.mxu0 %v8734
      %9561 = vmatprep.subr.bf16.mxu0 %v8728
      %9562 = vmatpush2.bf16.msra.mxu0 %v8727
      %9563 = vmatprep.subr.bf16.mxu0 %v8721
      %9564 = vmatpush2.bf16.msra.mxu0 %v8720
      %9565 = vmatprep.subr.bf16.mxu0 %v8714
      %9566 = vmatpush2.bf16.msra.mxu0 %v8713
      %9567 = vmatprep.subr.bf16.mxu0 %v8707
      %9568 = vmatpush2.bf16.msra.mxu0 %v8706
      %9569 = vmatprep.subr.bf16.mxu0 %v8700
      %9570 = vmatpush2.bf16.msra.mxu0 %v8699
      %9571 = vmatprep.mubr.bf16.mxu0 %v7289
      %9572 = vmatmul.mubr.bf16.gmra.mxu0 %v7288
      %v9573 = vpop.f32.mrf.mxu0
      %v9574 = vadd.f32 %v7919, %v9573
      %v9575 = vpop.f32.mrf.mxu0
      %v9576 = vadd.f32 %v7923, %v9575
      %v9577 = vpop.f32.mrf.mxu0
      %v9578 = vadd.f32 %v7919, %v9577
      %v9579 = vpop.f32.mrf.mxu0
      %v9580 = vadd.f32 %v7923, %v9579
      %9581 = vmatprep.mubr.bf16.mxu0 %v7293
      %9582 = vmatmul.mubr.bf16.gmra.mxu0 %v7292
      %v9583 = vpop.f32.mrf.mxu0
      %v9584 = vadd.f32 %v7919, %v9583
      %v9585 = vpop.f32.mrf.mxu0
      %v9586 = vadd.f32 %v7923, %v9585
      %v9587 = vpop.f32.mrf.mxu0
      %v9588 = vadd.f32 %v7919, %v9587
      %v9589 = vpop.f32.mrf.mxu0
      %v9590 = vadd.f32 %v7923, %v9589
      %9591 = vmatprep.mubr.bf16.mxu0 %v7297
      %9592 = vmatmul.mubr.bf16.gmra.mxu0 %v7296
      %v9593 = vpop.f32.mrf.mxu0
      %v9594 = vadd.f32 %v7919, %v9593
      %v9595 = vpop.f32.mrf.mxu0
      %v9596 = vadd.f32 %v7923, %v9595
      %v9597 = vpop.f32.mrf.mxu0
      %v9598 = vadd.f32 %v7919, %v9597
      %v9599 = vpop.f32.mrf.mxu0
      %v9600 = vadd.f32 %v7923, %v9599
      %9601 = vmatprep.mubr.bf16.mxu0 %v7301
      %9602 = vmatmul.mubr.bf16.gmra.mxu0 %v7300
      %v9603 = vpop.f32.mrf.mxu0
      %v9604 = vadd.f32 %v7919, %v9603
      %v9605 = vpop.f32.mrf.mxu0
      %v9606 = vadd.f32 %v7923, %v9605
      %v9607 = vpop.f32.mrf.mxu0
      %v9608 = vadd.f32 %v7919, %v9607
      %v9609 = vpop.f32.mrf.mxu0
      %v9610 = vadd.f32 %v7923, %v9609
      %9611 = vmatprep.mubr.bf16.mxu0 %v7305
      %9612 = vmatmul.mubr.bf16.gmra.mxu0 %v7304
      %v9613 = vpop.f32.mrf.mxu0
      %v9614 = vadd.f32 %v7919, %v9613
      %v9615 = vpop.f32.mrf.mxu0
      %v9616 = vadd.f32 %v7923, %v9615
      %v9617 = vpop.f32.mrf.mxu0
      %v9618 = vadd.f32 %v7919, %v9617
      %v9619 = vpop.f32.mrf.mxu0
      %v9620 = vadd.f32 %v7923, %v9619
      %9621 = vmatprep.mubr.bf16.mxu0 %v7309
      %9622 = vmatmul.mubr.bf16.gmra.mxu0 %v7308
      %v9623 = vpop.f32.mrf.mxu0
      %v9624 = vadd.f32 %v7919, %v9623
      %v9625 = vpop.f32.mrf.mxu0
      %v9626 = vadd.f32 %v7923, %v9625
      %v9627 = vpop.f32.mrf.mxu0
      %v9628 = vadd.f32 %v7919, %v9627
      %v9629 = vpop.f32.mrf.mxu0
      %v9630 = vadd.f32 %v7923, %v9629
      %9631 = vmatprep.mubr.bf16.mxu0 %v7313
      %9632 = vmatmul.mubr.bf16.gmra.mxu0 %v7312
      %v9633 = vpop.f32.mrf.mxu0
      %v9634 = vadd.f32 %v7919, %v9633
      %v9635 = vpop.f32.mrf.mxu0
      %v9636 = vadd.f32 %v7923, %v9635
      %v9637 = vpop.f32.mrf.mxu0
      %v9638 = vadd.f32 %v7919, %v9637
      %v9639 = vpop.f32.mrf.mxu0
      %v9640 = vadd.f32 %v7923, %v9639
      %9641 = vmatprep.mubr.bf16.mxu0 %v7317
      %9642 = vmatmul.mubr.bf16.gmra.mxu0 %v7316
      %v9643 = vpop.f32.mrf.mxu0
      %v9644 = vadd.f32 %v7919, %v9643
      %v9645 = vpop.f32.mrf.mxu0
      %v9646 = vadd.f32 %v7923, %v9645
      %v9647 = vpop.f32.mrf.mxu0
      %v9648 = vadd.f32 %v7919, %v9647
      %v9649 = vpop.f32.mrf.mxu0
      %v9650 = vadd.f32 %v7923, %v9649
      %9651 = vdwg.mxu0
      %9652 = vmatprep.subr.bf16.mxu0 %v8805
      %9653 = vmatpush1.bf16.msra.mxu0 %v8804
      %9654 = vmatprep.subr.bf16.mxu0 %v8798
      %9655 = vmatpush1.bf16.msra.mxu0 %v8797
      %9656 = vmatprep.subr.bf16.mxu0 %v8791
      %9657 = vmatpush1.bf16.msra.mxu0 %v8790
      %9658 = vmatprep.subr.bf16.mxu0 %v8784
      %9659 = vmatpush1.bf16.msra.mxu0 %v8783
      %9660 = vmatprep.subr.bf16.mxu0 %v8777
      %9661 = vmatpush1.bf16.msra.mxu0 %v8776
      %9662 = vmatprep.subr.bf16.mxu0 %v8770
      %9663 = vmatpush1.bf16.msra.mxu0 %v8769
      %9664 = vmatprep.subr.bf16.mxu0 %v8763
      %9665 = vmatpush1.bf16.msra.mxu0 %v8762
      %9666 = vmatprep.subr.bf16.mxu0 %v8756
      %9667 = vmatpush1.bf16.msra.mxu0 %v8755
      %9668 = vmatprep.subr.bf16.mxu0 %v8861
      %9669 = vmatpush2.bf16.msra.mxu0 %v8860
      %9670 = vmatprep.subr.bf16.mxu0 %v8854
      %9671 = vmatpush2.bf16.msra.mxu0 %v8853
      %9672 = vmatprep.subr.bf16.mxu0 %v8847
      %9673 = vmatpush2.bf16.msra.mxu0 %v8846
      %9674 = vmatprep.subr.bf16.mxu0 %v8840
      %9675 = vmatpush2.bf16.msra.mxu0 %v8839
      %9676 = vmatprep.subr.bf16.mxu0 %v8833
      %9677 = vmatpush2.bf16.msra.mxu0 %v8832
      %9678 = vmatprep.subr.bf16.mxu0 %v8826
      %9679 = vmatpush2.bf16.msra.mxu0 %v8825
      %9680 = vmatprep.subr.bf16.mxu0 %v8819
      %9681 = vmatpush2.bf16.msra.mxu0 %v8818
      %9682 = vmatprep.subr.bf16.mxu0 %v8812
      %9683 = vmatpush2.bf16.msra.mxu0 %v8811
      %9684 = vmatprep.mubr.bf16.mxu0 %v7291
      %9685 = vmatmul.mubr.bf16.gmra.mxu0 %v7290
      %v9686 = vpop.f32.mrf.mxu0
      %v9687 = vadd.f32 %v9574, %v9686
      %v9688 = vpop.f32.mrf.mxu0
      %v9689 = vadd.f32 %v9576, %v9688
      %v9690 = vpop.f32.mrf.mxu0
      %v9691 = vadd.f32 %v9578, %v9690
      %v9692 = vpop.f32.mrf.mxu0
      %v9693 = vadd.f32 %v9580, %v9692
      %9694 = vmatprep.mubr.bf16.mxu0 %v7295
      %9695 = vmatmul.mubr.bf16.gmra.mxu0 %v7294
      %v9696 = vpop.f32.mrf.mxu0
      %v9697 = vadd.f32 %v9584, %v9696
      %v9698 = vpop.f32.mrf.mxu0
      %v9699 = vadd.f32 %v9586, %v9698
      %v9700 = vpop.f32.mrf.mxu0
      %v9701 = vadd.f32 %v9588, %v9700
      %v9702 = vpop.f32.mrf.mxu0
      %v9703 = vadd.f32 %v9590, %v9702
      %9704 = vmatprep.mubr.bf16.mxu0 %v7299
      %9705 = vmatmul.mubr.bf16.gmra.mxu0 %v7298
      %v9706 = vpop.f32.mrf.mxu0
      %v9707 = vadd.f32 %v9594, %v9706
      %v9708 = vpop.f32.mrf.mxu0
      %v9709 = vadd.f32 %v9596, %v9708
      %v9710 = vpop.f32.mrf.mxu0
      %v9711 = vadd.f32 %v9598, %v9710
      %v9712 = vpop.f32.mrf.mxu0
      %v9713 = vadd.f32 %v9600, %v9712
      %9714 = vmatprep.mubr.bf16.mxu0 %v7303
      %9715 = vmatmul.mubr.bf16.gmra.mxu0 %v7302
      %v9716 = vpop.f32.mrf.mxu0
      %v9717 = vadd.f32 %v9604, %v9716
      %v9718 = vpop.f32.mrf.mxu0
      %v9719 = vadd.f32 %v9606, %v9718
      %v9720 = vpop.f32.mrf.mxu0
      %v9721 = vadd.f32 %v9608, %v9720
      %v9722 = vpop.f32.mrf.mxu0
      %v9723 = vadd.f32 %v9610, %v9722
      %9724 = vmatprep.mubr.bf16.mxu0 %v7307
      %9725 = vmatmul.mubr.bf16.gmra.mxu0 %v7306
      %v9726 = vpop.f32.mrf.mxu0
      %v9727 = vadd.f32 %v9614, %v9726
      %v9728 = vpop.f32.mrf.mxu0
      %v9729 = vadd.f32 %v9616, %v9728
      %v9730 = vpop.f32.mrf.mxu0
      %v9731 = vadd.f32 %v9618, %v9730
      %v9732 = vpop.f32.mrf.mxu0
      %v9733 = vadd.f32 %v9620, %v9732
      %9734 = vmatprep.mubr.bf16.mxu0 %v7311
      %9735 = vmatmul.mubr.bf16.gmra.mxu0 %v7310
      %v9736 = vpop.f32.mrf.mxu0
      %v9737 = vadd.f32 %v9624, %v9736
      %v9738 = vpop.f32.mrf.mxu0
      %v9739 = vadd.f32 %v9626, %v9738
      %v9740 = vpop.f32.mrf.mxu0
      %v9741 = vadd.f32 %v9628, %v9740
      %v9742 = vpop.f32.mrf.mxu0
      %v9743 = vadd.f32 %v9630, %v9742
      %9744 = vmatprep.mubr.bf16.mxu0 %v7315
      %9745 = vmatmul.mubr.bf16.gmra.mxu0 %v7314
      %v9746 = vpop.f32.mrf.mxu0
      %v9747 = vadd.f32 %v9634, %v9746
      %v9748 = vpop.f32.mrf.mxu0
      %v9749 = vadd.f32 %v9636, %v9748
      %v9750 = vpop.f32.mrf.mxu0
      %v9751 = vadd.f32 %v9638, %v9750
      %v9752 = vpop.f32.mrf.mxu0
      %v9753 = vadd.f32 %v9640, %v9752
      %9754 = vmatprep.mubr.bf16.mxu0 %v7319
      %9755 = vmatmul.mubr.bf16.gmra.mxu0 %v7318
      %v9756 = vpop.f32.mrf.mxu0
      %v9757 = vadd.f32 %v9644, %v9756
      %v9758 = vpop.f32.mrf.mxu0
      %v9759 = vadd.f32 %v9646, %v9758
      %v9760 = vpop.f32.mrf.mxu0
      %v9761 = vadd.f32 %v9648, %v9760
      %v9762 = vpop.f32.mrf.mxu0
      %v9763 = vadd.f32 %v9650, %v9762
      %9764 = vdwg.mxu0
      %9765 = vmatprep.subr.bf16.mxu0 0
      %9766 = vmatpush1.bf16.msra.mxu0 %v8694
      %9767 = vmatprep.subr.bf16.mxu0 0
      %9768 = vmatpush1.bf16.msra.mxu0 %v8687
      %9769 = vmatprep.subr.bf16.mxu0 0
      %9770 = vmatpush1.bf16.msra.mxu0 %v8680
      %9771 = vmatprep.subr.bf16.mxu0 0
      %9772 = vmatpush1.bf16.msra.mxu0 %v8673
      %9773 = vmatprep.subr.bf16.mxu0 0
      %9774 = vmatpush1.bf16.msra.mxu0 %v8666
      %9775 = vmatprep.subr.bf16.mxu0 0
      %9776 = vmatpush1.bf16.msra.mxu0 %v8659
      %9777 = vmatprep.subr.bf16.mxu0 0
      %9778 = vmatpush1.bf16.msra.mxu0 %v8652
      %9779 = vmatprep.subr.bf16.mxu0 0
      %9780 = vmatpush1.bf16.msra.mxu0 %v8645
      %9781 = vmatprep.subr.bf16.mxu0 0
      %9782 = vmatpush2.bf16.msra.mxu0 %v8750
      %9783 = vmatprep.subr.bf16.mxu0 0
      %9784 = vmatpush2.bf16.msra.mxu0 %v8743
      %9785 = vmatprep.subr.bf16.mxu0 0
      %9786 = vmatpush2.bf16.msra.mxu0 %v8736
      %9787 = vmatprep.subr.bf16.mxu0 0
      %9788 = vmatpush2.bf16.msra.mxu0 %v8729
      %9789 = vmatprep.subr.bf16.mxu0 0
      %9790 = vmatpush2.bf16.msra.mxu0 %v8722
      %9791 = vmatprep.subr.bf16.mxu0 0
      %9792 = vmatpush2.bf16.msra.mxu0 %v8715
      %9793 = vmatprep.subr.bf16.mxu0 0
      %9794 = vmatpush2.bf16.msra.mxu0 %v8708
      %9795 = vmatprep.subr.bf16.mxu0 0
      %9796 = vmatpush2.bf16.msra.mxu0 %v8701
      %9797 = vmatprep.mubr.bf16.mxu0 %v7289
      %9798 = vmatmul.mubr.bf16.gmra.mxu0 %v7288
      %v9799 = vpop.f32.mrf.mxu0
      %v9800 = vadd.f32 %v7927, %v9799
      %v9801 = vpop.f32.mrf.mxu0
      %v9802 = vpop.f32.mrf.mxu0
      %v9803 = vadd.f32 %v7927, %v9802
      %v9804 = vpop.f32.mrf.mxu0
      %9805 = vmatprep.mubr.bf16.mxu0 %v7293
      %9806 = vmatmul.mubr.bf16.gmra.mxu0 %v7292
      %v9807 = vpop.f32.mrf.mxu0
      %v9808 = vadd.f32 %v7927, %v9807
      %v9809 = vpop.f32.mrf.mxu0
      %v9810 = vpop.f32.mrf.mxu0
      %v9811 = vadd.f32 %v7927, %v9810
      %v9812 = vpop.f32.mrf.mxu0
      %9813 = vmatprep.mubr.bf16.mxu0 %v7297
      %9814 = vmatmul.mubr.bf16.gmra.mxu0 %v7296
      %v9815 = vpop.f32.mrf.mxu0
      %v9816 = vadd.f32 %v7927, %v9815
      %v9817 = vpop.f32.mrf.mxu0
      %v9818 = vpop.f32.mrf.mxu0
      %v9819 = vadd.f32 %v7927, %v9818
      %v9820 = vpop.f32.mrf.mxu0
      %9821 = vmatprep.mubr.bf16.mxu0 %v7301
      %9822 = vmatmul.mubr.bf16.gmra.mxu0 %v7300
      %v9823 = vpop.f32.mrf.mxu0
      %v9824 = vadd.f32 %v7927, %v9823
      %v9825 = vpop.f32.mrf.mxu0
      %v9826 = vpop.f32.mrf.mxu0
      %v9827 = vadd.f32 %v7927, %v9826
      %v9828 = vpop.f32.mrf.mxu0
      %9829 = vmatprep.mubr.bf16.mxu0 %v7305
      %9830 = vmatmul.mubr.bf16.gmra.mxu0 %v7304
      %v9831 = vpop.f32.mrf.mxu0
      %v9832 = vadd.f32 %v7927, %v9831
      %v9833 = vpop.f32.mrf.mxu0
      %v9834 = vpop.f32.mrf.mxu0
      %v9835 = vadd.f32 %v7927, %v9834
      %v9836 = vpop.f32.mrf.mxu0
      %9837 = vmatprep.mubr.bf16.mxu0 %v7309
      %9838 = vmatmul.mubr.bf16.gmra.mxu0 %v7308
      %v9839 = vpop.f32.mrf.mxu0
      %v9840 = vadd.f32 %v7927, %v9839
      %v9841 = vpop.f32.mrf.mxu0
      %v9842 = vpop.f32.mrf.mxu0
      %v9843 = vadd.f32 %v7927, %v9842
      %v9844 = vpop.f32.mrf.mxu0
      %9845 = vmatprep.mubr.bf16.mxu0 %v7313
      %9846 = vmatmul.mubr.bf16.gmra.mxu0 %v7312
      %v9847 = vpop.f32.mrf.mxu0
      %v9848 = vadd.f32 %v7927, %v9847
      %v9849 = vpop.f32.mrf.mxu0
      %v9850 = vpop.f32.mrf.mxu0
      %v9851 = vadd.f32 %v7927, %v9850
      %v9852 = vpop.f32.mrf.mxu0
      %9853 = vmatprep.mubr.bf16.mxu0 %v7317
      %9854 = vmatmul.mubr.bf16.gmra.mxu0 %v7316
      %v9855 = vpop.f32.mrf.mxu0
      %v9856 = vadd.f32 %v7927, %v9855
      %v9857 = vpop.f32.mrf.mxu0
      %v9858 = vpop.f32.mrf.mxu0
      %v9859 = vadd.f32 %v7927, %v9858
      %v9860 = vpop.f32.mrf.mxu0
      %9861 = vdwg.mxu0
      %9862 = vmatprep.subr.bf16.mxu0 0
      %9863 = vmatpush1.bf16.msra.mxu0 %v8806
      %9864 = vmatprep.subr.bf16.mxu0 0
      %9865 = vmatpush1.bf16.msra.mxu0 %v8799
      %9866 = vmatprep.subr.bf16.mxu0 0
      %9867 = vmatpush1.bf16.msra.mxu0 %v8792
      %9868 = vmatprep.subr.bf16.mxu0 0
      %9869 = vmatpush1.bf16.msra.mxu0 %v8785
      %9870 = vmatprep.subr.bf16.mxu0 0
      %9871 = vmatpush1.bf16.msra.mxu0 %v8778
      %9872 = vmatprep.subr.bf16.mxu0 0
      %9873 = vmatpush1.bf16.msra.mxu0 %v8771
      %9874 = vmatprep.subr.bf16.mxu0 0
      %9875 = vmatpush1.bf16.msra.mxu0 %v8764
      %9876 = vmatprep.subr.bf16.mxu0 0
      %9877 = vmatpush1.bf16.msra.mxu0 %v8757
      %9878 = vmatprep.subr.bf16.mxu0 0
      %9879 = vmatpush2.bf16.msra.mxu0 %v8862
      %9880 = vmatprep.subr.bf16.mxu0 0
      %9881 = vmatpush2.bf16.msra.mxu0 %v8855
      %9882 = vmatprep.subr.bf16.mxu0 0
      %9883 = vmatpush2.bf16.msra.mxu0 %v8848
      %9884 = vmatprep.subr.bf16.mxu0 0
      %9885 = vmatpush2.bf16.msra.mxu0 %v8841
      %9886 = vmatprep.subr.bf16.mxu0 0
      %9887 = vmatpush2.bf16.msra.mxu0 %v8834
      %9888 = vmatprep.subr.bf16.mxu0 0
      %9889 = vmatpush2.bf16.msra.mxu0 %v8827
      %9890 = vmatprep.subr.bf16.mxu0 0
      %9891 = vmatpush2.bf16.msra.mxu0 %v8820
      %9892 = vmatprep.subr.bf16.mxu0 0
      %9893 = vmatpush2.bf16.msra.mxu0 %v8813
      %9894 = vmatprep.mubr.bf16.mxu0 %v7291
      %9895 = vmatmul.mubr.bf16.gmra.mxu0 %v7290
      %v9896 = vpop.f32.mrf.mxu0
      %v9897 = vadd.f32 %v9800, %v9896
      %v9898 = vpop.f32.mrf.mxu0
      %v9899 = vpop.f32.mrf.mxu0
      %v9900 = vadd.f32 %v9803, %v9899
      %v9901 = vpop.f32.mrf.mxu0
      %9902 = vmatprep.mubr.bf16.mxu0 %v7295
      %9903 = vmatmul.mubr.bf16.gmra.mxu0 %v7294
      %v9904 = vpop.f32.mrf.mxu0
      %v9905 = vadd.f32 %v9808, %v9904
      %v9906 = vpop.f32.mrf.mxu0
      %v9907 = vpop.f32.mrf.mxu0
      %v9908 = vadd.f32 %v9811, %v9907
      %v9909 = vpop.f32.mrf.mxu0
      %9910 = vmatprep.mubr.bf16.mxu0 %v7299
      %9911 = vmatmul.mubr.bf16.gmra.mxu0 %v7298
      %v9912 = vpop.f32.mrf.mxu0
      %v9913 = vadd.f32 %v9816, %v9912
      %v9914 = vpop.f32.mrf.mxu0
      %v9915 = vpop.f32.mrf.mxu0
      %v9916 = vadd.f32 %v9819, %v9915
      %v9917 = vpop.f32.mrf.mxu0
      %9918 = vmatprep.mubr.bf16.mxu0 %v7303
      %9919 = vmatmul.mubr.bf16.gmra.mxu0 %v7302
      %v9920 = vpop.f32.mrf.mxu0
      %v9921 = vadd.f32 %v9824, %v9920
      %v9922 = vpop.f32.mrf.mxu0
      %v9923 = vpop.f32.mrf.mxu0
      %v9924 = vadd.f32 %v9827, %v9923
      %v9925 = vpop.f32.mrf.mxu0
      %9926 = vmatprep.mubr.bf16.mxu0 %v7307
      %9927 = vmatmul.mubr.bf16.gmra.mxu0 %v7306
      %v9928 = vpop.f32.mrf.mxu0
      %v9929 = vadd.f32 %v9832, %v9928
      %v9930 = vpop.f32.mrf.mxu0
      %v9931 = vpop.f32.mrf.mxu0
      %v9932 = vadd.f32 %v9835, %v9931
      %v9933 = vpop.f32.mrf.mxu0
      %9934 = vmatprep.mubr.bf16.mxu0 %v7311
      %9935 = vmatmul.mubr.bf16.gmra.mxu0 %v7310
      %v9936 = vpop.f32.mrf.mxu0
      %v9937 = vadd.f32 %v9840, %v9936
      %v9938 = vpop.f32.mrf.mxu0
      %v9939 = vpop.f32.mrf.mxu0
      %v9940 = vadd.f32 %v9843, %v9939
      %v9941 = vpop.f32.mrf.mxu0
      %9942 = vmatprep.mubr.bf16.mxu0 %v7315
      %9943 = vmatmul.mubr.bf16.gmra.mxu0 %v7314
      %v9944 = vpop.f32.mrf.mxu0
      %v9945 = vadd.f32 %v9848, %v9944
      %v9946 = vpop.f32.mrf.mxu0
      %v9947 = vpop.f32.mrf.mxu0
      %v9948 = vadd.f32 %v9851, %v9947
      %v9949 = vpop.f32.mrf.mxu0
      %9950 = vmatprep.mubr.bf16.mxu0 %v7319
      %9951 = vmatmul.mubr.bf16.gmra.mxu0 %v7318
      %v9952 = vpop.f32.mrf.mxu0
      %v9953 = vadd.f32 %v9856, %v9952
      %v9954 = vpop.f32.mrf.mxu0
      %v9955 = vpop.f32.mrf.mxu0
      %v9956 = vadd.f32 %v9859, %v9955
      %v9957 = vpop.f32.mrf.mxu0
      %9958 = vdwg.mxu0
      %v9959 = vpack.c.bf16 %v9239, %v9235
      %v9960 = vpack.c.bf16 %v9241, %v9237
      %v9961 = vpack.c.bf16 %v9465, %v9461
      %v9962 = vpack.c.bf16 %v9467, %v9463
      %v9963 = vpack.c.bf16 %v9691, %v9687
      %v9964 = vpack.c.bf16 %v9693, %v9689
      %v9965 = vpack.c.bf16 %v9900, %v9897
      %v9966 = vpack.c.bf16 %v9249, %v9245
      %v9967 = vpack.c.bf16 %v9251, %v9247
      %v9968 = vpack.c.bf16 %v9475, %v9471
      %v9969 = vpack.c.bf16 %v9477, %v9473
      %v9970 = vpack.c.bf16 %v9701, %v9697
      %v9971 = vpack.c.bf16 %v9703, %v9699
      %v9972 = vpack.c.bf16 %v9908, %v9905
      %v9973 = vpack.c.bf16 %v9259, %v9255
      %v9974 = vpack.c.bf16 %v9261, %v9257
      %v9975 = vpack.c.bf16 %v9485, %v9481
      %v9976 = vpack.c.bf16 %v9487, %v9483
      %v9977 = vpack.c.bf16 %v9711, %v9707
      %v9978 = vpack.c.bf16 %v9713, %v9709
      %v9979 = vpack.c.bf16 %v9916, %v9913
      %v9980 = vpack.c.bf16 %v9269, %v9265
      %v9981 = vpack.c.bf16 %v9271, %v9267
      %v9982 = vpack.c.bf16 %v9495, %v9491
      %v9983 = vpack.c.bf16 %v9497, %v9493
      %v9984 = vpack.c.bf16 %v9721, %v9717
      %v9985 = vpack.c.bf16 %v9723, %v9719
      %v9986 = vpack.c.bf16 %v9924, %v9921
      %v9987 = vpack.c.bf16 %v9279, %v9275
      %v9988 = vpack.c.bf16 %v9281, %v9277
      %v9989 = vpack.c.bf16 %v9505, %v9501
      %v9990 = vpack.c.bf16 %v9507, %v9503
      %v9991 = vpack.c.bf16 %v9731, %v9727
      %v9992 = vpack.c.bf16 %v9733, %v9729
      %v9993 = vpack.c.bf16 %v9932, %v9929
      %v9994 = vpack.c.bf16 %v9289, %v9285
      %v9995 = vpack.c.bf16 %v9291, %v9287
      %v9996 = vpack.c.bf16 %v9515, %v9511
      %v9997 = vpack.c.bf16 %v9517, %v9513
      %v9998 = vpack.c.bf16 %v9741, %v9737
      %v9999 = vpack.c.bf16 %v9743, %v9739
      %v10000 = vpack.c.bf16 %v9940, %v9937
      %v10001 = vpack.c.bf16 %v9299, %v9295
      %v10002 = vpack.c.bf16 %v9301, %v9297
      %v10003 = vpack.c.bf16 %v9525, %v9521
      %v10004 = vpack.c.bf16 %v9527, %v9523
      %v10005 = vpack.c.bf16 %v9751, %v9747
      %v10006 = vpack.c.bf16 %v9753, %v9749
      %v10007 = vpack.c.bf16 %v9948, %v9945
      %v10008 = vpack.c.bf16 %v9309, %v9305
      %v10009 = vpack.c.bf16 %v9311, %v9307
      %v10010 = vpack.c.bf16 %v9535, %v9531
      %v10011 = vpack.c.bf16 %v9537, %v9533
      %v10012 = vpack.c.bf16 %v9761, %v9757
      %v10013 = vpack.c.bf16 %v9763, %v9759
      %v10014 = vpack.c.bf16 %v9956, %v9953
      %v10071 = vunpack.c.l.b16 %v9959
      %v10072 = vunpack.c.l.b16 %v9960
      %v10073 = vunpack.c.l.b16 %v9961
      %v10074 = vunpack.c.l.b16 %v9962
      %v10075 = vunpack.c.l.b16 %v9963
      %v10076 = vunpack.c.l.b16 %v9964
      %v10077 = vunpack.c.l.b16 %v9965
      %v10078 = vunpack.c.h.b16 %v9959
      %v10079 = vunpack.c.h.b16 %v9960
      %v10080 = vunpack.c.h.b16 %v9961
      %v10081 = vunpack.c.h.b16 %v9962
      %v10082 = vunpack.c.h.b16 %v9963
      %v10083 = vunpack.c.h.b16 %v9964
      %v10084 = vunpack.c.h.b16 %v9965
      %v10085 = vunpack.c.l.b16 %v9966
      %v10086 = vunpack.c.l.b16 %v9967
      %v10087 = vunpack.c.l.b16 %v9968
      %v10088 = vunpack.c.l.b16 %v9969
      %v10089 = vunpack.c.l.b16 %v9970
      %v10090 = vunpack.c.l.b16 %v9971
      %v10091 = vunpack.c.l.b16 %v9972
      %v10092 = vunpack.c.h.b16 %v9966
      %v10093 = vunpack.c.h.b16 %v9967
      %v10094 = vunpack.c.h.b16 %v9968
      %v10095 = vunpack.c.h.b16 %v9969
      %v10096 = vunpack.c.h.b16 %v9970
      %v10097 = vunpack.c.h.b16 %v9971
      %v10098 = vunpack.c.h.b16 %v9972
      %v10099 = vunpack.c.l.b16 %v9973
      %v10100 = vunpack.c.l.b16 %v9974
      %v10101 = vunpack.c.l.b16 %v9975
      %v10102 = vunpack.c.l.b16 %v9976
      %v10103 = vunpack.c.l.b16 %v9977
      %v10104 = vunpack.c.l.b16 %v9978
      %v10105 = vunpack.c.l.b16 %v9979
      %v10106 = vunpack.c.h.b16 %v9973
      %v10107 = vunpack.c.h.b16 %v9974
      %v10108 = vunpack.c.h.b16 %v9975
      %v10109 = vunpack.c.h.b16 %v9976
      %v10110 = vunpack.c.h.b16 %v9977
      %v10111 = vunpack.c.h.b16 %v9978
      %v10112 = vunpack.c.h.b16 %v9979
      %v10113 = vunpack.c.l.b16 %v9980
      %v10114 = vunpack.c.l.b16 %v9981
      %v10115 = vunpack.c.l.b16 %v9982
      %v10116 = vunpack.c.l.b16 %v9983
      %v10117 = vunpack.c.l.b16 %v9984
      %v10118 = vunpack.c.l.b16 %v9985
      %v10119 = vunpack.c.l.b16 %v9986
      %v10120 = vunpack.c.h.b16 %v9980
      %v10121 = vunpack.c.h.b16 %v9981
      %v10122 = vunpack.c.h.b16 %v9982
      %v10123 = vunpack.c.h.b16 %v9983
      %v10124 = vunpack.c.h.b16 %v9984
      %v10125 = vunpack.c.h.b16 %v9985
      %v10126 = vunpack.c.h.b16 %v9986
      %v10127 = vunpack.c.l.b16 %v9987
      %v10128 = vunpack.c.l.b16 %v9988
      %v10129 = vunpack.c.l.b16 %v9989
      %v10130 = vunpack.c.l.b16 %v9990
      %v10131 = vunpack.c.l.b16 %v9991
      %v10132 = vunpack.c.l.b16 %v9992
      %v10133 = vunpack.c.l.b16 %v9993
      %v10134 = vunpack.c.h.b16 %v9987
      %v10135 = vunpack.c.h.b16 %v9988
      %v10136 = vunpack.c.h.b16 %v9989
      %v10137 = vunpack.c.h.b16 %v9990
      %v10138 = vunpack.c.h.b16 %v9991
      %v10139 = vunpack.c.h.b16 %v9992
      %v10140 = vunpack.c.h.b16 %v9993
      %v10141 = vunpack.c.l.b16 %v9994
      %v10142 = vunpack.c.l.b16 %v9995
      %v10143 = vunpack.c.l.b16 %v9996
      %v10144 = vunpack.c.l.b16 %v9997
      %v10145 = vunpack.c.l.b16 %v9998
      %v10146 = vunpack.c.l.b16 %v9999
      %v10147 = vunpack.c.l.b16 %v10000
      %v10148 = vunpack.c.h.b16 %v9994
      %v10149 = vunpack.c.h.b16 %v9995
      %v10150 = vunpack.c.h.b16 %v9996
      %v10151 = vunpack.c.h.b16 %v9997
      %v10152 = vunpack.c.h.b16 %v9998
      %v10153 = vunpack.c.h.b16 %v9999
      %v10154 = vunpack.c.h.b16 %v10000
      %v10155 = vunpack.c.l.b16 %v10001
      %v10156 = vunpack.c.l.b16 %v10002
      %v10157 = vunpack.c.l.b16 %v10003
      %v10158 = vunpack.c.l.b16 %v10004
      %v10159 = vunpack.c.l.b16 %v10005
      %v10160 = vunpack.c.l.b16 %v10006
      %v10161 = vunpack.c.l.b16 %v10007
      %v10162 = vunpack.c.h.b16 %v10001
      %v10163 = vunpack.c.h.b16 %v10002
      %v10164 = vunpack.c.h.b16 %v10003
      %v10165 = vunpack.c.h.b16 %v10004
      %v10166 = vunpack.c.h.b16 %v10005
      %v10167 = vunpack.c.h.b16 %v10006
      %v10168 = vunpack.c.h.b16 %v10007
      %v10169 = vunpack.c.l.b16 %v10008
      %v10170 = vunpack.c.l.b16 %v10009
      %v10171 = vunpack.c.l.b16 %v10010
      %v10172 = vunpack.c.l.b16 %v10011
      %v10173 = vunpack.c.l.b16 %v10012
      %v10174 = vunpack.c.l.b16 %v10013
      %v10175 = vunpack.c.l.b16 %v10014
      %v10176 = vunpack.c.h.b16 %v10008
      %v10177 = vunpack.c.h.b16 %v10009
      %v10178 = vunpack.c.h.b16 %v10010
      %v10179 = vunpack.c.h.b16 %v10011
      %v10180 = vunpack.c.h.b16 %v10012
      %v10181 = vunpack.c.h.b16 %v10013
      %v10182 = vunpack.c.h.b16 %v10014
      %v10183 = vpack.c.b16 %v10072, %v10071
      %v10184 = vpack.c.b16 %v10074, %v10073
      %v10185 = vpack.c.b16 %v10076, %v10075
      %v10186 = vpack.c.b16 %v10077, %v10077
      %v10187 = vpack.c.b16 %v10079, %v10078
      %v10188 = vpack.c.b16 %v10081, %v10080
      %v10189 = vpack.c.b16 %v10083, %v10082
      %v10190 = vpack.c.b16 %v10084, %v10084
      %v10191 = vpack.c.b16 %v10086, %v10085
      %v10192 = vpack.c.b16 %v10088, %v10087
      %v10193 = vpack.c.b16 %v10090, %v10089
      %v10194 = vpack.c.b16 %v10091, %v10091
      %v10195 = vpack.c.b16 %v10093, %v10092
      %v10196 = vpack.c.b16 %v10095, %v10094
      %v10197 = vpack.c.b16 %v10097, %v10096
      %v10198 = vpack.c.b16 %v10098, %v10098
      %v10199 = vpack.c.b16 %v10100, %v10099
      %v10200 = vpack.c.b16 %v10102, %v10101
      %v10201 = vpack.c.b16 %v10104, %v10103
      %v10202 = vpack.c.b16 %v10105, %v10105
      %v10203 = vpack.c.b16 %v10107, %v10106
      %v10204 = vpack.c.b16 %v10109, %v10108
      %v10205 = vpack.c.b16 %v10111, %v10110
      %v10206 = vpack.c.b16 %v10112, %v10112
      %v10207 = vpack.c.b16 %v10114, %v10113
      %v10208 = vpack.c.b16 %v10116, %v10115
      %v10209 = vpack.c.b16 %v10118, %v10117
      %v10210 = vpack.c.b16 %v10119, %v10119
      %v10211 = vpack.c.b16 %v10121, %v10120
      %v10212 = vpack.c.b16 %v10123, %v10122
      %v10213 = vpack.c.b16 %v10125, %v10124
      %v10214 = vpack.c.b16 %v10126, %v10126
      %v10215 = vpack.c.b16 %v10128, %v10127
      %v10216 = vpack.c.b16 %v10130, %v10129
      %v10217 = vpack.c.b16 %v10132, %v10131
      %v10218 = vpack.c.b16 %v10133, %v10133
      %v10219 = vpack.c.b16 %v10135, %v10134
      %v10220 = vpack.c.b16 %v10137, %v10136
      %v10221 = vpack.c.b16 %v10139, %v10138
      %v10222 = vpack.c.b16 %v10140, %v10140
      %v10223 = vpack.c.b16 %v10142, %v10141
      %v10224 = vpack.c.b16 %v10144, %v10143
      %v10225 = vpack.c.b16 %v10146, %v10145
      %v10226 = vpack.c.b16 %v10147, %v10147
      %v10227 = vpack.c.b16 %v10149, %v10148
      %v10228 = vpack.c.b16 %v10151, %v10150
      %v10229 = vpack.c.b16 %v10153, %v10152
      %v10230 = vpack.c.b16 %v10154, %v10154
      %v10231 = vpack.c.b16 %v10156, %v10155
      %v10232 = vpack.c.b16 %v10158, %v10157
      %v10233 = vpack.c.b16 %v10160, %v10159
      %v10234 = vpack.c.b16 %v10161, %v10161
      %v10235 = vpack.c.b16 %v10163, %v10162
      %v10236 = vpack.c.b16 %v10165, %v10164
      %v10237 = vpack.c.b16 %v10167, %v10166
      %v10238 = vpack.c.b16 %v10168, %v10168
      %v10239 = vpack.c.b16 %v10170, %v10169
      %v10240 = vpack.c.b16 %v10172, %v10171
      %v10241 = vpack.c.b16 %v10174, %v10173
      %v10242 = vpack.c.b16 %v10175, %v10175
      %v10243 = vpack.c.b16 %v10177, %v10176
      %v10244 = vpack.c.b16 %v10179, %v10178
      %v10245 = vpack.c.b16 %v10181, %v10180
      %v10246 = vpack.c.b16 %v10182, %v10182
      %10311 = vst [vmem:[%s590] sm:$0xff] %v10183
      %10312 = vst [vmem:[%s590 + $0x8] sm:$0xff] %v10184
      %10313 = vst [vmem:[%s590 + $0x10] sm:$0xff] %v10185
      %vm10314 = vcmask 125952
      %10315 = vst.msk [vmem:[%s590 + $0x18] sm:$0xf] %vm10314, %v10186
      %10316 = vst [vmem:[%s590 + $0x1c] sm:$0xff] %v10187
      %10317 = vst [vmem:[%s590 + $0x24] sm:$0xff] %v10188
      %10318 = vst [vmem:[%s590 + $0x2c] sm:$0xff] %v10189
      %10319 = vst.msk [vmem:[%s590 + $0x34] sm:$0xf] %vm10314, %v10190
      %10320 = vst [vmem:[%s590 + $0x38] sm:$0xff] %v10191
      %10321 = vst [vmem:[%s590 + $0x40] sm:$0xff] %v10192
      %10322 = vst [vmem:[%s590 + $0x48] sm:$0xff] %v10193
      %10323 = vst.msk [vmem:[%s590 + $0x50] sm:$0xf] %vm10314, %v10194
      %10324 = vst [vmem:[%s590 + $0x54] sm:$0xff] %v10195
      %10325 = vst [vmem:[%s590 + $0x5c] sm:$0xff] %v10196
      %10326 = vst [vmem:[%s590 + $0x64] sm:$0xff] %v10197
      %10327 = vst.msk [vmem:[%s590 + $0x6c] sm:$0xf] %vm10314, %v10198
      %10328 = vst [vmem:[%s590 + $0x70] sm:$0xff] %v10199
      %10329 = vst [vmem:[%s590 + $0x78] sm:$0xff] %v10200
      %10330 = vst [vmem:[%s590 + $0x80] sm:$0xff] %v10201
      %10331 = vst.msk [vmem:[%s590 + $0x88] sm:$0xf] %vm10314, %v10202
      %10332 = vst [vmem:[%s590 + $0x8c] sm:$0xff] %v10203
      %10333 = vst [vmem:[%s590 + $0x94] sm:$0xff] %v10204
      %10334 = vst [vmem:[%s590 + $0x9c] sm:$0xff] %v10205
      %10335 = vst.msk [vmem:[%s590 + $0xa4] sm:$0xf] %vm10314, %v10206
      %10336 = vst [vmem:[%s590 + $0xa8] sm:$0xff] %v10207
      %10337 = vst [vmem:[%s590 + $0xb0] sm:$0xff] %v10208
      %10338 = vst [vmem:[%s590 + $0xb8] sm:$0xff] %v10209
      %10339 = vst.msk [vmem:[%s590 + $0xc0] sm:$0xf] %vm10314, %v10210
      %10340 = vst [vmem:[%s590 + $0xc4] sm:$0xff] %v10211
      %10341 = vst [vmem:[%s590 + $0xcc] sm:$0xff] %v10212
      %10342 = vst [vmem:[%s590 + $0xd4] sm:$0xff] %v10213
      %10343 = vst.msk [vmem:[%s590 + $0xdc] sm:$0xf] %vm10314, %v10214
      %10344 = vst [vmem:[%s590 + $0xe0] sm:$0xff] %v10215
      %10345 = vst [vmem:[%s590 + $0xe8] sm:$0xff] %v10216
      %10346 = vst [vmem:[%s590 + $0xf0] sm:$0xff] %v10217
      %10347 = vst.msk [vmem:[%s590 + $0xf8] sm:$0xf] %vm10314, %v10218
      %10348 = vst [vmem:[%s590 + $0xfc] sm:$0xff] %v10219
      %10349 = vst [vmem:[%s590 + $0x104] sm:$0xff] %v10220
      %10350 = vst [vmem:[%s590 + $0x10c] sm:$0xff] %v10221
      %10351 = vst.msk [vmem:[%s590 + $0x114] sm:$0xf] %vm10314, %v10222
      %10352 = vst [vmem:[%s590 + $0x118] sm:$0xff] %v10223
      %10353 = vst [vmem:[%s590 + $0x120] sm:$0xff] %v10224
      %10354 = vst [vmem:[%s590 + $0x128] sm:$0xff] %v10225
      %10355 = vst.msk [vmem:[%s590 + $0x130] sm:$0xf] %vm10314, %v10226
      %10356 = vst [vmem:[%s590 + $0x134] sm:$0xff] %v10227
      %10357 = vst [vmem:[%s590 + $0x13c] sm:$0xff] %v10228
      %10358 = vst [vmem:[%s590 + $0x144] sm:$0xff] %v10229
      %10359 = vst.msk [vmem:[%s590 + $0x14c] sm:$0xf] %vm10314, %v10230
      %10360 = vst [vmem:[%s590 + $0x150] sm:$0xff] %v10231
      %10361 = vst [vmem:[%s590 + $0x158] sm:$0xff] %v10232
      %10362 = vst [vmem:[%s590 + $0x160] sm:$0xff] %v10233
      %10363 = vst.msk [vmem:[%s590 + $0x168] sm:$0xf] %vm10314, %v10234
      %10364 = vst [vmem:[%s590 + $0x16c] sm:$0xff] %v10235
      %10365 = vst [vmem:[%s590 + $0x174] sm:$0xff] %v10236
      %10366 = vst [vmem:[%s590 + $0x17c] sm:$0xff] %v10237
      %10367 = vst.msk [vmem:[%s590 + $0x184] sm:$0xf] %vm10314, %v10238
      %10368 = vst [vmem:[%s590 + $0x188] sm:$0xff] %v10239
      %10369 = vst [vmem:[%s590 + $0x190] sm:$0xff] %v10240
      %10370 = vst [vmem:[%s590 + $0x198] sm:$0xff] %v10241
      %10371 = vst.msk [vmem:[%s590 + $0x1a0] sm:$0xf] %vm10314, %v10242
      %10372 = vst [vmem:[%s590 + $0x1a4] sm:$0xff] %v10243
      %10373 = vst [vmem:[%s590 + $0x1ac] sm:$0xff] %v10244
      %10374 = vst [vmem:[%s590 + $0x1b4] sm:$0xff] %v10245
      %10375 = vst.msk [vmem:[%s590 + $0x1bc] sm:$0xf] %vm10314, %v10246
      %v10376 = vld [vmem:[%s8] sm:$0xff]
      %v10377 = vld [vmem:[%s8 + $0x8] sm:$0xff]
      %v10378 = vld [vmem:[%s8 + $0x10] sm:$0xff]
      %v10379 = vld [vmem:[%s8 + $0x18] sm:$0xf]
      %v10380 = vld [vmem:[%s8 + $0x1c] sm:$0xff]
      %v10381 = vld [vmem:[%s8 + $0x24] sm:$0xff]
      %v10382 = vld [vmem:[%s8 + $0x2c] sm:$0xff]
      %v10383 = vld [vmem:[%s8 + $0x34] sm:$0xf]
      %v10384 = vld [vmem:[%s8 + $0x38] sm:$0xff]
      %v10385 = vld [vmem:[%s8 + $0x40] sm:$0xff]
      %v10386 = vld [vmem:[%s8 + $0x48] sm:$0xff]
      %v10387 = vld [vmem:[%s8 + $0x50] sm:$0xf]
      %v10388 = vld [vmem:[%s8 + $0x54] sm:$0xff]
      %v10389 = vld [vmem:[%s8 + $0x5c] sm:$0xff]
      %v10390 = vld [vmem:[%s8 + $0x64] sm:$0xff]
      %v10391 = vld [vmem:[%s8 + $0x6c] sm:$0xf]
      %v10392 = vld [vmem:[%s8 + $0x70] sm:$0xff]
      %v10393 = vld [vmem:[%s8 + $0x78] sm:$0xff]
      %v10394 = vld [vmem:[%s8 + $0x80] sm:$0xff]
      %v10395 = vld [vmem:[%s8 + $0x88] sm:$0xf]
      %v10396 = vld [vmem:[%s8 + $0x8c] sm:$0xff]
      %v10397 = vld [vmem:[%s8 + $0x94] sm:$0xff]
      %v10398 = vld [vmem:[%s8 + $0x9c] sm:$0xff]
      %v10399 = vld [vmem:[%s8 + $0xa4] sm:$0xf]
      %v10400 = vld [vmem:[%s8 + $0xa8] sm:$0xff]
      %v10401 = vld [vmem:[%s8 + $0xb0] sm:$0xff]
      %v10402 = vld [vmem:[%s8 + $0xb8] sm:$0xff]
      %v10403 = vld [vmem:[%s8 + $0xc0] sm:$0xf]
      %v10404 = vld [vmem:[%s8 + $0xc4] sm:$0xff]
      %v10405 = vld [vmem:[%s8 + $0xcc] sm:$0xff]
      %v10406 = vld [vmem:[%s8 + $0xd4] sm:$0xff]
      %v10407 = vld [vmem:[%s8 + $0xdc] sm:$0xf]
      %v10408 = vld [vmem:[%s8 + $0xe0] sm:$0xff]
      %v10409 = vld [vmem:[%s8 + $0xe8] sm:$0xff]
      %v10410 = vld [vmem:[%s8 + $0xf0] sm:$0xff]
      %v10411 = vld [vmem:[%s8 + $0xf8] sm:$0xf]
      %v10412 = vld [vmem:[%s8 + $0xfc] sm:$0xff]
      %v10413 = vld [vmem:[%s8 + $0x104] sm:$0xff]
      %v10414 = vld [vmem:[%s8 + $0x10c] sm:$0xff]
      %v10415 = vld [vmem:[%s8 + $0x114] sm:$0xf]
      %v10416 = vld [vmem:[%s8 + $0x118] sm:$0xff]
      %v10417 = vld [vmem:[%s8 + $0x120] sm:$0xff]
      %v10418 = vld [vmem:[%s8 + $0x128] sm:$0xff]
      %v10419 = vld [vmem:[%s8 + $0x130] sm:$0xf]
      %v10420 = vld [vmem:[%s8 + $0x134] sm:$0xff]
      %v10421 = vld [vmem:[%s8 + $0x13c] sm:$0xff]
      %v10422 = vld [vmem:[%s8 + $0x144] sm:$0xff]
      %v10423 = vld [vmem:[%s8 + $0x14c] sm:$0xf]
      %v10424 = vld [vmem:[%s8 + $0x150] sm:$0xff]
      %v10425 = vld [vmem:[%s8 + $0x158] sm:$0xff]
      %v10426 = vld [vmem:[%s8 + $0x160] sm:$0xff]
      %v10427 = vld [vmem:[%s8 + $0x168] sm:$0xf]
      %v10428 = vld [vmem:[%s8 + $0x16c] sm:$0xff]
      %v10429 = vld [vmem:[%s8 + $0x174] sm:$0xff]
      %v10430 = vld [vmem:[%s8 + $0x17c] sm:$0xff]
      %v10431 = vld [vmem:[%s8 + $0x184] sm:$0xf]
      %v10432 = vld [vmem:[%s8 + $0x188] sm:$0xff]
      %v10433 = vld [vmem:[%s8 + $0x190] sm:$0xff]
      %v10434 = vld [vmem:[%s8 + $0x198] sm:$0xff]
      %v10435 = vld [vmem:[%s8 + $0x1a0] sm:$0xf]
      %v10436 = vld [vmem:[%s8 + $0x1a4] sm:$0xff]
      %v10437 = vld [vmem:[%s8 + $0x1ac] sm:$0xff]
      %v10438 = vld [vmem:[%s8 + $0x1b4] sm:$0xff]
      %v10439 = vld [vmem:[%s8 + $0x1bc] sm:$0xf]
      %v10440 = vld [vmem:[%s8 + $0x1c0] sm:$0xff]
      %v10441 = vld [vmem:[%s8 + $0x1c8] sm:$0xff]
      %v10442 = vld [vmem:[%s8 + $0x1d0] sm:$0xff]
      %v10443 = vld [vmem:[%s8 + $0x1d8] sm:$0xf]
      %v10444 = vld [vmem:[%s8 + $0x1dc] sm:$0xff]
      %v10445 = vld [vmem:[%s8 + $0x1e4] sm:$0xff]
      %v10446 = vld [vmem:[%s8 + $0x1ec] sm:$0xff]
      %v10447 = vld [vmem:[%s8 + $0x1f4] sm:$0xf]
      %v10448 = vld [vmem:[%s8 + $0x1f8] sm:$0xff]
      %v10449 = vld [vmem:[%s8 + $0x200] sm:$0xff]
      %v10450 = vld [vmem:[%s8 + $0x208] sm:$0xff]
      %v10451 = vld [vmem:[%s8 + $0x210] sm:$0xf]
      %v10452 = vld [vmem:[%s8 + $0x214] sm:$0xff]
      %v10453 = vld [vmem:[%s8 + $0x21c] sm:$0xff]
      %v10454 = vld [vmem:[%s8 + $0x224] sm:$0xff]
      %v10455 = vld [vmem:[%s8 + $0x22c] sm:$0xf]
      %v10456 = vld [vmem:[%s8 + $0x230] sm:$0xff]
      %v10457 = vld [vmem:[%s8 + $0x238] sm:$0xff]
      %v10458 = vld [vmem:[%s8 + $0x240] sm:$0xff]
      %v10459 = vld [vmem:[%s8 + $0x248] sm:$0xf]
      %v10460 = vld [vmem:[%s8 + $0x24c] sm:$0xff]
      %v10461 = vld [vmem:[%s8 + $0x254] sm:$0xff]
      %v10462 = vld [vmem:[%s8 + $0x25c] sm:$0xff]
      %v10463 = vld [vmem:[%s8 + $0x264] sm:$0xf]
      %v10464 = vld [vmem:[%s8 + $0x268] sm:$0xff]
      %v10465 = vld [vmem:[%s8 + $0x270] sm:$0xff]
      %v10466 = vld [vmem:[%s8 + $0x278] sm:$0xff]
      %v10467 = vld [vmem:[%s8 + $0x280] sm:$0xf]
      %v10468 = vld [vmem:[%s8 + $0x284] sm:$0xff]
      %v10469 = vld [vmem:[%s8 + $0x28c] sm:$0xff]
      %v10470 = vld [vmem:[%s8 + $0x294] sm:$0xff]
      %v10471 = vld [vmem:[%s8 + $0x29c] sm:$0xf]
      %v10472 = vld [vmem:[%s8 + $0x2a0] sm:$0xff]
      %v10473 = vld [vmem:[%s8 + $0x2a8] sm:$0xff]
      %v10474 = vld [vmem:[%s8 + $0x2b0] sm:$0xff]
      %v10475 = vld [vmem:[%s8 + $0x2b8] sm:$0xf]
      %v10476 = vld [vmem:[%s8 + $0x2bc] sm:$0xff]
      %v10477 = vld [vmem:[%s8 + $0x2c4] sm:$0xff]
      %v10478 = vld [vmem:[%s8 + $0x2cc] sm:$0xff]
      %v10479 = vld [vmem:[%s8 + $0x2d4] sm:$0xf]
      %v10480 = vld [vmem:[%s8 + $0x2d8] sm:$0xff]
      %v10481 = vld [vmem:[%s8 + $0x2e0] sm:$0xff]
      %v10482 = vld [vmem:[%s8 + $0x2e8] sm:$0xff]
      %v10483 = vld [vmem:[%s8 + $0x2f0] sm:$0xf]
      %v10484 = vld [vmem:[%s8 + $0x2f4] sm:$0xff]
      %v10485 = vld [vmem:[%s8 + $0x2fc] sm:$0xff]
      %v10486 = vld [vmem:[%s8 + $0x304] sm:$0xff]
      %v10487 = vld [vmem:[%s8 + $0x30c] sm:$0xf]
      %v10488 = vld [vmem:[%s8 + $0x310] sm:$0xff]
      %v10489 = vld [vmem:[%s8 + $0x318] sm:$0xff]
      %v10490 = vld [vmem:[%s8 + $0x320] sm:$0xff]
      %v10491 = vld [vmem:[%s8 + $0x328] sm:$0xf]
      %v10492 = vld [vmem:[%s8 + $0x32c] sm:$0xff]
      %v10493 = vld [vmem:[%s8 + $0x334] sm:$0xff]
      %v10494 = vld [vmem:[%s8 + $0x33c] sm:$0xff]
      %v10495 = vld [vmem:[%s8 + $0x344] sm:$0xf]
      %v10496 = vld [vmem:[%s8 + $0x348] sm:$0xff]
      %v10497 = vld [vmem:[%s8 + $0x350] sm:$0xff]
      %v10498 = vld [vmem:[%s8 + $0x358] sm:$0xff]
      %v10499 = vld [vmem:[%s8 + $0x360] sm:$0xf]
      %v10500 = vld [vmem:[%s8 + $0x364] sm:$0xff]
      %v10501 = vld [vmem:[%s8 + $0x36c] sm:$0xff]
      %v10502 = vld [vmem:[%s8 + $0x374] sm:$0xff]
      %v10503 = vld [vmem:[%s8 + $0x37c] sm:$0xf]
      %v10504 = vld [vmem:[%s8 + $0x380] sm:$0xff]
      %v10505 = vld [vmem:[%s8 + $0x388] sm:$0xff]
      %v10506 = vld [vmem:[%s8 + $0x390] sm:$0xff]
      %v10507 = vld [vmem:[%s8 + $0x398] sm:$0xf]
      %v10508 = vld [vmem:[%s8 + $0x39c] sm:$0xff]
      %v10509 = vld [vmem:[%s8 + $0x3a4] sm:$0xff]
      %v10510 = vld [vmem:[%s8 + $0x3ac] sm:$0xff]
      %v10511 = vld [vmem:[%s8 + $0x3b4] sm:$0xf]
      %v10512 = vld [vmem:[%s8 + $0x3b8] sm:$0xff]
      %v10513 = vld [vmem:[%s8 + $0x3c0] sm:$0xff]
      %v10514 = vld [vmem:[%s8 + $0x3c8] sm:$0xff]
      %v10515 = vld [vmem:[%s8 + $0x3d0] sm:$0xf]
      %v10516 = vld [vmem:[%s8 + $0x3d4] sm:$0xff]
      %v10517 = vld [vmem:[%s8 + $0x3dc] sm:$0xff]
      %v10518 = vld [vmem:[%s8 + $0x3e4] sm:$0xff]
      %v10519 = vld [vmem:[%s8 + $0x3ec] sm:$0xf]
      %v10520 = vld [vmem:[%s8 + $0x3f0] sm:$0xff]
      %v10521 = vld [vmem:[%s8 + $0x3f8] sm:$0xff]
      %v10522 = vld [vmem:[%s8 + $0x400] sm:$0xff]
      %v10523 = vld [vmem:[%s8 + $0x408] sm:$0xf]
      %v10524 = vld [vmem:[%s8 + $0x40c] sm:$0xff]
      %v10525 = vld [vmem:[%s8 + $0x414] sm:$0xff]
      %v10526 = vld [vmem:[%s8 + $0x41c] sm:$0xff]
      %v10527 = vld [vmem:[%s8 + $0x424] sm:$0xf]
      %v10528 = vld [vmem:[%s8 + $0x428] sm:$0xff]
      %v10529 = vld [vmem:[%s8 + $0x430] sm:$0xff]
      %v10530 = vld [vmem:[%s8 + $0x438] sm:$0xff]
      %v10531 = vld [vmem:[%s8 + $0x440] sm:$0xf]
      %v10532 = vld [vmem:[%s8 + $0x444] sm:$0xff]
      %v10533 = vld [vmem:[%s8 + $0x44c] sm:$0xff]
      %v10534 = vld [vmem:[%s8 + $0x454] sm:$0xff]
      %v10535 = vld [vmem:[%s8 + $0x45c] sm:$0xf]
      %v10536 = vld [vmem:[%s8 + $0x460] sm:$0xff]
      %v10537 = vld [vmem:[%s8 + $0x468] sm:$0xff]
      %v10538 = vld [vmem:[%s8 + $0x470] sm:$0xff]
      %v10539 = vld [vmem:[%s8 + $0x478] sm:$0xf]
      %v10540 = vld [vmem:[%s8 + $0x47c] sm:$0xff]
      %v10541 = vld [vmem:[%s8 + $0x484] sm:$0xff]
      %v10542 = vld [vmem:[%s8 + $0x48c] sm:$0xff]
      %v10543 = vld [vmem:[%s8 + $0x494] sm:$0xf]
      %v10544 = vld [vmem:[%s8 + $0x498] sm:$0xff]
      %v10545 = vld [vmem:[%s8 + $0x4a0] sm:$0xff]
      %v10546 = vld [vmem:[%s8 + $0x4a8] sm:$0xff]
      %v10547 = vld [vmem:[%s8 + $0x4b0] sm:$0xf]
      %v10548 = vld [vmem:[%s8 + $0x4b4] sm:$0xff]
      %v10549 = vld [vmem:[%s8 + $0x4bc] sm:$0xff]
      %v10550 = vld [vmem:[%s8 + $0x4c4] sm:$0xff]
      %v10551 = vld [vmem:[%s8 + $0x4cc] sm:$0xf]
      %v10552 = vld [vmem:[%s8 + $0x4d0] sm:$0xff]
      %v10553 = vld [vmem:[%s8 + $0x4d8] sm:$0xff]
      %v10554 = vld [vmem:[%s8 + $0x4e0] sm:$0xff]
      %v10555 = vld [vmem:[%s8 + $0x4e8] sm:$0xf]
      %v10556 = vld [vmem:[%s8 + $0x4ec] sm:$0xff]
      %v10557 = vld [vmem:[%s8 + $0x4f4] sm:$0xff]
      %v10558 = vld [vmem:[%s8 + $0x4fc] sm:$0xff]
      %v10559 = vld [vmem:[%s8 + $0x504] sm:$0xf]
      %v10560 = vld [vmem:[%s8 + $0x508] sm:$0xff]
      %v10561 = vld [vmem:[%s8 + $0x510] sm:$0xff]
      %v10562 = vld [vmem:[%s8 + $0x518] sm:$0xff]
      %v10563 = vld [vmem:[%s8 + $0x520] sm:$0xf]
      %v10564 = vld [vmem:[%s8 + $0x524] sm:$0xff]
      %v10565 = vld [vmem:[%s8 + $0x52c] sm:$0xff]
      %v10566 = vld [vmem:[%s8 + $0x534] sm:$0xff]
      %v10567 = vld [vmem:[%s8 + $0x53c] sm:$0xf]
      %v10568 = vld [vmem:[%s8 + $0x540] sm:$0xff]
      %v10569 = vld [vmem:[%s8 + $0x548] sm:$0xff]
      %v10570 = vld [vmem:[%s8 + $0x550] sm:$0xff]
      %v10571 = vld [vmem:[%s8 + $0x558] sm:$0xf]
      %v10572 = vld [vmem:[%s8 + $0x55c] sm:$0xff]
      %v10573 = vld [vmem:[%s8 + $0x564] sm:$0xff]
      %v10574 = vld [vmem:[%s8 + $0x56c] sm:$0xff]
      %v10575 = vld [vmem:[%s8 + $0x574] sm:$0xf]
      %v10576 = vld [vmem:[%s8 + $0x578] sm:$0xff]
      %v10577 = vld [vmem:[%s8 + $0x580] sm:$0xff]
      %v10578 = vld [vmem:[%s8 + $0x588] sm:$0xff]
      %v10579 = vld [vmem:[%s8 + $0x590] sm:$0xf]
      %v10580 = vld [vmem:[%s8 + $0x594] sm:$0xff]
      %v10581 = vld [vmem:[%s8 + $0x59c] sm:$0xff]
      %v10582 = vld [vmem:[%s8 + $0x5a4] sm:$0xff]
      %v10583 = vld [vmem:[%s8 + $0x5ac] sm:$0xf]
      %v10584 = vld [vmem:[%s8 + $0x5b0] sm:$0xff]
      %v10585 = vld [vmem:[%s8 + $0x5b8] sm:$0xff]
      %v10586 = vld [vmem:[%s8 + $0x5c0] sm:$0xff]
      %v10587 = vld [vmem:[%s8 + $0x5c8] sm:$0xf]
      %v10588 = vld [vmem:[%s8 + $0x5cc] sm:$0xff]
      %v10589 = vld [vmem:[%s8 + $0x5d4] sm:$0xff]
      %v10590 = vld [vmem:[%s8 + $0x5dc] sm:$0xff]
      %v10591 = vld [vmem:[%s8 + $0x5e4] sm:$0xf]
      %v10592 = vld [vmem:[%s8 + $0x5e8] sm:$0xff]
      %v10593 = vld [vmem:[%s8 + $0x5f0] sm:$0xff]
      %v10594 = vld [vmem:[%s8 + $0x5f8] sm:$0xff]
      %v10595 = vld [vmem:[%s8 + $0x600] sm:$0xf]
      %v10596 = vld [vmem:[%s8 + $0x604] sm:$0xff]
      %v10597 = vld [vmem:[%s8 + $0x60c] sm:$0xff]
      %v10598 = vld [vmem:[%s8 + $0x614] sm:$0xff]
      %v10599 = vld [vmem:[%s8 + $0x61c] sm:$0xf]
      %v10600 = vld [vmem:[%s8 + $0x620] sm:$0xff]
      %v10601 = vld [vmem:[%s8 + $0x628] sm:$0xff]
      %v10602 = vld [vmem:[%s8 + $0x630] sm:$0xff]
      %v10603 = vld [vmem:[%s8 + $0x638] sm:$0xf]
      %v10604 = vld [vmem:[%s8 + $0x63c] sm:$0xff]
      %v10605 = vld [vmem:[%s8 + $0x644] sm:$0xff]
      %v10606 = vld [vmem:[%s8 + $0x64c] sm:$0xff]
      %v10607 = vld [vmem:[%s8 + $0x654] sm:$0xf]
      %v10608 = vld [vmem:[%s8 + $0x658] sm:$0xff]
      %v10609 = vld [vmem:[%s8 + $0x660] sm:$0xff]
      %v10610 = vld [vmem:[%s8 + $0x668] sm:$0xff]
      %v10611 = vld [vmem:[%s8 + $0x670] sm:$0xf]
      %v10612 = vld [vmem:[%s8 + $0x674] sm:$0xff]
      %v10613 = vld [vmem:[%s8 + $0x67c] sm:$0xff]
      %v10614 = vld [vmem:[%s8 + $0x684] sm:$0xff]
      %v10615 = vld [vmem:[%s8 + $0x68c] sm:$0xf]
      %v10616 = vld [vmem:[%s8 + $0x690] sm:$0xff]
      %v10617 = vld [vmem:[%s8 + $0x698] sm:$0xff]
      %v10618 = vld [vmem:[%s8 + $0x6a0] sm:$0xff]
      %v10619 = vld [vmem:[%s8 + $0x6a8] sm:$0xf]
      %v10620 = vld [vmem:[%s8 + $0x6ac] sm:$0xff]
      %v10621 = vld [vmem:[%s8 + $0x6b4] sm:$0xff]
      %v10622 = vld [vmem:[%s8 + $0x6bc] sm:$0xff]
      %v10623 = vld [vmem:[%s8 + $0x6c4] sm:$0xf]
      %v10624 = vld [vmem:[%s8 + $0x6c8] sm:$0xff]
      %v10625 = vld [vmem:[%s8 + $0x6d0] sm:$0xff]
      %v10626 = vld [vmem:[%s8 + $0x6d8] sm:$0xff]
      %v10627 = vld [vmem:[%s8 + $0x6e0] sm:$0xf]
      %v10628 = vld [vmem:[%s8 + $0x6e4] sm:$0xff]
      %v10629 = vld [vmem:[%s8 + $0x6ec] sm:$0xff]
      %v10630 = vld [vmem:[%s8 + $0x6f4] sm:$0xff]
      %v10631 = vld [vmem:[%s8 + $0x6fc] sm:$0xf]
      %v10632 = vld [vmem:[%s16] sm:$0x7f]
      %v10634 = vlaneseq
      %v10635 = vshrl.u32 %v10634, 7
      %v10636 = vsub.s32 0, %v10635
      %v10637 = vrot.slane %v10632, %v10636
      %v10638 = vlaneseq
      %v10639 = vshrl.u32 %v10638, 7
      %v10640 = vsub.s32 1, %v10639
      %v10641 = vrot.slane %v10632, %v10640
      %v10642 = vlaneseq
      %v10643 = vshrl.u32 %v10642, 7
      %v10644 = vsub.s32 2, %v10643
      %v10645 = vrot.slane %v10632, %v10644
      %v10646 = vlaneseq
      %v10647 = vshrl.u32 %v10646, 7
      %v10648 = vsub.s32 3, %v10647
      %v10649 = vrot.slane %v10632, %v10648
      %v10650 = vlaneseq
      %v10651 = vshrl.u32 %v10650, 7
      %v10652 = vsub.s32 4, %v10651
      %v10653 = vrot.slane %v10632, %v10652
      %v10654 = vlaneseq
      %v10655 = vshrl.u32 %v10654, 7
      %v10656 = vsub.s32 5, %v10655
      %v10657 = vrot.slane %v10632, %v10656
      %v10658 = vlaneseq
      %v10659 = vshrl.u32 %v10658, 7
      %v10660 = vsub.s32 6, %v10659
      %v10661 = vrot.slane %v10632, %v10660
      %v10925 = vunpack.c.l.b16 %v10376
      %v10926 = vunpack.c.h.b16 %v10376
      %v10927 = vunpack.c.l.b16 %v10377
      %v10928 = vunpack.c.h.b16 %v10377
      %v10929 = vunpack.c.l.b16 %v10378
      %v10930 = vunpack.c.h.b16 %v10378
      %v10931 = vunpack.c.l.b16 %v10379
      %v10932 = vunpack.c.l.b16 %v10380
      %v10933 = vunpack.c.h.b16 %v10380
      %v10934 = vunpack.c.l.b16 %v10381
      %v10935 = vunpack.c.h.b16 %v10381
      %v10936 = vunpack.c.l.b16 %v10382
      %v10937 = vunpack.c.h.b16 %v10382
      %v10938 = vunpack.c.l.b16 %v10383
      %v10939 = vunpack.c.l.b16 %v10384
      %v10940 = vunpack.c.h.b16 %v10384
      %v10941 = vunpack.c.l.b16 %v10385
      %v10942 = vunpack.c.h.b16 %v10385
      %v10943 = vunpack.c.l.b16 %v10386
      %v10944 = vunpack.c.h.b16 %v10386
      %v10945 = vunpack.c.l.b16 %v10387
      %v10946 = vunpack.c.l.b16 %v10388
      %v10947 = vunpack.c.h.b16 %v10388
      %v10948 = vunpack.c.l.b16 %v10389
      %v10949 = vunpack.c.h.b16 %v10389
      %v10950 = vunpack.c.l.b16 %v10390
      %v10951 = vunpack.c.h.b16 %v10390
      %v10952 = vunpack.c.l.b16 %v10391
      %v10953 = vunpack.c.l.b16 %v10392
      %v10954 = vunpack.c.h.b16 %v10392
      %v10955 = vunpack.c.l.b16 %v10393
      %v10956 = vunpack.c.h.b16 %v10393
      %v10957 = vunpack.c.l.b16 %v10394
      %v10958 = vunpack.c.h.b16 %v10394
      %v10959 = vunpack.c.l.b16 %v10395
      %v10960 = vunpack.c.l.b16 %v10396
      %v10961 = vunpack.c.h.b16 %v10396
      %v10962 = vunpack.c.l.b16 %v10397
      %v10963 = vunpack.c.h.b16 %v10397
      %v10964 = vunpack.c.l.b16 %v10398
      %v10965 = vunpack.c.h.b16 %v10398
      %v10966 = vunpack.c.l.b16 %v10399
      %v10967 = vunpack.c.l.b16 %v10400
      %v10968 = vunpack.c.h.b16 %v10400
      %v10969 = vunpack.c.l.b16 %v10401
      %v10970 = vunpack.c.h.b16 %v10401
      %v10971 = vunpack.c.l.b16 %v10402
      %v10972 = vunpack.c.h.b16 %v10402
      %v10973 = vunpack.c.l.b16 %v10403
      %v10974 = vunpack.c.l.b16 %v10404
      %v10975 = vunpack.c.h.b16 %v10404
      %v10976 = vunpack.c.l.b16 %v10405
      %v10977 = vunpack.c.h.b16 %v10405
      %v10978 = vunpack.c.l.b16 %v10406
      %v10979 = vunpack.c.h.b16 %v10406
      %v10980 = vunpack.c.l.b16 %v10407
      %v10981 = vunpack.c.l.b16 %v10408
      %v10982 = vunpack.c.h.b16 %v10408
      %v10983 = vunpack.c.l.b16 %v10409
      %v10984 = vunpack.c.h.b16 %v10409
      %v10985 = vunpack.c.l.b16 %v10410
      %v10986 = vunpack.c.h.b16 %v10410
      %v10987 = vunpack.c.l.b16 %v10411
      %v10988 = vunpack.c.l.b16 %v10412
      %v10989 = vunpack.c.h.b16 %v10412
      %v10990 = vunpack.c.l.b16 %v10413
      %v10991 = vunpack.c.h.b16 %v10413
      %v10992 = vunpack.c.l.b16 %v10414
      %v10993 = vunpack.c.h.b16 %v10414
      %v10994 = vunpack.c.l.b16 %v10415
      %v10995 = vunpack.c.l.b16 %v10416
      %v10996 = vunpack.c.h.b16 %v10416
      %v10997 = vunpack.c.l.b16 %v10417
      %v10998 = vunpack.c.h.b16 %v10417
      %v10999 = vunpack.c.l.b16 %v10418
      %v11000 = vunpack.c.h.b16 %v10418
      %v11001 = vunpack.c.l.b16 %v10419
      %v11002 = vunpack.c.l.b16 %v10420
      %v11003 = vunpack.c.h.b16 %v10420
      %v11004 = vunpack.c.l.b16 %v10421
      %v11005 = vunpack.c.h.b16 %v10421
      %v11006 = vunpack.c.l.b16 %v10422
      %v11007 = vunpack.c.h.b16 %v10422
      %v11008 = vunpack.c.l.b16 %v10423
      %v11009 = vunpack.c.l.b16 %v10424
      %v11010 = vunpack.c.h.b16 %v10424
      %v11011 = vunpack.c.l.b16 %v10425
      %v11012 = vunpack.c.h.b16 %v10425
      %v11013 = vunpack.c.l.b16 %v10426
      %v11014 = vunpack.c.h.b16 %v10426
      %v11015 = vunpack.c.l.b16 %v10427
      %v11016 = vunpack.c.l.b16 %v10428
      %v11017 = vunpack.c.h.b16 %v10428
      %v11018 = vunpack.c.l.b16 %v10429
      %v11019 = vunpack.c.h.b16 %v10429
      %v11020 = vunpack.c.l.b16 %v10430
      %v11021 = vunpack.c.h.b16 %v10430
      %v11022 = vunpack.c.l.b16 %v10431
      %v11023 = vunpack.c.l.b16 %v10432
      %v11024 = vunpack.c.h.b16 %v10432
      %v11025 = vunpack.c.l.b16 %v10433
      %v11026 = vunpack.c.h.b16 %v10433
      %v11027 = vunpack.c.l.b16 %v10434
      %v11028 = vunpack.c.h.b16 %v10434
      %v11029 = vunpack.c.l.b16 %v10435
      %v11030 = vunpack.c.l.b16 %v10436
      %v11031 = vunpack.c.h.b16 %v10436
      %v11032 = vunpack.c.l.b16 %v10437
      %v11033 = vunpack.c.h.b16 %v10437
      %v11034 = vunpack.c.l.b16 %v10438
      %v11035 = vunpack.c.h.b16 %v10438
      %v11036 = vunpack.c.l.b16 %v10439
      %v11037 = vunpack.c.l.b16 %v10440
      %v11038 = vunpack.c.h.b16 %v10440
      %v11039 = vunpack.c.l.b16 %v10441
      %v11040 = vunpack.c.h.b16 %v10441
      %v11041 = vunpack.c.l.b16 %v10442
      %v11042 = vunpack.c.h.b16 %v10442
      %v11043 = vunpack.c.l.b16 %v10443
      %v11044 = vunpack.c.l.b16 %v10444
      %v11045 = vunpack.c.h.b16 %v10444
      %v11046 = vunpack.c.l.b16 %v10445
      %v11047 = vunpack.c.h.b16 %v10445
      %v11048 = vunpack.c.l.b16 %v10446
      %v11049 = vunpack.c.h.b16 %v10446
      %v11050 = vunpack.c.l.b16 %v10447
      %v11051 = vunpack.c.l.b16 %v10448
      %v11052 = vunpack.c.h.b16 %v10448
      %v11053 = vunpack.c.l.b16 %v10449
      %v11054 = vunpack.c.h.b16 %v10449
      %v11055 = vunpack.c.l.b16 %v10450
      %v11056 = vunpack.c.h.b16 %v10450
      %v11057 = vunpack.c.l.b16 %v10451
      %v11058 = vunpack.c.l.b16 %v10452
      %v11059 = vunpack.c.h.b16 %v10452
      %v11060 = vunpack.c.l.b16 %v10453
      %v11061 = vunpack.c.h.b16 %v10453
      %v11062 = vunpack.c.l.b16 %v10454
      %v11063 = vunpack.c.h.b16 %v10454
      %v11064 = vunpack.c.l.b16 %v10455
      %v11065 = vunpack.c.l.b16 %v10456
      %v11066 = vunpack.c.h.b16 %v10456
      %v11067 = vunpack.c.l.b16 %v10457
      %v11068 = vunpack.c.h.b16 %v10457
      %v11069 = vunpack.c.l.b16 %v10458
      %v11070 = vunpack.c.h.b16 %v10458
      %v11071 = vunpack.c.l.b16 %v10459
      %v11072 = vunpack.c.l.b16 %v10460
      %v11073 = vunpack.c.h.b16 %v10460
      %v11074 = vunpack.c.l.b16 %v10461
      %v11075 = vunpack.c.h.b16 %v10461
      %v11076 = vunpack.c.l.b16 %v10462
      %v11077 = vunpack.c.h.b16 %v10462
      %v11078 = vunpack.c.l.b16 %v10463
      %v11079 = vunpack.c.l.b16 %v10464
      %v11080 = vunpack.c.h.b16 %v10464
      %v11081 = vunpack.c.l.b16 %v10465
      %v11082 = vunpack.c.h.b16 %v10465
      %v11083 = vunpack.c.l.b16 %v10466
      %v11084 = vunpack.c.h.b16 %v10466
      %v11085 = vunpack.c.l.b16 %v10467
      %v11086 = vunpack.c.l.b16 %v10468
      %v11087 = vunpack.c.h.b16 %v10468
      %v11088 = vunpack.c.l.b16 %v10469
      %v11089 = vunpack.c.h.b16 %v10469
      %v11090 = vunpack.c.l.b16 %v10470
      %v11091 = vunpack.c.h.b16 %v10470
      %v11092 = vunpack.c.l.b16 %v10471
      %v11093 = vunpack.c.l.b16 %v10472
      %v11094 = vunpack.c.h.b16 %v10472
      %v11095 = vunpack.c.l.b16 %v10473
      %v11096 = vunpack.c.h.b16 %v10473
      %v11097 = vunpack.c.l.b16 %v10474
      %v11098 = vunpack.c.h.b16 %v10474
      %v11099 = vunpack.c.l.b16 %v10475
      %v11100 = vunpack.c.l.b16 %v10476
      %v11101 = vunpack.c.h.b16 %v10476
      %v11102 = vunpack.c.l.b16 %v10477
      %v11103 = vunpack.c.h.b16 %v10477
      %v11104 = vunpack.c.l.b16 %v10478
      %v11105 = vunpack.c.h.b16 %v10478
      %v11106 = vunpack.c.l.b16 %v10479
      %v11107 = vunpack.c.l.b16 %v10480
      %v11108 = vunpack.c.h.b16 %v10480
      %v11109 = vunpack.c.l.b16 %v10481
      %v11110 = vunpack.c.h.b16 %v10481
      %v11111 = vunpack.c.l.b16 %v10482
      %v11112 = vunpack.c.h.b16 %v10482
      %v11113 = vunpack.c.l.b16 %v10483
      %v11114 = vunpack.c.l.b16 %v10484
      %v11115 = vunpack.c.h.b16 %v10484
      %v11116 = vunpack.c.l.b16 %v10485
      %v11117 = vunpack.c.h.b16 %v10485
      %v11118 = vunpack.c.l.b16 %v10486
      %v11119 = vunpack.c.h.b16 %v10486
      %v11120 = vunpack.c.l.b16 %v10487
      %v11121 = vunpack.c.l.b16 %v10488
      %v11122 = vunpack.c.h.b16 %v10488
      %v11123 = vunpack.c.l.b16 %v10489
      %v11124 = vunpack.c.h.b16 %v10489
      %v11125 = vunpack.c.l.b16 %v10490
      %v11126 = vunpack.c.h.b16 %v10490
      %v11127 = vunpack.c.l.b16 %v10491
      %v11128 = vunpack.c.l.b16 %v10492
      %v11129 = vunpack.c.h.b16 %v10492
      %v11130 = vunpack.c.l.b16 %v10493
      %v11131 = vunpack.c.h.b16 %v10493
      %v11132 = vunpack.c.l.b16 %v10494
      %v11133 = vunpack.c.h.b16 %v10494
      %v11134 = vunpack.c.l.b16 %v10495
      %v11135 = vunpack.c.l.b16 %v10496
      %v11136 = vunpack.c.h.b16 %v10496
      %v11137 = vunpack.c.l.b16 %v10497
      %v11138 = vunpack.c.h.b16 %v10497
      %v11139 = vunpack.c.l.b16 %v10498
      %v11140 = vunpack.c.h.b16 %v10498
      %v11141 = vunpack.c.l.b16 %v10499
      %v11142 = vunpack.c.l.b16 %v10500
      %v11143 = vunpack.c.h.b16 %v10500
      %v11144 = vunpack.c.l.b16 %v10501
      %v11145 = vunpack.c.h.b16 %v10501
      %v11146 = vunpack.c.l.b16 %v10502
      %v11147 = vunpack.c.h.b16 %v10502
      %v11148 = vunpack.c.l.b16 %v10503
      %v11149 = vunpack.c.l.b16 %v10504
      %v11150 = vunpack.c.h.b16 %v10504
      %v11151 = vunpack.c.l.b16 %v10505
      %v11152 = vunpack.c.h.b16 %v10505
      %v11153 = vunpack.c.l.b16 %v10506
      %v11154 = vunpack.c.h.b16 %v10506
      %v11155 = vunpack.c.l.b16 %v10507
      %v11156 = vunpack.c.l.b16 %v10508
      %v11157 = vunpack.c.h.b16 %v10508
      %v11158 = vunpack.c.l.b16 %v10509
      %v11159 = vunpack.c.h.b16 %v10509
      %v11160 = vunpack.c.l.b16 %v10510
      %v11161 = vunpack.c.h.b16 %v10510
      %v11162 = vunpack.c.l.b16 %v10511
      %v11163 = vunpack.c.l.b16 %v10512
      %v11164 = vunpack.c.h.b16 %v10512
      %v11165 = vunpack.c.l.b16 %v10513
      %v11166 = vunpack.c.h.b16 %v10513
      %v11167 = vunpack.c.l.b16 %v10514
      %v11168 = vunpack.c.h.b16 %v10514
      %v11169 = vunpack.c.l.b16 %v10515
      %v11170 = vunpack.c.l.b16 %v10516
      %v11171 = vunpack.c.h.b16 %v10516
      %v11172 = vunpack.c.l.b16 %v10517
      %v11173 = vunpack.c.h.b16 %v10517
      %v11174 = vunpack.c.l.b16 %v10518
      %v11175 = vunpack.c.h.b16 %v10518
      %v11176 = vunpack.c.l.b16 %v10519
      %v11177 = vunpack.c.l.b16 %v10520
      %v11178 = vunpack.c.h.b16 %v10520
      %v11179 = vunpack.c.l.b16 %v10521
      %v11180 = vunpack.c.h.b16 %v10521
      %v11181 = vunpack.c.l.b16 %v10522
      %v11182 = vunpack.c.h.b16 %v10522
      %v11183 = vunpack.c.l.b16 %v10523
      %v11184 = vunpack.c.l.b16 %v10524
      %v11185 = vunpack.c.h.b16 %v10524
      %v11186 = vunpack.c.l.b16 %v10525
      %v11187 = vunpack.c.h.b16 %v10525
      %v11188 = vunpack.c.l.b16 %v10526
      %v11189 = vunpack.c.h.b16 %v10526
      %v11190 = vunpack.c.l.b16 %v10527
      %v11191 = vunpack.c.l.b16 %v10528
      %v11192 = vunpack.c.h.b16 %v10528
      %v11193 = vunpack.c.l.b16 %v10529
      %v11194 = vunpack.c.h.b16 %v10529
      %v11195 = vunpack.c.l.b16 %v10530
      %v11196 = vunpack.c.h.b16 %v10530
      %v11197 = vunpack.c.l.b16 %v10531
      %v11198 = vunpack.c.l.b16 %v10532
      %v11199 = vunpack.c.h.b16 %v10532
      %v11200 = vunpack.c.l.b16 %v10533
      %v11201 = vunpack.c.h.b16 %v10533
      %v11202 = vunpack.c.l.b16 %v10534
      %v11203 = vunpack.c.h.b16 %v10534
      %v11204 = vunpack.c.l.b16 %v10535
      %v11205 = vunpack.c.l.b16 %v10536
      %v11206 = vunpack.c.h.b16 %v10536
      %v11207 = vunpack.c.l.b16 %v10537
      %v11208 = vunpack.c.h.b16 %v10537
      %v11209 = vunpack.c.l.b16 %v10538
      %v11210 = vunpack.c.h.b16 %v10538
      %v11211 = vunpack.c.l.b16 %v10539
      %v11212 = vunpack.c.l.b16 %v10540
      %v11213 = vunpack.c.h.b16 %v10540
      %v11214 = vunpack.c.l.b16 %v10541
      %v11215 = vunpack.c.h.b16 %v10541
      %v11216 = vunpack.c.l.b16 %v10542
      %v11217 = vunpack.c.h.b16 %v10542
      %v11218 = vunpack.c.l.b16 %v10543
      %v11219 = vunpack.c.l.b16 %v10544
      %v11220 = vunpack.c.h.b16 %v10544
      %v11221 = vunpack.c.l.b16 %v10545
      %v11222 = vunpack.c.h.b16 %v10545
      %v11223 = vunpack.c.l.b16 %v10546
      %v11224 = vunpack.c.h.b16 %v10546
      %v11225 = vunpack.c.l.b16 %v10547
      %v11226 = vunpack.c.l.b16 %v10548
      %v11227 = vunpack.c.h.b16 %v10548
      %v11228 = vunpack.c.l.b16 %v10549
      %v11229 = vunpack.c.h.b16 %v10549
      %v11230 = vunpack.c.l.b16 %v10550
      %v11231 = vunpack.c.h.b16 %v10550
      %v11232 = vunpack.c.l.b16 %v10551
      %v11233 = vunpack.c.l.b16 %v10552
      %v11234 = vunpack.c.h.b16 %v10552
      %v11235 = vunpack.c.l.b16 %v10553
      %v11236 = vunpack.c.h.b16 %v10553
      %v11237 = vunpack.c.l.b16 %v10554
      %v11238 = vunpack.c.h.b16 %v10554
      %v11239 = vunpack.c.l.b16 %v10555
      %v11240 = vunpack.c.l.b16 %v10556
      %v11241 = vunpack.c.h.b16 %v10556
      %v11242 = vunpack.c.l.b16 %v10557
      %v11243 = vunpack.c.h.b16 %v10557
      %v11244 = vunpack.c.l.b16 %v10558
      %v11245 = vunpack.c.h.b16 %v10558
      %v11246 = vunpack.c.l.b16 %v10559
      %v11247 = vunpack.c.l.b16 %v10560
      %v11248 = vunpack.c.h.b16 %v10560
      %v11249 = vunpack.c.l.b16 %v10561
      %v11250 = vunpack.c.h.b16 %v10561
      %v11251 = vunpack.c.l.b16 %v10562
      %v11252 = vunpack.c.h.b16 %v10562
      %v11253 = vunpack.c.l.b16 %v10563
      %v11254 = vunpack.c.l.b16 %v10564
      %v11255 = vunpack.c.h.b16 %v10564
      %v11256 = vunpack.c.l.b16 %v10565
      %v11257 = vunpack.c.h.b16 %v10565
      %v11258 = vunpack.c.l.b16 %v10566
      %v11259 = vunpack.c.h.b16 %v10566
      %v11260 = vunpack.c.l.b16 %v10567
      %v11261 = vunpack.c.l.b16 %v10568
      %v11262 = vunpack.c.h.b16 %v10568
      %v11263 = vunpack.c.l.b16 %v10569
      %v11264 = vunpack.c.h.b16 %v10569
      %v11265 = vunpack.c.l.b16 %v10570
      %v11266 = vunpack.c.h.b16 %v10570
      %v11267 = vunpack.c.l.b16 %v10571
      %v11268 = vunpack.c.l.b16 %v10572
      %v11269 = vunpack.c.h.b16 %v10572
      %v11270 = vunpack.c.l.b16 %v10573
      %v11271 = vunpack.c.h.b16 %v10573
      %v11272 = vunpack.c.l.b16 %v10574
      %v11273 = vunpack.c.h.b16 %v10574
      %v11274 = vunpack.c.l.b16 %v10575
      %v11275 = vunpack.c.l.b16 %v10576
      %v11276 = vunpack.c.h.b16 %v10576
      %v11277 = vunpack.c.l.b16 %v10577
      %v11278 = vunpack.c.h.b16 %v10577
      %v11279 = vunpack.c.l.b16 %v10578
      %v11280 = vunpack.c.h.b16 %v10578
      %v11281 = vunpack.c.l.b16 %v10579
      %v11282 = vunpack.c.l.b16 %v10580
      %v11283 = vunpack.c.h.b16 %v10580
      %v11284 = vunpack.c.l.b16 %v10581
      %v11285 = vunpack.c.h.b16 %v10581
      %v11286 = vunpack.c.l.b16 %v10582
      %v11287 = vunpack.c.h.b16 %v10582
      %v11288 = vunpack.c.l.b16 %v10583
      %v11289 = vunpack.c.l.b16 %v10584
      %v11290 = vunpack.c.h.b16 %v10584
      %v11291 = vunpack.c.l.b16 %v10585
      %v11292 = vunpack.c.h.b16 %v10585
      %v11293 = vunpack.c.l.b16 %v10586
      %v11294 = vunpack.c.h.b16 %v10586
      %v11295 = vunpack.c.l.b16 %v10587
      %v11296 = vunpack.c.l.b16 %v10588
      %v11297 = vunpack.c.h.b16 %v10588
      %v11298 = vunpack.c.l.b16 %v10589
      %v11299 = vunpack.c.h.b16 %v10589
      %v11300 = vunpack.c.l.b16 %v10590
      %v11301 = vunpack.c.h.b16 %v10590
      %v11302 = vunpack.c.l.b16 %v10591
      %v11303 = vunpack.c.l.b16 %v10592
      %v11304 = vunpack.c.h.b16 %v10592
      %v11305 = vunpack.c.l.b16 %v10593
      %v11306 = vunpack.c.h.b16 %v10593
      %v11307 = vunpack.c.l.b16 %v10594
      %v11308 = vunpack.c.h.b16 %v10594
      %v11309 = vunpack.c.l.b16 %v10595
      %v11310 = vunpack.c.l.b16 %v10596
      %v11311 = vunpack.c.h.b16 %v10596
      %v11312 = vunpack.c.l.b16 %v10597
      %v11313 = vunpack.c.h.b16 %v10597
      %v11314 = vunpack.c.l.b16 %v10598
      %v11315 = vunpack.c.h.b16 %v10598
      %v11316 = vunpack.c.l.b16 %v10599
      %v11317 = vunpack.c.l.b16 %v10600
      %v11318 = vunpack.c.h.b16 %v10600
      %v11319 = vunpack.c.l.b16 %v10601
      %v11320 = vunpack.c.h.b16 %v10601
      %v11321 = vunpack.c.l.b16 %v10602
      %v11322 = vunpack.c.h.b16 %v10602
      %v11323 = vunpack.c.l.b16 %v10603
      %v11324 = vunpack.c.l.b16 %v10604
      %v11325 = vunpack.c.h.b16 %v10604
      %v11326 = vunpack.c.l.b16 %v10605
      %v11327 = vunpack.c.h.b16 %v10605
      %v11328 = vunpack.c.l.b16 %v10606
      %v11329 = vunpack.c.h.b16 %v10606
      %v11330 = vunpack.c.l.b16 %v10607
      %v11331 = vunpack.c.l.b16 %v10608
      %v11332 = vunpack.c.h.b16 %v10608
      %v11333 = vunpack.c.l.b16 %v10609
      %v11334 = vunpack.c.h.b16 %v10609
      %v11335 = vunpack.c.l.b16 %v10610
      %v11336 = vunpack.c.h.b16 %v10610
      %v11337 = vunpack.c.l.b16 %v10611
      %v11338 = vunpack.c.l.b16 %v10612
      %v11339 = vunpack.c.h.b16 %v10612
      %v11340 = vunpack.c.l.b16 %v10613
      %v11341 = vunpack.c.h.b16 %v10613
      %v11342 = vunpack.c.l.b16 %v10614
      %v11343 = vunpack.c.h.b16 %v10614
      %v11344 = vunpack.c.l.b16 %v10615
      %v11345 = vunpack.c.l.b16 %v10616
      %v11346 = vunpack.c.h.b16 %v10616
      %v11347 = vunpack.c.l.b16 %v10617
      %v11348 = vunpack.c.h.b16 %v10617
      %v11349 = vunpack.c.l.b16 %v10618
      %v11350 = vunpack.c.h.b16 %v10618
      %v11351 = vunpack.c.l.b16 %v10619
      %v11352 = vunpack.c.l.b16 %v10620
      %v11353 = vunpack.c.h.b16 %v10620
      %v11354 = vunpack.c.l.b16 %v10621
      %v11355 = vunpack.c.h.b16 %v10621
      %v11356 = vunpack.c.l.b16 %v10622
      %v11357 = vunpack.c.h.b16 %v10622
      %v11358 = vunpack.c.l.b16 %v10623
      %v11359 = vunpack.c.l.b16 %v10624
      %v11360 = vunpack.c.h.b16 %v10624
      %v11361 = vunpack.c.l.b16 %v10625
      %v11362 = vunpack.c.h.b16 %v10625
      %v11363 = vunpack.c.l.b16 %v10626
      %v11364 = vunpack.c.h.b16 %v10626
      %v11365 = vunpack.c.l.b16 %v10627
      %v11366 = vunpack.c.l.b16 %v10628
      %v11367 = vunpack.c.h.b16 %v10628
      %v11368 = vunpack.c.l.b16 %v10629
      %v11369 = vunpack.c.h.b16 %v10629
      %v11370 = vunpack.c.l.b16 %v10630
      %v11371 = vunpack.c.h.b16 %v10630
      %v11372 = vunpack.c.l.b16 %v10631
      %v11373 = vpack.c.b16 %v10932, %v10925
      %v11374 = vpack.c.b16 %v10933, %v10926
      %v11375 = vpack.c.b16 %v10934, %v10927
      %v11376 = vpack.c.b16 %v10935, %v10928
      %v11377 = vpack.c.b16 %v10936, %v10929
      %v11378 = vpack.c.b16 %v10937, %v10930
      %v11379 = vpack.c.b16 %v10938, %v10931
      %v11380 = vpack.c.b16 %v10946, %v10939
      %v11381 = vpack.c.b16 %v10947, %v10940
      %v11382 = vpack.c.b16 %v10948, %v10941
      %v11383 = vpack.c.b16 %v10949, %v10942
      %v11384 = vpack.c.b16 %v10950, %v10943
      %v11385 = vpack.c.b16 %v10951, %v10944
      %v11386 = vpack.c.b16 %v10952, %v10945
      %v11387 = vpack.c.b16 %v10960, %v10953
      %v11388 = vpack.c.b16 %v10961, %v10954
      %v11389 = vpack.c.b16 %v10962, %v10955
      %v11390 = vpack.c.b16 %v10963, %v10956
      %v11391 = vpack.c.b16 %v10964, %v10957
      %v11392 = vpack.c.b16 %v10965, %v10958
      %v11393 = vpack.c.b16 %v10966, %v10959
      %v11394 = vpack.c.b16 %v10974, %v10967
      %v11395 = vpack.c.b16 %v10975, %v10968
      %v11396 = vpack.c.b16 %v10976, %v10969
      %v11397 = vpack.c.b16 %v10977, %v10970
      %v11398 = vpack.c.b16 %v10978, %v10971
      %v11399 = vpack.c.b16 %v10979, %v10972
      %v11400 = vpack.c.b16 %v10980, %v10973
      %v11401 = vpack.c.b16 %v10988, %v10981
      %v11402 = vpack.c.b16 %v10989, %v10982
      %v11403 = vpack.c.b16 %v10990, %v10983
      %v11404 = vpack.c.b16 %v10991, %v10984
      %v11405 = vpack.c.b16 %v10992, %v10985
      %v11406 = vpack.c.b16 %v10993, %v10986
      %v11407 = vpack.c.b16 %v10994, %v10987
      %v11408 = vpack.c.b16 %v11002, %v10995
      %v11409 = vpack.c.b16 %v11003, %v10996
      %v11410 = vpack.c.b16 %v11004, %v10997
      %v11411 = vpack.c.b16 %v11005, %v10998
      %v11412 = vpack.c.b16 %v11006, %v10999
      %v11413 = vpack.c.b16 %v11007, %v11000
      %v11414 = vpack.c.b16 %v11008, %v11001
      %v11415 = vpack.c.b16 %v11016, %v11009
      %v11416 = vpack.c.b16 %v11017, %v11010
      %v11417 = vpack.c.b16 %v11018, %v11011
      %v11418 = vpack.c.b16 %v11019, %v11012
      %v11419 = vpack.c.b16 %v11020, %v11013
      %v11420 = vpack.c.b16 %v11021, %v11014
      %v11421 = vpack.c.b16 %v11022, %v11015
      %v11422 = vpack.c.b16 %v11030, %v11023
      %v11423 = vpack.c.b16 %v11031, %v11024
      %v11424 = vpack.c.b16 %v11032, %v11025
      %v11425 = vpack.c.b16 %v11033, %v11026
      %v11426 = vpack.c.b16 %v11034, %v11027
      %v11427 = vpack.c.b16 %v11035, %v11028
      %v11428 = vpack.c.b16 %v11036, %v11029
      %v11429 = vpack.c.b16 %v11044, %v11037
      %v11430 = vpack.c.b16 %v11045, %v11038
      %v11431 = vpack.c.b16 %v11046, %v11039
      %v11432 = vpack.c.b16 %v11047, %v11040
      %v11433 = vpack.c.b16 %v11048, %v11041
      %v11434 = vpack.c.b16 %v11049, %v11042
      %v11435 = vpack.c.b16 %v11050, %v11043
      %v11436 = vpack.c.b16 %v11058, %v11051
      %v11437 = vpack.c.b16 %v11059, %v11052
      %v11438 = vpack.c.b16 %v11060, %v11053
      %v11439 = vpack.c.b16 %v11061, %v11054
      %v11440 = vpack.c.b16 %v11062, %v11055
      %v11441 = vpack.c.b16 %v11063, %v11056
      %v11442 = vpack.c.b16 %v11064, %v11057
      %v11443 = vpack.c.b16 %v11072, %v11065
      %v11444 = vpack.c.b16 %v11073, %v11066
      %v11445 = vpack.c.b16 %v11074, %v11067
      %v11446 = vpack.c.b16 %v11075, %v11068
      %v11447 = vpack.c.b16 %v11076, %v11069
      %v11448 = vpack.c.b16 %v11077, %v11070
      %v11449 = vpack.c.b16 %v11078, %v11071
      %v11450 = vpack.c.b16 %v11086, %v11079
      %v11451 = vpack.c.b16 %v11087, %v11080
      %v11452 = vpack.c.b16 %v11088, %v11081
      %v11453 = vpack.c.b16 %v11089, %v11082
      %v11454 = vpack.c.b16 %v11090, %v11083
      %v11455 = vpack.c.b16 %v11091, %v11084
      %v11456 = vpack.c.b16 %v11092, %v11085
      %v11457 = vpack.c.b16 %v11100, %v11093
      %v11458 = vpack.c.b16 %v11101, %v11094
      %v11459 = vpack.c.b16 %v11102, %v11095
      %v11460 = vpack.c.b16 %v11103, %v11096
      %v11461 = vpack.c.b16 %v11104, %v11097
      %v11462 = vpack.c.b16 %v11105, %v11098
      %v11463 = vpack.c.b16 %v11106, %v11099
      %v11464 = vpack.c.b16 %v11114, %v11107
      %v11465 = vpack.c.b16 %v11115, %v11108
      %v11466 = vpack.c.b16 %v11116, %v11109
      %v11467 = vpack.c.b16 %v11117, %v11110
      %v11468 = vpack.c.b16 %v11118, %v11111
      %v11469 = vpack.c.b16 %v11119, %v11112
      %v11470 = vpack.c.b16 %v11120, %v11113
      %v11471 = vpack.c.b16 %v11128, %v11121
      %v11472 = vpack.c.b16 %v11129, %v11122
      %v11473 = vpack.c.b16 %v11130, %v11123
      %v11474 = vpack.c.b16 %v11131, %v11124
      %v11475 = vpack.c.b16 %v11132, %v11125
      %v11476 = vpack.c.b16 %v11133, %v11126
      %v11477 = vpack.c.b16 %v11134, %v11127
      %v11478 = vpack.c.b16 %v11142, %v11135
      %v11479 = vpack.c.b16 %v11143, %v11136
      %v11480 = vpack.c.b16 %v11144, %v11137
      %v11481 = vpack.c.b16 %v11145, %v11138
      %v11482 = vpack.c.b16 %v11146, %v11139
      %v11483 = vpack.c.b16 %v11147, %v11140
      %v11484 = vpack.c.b16 %v11148, %v11141
      %v11485 = vpack.c.b16 %v11156, %v11149
      %v11486 = vpack.c.b16 %v11157, %v11150
      %v11487 = vpack.c.b16 %v11158, %v11151
      %v11488 = vpack.c.b16 %v11159, %v11152
      %v11489 = vpack.c.b16 %v11160, %v11153
      %v11490 = vpack.c.b16 %v11161, %v11154
      %v11491 = vpack.c.b16 %v11162, %v11155
      %v11492 = vpack.c.b16 %v11170, %v11163
      %v11493 = vpack.c.b16 %v11171, %v11164
      %v11494 = vpack.c.b16 %v11172, %v11165
      %v11495 = vpack.c.b16 %v11173, %v11166
      %v11496 = vpack.c.b16 %v11174, %v11167
      %v11497 = vpack.c.b16 %v11175, %v11168
      %v11498 = vpack.c.b16 %v11176, %v11169
      %v11499 = vpack.c.b16 %v11184, %v11177
      %v11500 = vpack.c.b16 %v11185, %v11178
      %v11501 = vpack.c.b16 %v11186, %v11179
      %v11502 = vpack.c.b16 %v11187, %v11180
      %v11503 = vpack.c.b16 %v11188, %v11181
      %v11504 = vpack.c.b16 %v11189, %v11182
      %v11505 = vpack.c.b16 %v11190, %v11183
      %v11506 = vpack.c.b16 %v11198, %v11191
      %v11507 = vpack.c.b16 %v11199, %v11192
      %v11508 = vpack.c.b16 %v11200, %v11193
      %v11509 = vpack.c.b16 %v11201, %v11194
      %v11510 = vpack.c.b16 %v11202, %v11195
      %v11511 = vpack.c.b16 %v11203, %v11196
      %v11512 = vpack.c.b16 %v11204, %v11197
      %v11513 = vpack.c.b16 %v11212, %v11205
      %v11514 = vpack.c.b16 %v11213, %v11206
      %v11515 = vpack.c.b16 %v11214, %v11207
      %v11516 = vpack.c.b16 %v11215, %v11208
      %v11517 = vpack.c.b16 %v11216, %v11209
      %v11518 = vpack.c.b16 %v11217, %v11210
      %v11519 = vpack.c.b16 %v11218, %v11211
      %v11520 = vpack.c.b16 %v11226, %v11219
      %v11521 = vpack.c.b16 %v11227, %v11220
      %v11522 = vpack.c.b16 %v11228, %v11221
      %v11523 = vpack.c.b16 %v11229, %v11222
      %v11524 = vpack.c.b16 %v11230, %v11223
      %v11525 = vpack.c.b16 %v11231, %v11224
      %v11526 = vpack.c.b16 %v11232, %v11225
      %v11527 = vpack.c.b16 %v11240, %v11233
      %v11528 = vpack.c.b16 %v11241, %v11234
      %v11529 = vpack.c.b16 %v11242, %v11235
      %v11530 = vpack.c.b16 %v11243, %v11236
      %v11531 = vpack.c.b16 %v11244, %v11237
      %v11532 = vpack.c.b16 %v11245, %v11238
      %v11533 = vpack.c.b16 %v11246, %v11239
      %v11534 = vpack.c.b16 %v11254, %v11247
      %v11535 = vpack.c.b16 %v11255, %v11248
      %v11536 = vpack.c.b16 %v11256, %v11249
      %v11537 = vpack.c.b16 %v11257, %v11250
      %v11538 = vpack.c.b16 %v11258, %v11251
      %v11539 = vpack.c.b16 %v11259, %v11252
      %v11540 = vpack.c.b16 %v11260, %v11253
      %v11541 = vpack.c.b16 %v11268, %v11261
      %v11542 = vpack.c.b16 %v11269, %v11262
      %v11543 = vpack.c.b16 %v11270, %v11263
      %v11544 = vpack.c.b16 %v11271, %v11264
      %v11545 = vpack.c.b16 %v11272, %v11265
      %v11546 = vpack.c.b16 %v11273, %v11266
      %v11547 = vpack.c.b16 %v11274, %v11267
      %v11548 = vpack.c.b16 %v11282, %v11275
      %v11549 = vpack.c.b16 %v11283, %v11276
      %v11550 = vpack.c.b16 %v11284, %v11277
      %v11551 = vpack.c.b16 %v11285, %v11278
      %v11552 = vpack.c.b16 %v11286, %v11279
      %v11553 = vpack.c.b16 %v11287, %v11280
      %v11554 = vpack.c.b16 %v11288, %v11281
      %v11555 = vpack.c.b16 %v11296, %v11289
      %v11556 = vpack.c.b16 %v11297, %v11290
      %v11557 = vpack.c.b16 %v11298, %v11291
      %v11558 = vpack.c.b16 %v11299, %v11292
      %v11559 = vpack.c.b16 %v11300, %v11293
      %v11560 = vpack.c.b16 %v11301, %v11294
      %v11561 = vpack.c.b16 %v11302, %v11295
      %v11562 = vpack.c.b16 %v11310, %v11303
      %v11563 = vpack.c.b16 %v11311, %v11304
      %v11564 = vpack.c.b16 %v11312, %v11305
      %v11565 = vpack.c.b16 %v11313, %v11306
      %v11566 = vpack.c.b16 %v11314, %v11307
      %v11567 = vpack.c.b16 %v11315, %v11308
      %v11568 = vpack.c.b16 %v11316, %v11309
      %v11569 = vpack.c.b16 %v11324, %v11317
      %v11570 = vpack.c.b16 %v11325, %v11318
      %v11571 = vpack.c.b16 %v11326, %v11319
      %v11572 = vpack.c.b16 %v11327, %v11320
      %v11573 = vpack.c.b16 %v11328, %v11321
      %v11574 = vpack.c.b16 %v11329, %v11322
      %v11575 = vpack.c.b16 %v11330, %v11323
      %v11576 = vpack.c.b16 %v11338, %v11331
      %v11577 = vpack.c.b16 %v11339, %v11332
      %v11578 = vpack.c.b16 %v11340, %v11333
      %v11579 = vpack.c.b16 %v11341, %v11334
      %v11580 = vpack.c.b16 %v11342, %v11335
      %v11581 = vpack.c.b16 %v11343, %v11336
      %v11582 = vpack.c.b16 %v11344, %v11337
      %v11583 = vpack.c.b16 %v11352, %v11345
      %v11584 = vpack.c.b16 %v11353, %v11346
      %v11585 = vpack.c.b16 %v11354, %v11347
      %v11586 = vpack.c.b16 %v11355, %v11348
      %v11587 = vpack.c.b16 %v11356, %v11349
      %v11588 = vpack.c.b16 %v11357, %v11350
      %v11589 = vpack.c.b16 %v11358, %v11351
      %v11590 = vpack.c.b16 %v11366, %v11359
      %v11591 = vpack.c.b16 %v11367, %v11360
      %v11592 = vpack.c.b16 %v11368, %v11361
      %v11593 = vpack.c.b16 %v11369, %v11362
      %v11594 = vpack.c.b16 %v11370, %v11363
      %v11595 = vpack.c.b16 %v11371, %v11364
      %v11596 = vpack.c.b16 %v11372, %v11365
      %11821 = vmatprep.subr.bf16.mxu0 %v11423
      %11822 = vmatpush1.bf16.msra.mxu0 %v11422
      %11823 = vmatprep.subr.bf16.mxu0 %v11416
      %11824 = vmatpush1.bf16.msra.mxu0 %v11415
      %11825 = vmatprep.subr.bf16.mxu0 %v11409
      %11826 = vmatpush1.bf16.msra.mxu0 %v11408
      %11827 = vmatprep.subr.bf16.mxu0 %v11402
      %11828 = vmatpush1.bf16.msra.mxu0 %v11401
      %11829 = vmatprep.subr.bf16.mxu0 %v11395
      %11830 = vmatpush1.bf16.msra.mxu0 %v11394
      %11831 = vmatprep.subr.bf16.mxu0 %v11388
      %11832 = vmatpush1.bf16.msra.mxu0 %v11387
      %11833 = vmatprep.subr.bf16.mxu0 %v11381
      %11834 = vmatpush1.bf16.msra.mxu0 %v11380
      %11835 = vmatprep.subr.bf16.mxu0 %v11374
      %11836 = vmatpush1.bf16.msra.mxu0 %v11373
      %11837 = vmatprep.subr.bf16.mxu0 %v11479
      %11838 = vmatpush2.bf16.msra.mxu0 %v11478
      %11839 = vmatprep.subr.bf16.mxu0 %v11472
      %11840 = vmatpush2.bf16.msra.mxu0 %v11471
      %11841 = vmatprep.subr.bf16.mxu0 %v11465
      %11842 = vmatpush2.bf16.msra.mxu0 %v11464
      %11843 = vmatprep.subr.bf16.mxu0 %v11458
      %11844 = vmatpush2.bf16.msra.mxu0 %v11457
      %11845 = vmatprep.subr.bf16.mxu0 %v11451
      %11846 = vmatpush2.bf16.msra.mxu0 %v11450
      %11847 = vmatprep.subr.bf16.mxu0 %v11444
      %11848 = vmatpush2.bf16.msra.mxu0 %v11443
      %11849 = vmatprep.subr.bf16.mxu0 %v11437
      %11850 = vmatpush2.bf16.msra.mxu0 %v11436
      %11851 = vmatprep.subr.bf16.mxu0 %v11430
      %11852 = vmatpush2.bf16.msra.mxu0 %v11429
      %11853 = vmatprep.mubr.bf16.mxu0 %v7611
      %11854 = vmatmul.mubr.bf16.gmra.mxu0 %v7610
      %v11855 = vpop.f32.mrf.mxu0
      %v11856 = vadd.f32 %v10637, %v11855
      %v11857 = vpop.f32.mrf.mxu0
      %v11858 = vadd.f32 %v10641, %v11857
      %v11859 = vpop.f32.mrf.mxu0
      %v11860 = vadd.f32 %v10637, %v11859
      %v11861 = vpop.f32.mrf.mxu0
      %v11862 = vadd.f32 %v10641, %v11861
      %11863 = vmatprep.mubr.bf16.mxu0 %v7615
      %11864 = vmatmul.mubr.bf16.gmra.mxu0 %v7614
      %v11865 = vpop.f32.mrf.mxu0
      %v11866 = vadd.f32 %v10637, %v11865
      %v11867 = vpop.f32.mrf.mxu0
      %v11868 = vadd.f32 %v10641, %v11867
      %v11869 = vpop.f32.mrf.mxu0
      %v11870 = vadd.f32 %v10637, %v11869
      %v11871 = vpop.f32.mrf.mxu0
      %v11872 = vadd.f32 %v10641, %v11871
      %11873 = vmatprep.mubr.bf16.mxu0 %v7619
      %11874 = vmatmul.mubr.bf16.gmra.mxu0 %v7618
      %v11875 = vpop.f32.mrf.mxu0
      %v11876 = vadd.f32 %v10637, %v11875
      %v11877 = vpop.f32.mrf.mxu0
      %v11878 = vadd.f32 %v10641, %v11877
      %v11879 = vpop.f32.mrf.mxu0
      %v11880 = vadd.f32 %v10637, %v11879
      %v11881 = vpop.f32.mrf.mxu0
      %v11882 = vadd.f32 %v10641, %v11881
      %11883 = vmatprep.mubr.bf16.mxu0 %v7623
      %11884 = vmatmul.mubr.bf16.gmra.mxu0 %v7622
      %v11885 = vpop.f32.mrf.mxu0
      %v11886 = vadd.f32 %v10637, %v11885
      %v11887 = vpop.f32.mrf.mxu0
      %v11888 = vadd.f32 %v10641, %v11887
      %v11889 = vpop.f32.mrf.mxu0
      %v11890 = vadd.f32 %v10637, %v11889
      %v11891 = vpop.f32.mrf.mxu0
      %v11892 = vadd.f32 %v10641, %v11891
      %11893 = vmatprep.mubr.bf16.mxu0 %v7627
      %11894 = vmatmul.mubr.bf16.gmra.mxu0 %v7626
      %v11895 = vpop.f32.mrf.mxu0
      %v11896 = vadd.f32 %v10637, %v11895
      %v11897 = vpop.f32.mrf.mxu0
      %v11898 = vadd.f32 %v10641, %v11897
      %v11899 = vpop.f32.mrf.mxu0
      %v11900 = vadd.f32 %v10637, %v11899
      %v11901 = vpop.f32.mrf.mxu0
      %v11902 = vadd.f32 %v10641, %v11901
      %11903 = vmatprep.mubr.bf16.mxu0 %v7631
      %11904 = vmatmul.mubr.bf16.gmra.mxu0 %v7630
      %v11905 = vpop.f32.mrf.mxu0
      %v11906 = vadd.f32 %v10637, %v11905
      %v11907 = vpop.f32.mrf.mxu0
      %v11908 = vadd.f32 %v10641, %v11907
      %v11909 = vpop.f32.mrf.mxu0
      %v11910 = vadd.f32 %v10637, %v11909
      %v11911 = vpop.f32.mrf.mxu0
      %v11912 = vadd.f32 %v10641, %v11911
      %11913 = vmatprep.mubr.bf16.mxu0 %v7635
      %11914 = vmatmul.mubr.bf16.gmra.mxu0 %v7634
      %v11915 = vpop.f32.mrf.mxu0
      %v11916 = vadd.f32 %v10637, %v11915
      %v11917 = vpop.f32.mrf.mxu0
      %v11918 = vadd.f32 %v10641, %v11917
      %v11919 = vpop.f32.mrf.mxu0
      %v11920 = vadd.f32 %v10637, %v11919
      %v11921 = vpop.f32.mrf.mxu0
      %v11922 = vadd.f32 %v10641, %v11921
      %11923 = vmatprep.mubr.bf16.mxu0 %v7639
      %11924 = vmatmul.mubr.bf16.gmra.mxu0 %v7638
      %v11925 = vpop.f32.mrf.mxu0
      %v11926 = vadd.f32 %v10637, %v11925
      %v11927 = vpop.f32.mrf.mxu0
      %v11928 = vadd.f32 %v10641, %v11927
      %v11929 = vpop.f32.mrf.mxu0
      %v11930 = vadd.f32 %v10637, %v11929
      %v11931 = vpop.f32.mrf.mxu0
      %v11932 = vadd.f32 %v10641, %v11931
      %11933 = vdwg.mxu0
      %11934 = vmatprep.subr.bf16.mxu0 %v11535
      %11935 = vmatpush1.bf16.msra.mxu0 %v11534
      %11936 = vmatprep.subr.bf16.mxu0 %v11528
      %11937 = vmatpush1.bf16.msra.mxu0 %v11527
      %11938 = vmatprep.subr.bf16.mxu0 %v11521
      %11939 = vmatpush1.bf16.msra.mxu0 %v11520
      %11940 = vmatprep.subr.bf16.mxu0 %v11514
      %11941 = vmatpush1.bf16.msra.mxu0 %v11513
      %11942 = vmatprep.subr.bf16.mxu0 %v11507
      %11943 = vmatpush1.bf16.msra.mxu0 %v11506
      %11944 = vmatprep.subr.bf16.mxu0 %v11500
      %11945 = vmatpush1.bf16.msra.mxu0 %v11499
      %11946 = vmatprep.subr.bf16.mxu0 %v11493
      %11947 = vmatpush1.bf16.msra.mxu0 %v11492
      %11948 = vmatprep.subr.bf16.mxu0 %v11486
      %11949 = vmatpush1.bf16.msra.mxu0 %v11485
      %11950 = vmatprep.subr.bf16.mxu0 %v11591
      %11951 = vmatpush2.bf16.msra.mxu0 %v11590
      %11952 = vmatprep.subr.bf16.mxu0 %v11584
      %11953 = vmatpush2.bf16.msra.mxu0 %v11583
      %11954 = vmatprep.subr.bf16.mxu0 %v11577
      %11955 = vmatpush2.bf16.msra.mxu0 %v11576
      %11956 = vmatprep.subr.bf16.mxu0 %v11570
      %11957 = vmatpush2.bf16.msra.mxu0 %v11569
      %11958 = vmatprep.subr.bf16.mxu0 %v11563
      %11959 = vmatpush2.bf16.msra.mxu0 %v11562
      %11960 = vmatprep.subr.bf16.mxu0 %v11556
      %11961 = vmatpush2.bf16.msra.mxu0 %v11555
      %11962 = vmatprep.subr.bf16.mxu0 %v11549
      %11963 = vmatpush2.bf16.msra.mxu0 %v11548
      %11964 = vmatprep.subr.bf16.mxu0 %v11542
      %11965 = vmatpush2.bf16.msra.mxu0 %v11541
      %11966 = vmatprep.mubr.bf16.mxu0 %v7613
      %11967 = vmatmul.mubr.bf16.gmra.mxu0 %v7612
      %v11968 = vpop.f32.mrf.mxu0
      %v11969 = vadd.f32 %v11856, %v11968
      %v11970 = vpop.f32.mrf.mxu0
      %v11971 = vadd.f32 %v11858, %v11970
      %v11972 = vpop.f32.mrf.mxu0
      %v11973 = vadd.f32 %v11860, %v11972
      %v11974 = vpop.f32.mrf.mxu0
      %v11975 = vadd.f32 %v11862, %v11974
      %11976 = vmatprep.mubr.bf16.mxu0 %v7617
      %11977 = vmatmul.mubr.bf16.gmra.mxu0 %v7616
      %v11978 = vpop.f32.mrf.mxu0
      %v11979 = vadd.f32 %v11866, %v11978
      %v11980 = vpop.f32.mrf.mxu0
      %v11981 = vadd.f32 %v11868, %v11980
      %v11982 = vpop.f32.mrf.mxu0
      %v11983 = vadd.f32 %v11870, %v11982
      %v11984 = vpop.f32.mrf.mxu0
      %v11985 = vadd.f32 %v11872, %v11984
      %11986 = vmatprep.mubr.bf16.mxu0 %v7621
      %11987 = vmatmul.mubr.bf16.gmra.mxu0 %v7620
      %v11988 = vpop.f32.mrf.mxu0
      %v11989 = vadd.f32 %v11876, %v11988
      %v11990 = vpop.f32.mrf.mxu0
      %v11991 = vadd.f32 %v11878, %v11990
      %v11992 = vpop.f32.mrf.mxu0
      %v11993 = vadd.f32 %v11880, %v11992
      %v11994 = vpop.f32.mrf.mxu0
      %v11995 = vadd.f32 %v11882, %v11994
      %11996 = vmatprep.mubr.bf16.mxu0 %v7625
      %11997 = vmatmul.mubr.bf16.gmra.mxu0 %v7624
      %v11998 = vpop.f32.mrf.mxu0
      %v11999 = vadd.f32 %v11886, %v11998
      %v12000 = vpop.f32.mrf.mxu0
      %v12001 = vadd.f32 %v11888, %v12000
      %v12002 = vpop.f32.mrf.mxu0
      %v12003 = vadd.f32 %v11890, %v12002
      %v12004 = vpop.f32.mrf.mxu0
      %v12005 = vadd.f32 %v11892, %v12004
      %12006 = vmatprep.mubr.bf16.mxu0 %v7629
      %12007 = vmatmul.mubr.bf16.gmra.mxu0 %v7628
      %v12008 = vpop.f32.mrf.mxu0
      %v12009 = vadd.f32 %v11896, %v12008
      %v12010 = vpop.f32.mrf.mxu0
      %v12011 = vadd.f32 %v11898, %v12010
      %v12012 = vpop.f32.mrf.mxu0
      %v12013 = vadd.f32 %v11900, %v12012
      %v12014 = vpop.f32.mrf.mxu0
      %v12015 = vadd.f32 %v11902, %v12014
      %12016 = vmatprep.mubr.bf16.mxu0 %v7633
      %12017 = vmatmul.mubr.bf16.gmra.mxu0 %v7632
      %v12018 = vpop.f32.mrf.mxu0
      %v12019 = vadd.f32 %v11906, %v12018
      %v12020 = vpop.f32.mrf.mxu0
      %v12021 = vadd.f32 %v11908, %v12020
      %v12022 = vpop.f32.mrf.mxu0
      %v12023 = vadd.f32 %v11910, %v12022
      %v12024 = vpop.f32.mrf.mxu0
      %v12025 = vadd.f32 %v11912, %v12024
      %12026 = vmatprep.mubr.bf16.mxu0 %v7637
      %12027 = vmatmul.mubr.bf16.gmra.mxu0 %v7636
      %v12028 = vpop.f32.mrf.mxu0
      %v12029 = vadd.f32 %v11916, %v12028
      %v12030 = vpop.f32.mrf.mxu0
      %v12031 = vadd.f32 %v11918, %v12030
      %v12032 = vpop.f32.mrf.mxu0
      %v12033 = vadd.f32 %v11920, %v12032
      %v12034 = vpop.f32.mrf.mxu0
      %v12035 = vadd.f32 %v11922, %v12034
      %12036 = vmatprep.mubr.bf16.mxu0 %v7641
      %12037 = vmatmul.mubr.bf16.gmra.mxu0 %v7640
      %v12038 = vpop.f32.mrf.mxu0
      %v12039 = vadd.f32 %v11926, %v12038
      %v12040 = vpop.f32.mrf.mxu0
      %v12041 = vadd.f32 %v11928, %v12040
      %v12042 = vpop.f32.mrf.mxu0
      %v12043 = vadd.f32 %v11930, %v12042
      %v12044 = vpop.f32.mrf.mxu0
      %v12045 = vadd.f32 %v11932, %v12044
      %12046 = vdwg.mxu0
      %12047 = vmatprep.subr.bf16.mxu0 %v11425
      %12048 = vmatpush1.bf16.msra.mxu0 %v11424
      %12049 = vmatprep.subr.bf16.mxu0 %v11418
      %12050 = vmatpush1.bf16.msra.mxu0 %v11417
      %12051 = vmatprep.subr.bf16.mxu0 %v11411
      %12052 = vmatpush1.bf16.msra.mxu0 %v11410
      %12053 = vmatprep.subr.bf16.mxu0 %v11404
      %12054 = vmatpush1.bf16.msra.mxu0 %v11403
      %12055 = vmatprep.subr.bf16.mxu0 %v11397
      %12056 = vmatpush1.bf16.msra.mxu0 %v11396
      %12057 = vmatprep.subr.bf16.mxu0 %v11390
      %12058 = vmatpush1.bf16.msra.mxu0 %v11389
      %12059 = vmatprep.subr.bf16.mxu0 %v11383
      %12060 = vmatpush1.bf16.msra.mxu0 %v11382
      %12061 = vmatprep.subr.bf16.mxu0 %v11376
      %12062 = vmatpush1.bf16.msra.mxu0 %v11375
      %12063 = vmatprep.subr.bf16.mxu0 %v11481
      %12064 = vmatpush2.bf16.msra.mxu0 %v11480
      %12065 = vmatprep.subr.bf16.mxu0 %v11474
      %12066 = vmatpush2.bf16.msra.mxu0 %v11473
      %12067 = vmatprep.subr.bf16.mxu0 %v11467
      %12068 = vmatpush2.bf16.msra.mxu0 %v11466
      %12069 = vmatprep.subr.bf16.mxu0 %v11460
      %12070 = vmatpush2.bf16.msra.mxu0 %v11459
      %12071 = vmatprep.subr.bf16.mxu0 %v11453
      %12072 = vmatpush2.bf16.msra.mxu0 %v11452
      %12073 = vmatprep.subr.bf16.mxu0 %v11446
      %12074 = vmatpush2.bf16.msra.mxu0 %v11445
      %12075 = vmatprep.subr.bf16.mxu0 %v11439
      %12076 = vmatpush2.bf16.msra.mxu0 %v11438
      %12077 = vmatprep.subr.bf16.mxu0 %v11432
      %12078 = vmatpush2.bf16.msra.mxu0 %v11431
      %12079 = vmatprep.mubr.bf16.mxu0 %v7611
      %12080 = vmatmul.mubr.bf16.gmra.mxu0 %v7610
      %v12081 = vpop.f32.mrf.mxu0
      %v12082 = vadd.f32 %v10645, %v12081
      %v12083 = vpop.f32.mrf.mxu0
      %v12084 = vadd.f32 %v10649, %v12083
      %v12085 = vpop.f32.mrf.mxu0
      %v12086 = vadd.f32 %v10645, %v12085
      %v12087 = vpop.f32.mrf.mxu0
      %v12088 = vadd.f32 %v10649, %v12087
      %12089 = vmatprep.mubr.bf16.mxu0 %v7615
      %12090 = vmatmul.mubr.bf16.gmra.mxu0 %v7614
      %v12091 = vpop.f32.mrf.mxu0
      %v12092 = vadd.f32 %v10645, %v12091
      %v12093 = vpop.f32.mrf.mxu0
      %v12094 = vadd.f32 %v10649, %v12093
      %v12095 = vpop.f32.mrf.mxu0
      %v12096 = vadd.f32 %v10645, %v12095
      %v12097 = vpop.f32.mrf.mxu0
      %v12098 = vadd.f32 %v10649, %v12097
      %12099 = vmatprep.mubr.bf16.mxu0 %v7619
      %12100 = vmatmul.mubr.bf16.gmra.mxu0 %v7618
      %v12101 = vpop.f32.mrf.mxu0
      %v12102 = vadd.f32 %v10645, %v12101
      %v12103 = vpop.f32.mrf.mxu0
      %v12104 = vadd.f32 %v10649, %v12103
      %v12105 = vpop.f32.mrf.mxu0
      %v12106 = vadd.f32 %v10645, %v12105
      %v12107 = vpop.f32.mrf.mxu0
      %v12108 = vadd.f32 %v10649, %v12107
      %12109 = vmatprep.mubr.bf16.mxu0 %v7623
      %12110 = vmatmul.mubr.bf16.gmra.mxu0 %v7622
      %v12111 = vpop.f32.mrf.mxu0
      %v12112 = vadd.f32 %v10645, %v12111
      %v12113 = vpop.f32.mrf.mxu0
      %v12114 = vadd.f32 %v10649, %v12113
      %v12115 = vpop.f32.mrf.mxu0
      %v12116 = vadd.f32 %v10645, %v12115
      %v12117 = vpop.f32.mrf.mxu0
      %v12118 = vadd.f32 %v10649, %v12117
      %12119 = vmatprep.mubr.bf16.mxu0 %v7627
      %12120 = vmatmul.mubr.bf16.gmra.mxu0 %v7626
      %v12121 = vpop.f32.mrf.mxu0
      %v12122 = vadd.f32 %v10645, %v12121
      %v12123 = vpop.f32.mrf.mxu0
      %v12124 = vadd.f32 %v10649, %v12123
      %v12125 = vpop.f32.mrf.mxu0
      %v12126 = vadd.f32 %v10645, %v12125
      %v12127 = vpop.f32.mrf.mxu0
      %v12128 = vadd.f32 %v10649, %v12127
      %12129 = vmatprep.mubr.bf16.mxu0 %v7631
      %12130 = vmatmul.mubr.bf16.gmra.mxu0 %v7630
      %v12131 = vpop.f32.mrf.mxu0
      %v12132 = vadd.f32 %v10645, %v12131
      %v12133 = vpop.f32.mrf.mxu0
      %v12134 = vadd.f32 %v10649, %v12133
      %v12135 = vpop.f32.mrf.mxu0
      %v12136 = vadd.f32 %v10645, %v12135
      %v12137 = vpop.f32.mrf.mxu0
      %v12138 = vadd.f32 %v10649, %v12137
      %12139 = vmatprep.mubr.bf16.mxu0 %v7635
      %12140 = vmatmul.mubr.bf16.gmra.mxu0 %v7634
      %v12141 = vpop.f32.mrf.mxu0
      %v12142 = vadd.f32 %v10645, %v12141
      %v12143 = vpop.f32.mrf.mxu0
      %v12144 = vadd.f32 %v10649, %v12143
      %v12145 = vpop.f32.mrf.mxu0
      %v12146 = vadd.f32 %v10645, %v12145
      %v12147 = vpop.f32.mrf.mxu0
      %v12148 = vadd.f32 %v10649, %v12147
      %12149 = vmatprep.mubr.bf16.mxu0 %v7639
      %12150 = vmatmul.mubr.bf16.gmra.mxu0 %v7638
      %v12151 = vpop.f32.mrf.mxu0
      %v12152 = vadd.f32 %v10645, %v12151
      %v12153 = vpop.f32.mrf.mxu0
      %v12154 = vadd.f32 %v10649, %v12153
      %v12155 = vpop.f32.mrf.mxu0
      %v12156 = vadd.f32 %v10645, %v12155
      %v12157 = vpop.f32.mrf.mxu0
      %v12158 = vadd.f32 %v10649, %v12157
      %12159 = vdwg.mxu0
      %12160 = vmatprep.subr.bf16.mxu0 %v11537
      %12161 = vmatpush1.bf16.msra.mxu0 %v11536
      %12162 = vmatprep.subr.bf16.mxu0 %v11530
      %12163 = vmatpush1.bf16.msra.mxu0 %v11529
      %12164 = vmatprep.subr.bf16.mxu0 %v11523
      %12165 = vmatpush1.bf16.msra.mxu0 %v11522
      %12166 = vmatprep.subr.bf16.mxu0 %v11516
      %12167 = vmatpush1.bf16.msra.mxu0 %v11515
      %12168 = vmatprep.subr.bf16.mxu0 %v11509
      %12169 = vmatpush1.bf16.msra.mxu0 %v11508
      %12170 = vmatprep.subr.bf16.mxu0 %v11502
      %12171 = vmatpush1.bf16.msra.mxu0 %v11501
      %12172 = vmatprep.subr.bf16.mxu0 %v11495
      %12173 = vmatpush1.bf16.msra.mxu0 %v11494
      %12174 = vmatprep.subr.bf16.mxu0 %v11488
      %12175 = vmatpush1.bf16.msra.mxu0 %v11487
      %12176 = vmatprep.subr.bf16.mxu0 %v11593
      %12177 = vmatpush2.bf16.msra.mxu0 %v11592
      %12178 = vmatprep.subr.bf16.mxu0 %v11586
      %12179 = vmatpush2.bf16.msra.mxu0 %v11585
      %12180 = vmatprep.subr.bf16.mxu0 %v11579
      %12181 = vmatpush2.bf16.msra.mxu0 %v11578
      %12182 = vmatprep.subr.bf16.mxu0 %v11572
      %12183 = vmatpush2.bf16.msra.mxu0 %v11571
      %12184 = vmatprep.subr.bf16.mxu0 %v11565
      %12185 = vmatpush2.bf16.msra.mxu0 %v11564
      %12186 = vmatprep.subr.bf16.mxu0 %v11558
      %12187 = vmatpush2.bf16.msra.mxu0 %v11557
      %12188 = vmatprep.subr.bf16.mxu0 %v11551
      %12189 = vmatpush2.bf16.msra.mxu0 %v11550
      %12190 = vmatprep.subr.bf16.mxu0 %v11544
      %12191 = vmatpush2.bf16.msra.mxu0 %v11543
      %12192 = vmatprep.mubr.bf16.mxu0 %v7613
      %12193 = vmatmul.mubr.bf16.gmra.mxu0 %v7612
      %v12194 = vpop.f32.mrf.mxu0
      %v12195 = vadd.f32 %v12082, %v12194
      %v12196 = vpop.f32.mrf.mxu0
      %v12197 = vadd.f32 %v12084, %v12196
      %v12198 = vpop.f32.mrf.mxu0
      %v12199 = vadd.f32 %v12086, %v12198
      %v12200 = vpop.f32.mrf.mxu0
      %v12201 = vadd.f32 %v12088, %v12200
      %12202 = vmatprep.mubr.bf16.mxu0 %v7617
      %12203 = vmatmul.mubr.bf16.gmra.mxu0 %v7616
      %v12204 = vpop.f32.mrf.mxu0
      %v12205 = vadd.f32 %v12092, %v12204
      %v12206 = vpop.f32.mrf.mxu0
      %v12207 = vadd.f32 %v12094, %v12206
      %v12208 = vpop.f32.mrf.mxu0
      %v12209 = vadd.f32 %v12096, %v12208
      %v12210 = vpop.f32.mrf.mxu0
      %v12211 = vadd.f32 %v12098, %v12210
      %12212 = vmatprep.mubr.bf16.mxu0 %v7621
      %12213 = vmatmul.mubr.bf16.gmra.mxu0 %v7620
      %v12214 = vpop.f32.mrf.mxu0
      %v12215 = vadd.f32 %v12102, %v12214
      %v12216 = vpop.f32.mrf.mxu0
      %v12217 = vadd.f32 %v12104, %v12216
      %v12218 = vpop.f32.mrf.mxu0
      %v12219 = vadd.f32 %v12106, %v12218
      %v12220 = vpop.f32.mrf.mxu0
      %v12221 = vadd.f32 %v12108, %v12220
      %12222 = vmatprep.mubr.bf16.mxu0 %v7625
      %12223 = vmatmul.mubr.bf16.gmra.mxu0 %v7624
      %v12224 = vpop.f32.mrf.mxu0
      %v12225 = vadd.f32 %v12112, %v12224
      %v12226 = vpop.f32.mrf.mxu0
      %v12227 = vadd.f32 %v12114, %v12226
      %v12228 = vpop.f32.mrf.mxu0
      %v12229 = vadd.f32 %v12116, %v12228
      %v12230 = vpop.f32.mrf.mxu0
      %v12231 = vadd.f32 %v12118, %v12230
      %12232 = vmatprep.mubr.bf16.mxu0 %v7629
      %12233 = vmatmul.mubr.bf16.gmra.mxu0 %v7628
      %v12234 = vpop.f32.mrf.mxu0
      %v12235 = vadd.f32 %v12122, %v12234
      %v12236 = vpop.f32.mrf.mxu0
      %v12237 = vadd.f32 %v12124, %v12236
      %v12238 = vpop.f32.mrf.mxu0
      %v12239 = vadd.f32 %v12126, %v12238
      %v12240 = vpop.f32.mrf.mxu0
      %v12241 = vadd.f32 %v12128, %v12240
      %12242 = vmatprep.mubr.bf16.mxu0 %v7633
      %12243 = vmatmul.mubr.bf16.gmra.mxu0 %v7632
      %v12244 = vpop.f32.mrf.mxu0
      %v12245 = vadd.f32 %v12132, %v12244
      %v12246 = vpop.f32.mrf.mxu0
      %v12247 = vadd.f32 %v12134, %v12246
      %v12248 = vpop.f32.mrf.mxu0
      %v12249 = vadd.f32 %v12136, %v12248
      %v12250 = vpop.f32.mrf.mxu0
      %v12251 = vadd.f32 %v12138, %v12250
      %12252 = vmatprep.mubr.bf16.mxu0 %v7637
      %12253 = vmatmul.mubr.bf16.gmra.mxu0 %v7636
      %v12254 = vpop.f32.mrf.mxu0
      %v12255 = vadd.f32 %v12142, %v12254
      %v12256 = vpop.f32.mrf.mxu0
      %v12257 = vadd.f32 %v12144, %v12256
      %v12258 = vpop.f32.mrf.mxu0
      %v12259 = vadd.f32 %v12146, %v12258
      %v12260 = vpop.f32.mrf.mxu0
      %v12261 = vadd.f32 %v12148, %v12260
      %12262 = vmatprep.mubr.bf16.mxu0 %v7641
      %12263 = vmatmul.mubr.bf16.gmra.mxu0 %v7640
      %v12264 = vpop.f32.mrf.mxu0
      %v12265 = vadd.f32 %v12152, %v12264
      %v12266 = vpop.f32.mrf.mxu0
      %v12267 = vadd.f32 %v12154, %v12266
      %v12268 = vpop.f32.mrf.mxu0
      %v12269 = vadd.f32 %v12156, %v12268
      %v12270 = vpop.f32.mrf.mxu0
      %v12271 = vadd.f32 %v12158, %v12270
      %12272 = vdwg.mxu0
      %12273 = vmatprep.subr.bf16.mxu0 %v11427
      %12274 = vmatpush1.bf16.msra.mxu0 %v11426
      %12275 = vmatprep.subr.bf16.mxu0 %v11420
      %12276 = vmatpush1.bf16.msra.mxu0 %v11419
      %12277 = vmatprep.subr.bf16.mxu0 %v11413
      %12278 = vmatpush1.bf16.msra.mxu0 %v11412
      %12279 = vmatprep.subr.bf16.mxu0 %v11406
      %12280 = vmatpush1.bf16.msra.mxu0 %v11405
      %12281 = vmatprep.subr.bf16.mxu0 %v11399
      %12282 = vmatpush1.bf16.msra.mxu0 %v11398
      %12283 = vmatprep.subr.bf16.mxu0 %v11392
      %12284 = vmatpush1.bf16.msra.mxu0 %v11391
      %12285 = vmatprep.subr.bf16.mxu0 %v11385
      %12286 = vmatpush1.bf16.msra.mxu0 %v11384
      %12287 = vmatprep.subr.bf16.mxu0 %v11378
      %12288 = vmatpush1.bf16.msra.mxu0 %v11377
      %12289 = vmatprep.subr.bf16.mxu0 %v11483
      %12290 = vmatpush2.bf16.msra.mxu0 %v11482
      %12291 = vmatprep.subr.bf16.mxu0 %v11476
      %12292 = vmatpush2.bf16.msra.mxu0 %v11475
      %12293 = vmatprep.subr.bf16.mxu0 %v11469
      %12294 = vmatpush2.bf16.msra.mxu0 %v11468
      %12295 = vmatprep.subr.bf16.mxu0 %v11462
      %12296 = vmatpush2.bf16.msra.mxu0 %v11461
      %12297 = vmatprep.subr.bf16.mxu0 %v11455
      %12298 = vmatpush2.bf16.msra.mxu0 %v11454
      %12299 = vmatprep.subr.bf16.mxu0 %v11448
      %12300 = vmatpush2.bf16.msra.mxu0 %v11447
      %12301 = vmatprep.subr.bf16.mxu0 %v11441
      %12302 = vmatpush2.bf16.msra.mxu0 %v11440
      %12303 = vmatprep.subr.bf16.mxu0 %v11434
      %12304 = vmatpush2.bf16.msra.mxu0 %v11433
      %12305 = vmatprep.mubr.bf16.mxu0 %v7611
      %12306 = vmatmul.mubr.bf16.gmra.mxu0 %v7610
      %v12307 = vpop.f32.mrf.mxu0
      %v12308 = vadd.f32 %v10653, %v12307
      %v12309 = vpop.f32.mrf.mxu0
      %v12310 = vadd.f32 %v10657, %v12309
      %v12311 = vpop.f32.mrf.mxu0
      %v12312 = vadd.f32 %v10653, %v12311
      %v12313 = vpop.f32.mrf.mxu0
      %v12314 = vadd.f32 %v10657, %v12313
      %12315 = vmatprep.mubr.bf16.mxu0 %v7615
      %12316 = vmatmul.mubr.bf16.gmra.mxu0 %v7614
      %v12317 = vpop.f32.mrf.mxu0
      %v12318 = vadd.f32 %v10653, %v12317
      %v12319 = vpop.f32.mrf.mxu0
      %v12320 = vadd.f32 %v10657, %v12319
      %v12321 = vpop.f32.mrf.mxu0
      %v12322 = vadd.f32 %v10653, %v12321
      %v12323 = vpop.f32.mrf.mxu0
      %v12324 = vadd.f32 %v10657, %v12323
      %12325 = vmatprep.mubr.bf16.mxu0 %v7619
      %12326 = vmatmul.mubr.bf16.gmra.mxu0 %v7618
      %v12327 = vpop.f32.mrf.mxu0
      %v12328 = vadd.f32 %v10653, %v12327
      %v12329 = vpop.f32.mrf.mxu0
      %v12330 = vadd.f32 %v10657, %v12329
      %v12331 = vpop.f32.mrf.mxu0
      %v12332 = vadd.f32 %v10653, %v12331
      %v12333 = vpop.f32.mrf.mxu0
      %v12334 = vadd.f32 %v10657, %v12333
      %12335 = vmatprep.mubr.bf16.mxu0 %v7623
      %12336 = vmatmul.mubr.bf16.gmra.mxu0 %v7622
      %v12337 = vpop.f32.mrf.mxu0
      %v12338 = vadd.f32 %v10653, %v12337
      %v12339 = vpop.f32.mrf.mxu0
      %v12340 = vadd.f32 %v10657, %v12339
      %v12341 = vpop.f32.mrf.mxu0
      %v12342 = vadd.f32 %v10653, %v12341
      %v12343 = vpop.f32.mrf.mxu0
      %v12344 = vadd.f32 %v10657, %v12343
      %12345 = vmatprep.mubr.bf16.mxu0 %v7627
      %12346 = vmatmul.mubr.bf16.gmra.mxu0 %v7626
      %v12347 = vpop.f32.mrf.mxu0
      %v12348 = vadd.f32 %v10653, %v12347
      %v12349 = vpop.f32.mrf.mxu0
      %v12350 = vadd.f32 %v10657, %v12349
      %v12351 = vpop.f32.mrf.mxu0
      %v12352 = vadd.f32 %v10653, %v12351
      %v12353 = vpop.f32.mrf.mxu0
      %v12354 = vadd.f32 %v10657, %v12353
      %12355 = vmatprep.mubr.bf16.mxu0 %v7631
      %12356 = vmatmul.mubr.bf16.gmra.mxu0 %v7630
      %v12357 = vpop.f32.mrf.mxu0
      %v12358 = vadd.f32 %v10653, %v12357
      %v12359 = vpop.f32.mrf.mxu0
      %v12360 = vadd.f32 %v10657, %v12359
      %v12361 = vpop.f32.mrf.mxu0
      %v12362 = vadd.f32 %v10653, %v12361
      %v12363 = vpop.f32.mrf.mxu0
      %v12364 = vadd.f32 %v10657, %v12363
      %12365 = vmatprep.mubr.bf16.mxu0 %v7635
      %12366 = vmatmul.mubr.bf16.gmra.mxu0 %v7634
      %v12367 = vpop.f32.mrf.mxu0
      %v12368 = vadd.f32 %v10653, %v12367
      %v12369 = vpop.f32.mrf.mxu0
      %v12370 = vadd.f32 %v10657, %v12369
      %v12371 = vpop.f32.mrf.mxu0
      %v12372 = vadd.f32 %v10653, %v12371
      %v12373 = vpop.f32.mrf.mxu0
      %v12374 = vadd.f32 %v10657, %v12373
      %12375 = vmatprep.mubr.bf16.mxu0 %v7639
      %12376 = vmatmul.mubr.bf16.gmra.mxu0 %v7638
      %v12377 = vpop.f32.mrf.mxu0
      %v12378 = vadd.f32 %v10653, %v12377
      %v12379 = vpop.f32.mrf.mxu0
      %v12380 = vadd.f32 %v10657, %v12379
      %v12381 = vpop.f32.mrf.mxu0
      %v12382 = vadd.f32 %v10653, %v12381
      %v12383 = vpop.f32.mrf.mxu0
      %v12384 = vadd.f32 %v10657, %v12383
      %12385 = vdwg.mxu0
      %12386 = vmatprep.subr.bf16.mxu0 %v11539
      %12387 = vmatpush1.bf16.msra.mxu0 %v11538
      %12388 = vmatprep.subr.bf16.mxu0 %v11532
      %12389 = vmatpush1.bf16.msra.mxu0 %v11531
      %12390 = vmatprep.subr.bf16.mxu0 %v11525
      %12391 = vmatpush1.bf16.msra.mxu0 %v11524
      %12392 = vmatprep.subr.bf16.mxu0 %v11518
      %12393 = vmatpush1.bf16.msra.mxu0 %v11517
      %12394 = vmatprep.subr.bf16.mxu0 %v11511
      %12395 = vmatpush1.bf16.msra.mxu0 %v11510
      %12396 = vmatprep.subr.bf16.mxu0 %v11504
      %12397 = vmatpush1.bf16.msra.mxu0 %v11503
      %12398 = vmatprep.subr.bf16.mxu0 %v11497
      %12399 = vmatpush1.bf16.msra.mxu0 %v11496
      %12400 = vmatprep.subr.bf16.mxu0 %v11490
      %12401 = vmatpush1.bf16.msra.mxu0 %v11489
      %12402 = vmatprep.subr.bf16.mxu0 %v11595
      %12403 = vmatpush2.bf16.msra.mxu0 %v11594
      %12404 = vmatprep.subr.bf16.mxu0 %v11588
      %12405 = vmatpush2.bf16.msra.mxu0 %v11587
      %12406 = vmatprep.subr.bf16.mxu0 %v11581
      %12407 = vmatpush2.bf16.msra.mxu0 %v11580
      %12408 = vmatprep.subr.bf16.mxu0 %v11574
      %12409 = vmatpush2.bf16.msra.mxu0 %v11573
      %12410 = vmatprep.subr.bf16.mxu0 %v11567
      %12411 = vmatpush2.bf16.msra.mxu0 %v11566
      %12412 = vmatprep.subr.bf16.mxu0 %v11560
      %12413 = vmatpush2.bf16.msra.mxu0 %v11559
      %12414 = vmatprep.subr.bf16.mxu0 %v11553
      %12415 = vmatpush2.bf16.msra.mxu0 %v11552
      %12416 = vmatprep.subr.bf16.mxu0 %v11546
      %12417 = vmatpush2.bf16.msra.mxu0 %v11545
      %12418 = vmatprep.mubr.bf16.mxu0 %v7613
      %12419 = vmatmul.mubr.bf16.gmra.mxu0 %v7612
      %v12420 = vpop.f32.mrf.mxu0
      %v12421 = vadd.f32 %v12308, %v12420
      %v12422 = vpop.f32.mrf.mxu0
      %v12423 = vadd.f32 %v12310, %v12422
      %v12424 = vpop.f32.mrf.mxu0
      %v12425 = vadd.f32 %v12312, %v12424
      %v12426 = vpop.f32.mrf.mxu0
      %v12427 = vadd.f32 %v12314, %v12426
      %12428 = vmatprep.mubr.bf16.mxu0 %v7617
      %12429 = vmatmul.mubr.bf16.gmra.mxu0 %v7616
      %v12430 = vpop.f32.mrf.mxu0
      %v12431 = vadd.f32 %v12318, %v12430
      %v12432 = vpop.f32.mrf.mxu0
      %v12433 = vadd.f32 %v12320, %v12432
      %v12434 = vpop.f32.mrf.mxu0
      %v12435 = vadd.f32 %v12322, %v12434
      %v12436 = vpop.f32.mrf.mxu0
      %v12437 = vadd.f32 %v12324, %v12436
      %12438 = vmatprep.mubr.bf16.mxu0 %v7621
      %12439 = vmatmul.mubr.bf16.gmra.mxu0 %v7620
      %v12440 = vpop.f32.mrf.mxu0
      %v12441 = vadd.f32 %v12328, %v12440
      %v12442 = vpop.f32.mrf.mxu0
      %v12443 = vadd.f32 %v12330, %v12442
      %v12444 = vpop.f32.mrf.mxu0
      %v12445 = vadd.f32 %v12332, %v12444
      %v12446 = vpop.f32.mrf.mxu0
      %v12447 = vadd.f32 %v12334, %v12446
      %12448 = vmatprep.mubr.bf16.mxu0 %v7625
      %12449 = vmatmul.mubr.bf16.gmra.mxu0 %v7624
      %v12450 = vpop.f32.mrf.mxu0
      %v12451 = vadd.f32 %v12338, %v12450
      %v12452 = vpop.f32.mrf.mxu0
      %v12453 = vadd.f32 %v12340, %v12452
      %v12454 = vpop.f32.mrf.mxu0
      %v12455 = vadd.f32 %v12342, %v12454
      %v12456 = vpop.f32.mrf.mxu0
      %v12457 = vadd.f32 %v12344, %v12456
      %12458 = vmatprep.mubr.bf16.mxu0 %v7629
      %12459 = vmatmul.mubr.bf16.gmra.mxu0 %v7628
      %v12460 = vpop.f32.mrf.mxu0
      %v12461 = vadd.f32 %v12348, %v12460
      %v12462 = vpop.f32.mrf.mxu0
      %v12463 = vadd.f32 %v12350, %v12462
      %v12464 = vpop.f32.mrf.mxu0
      %v12465 = vadd.f32 %v12352, %v12464
      %v12466 = vpop.f32.mrf.mxu0
      %v12467 = vadd.f32 %v12354, %v12466
      %12468 = vmatprep.mubr.bf16.mxu0 %v7633
      %12469 = vmatmul.mubr.bf16.gmra.mxu0 %v7632
      %v12470 = vpop.f32.mrf.mxu0
      %v12471 = vadd.f32 %v12358, %v12470
      %v12472 = vpop.f32.mrf.mxu0
      %v12473 = vadd.f32 %v12360, %v12472
      %v12474 = vpop.f32.mrf.mxu0
      %v12475 = vadd.f32 %v12362, %v12474
      %v12476 = vpop.f32.mrf.mxu0
      %v12477 = vadd.f32 %v12364, %v12476
      %12478 = vmatprep.mubr.bf16.mxu0 %v7637
      %12479 = vmatmul.mubr.bf16.gmra.mxu0 %v7636
      %v12480 = vpop.f32.mrf.mxu0
      %v12481 = vadd.f32 %v12368, %v12480
      %v12482 = vpop.f32.mrf.mxu0
      %v12483 = vadd.f32 %v12370, %v12482
      %v12484 = vpop.f32.mrf.mxu0
      %v12485 = vadd.f32 %v12372, %v12484
      %v12486 = vpop.f32.mrf.mxu0
      %v12487 = vadd.f32 %v12374, %v12486
      %12488 = vmatprep.mubr.bf16.mxu0 %v7641
      %12489 = vmatmul.mubr.bf16.gmra.mxu0 %v7640
      %v12490 = vpop.f32.mrf.mxu0
      %v12491 = vadd.f32 %v12378, %v12490
      %v12492 = vpop.f32.mrf.mxu0
      %v12493 = vadd.f32 %v12380, %v12492
      %v12494 = vpop.f32.mrf.mxu0
      %v12495 = vadd.f32 %v12382, %v12494
      %v12496 = vpop.f32.mrf.mxu0
      %v12497 = vadd.f32 %v12384, %v12496
      %12498 = vdwg.mxu0
      %12499 = vmatprep.subr.bf16.mxu0 0
      %12500 = vmatpush1.bf16.msra.mxu0 %v11428
      %12501 = vmatprep.subr.bf16.mxu0 0
      %12502 = vmatpush1.bf16.msra.mxu0 %v11421
      %12503 = vmatprep.subr.bf16.mxu0 0
      %12504 = vmatpush1.bf16.msra.mxu0 %v11414
      %12505 = vmatprep.subr.bf16.mxu0 0
      %12506 = vmatpush1.bf16.msra.mxu0 %v11407
      %12507 = vmatprep.subr.bf16.mxu0 0
      %12508 = vmatpush1.bf16.msra.mxu0 %v11400
      %12509 = vmatprep.subr.bf16.mxu0 0
      %12510 = vmatpush1.bf16.msra.mxu0 %v11393
      %12511 = vmatprep.subr.bf16.mxu0 0
      %12512 = vmatpush1.bf16.msra.mxu0 %v11386
      %12513 = vmatprep.subr.bf16.mxu0 0
      %12514 = vmatpush1.bf16.msra.mxu0 %v11379
      %12515 = vmatprep.subr.bf16.mxu0 0
      %12516 = vmatpush2.bf16.msra.mxu0 %v11484
      %12517 = vmatprep.subr.bf16.mxu0 0
      %12518 = vmatpush2.bf16.msra.mxu0 %v11477
      %12519 = vmatprep.subr.bf16.mxu0 0
      %12520 = vmatpush2.bf16.msra.mxu0 %v11470
      %12521 = vmatprep.subr.bf16.mxu0 0
      %12522 = vmatpush2.bf16.msra.mxu0 %v11463
      %12523 = vmatprep.subr.bf16.mxu0 0
      %12524 = vmatpush2.bf16.msra.mxu0 %v11456
      %12525 = vmatprep.subr.bf16.mxu0 0
      %12526 = vmatpush2.bf16.msra.mxu0 %v11449
      %12527 = vmatprep.subr.bf16.mxu0 0
      %12528 = vmatpush2.bf16.msra.mxu0 %v11442
      %12529 = vmatprep.subr.bf16.mxu0 0
      %12530 = vmatpush2.bf16.msra.mxu0 %v11435
      %12531 = vmatprep.mubr.bf16.mxu0 %v7611
      %12532 = vmatmul.mubr.bf16.gmra.mxu0 %v7610
      %v12533 = vpop.f32.mrf.mxu0
      %v12534 = vadd.f32 %v10661, %v12533
      %v12535 = vpop.f32.mrf.mxu0
      %v12536 = vpop.f32.mrf.mxu0
      %v12537 = vadd.f32 %v10661, %v12536
      %v12538 = vpop.f32.mrf.mxu0
      %12539 = vmatprep.mubr.bf16.mxu0 %v7615
      %12540 = vmatmul.mubr.bf16.gmra.mxu0 %v7614
      %v12541 = vpop.f32.mrf.mxu0
      %v12542 = vadd.f32 %v10661, %v12541
      %v12543 = vpop.f32.mrf.mxu0
      %v12544 = vpop.f32.mrf.mxu0
      %v12545 = vadd.f32 %v10661, %v12544
      %v12546 = vpop.f32.mrf.mxu0
      %12547 = vmatprep.mubr.bf16.mxu0 %v7619
      %12548 = vmatmul.mubr.bf16.gmra.mxu0 %v7618
      %v12549 = vpop.f32.mrf.mxu0
      %v12550 = vadd.f32 %v10661, %v12549
      %v12551 = vpop.f32.mrf.mxu0
      %v12552 = vpop.f32.mrf.mxu0
      %v12553 = vadd.f32 %v10661, %v12552
      %v12554 = vpop.f32.mrf.mxu0
      %12555 = vmatprep.mubr.bf16.mxu0 %v7623
      %12556 = vmatmul.mubr.bf16.gmra.mxu0 %v7622
      %v12557 = vpop.f32.mrf.mxu0
      %v12558 = vadd.f32 %v10661, %v12557
      %v12559 = vpop.f32.mrf.mxu0
      %v12560 = vpop.f32.mrf.mxu0
      %v12561 = vadd.f32 %v10661, %v12560
      %v12562 = vpop.f32.mrf.mxu0
      %12563 = vmatprep.mubr.bf16.mxu0 %v7627
      %12564 = vmatmul.mubr.bf16.gmra.mxu0 %v7626
      %v12565 = vpop.f32.mrf.mxu0
      %v12566 = vadd.f32 %v10661, %v12565
      %v12567 = vpop.f32.mrf.mxu0
      %v12568 = vpop.f32.mrf.mxu0
      %v12569 = vadd.f32 %v10661, %v12568
      %v12570 = vpop.f32.mrf.mxu0
      %12571 = vmatprep.mubr.bf16.mxu0 %v7631
      %12572 = vmatmul.mubr.bf16.gmra.mxu0 %v7630
      %v12573 = vpop.f32.mrf.mxu0
      %v12574 = vadd.f32 %v10661, %v12573
      %v12575 = vpop.f32.mrf.mxu0
      %v12576 = vpop.f32.mrf.mxu0
      %v12577 = vadd.f32 %v10661, %v12576
      %v12578 = vpop.f32.mrf.mxu0
      %12579 = vmatprep.mubr.bf16.mxu0 %v7635
      %12580 = vmatmul.mubr.bf16.gmra.mxu0 %v7634
      %v12581 = vpop.f32.mrf.mxu0
      %v12582 = vadd.f32 %v10661, %v12581
      %v12583 = vpop.f32.mrf.mxu0
      %v12584 = vpop.f32.mrf.mxu0
      %v12585 = vadd.f32 %v10661, %v12584
      %v12586 = vpop.f32.mrf.mxu0
      %12587 = vmatprep.mubr.bf16.mxu0 %v7639
      %12588 = vmatmul.mubr.bf16.gmra.mxu0 %v7638
      %v12589 = vpop.f32.mrf.mxu0
      %v12590 = vadd.f32 %v10661, %v12589
      %v12591 = vpop.f32.mrf.mxu0
      %v12592 = vpop.f32.mrf.mxu0
      %v12593 = vadd.f32 %v10661, %v12592
      %v12594 = vpop.f32.mrf.mxu0
      %12595 = vdwg.mxu0
      %12596 = vmatprep.subr.bf16.mxu0 0
      %12597 = vmatpush1.bf16.msra.mxu0 %v11540
      %12598 = vmatprep.subr.bf16.mxu0 0
      %12599 = vmatpush1.bf16.msra.mxu0 %v11533
      %12600 = vmatprep.subr.bf16.mxu0 0
      %12601 = vmatpush1.bf16.msra.mxu0 %v11526
      %12602 = vmatprep.subr.bf16.mxu0 0
      %12603 = vmatpush1.bf16.msra.mxu0 %v11519
      %12604 = vmatprep.subr.bf16.mxu0 0
      %12605 = vmatpush1.bf16.msra.mxu0 %v11512
      %12606 = vmatprep.subr.bf16.mxu0 0
      %12607 = vmatpush1.bf16.msra.mxu0 %v11505
      %12608 = vmatprep.subr.bf16.mxu0 0
      %12609 = vmatpush1.bf16.msra.mxu0 %v11498
      %12610 = vmatprep.subr.bf16.mxu0 0
      %12611 = vmatpush1.bf16.msra.mxu0 %v11491
      %12612 = vmatprep.subr.bf16.mxu0 0
      %12613 = vmatpush2.bf16.msra.mxu0 %v11596
      %12614 = vmatprep.subr.bf16.mxu0 0
      %12615 = vmatpush2.bf16.msra.mxu0 %v11589
      %12616 = vmatprep.subr.bf16.mxu0 0
      %12617 = vmatpush2.bf16.msra.mxu0 %v11582
      %12618 = vmatprep.subr.bf16.mxu0 0
      %12619 = vmatpush2.bf16.msra.mxu0 %v11575
      %12620 = vmatprep.subr.bf16.mxu0 0
      %12621 = vmatpush2.bf16.msra.mxu0 %v11568
      %12622 = vmatprep.subr.bf16.mxu0 0
      %12623 = vmatpush2.bf16.msra.mxu0 %v11561
      %12624 = vmatprep.subr.bf16.mxu0 0
      %12625 = vmatpush2.bf16.msra.mxu0 %v11554
      %12626 = vmatprep.subr.bf16.mxu0 0
      %12627 = vmatpush2.bf16.msra.mxu0 %v11547
      %12628 = vmatprep.mubr.bf16.mxu0 %v7613
      %12629 = vmatmul.mubr.bf16.gmra.mxu0 %v7612
      %v12630 = vpop.f32.mrf.mxu0
      %v12631 = vadd.f32 %v12534, %v12630
      %v12632 = vpop.f32.mrf.mxu0
      %v12633 = vpop.f32.mrf.mxu0
      %v12634 = vadd.f32 %v12537, %v12633
      %v12635 = vpop.f32.mrf.mxu0
      %12636 = vmatprep.mubr.bf16.mxu0 %v7617
      %12637 = vmatmul.mubr.bf16.gmra.mxu0 %v7616
      %v12638 = vpop.f32.mrf.mxu0
      %v12639 = vadd.f32 %v12542, %v12638
      %v12640 = vpop.f32.mrf.mxu0
      %v12641 = vpop.f32.mrf.mxu0
      %v12642 = vadd.f32 %v12545, %v12641
      %v12643 = vpop.f32.mrf.mxu0
      %12644 = vmatprep.mubr.bf16.mxu0 %v7621
      %12645 = vmatmul.mubr.bf16.gmra.mxu0 %v7620
      %v12646 = vpop.f32.mrf.mxu0
      %v12647 = vadd.f32 %v12550, %v12646
      %v12648 = vpop.f32.mrf.mxu0
      %v12649 = vpop.f32.mrf.mxu0
      %v12650 = vadd.f32 %v12553, %v12649
      %v12651 = vpop.f32.mrf.mxu0
      %12652 = vmatprep.mubr.bf16.mxu0 %v7625
      %12653 = vmatmul.mubr.bf16.gmra.mxu0 %v7624
      %v12654 = vpop.f32.mrf.mxu0
      %v12655 = vadd.f32 %v12558, %v12654
      %v12656 = vpop.f32.mrf.mxu0
      %v12657 = vpop.f32.mrf.mxu0
      %v12658 = vadd.f32 %v12561, %v12657
      %v12659 = vpop.f32.mrf.mxu0
      %12660 = vmatprep.mubr.bf16.mxu0 %v7629
      %12661 = vmatmul.mubr.bf16.gmra.mxu0 %v7628
      %v12662 = vpop.f32.mrf.mxu0
      %v12663 = vadd.f32 %v12566, %v12662
      %v12664 = vpop.f32.mrf.mxu0
      %v12665 = vpop.f32.mrf.mxu0
      %v12666 = vadd.f32 %v12569, %v12665
      %v12667 = vpop.f32.mrf.mxu0
      %12668 = vmatprep.mubr.bf16.mxu0 %v7633
      %12669 = vmatmul.mubr.bf16.gmra.mxu0 %v7632
      %v12670 = vpop.f32.mrf.mxu0
      %v12671 = vadd.f32 %v12574, %v12670
      %v12672 = vpop.f32.mrf.mxu0
      %v12673 = vpop.f32.mrf.mxu0
      %v12674 = vadd.f32 %v12577, %v12673
      %v12675 = vpop.f32.mrf.mxu0
      %12676 = vmatprep.mubr.bf16.mxu0 %v7637
      %12677 = vmatmul.mubr.bf16.gmra.mxu0 %v7636
      %v12678 = vpop.f32.mrf.mxu0
      %v12679 = vadd.f32 %v12582, %v12678
      %v12680 = vpop.f32.mrf.mxu0
      %v12681 = vpop.f32.mrf.mxu0
      %v12682 = vadd.f32 %v12585, %v12681
      %v12683 = vpop.f32.mrf.mxu0
      %12684 = vmatprep.mubr.bf16.mxu0 %v7641
      %12685 = vmatmul.mubr.bf16.gmra.mxu0 %v7640
      %v12686 = vpop.f32.mrf.mxu0
      %v12687 = vadd.f32 %v12590, %v12686
      %v12688 = vpop.f32.mrf.mxu0
      %v12689 = vpop.f32.mrf.mxu0
      %v12690 = vadd.f32 %v12593, %v12689
      %v12691 = vpop.f32.mrf.mxu0
      %12692 = vdwg.mxu0
      %v12693 = vpack.c.bf16 %v11973, %v11969
      %v12694 = vpack.c.bf16 %v11975, %v11971
      %v12695 = vpack.c.bf16 %v12199, %v12195
      %v12696 = vpack.c.bf16 %v12201, %v12197
      %v12697 = vpack.c.bf16 %v12425, %v12421
      %v12698 = vpack.c.bf16 %v12427, %v12423
      %v12699 = vpack.c.bf16 %v12634, %v12631
      %v12700 = vpack.c.bf16 %v11983, %v11979
      %v12701 = vpack.c.bf16 %v11985, %v11981
      %v12702 = vpack.c.bf16 %v12209, %v12205
      %v12703 = vpack.c.bf16 %v12211, %v12207
      %v12704 = vpack.c.bf16 %v12435, %v12431
      %v12705 = vpack.c.bf16 %v12437, %v12433
      %v12706 = vpack.c.bf16 %v12642, %v12639
      %v12707 = vpack.c.bf16 %v11993, %v11989
      %v12708 = vpack.c.bf16 %v11995, %v11991
      %v12709 = vpack.c.bf16 %v12219, %v12215
      %v12710 = vpack.c.bf16 %v12221, %v12217
      %v12711 = vpack.c.bf16 %v12445, %v12441
      %v12712 = vpack.c.bf16 %v12447, %v12443
      %v12713 = vpack.c.bf16 %v12650, %v12647
      %v12714 = vpack.c.bf16 %v12003, %v11999
      %v12715 = vpack.c.bf16 %v12005, %v12001
      %v12716 = vpack.c.bf16 %v12229, %v12225
      %v12717 = vpack.c.bf16 %v12231, %v12227
      %v12718 = vpack.c.bf16 %v12455, %v12451
      %v12719 = vpack.c.bf16 %v12457, %v12453
      %v12720 = vpack.c.bf16 %v12658, %v12655
      %v12721 = vpack.c.bf16 %v12013, %v12009
      %v12722 = vpack.c.bf16 %v12015, %v12011
      %v12723 = vpack.c.bf16 %v12239, %v12235
      %v12724 = vpack.c.bf16 %v12241, %v12237
      %v12725 = vpack.c.bf16 %v12465, %v12461
      %v12726 = vpack.c.bf16 %v12467, %v12463
      %v12727 = vpack.c.bf16 %v12666, %v12663
      %v12728 = vpack.c.bf16 %v12023, %v12019
      %v12729 = vpack.c.bf16 %v12025, %v12021
      %v12730 = vpack.c.bf16 %v12249, %v12245
      %v12731 = vpack.c.bf16 %v12251, %v12247
      %v12732 = vpack.c.bf16 %v12475, %v12471
      %v12733 = vpack.c.bf16 %v12477, %v12473
      %v12734 = vpack.c.bf16 %v12674, %v12671
      %v12735 = vpack.c.bf16 %v12033, %v12029
      %v12736 = vpack.c.bf16 %v12035, %v12031
      %v12737 = vpack.c.bf16 %v12259, %v12255
      %v12738 = vpack.c.bf16 %v12261, %v12257
      %v12739 = vpack.c.bf16 %v12485, %v12481
      %v12740 = vpack.c.bf16 %v12487, %v12483
      %v12741 = vpack.c.bf16 %v12682, %v12679
      %v12742 = vpack.c.bf16 %v12043, %v12039
      %v12743 = vpack.c.bf16 %v12045, %v12041
      %v12744 = vpack.c.bf16 %v12269, %v12265
      %v12745 = vpack.c.bf16 %v12271, %v12267
      %v12746 = vpack.c.bf16 %v12495, %v12491
      %v12747 = vpack.c.bf16 %v12497, %v12493
      %v12748 = vpack.c.bf16 %v12690, %v12687
      %v12805 = vunpack.c.l.b16 %v12693
      %v12806 = vunpack.c.l.b16 %v12694
      %v12807 = vunpack.c.l.b16 %v12695
      %v12808 = vunpack.c.l.b16 %v12696
      %v12809 = vunpack.c.l.b16 %v12697
      %v12810 = vunpack.c.l.b16 %v12698
      %v12811 = vunpack.c.l.b16 %v12699
      %v12812 = vunpack.c.h.b16 %v12693
      %v12813 = vunpack.c.h.b16 %v12694
      %v12814 = vunpack.c.h.b16 %v12695
      %v12815 = vunpack.c.h.b16 %v12696
      %v12816 = vunpack.c.h.b16 %v12697
      %v12817 = vunpack.c.h.b16 %v12698
      %v12818 = vunpack.c.h.b16 %v12699
      %v12819 = vunpack.c.l.b16 %v12700
      %v12820 = vunpack.c.l.b16 %v12701
      %v12821 = vunpack.c.l.b16 %v12702
      %v12822 = vunpack.c.l.b16 %v12703
      %v12823 = vunpack.c.l.b16 %v12704
      %v12824 = vunpack.c.l.b16 %v12705
      %v12825 = vunpack.c.l.b16 %v12706
      %v12826 = vunpack.c.h.b16 %v12700
      %v12827 = vunpack.c.h.b16 %v12701
      %v12828 = vunpack.c.h.b16 %v12702
      %v12829 = vunpack.c.h.b16 %v12703
      %v12830 = vunpack.c.h.b16 %v12704
      %v12831 = vunpack.c.h.b16 %v12705
      %v12832 = vunpack.c.h.b16 %v12706
      %v12833 = vunpack.c.l.b16 %v12707
      %v12834 = vunpack.c.l.b16 %v12708
      %v12835 = vunpack.c.l.b16 %v12709
      %v12836 = vunpack.c.l.b16 %v12710
      %v12837 = vunpack.c.l.b16 %v12711
      %v12838 = vunpack.c.l.b16 %v12712
      %v12839 = vunpack.c.l.b16 %v12713
      %v12840 = vunpack.c.h.b16 %v12707
      %v12841 = vunpack.c.h.b16 %v12708
      %v12842 = vunpack.c.h.b16 %v12709
      %v12843 = vunpack.c.h.b16 %v12710
      %v12844 = vunpack.c.h.b16 %v12711
      %v12845 = vunpack.c.h.b16 %v12712
      %v12846 = vunpack.c.h.b16 %v12713
      %v12847 = vunpack.c.l.b16 %v12714
      %v12848 = vunpack.c.l.b16 %v12715
      %v12849 = vunpack.c.l.b16 %v12716
      %v12850 = vunpack.c.l.b16 %v12717
      %v12851 = vunpack.c.l.b16 %v12718
      %v12852 = vunpack.c.l.b16 %v12719
      %v12853 = vunpack.c.l.b16 %v12720
      %v12854 = vunpack.c.h.b16 %v12714
      %v12855 = vunpack.c.h.b16 %v12715
      %v12856 = vunpack.c.h.b16 %v12716
      %v12857 = vunpack.c.h.b16 %v12717
      %v12858 = vunpack.c.h.b16 %v12718
      %v12859 = vunpack.c.h.b16 %v12719
      %v12860 = vunpack.c.h.b16 %v12720
      %v12861 = vunpack.c.l.b16 %v12721
      %v12862 = vunpack.c.l.b16 %v12722
      %v12863 = vunpack.c.l.b16 %v12723
      %v12864 = vunpack.c.l.b16 %v12724
      %v12865 = vunpack.c.l.b16 %v12725
      %v12866 = vunpack.c.l.b16 %v12726
      %v12867 = vunpack.c.l.b16 %v12727
      %v12868 = vunpack.c.h.b16 %v12721
      %v12869 = vunpack.c.h.b16 %v12722
      %v12870 = vunpack.c.h.b16 %v12723
      %v12871 = vunpack.c.h.b16 %v12724
      %v12872 = vunpack.c.h.b16 %v12725
      %v12873 = vunpack.c.h.b16 %v12726
      %v12874 = vunpack.c.h.b16 %v12727
      %v12875 = vunpack.c.l.b16 %v12728
      %v12876 = vunpack.c.l.b16 %v12729
      %v12877 = vunpack.c.l.b16 %v12730
      %v12878 = vunpack.c.l.b16 %v12731
      %v12879 = vunpack.c.l.b16 %v12732
      %v12880 = vunpack.c.l.b16 %v12733
      %v12881 = vunpack.c.l.b16 %v12734
      %v12882 = vunpack.c.h.b16 %v12728
      %v12883 = vunpack.c.h.b16 %v12729
      %v12884 = vunpack.c.h.b16 %v12730
      %v12885 = vunpack.c.h.b16 %v12731
      %v12886 = vunpack.c.h.b16 %v12732
      %v12887 = vunpack.c.h.b16 %v12733
      %v12888 = vunpack.c.h.b16 %v12734
      %v12889 = vunpack.c.l.b16 %v12735
      %v12890 = vunpack.c.l.b16 %v12736
      %v12891 = vunpack.c.l.b16 %v12737
      %v12892 = vunpack.c.l.b16 %v12738
      %v12893 = vunpack.c.l.b16 %v12739
      %v12894 = vunpack.c.l.b16 %v12740
      %v12895 = vunpack.c.l.b16 %v12741
      %v12896 = vunpack.c.h.b16 %v12735
      %v12897 = vunpack.c.h.b16 %v12736
      %v12898 = vunpack.c.h.b16 %v12737
      %v12899 = vunpack.c.h.b16 %v12738
      %v12900 = vunpack.c.h.b16 %v12739
      %v12901 = vunpack.c.h.b16 %v12740
      %v12902 = vunpack.c.h.b16 %v12741
      %v12903 = vunpack.c.l.b16 %v12742
      %v12904 = vunpack.c.l.b16 %v12743
      %v12905 = vunpack.c.l.b16 %v12744
      %v12906 = vunpack.c.l.b16 %v12745
      %v12907 = vunpack.c.l.b16 %v12746
      %v12908 = vunpack.c.l.b16 %v12747
      %v12909 = vunpack.c.l.b16 %v12748
      %v12910 = vunpack.c.h.b16 %v12742
      %v12911 = vunpack.c.h.b16 %v12743
      %v12912 = vunpack.c.h.b16 %v12744
      %v12913 = vunpack.c.h.b16 %v12745
      %v12914 = vunpack.c.h.b16 %v12746
      %v12915 = vunpack.c.h.b16 %v12747
      %v12916 = vunpack.c.h.b16 %v12748
      %v12917 = vpack.c.b16 %v12806, %v12805
      %v12918 = vpack.c.b16 %v12808, %v12807
      %v12919 = vpack.c.b16 %v12810, %v12809
      %v12920 = vpack.c.b16 %v12811, %v12811
      %v12921 = vpack.c.b16 %v12813, %v12812
      %v12922 = vpack.c.b16 %v12815, %v12814
      %v12923 = vpack.c.b16 %v12817, %v12816
      %v12924 = vpack.c.b16 %v12818, %v12818
      %v12925 = vpack.c.b16 %v12820, %v12819
      %v12926 = vpack.c.b16 %v12822, %v12821
      %v12927 = vpack.c.b16 %v12824, %v12823
      %v12928 = vpack.c.b16 %v12825, %v12825
      %v12929 = vpack.c.b16 %v12827, %v12826
      %v12930 = vpack.c.b16 %v12829, %v12828
      %v12931 = vpack.c.b16 %v12831, %v12830
      %v12932 = vpack.c.b16 %v12832, %v12832
      %v12933 = vpack.c.b16 %v12834, %v12833
      %v12934 = vpack.c.b16 %v12836, %v12835
      %v12935 = vpack.c.b16 %v12838, %v12837
      %v12936 = vpack.c.b16 %v12839, %v12839
      %v12937 = vpack.c.b16 %v12841, %v12840
      %v12938 = vpack.c.b16 %v12843, %v12842
      %v12939 = vpack.c.b16 %v12845, %v12844
      %v12940 = vpack.c.b16 %v12846, %v12846
      %v12941 = vpack.c.b16 %v12848, %v12847
      %v12942 = vpack.c.b16 %v12850, %v12849
      %v12943 = vpack.c.b16 %v12852, %v12851
      %v12944 = vpack.c.b16 %v12853, %v12853
      %v12945 = vpack.c.b16 %v12855, %v12854
      %v12946 = vpack.c.b16 %v12857, %v12856
      %v12947 = vpack.c.b16 %v12859, %v12858
      %v12948 = vpack.c.b16 %v12860, %v12860
      %v12949 = vpack.c.b16 %v12862, %v12861
      %v12950 = vpack.c.b16 %v12864, %v12863
      %v12951 = vpack.c.b16 %v12866, %v12865
      %v12952 = vpack.c.b16 %v12867, %v12867
      %v12953 = vpack.c.b16 %v12869, %v12868
      %v12954 = vpack.c.b16 %v12871, %v12870
      %v12955 = vpack.c.b16 %v12873, %v12872
      %v12956 = vpack.c.b16 %v12874, %v12874
      %v12957 = vpack.c.b16 %v12876, %v12875
      %v12958 = vpack.c.b16 %v12878, %v12877
      %v12959 = vpack.c.b16 %v12880, %v12879
      %v12960 = vpack.c.b16 %v12881, %v12881
      %v12961 = vpack.c.b16 %v12883, %v12882
      %v12962 = vpack.c.b16 %v12885, %v12884
      %v12963 = vpack.c.b16 %v12887, %v12886
      %v12964 = vpack.c.b16 %v12888, %v12888
      %v12965 = vpack.c.b16 %v12890, %v12889
      %v12966 = vpack.c.b16 %v12892, %v12891
      %v12967 = vpack.c.b16 %v12894, %v12893
      %v12968 = vpack.c.b16 %v12895, %v12895
      %v12969 = vpack.c.b16 %v12897, %v12896
      %v12970 = vpack.c.b16 %v12899, %v12898
      %v12971 = vpack.c.b16 %v12901, %v12900
      %v12972 = vpack.c.b16 %v12902, %v12902
      %v12973 = vpack.c.b16 %v12904, %v12903
      %v12974 = vpack.c.b16 %v12906, %v12905
      %v12975 = vpack.c.b16 %v12908, %v12907
      %v12976 = vpack.c.b16 %v12909, %v12909
      %v12977 = vpack.c.b16 %v12911, %v12910
      %v12978 = vpack.c.b16 %v12913, %v12912
      %v12979 = vpack.c.b16 %v12915, %v12914
      %v12980 = vpack.c.b16 %v12916, %v12916
      %13045 = vst [vmem:[%s590 + $0x1c0] sm:$0xff] %v12917
      %13046 = vst [vmem:[%s590 + $0x1c8] sm:$0xff] %v12918
      %13047 = vst [vmem:[%s590 + $0x1d0] sm:$0xff] %v12919
      %13048 = vst.msk [vmem:[%s590 + $0x1d8] sm:$0xf] %vm10314, %v12920
      %13049 = vst [vmem:[%s590 + $0x1dc] sm:$0xff] %v12921
      %13050 = vst [vmem:[%s590 + $0x1e4] sm:$0xff] %v12922
      %13051 = vst [vmem:[%s590 + $0x1ec] sm:$0xff] %v12923
      %13052 = vst.msk [vmem:[%s590 + $0x1f4] sm:$0xf] %vm10314, %v12924
      %13053 = vst [vmem:[%s590 + $0x1f8] sm:$0xff] %v12925
      %13054 = vst [vmem:[%s590 + $0x200] sm:$0xff] %v12926
      %13055 = vst [vmem:[%s590 + $0x208] sm:$0xff] %v12927
      %13056 = vst.msk [vmem:[%s590 + $0x210] sm:$0xf] %vm10314, %v12928
      %13057 = vst [vmem:[%s590 + $0x214] sm:$0xff] %v12929
      %13058 = vst [vmem:[%s590 + $0x21c] sm:$0xff] %v12930
      %13059 = vst [vmem:[%s590 + $0x224] sm:$0xff] %v12931
      %13060 = vst.msk [vmem:[%s590 + $0x22c] sm:$0xf] %vm10314, %v12932
      %13061 = vst [vmem:[%s590 + $0x230] sm:$0xff] %v12933
      %13062 = vst [vmem:[%s590 + $0x238] sm:$0xff] %v12934
      %13063 = vst [vmem:[%s590 + $0x240] sm:$0xff] %v12935
      %13064 = vst.msk [vmem:[%s590 + $0x248] sm:$0xf] %vm10314, %v12936
      %13065 = vst [vmem:[%s590 + $0x24c] sm:$0xff] %v12937
      %13066 = vst [vmem:[%s590 + $0x254] sm:$0xff] %v12938
      %13067 = vst [vmem:[%s590 + $0x25c] sm:$0xff] %v12939
      %13068 = vst.msk [vmem:[%s590 + $0x264] sm:$0xf] %vm10314, %v12940
      %13069 = vst [vmem:[%s590 + $0x268] sm:$0xff] %v12941
      %13070 = vst [vmem:[%s590 + $0x270] sm:$0xff] %v12942
      %13071 = vst [vmem:[%s590 + $0x278] sm:$0xff] %v12943
      %13072 = vst.msk [vmem:[%s590 + $0x280] sm:$0xf] %vm10314, %v12944
      %13073 = vst [vmem:[%s590 + $0x284] sm:$0xff] %v12945
      %13074 = vst [vmem:[%s590 + $0x28c] sm:$0xff] %v12946
      %13075 = vst [vmem:[%s590 + $0x294] sm:$0xff] %v12947
      %13076 = vst.msk [vmem:[%s590 + $0x29c] sm:$0xf] %vm10314, %v12948
      %13077 = vst [vmem:[%s590 + $0x2a0] sm:$0xff] %v12949
      %13078 = vst [vmem:[%s590 + $0x2a8] sm:$0xff] %v12950
      %13079 = vst [vmem:[%s590 + $0x2b0] sm:$0xff] %v12951
      %13080 = vst.msk [vmem:[%s590 + $0x2b8] sm:$0xf] %vm10314, %v12952
      %13081 = vst [vmem:[%s590 + $0x2bc] sm:$0xff] %v12953
      %13082 = vst [vmem:[%s590 + $0x2c4] sm:$0xff] %v12954
      %13083 = vst [vmem:[%s590 + $0x2cc] sm:$0xff] %v12955
      %13084 = vst.msk [vmem:[%s590 + $0x2d4] sm:$0xf] %vm10314, %v12956
      %13085 = vst [vmem:[%s590 + $0x2d8] sm:$0xff] %v12957
      %13086 = vst [vmem:[%s590 + $0x2e0] sm:$0xff] %v12958
      %13087 = vst [vmem:[%s590 + $0x2e8] sm:$0xff] %v12959
      %13088 = vst.msk [vmem:[%s590 + $0x2f0] sm:$0xf] %vm10314, %v12960
      %13089 = vst [vmem:[%s590 + $0x2f4] sm:$0xff] %v12961
      %13090 = vst [vmem:[%s590 + $0x2fc] sm:$0xff] %v12962
      %13091 = vst [vmem:[%s590 + $0x304] sm:$0xff] %v12963
      %13092 = vst.msk [vmem:[%s590 + $0x30c] sm:$0xf] %vm10314, %v12964
      %13093 = vst [vmem:[%s590 + $0x310] sm:$0xff] %v12965
      %13094 = vst [vmem:[%s590 + $0x318] sm:$0xff] %v12966
      %13095 = vst [vmem:[%s590 + $0x320] sm:$0xff] %v12967
      %13096 = vst.msk [vmem:[%s590 + $0x328] sm:$0xf] %vm10314, %v12968
      %13097 = vst [vmem:[%s590 + $0x32c] sm:$0xff] %v12969
      %13098 = vst [vmem:[%s590 + $0x334] sm:$0xff] %v12970
      %13099 = vst [vmem:[%s590 + $0x33c] sm:$0xff] %v12971
      %13100 = vst.msk [vmem:[%s590 + $0x344] sm:$0xf] %vm10314, %v12972
      %13101 = vst [vmem:[%s590 + $0x348] sm:$0xff] %v12973
      %13102 = vst [vmem:[%s590 + $0x350] sm:$0xff] %v12974
      %13103 = vst [vmem:[%s590 + $0x358] sm:$0xff] %v12975
      %13104 = vst.msk [vmem:[%s590 + $0x360] sm:$0xf] %vm10314, %v12976
      %13105 = vst [vmem:[%s590 + $0x364] sm:$0xff] %v12977
      %13106 = vst [vmem:[%s590 + $0x36c] sm:$0xff] %v12978
      %13107 = vst [vmem:[%s590 + $0x374] sm:$0xff] %v12979
      %13108 = vst.msk [vmem:[%s590 + $0x37c] sm:$0xf] %vm10314, %v12980
      %s13109 = smul.u32 32, %s30
      %p13110 = scmp.lt.s32.totalorder %s13109, 63
      %s13111 = scalar_select %p13110, %s13109, 63
      %s13112 = smul.addr %s13111, 7
      %s13113 = smul.addr %s13112, 4
      %s13114 = scalar_lea.vmem %s17, %s13113
      %s13115 = smul.u32 32, %s30
      %p13116 = scmp.lt.s32.totalorder %s13115, 63
      %s13117 = scalar_select %p13116, %s13115, 63
      %s13118 = smul.addr %s13117, 8
      %s13119 = scalar_lea.vmem %s18, %s13118
      // Predicated region
      $region89: #{bayesian_ae_forward.1} parent=87 // pred_check
        %p13120 = pneg %p410
      $region90: #{bayesian_ae_forward.1} parent=87 // pred_check_branch
        %13122 = sbr.rel (%p13120) target = $region92
      $region91: #{bayesian_ae_forward.1} parent=87 // pred_region
        %s13123 = smul.u32 32, %s30
      $region92: #{bayesian_ae_forward.1} parent=87 // pred_fallthru
        _
      // Predicated region
      $region93: #{bayesian_ae_forward.1} parent=87 // pred_check
        %p13124 = pneg %p436
      $region94: #{bayesian_ae_forward.1} parent=87 // pred_check_branch
        %13126 = sbr.rel (%p13124) target = $region96
      $region95: #{bayesian_ae_forward.1} parent=87 // pred_region
        %s13127 = smul.u32 32, %s30
      $region96: #{bayesian_ae_forward.1} parent=87 // pred_fallthru
        _
    $region88: #{bayesian_ae_forward.1} parent=5 // pred_fallthru
      _
    %p13128 = scmp.le.s32.totalorder 2, %s25
    // Predicated region
    $region97: #{bayesian_ae_forward.1} parent=5 // pred_check
      %p13129 = pneg %p13128
    $region98: #{bayesian_ae_forward.1} parent=5 // pred_check_branch
      %13131 = sbr.rel (%p13129) target = $region100
    $region99: #{bayesian_ae_forward.1} parent=5 // pred_region
      %s13132 = ssub.s32 %s25, 2
      // Predicated region
      $region101: #{bayesian_ae_forward.1} parent=99 // pred_check
        %p13133 = pneg %p416
      $region102: #{bayesian_ae_forward.1} parent=99 // pred_check_branch
        %13135 = sbr.rel (%p13133) target = $region104
      $region103: #{bayesian_ae_forward.1} parent=99 // pred_region
        %s13136 = smul.u32 32, %s31
        %p13137 = scmp.lt.s32.totalorder %s13136, 63
        %s13138 = scalar_select %p13137, %s13136, 63
        %s13139 = smul.addr %s13138, 7
        %s13140 = smul.addr %s13139, 4
        %s13141 = scalar_lea.vmem %s17, %s13140
      $region104: #{bayesian_ae_forward.1} parent=99 // pred_fallthru
        _
      // Predicated region
      $region105: #{bayesian_ae_forward.1} parent=99 // pred_check
        %p13142 = pneg %p442
      $region106: #{bayesian_ae_forward.1} parent=99 // pred_check_branch
        %13144 = sbr.rel (%p13142) target = $region108
      $region107: #{bayesian_ae_forward.1} parent=99 // pred_region
        %s13145 = smul.u32 32, %s31
        %p13146 = scmp.lt.s32.totalorder %s13145, 63
        %s13147 = scalar_select %p13146, %s13145, 63
        %s13148 = smul.addr %s13147, 8
        %s13149 = scalar_lea.vmem %s18, %s13148
      $region108: #{bayesian_ae_forward.1} parent=99 // pred_fallthru
        _
    $region100: #{bayesian_ae_forward.1} parent=5 // pred_fallthru
      _
  $region6: #{bayesian_ae_forward.1} parent=0 // loop_footer
    %s29 = sadd.s32 1, %s25
  $region7: #{bayesian_ae_forward.1} parent=0 // loop_footer_branch
    %24 = sbr.rel target = $region3
  $region8: #{bayesian_ae_forward.1} parent=0 // loop_exit
    _

</llo_original>
